<compile_context>
chip_gen: v5e
topology: v5e:2x2
jax: 0.10.0
libtpu: 0.0.40
codegen_flags: <defaults>
</compile_context>

<pallas_src>
import jax
import jax.numpy as jnp
from jax.experimental import pallas as pl
from jax.experimental.pallas import tpu as pltpu

_VMEM_LIMIT = 48 * 1024 * 1024   # below physical VMEM on v5e/v6e (128MiB) and v7x (64MiB)


# ---------------------------------------------------------------------------
# Fused conv3x3(valid, stride 1) + bias + ReLU + maxpool2x2(stride 2) kernel
# ---------------------------------------------------------------------------
def _conv3x3_relu_pool_kernel(x_ref, w_ref, b_ref, o_ref):
    """x_ref: (1,H,W,Cin)  w_ref: (3,3,Cin,Cout)  b_ref: (1,Cout)
       o_ref: (1,Hp,Wp,Cout) with Hp=(H-2)//2, Wp=(W-2)//2 (floor pool)."""
    _, h, w, cin = x_ref.shape
    _, hp, wp, cout = o_ref.shape
    ho, wo = h - 2, w - 2

    # 3x3 valid conv as 9 accumulated (Ho*Wo, Cin) @ (Cin, Cout) MXU matmuls;
    # im2col is fused in-kernel, nothing replicated in HBM.
    acc = jnp.zeros((ho * wo, cout), jnp.float32)
    for ki in range(3):
        for kj in range(3):
            slab = x_ref[0, ki:ki + ho, kj:kj + wo, :].reshape(ho * wo, cin)
            acc = acc + jnp.dot(slab, w_ref[ki, kj],
                                preferred_element_type=jnp.float32)

    acc = jnp.maximum(acc + b_ref[...], 0.0)          # bias + ReLU (f32 epilogue)

    # Fused 2x2 / stride-2 max pool (floor mode, like F.max_pool2d(x, 2, 2)).
    y = acc.reshape(ho, wo, cout)
    y = y[: 2 * hp].reshape(hp, 2, wo, cout).max(axis=1)          # pool over H
    y = y[:, : 2 * wp, :].reshape(hp, wp, 2, cout).max(axis=2)    # pool over W
    o_ref[0] = y.astype(o_ref.dtype)


def conv3x3_relu_pool(x_nhwc, w_oihw, b):
    """x: (N,H,W,Cin) NHWC, w: (Cout,Cin,3,3) OIHW, b: (Cout,) -> (N,Hp,Wp,Cout)."""
    n, h, w, cin = x_nhwc.shape
    cout = w_oihw.shape[0]
    ho, wo = h - 2, w - 2
    hp, wp = ho // 2, wo // 2
    w_hwio = jnp.transpose(w_oihw, (2, 3, 1, 0)).astype(jnp.float32)  # (3,3,Cin,Cout)
    b2d = b.reshape(1, cout).astype(jnp.float32)
    return pl.pallas_call(
        _conv3x3_relu_pool_kernel,
        out_shape=jax.ShapeDtypeStruct((n, hp, wp, cout), jnp.float32),
        grid_spec=pltpu.PrefetchScalarGridSpec(
            num_scalar_prefetch=0,
            grid=(n,),
            in_specs=[
                pl.BlockSpec((1, h, w, cin), lambda i: (i, 0, 0, 0)),
                pl.BlockSpec((3, 3, cin, cout), lambda i: (0, 0, 0, 0)),
                pl.BlockSpec((1, cout), lambda i: (0, 0)),
            ],
            out_specs=pl.BlockSpec((1, hp, wp, cout), lambda i: (i, 0, 0, 0)),
        ),
        compiler_params=pltpu.CompilerParams(
            dimension_semantics=("parallel",),       # shard batch across TCs (v7x)
            vmem_limit_bytes=_VMEM_LIMIT,
        ),
    )(x_nhwc.astype(jnp.float32), w_hwio, b2d)


# ---------------------------------------------------------------------------
# Fused fc1 (K-tiled, bf16) + ReLU + fc2 kernel
# ---------------------------------------------------------------------------
def _fc1_relu_fc2_kernel(x_ref, w1_ref, b1_ref, w2_ref, b2_ref, o_ref, acc_ref):
    k = pl.program_id(0)

    @pl.when(k == 0)
    def _():
        acc_ref[...] = jnp.zeros_like(acc_ref)

    acc_ref[...] += jnp.dot(x_ref[...], w1_ref[...],
                            preferred_element_type=jnp.float32)

    @pl.when(k == pl.num_programs(0) - 1)
    def _():
        h1 = jnp.maximum(acc_ref[...] + b1_ref[...], 0.0)          # fc1 bias + ReLU
        o_ref[...] = (jnp.dot(h1, w2_ref[...],
                              preferred_element_type=jnp.float32)
                      + b2_ref[...]).astype(o_ref.dtype)           # fused fc2


def fc1_relu_fc2(x_flat, w1, b1, w2, b2, *, tk_target=512):
    """x:(M,K), w1:(K,N1), b1:(N1,), w2:(N1,N2), b2:(N2,) -> (M,N2)."""
    m, k = x_flat.shape
    n1 = w1.shape[1]
    n2 = w2.shape[1]
    # bf16 streaming operands for the big fc1 matmul; accumulation stays f32.
    x_flat = x_flat.astype(jnp.bfloat16)
    w1 = w1.astype(jnp.bfloat16)
    if k > tk_target:
        tk = tk_target
        k_pad = pl.cdiv(k, tk) * tk
        if k_pad != k:                                 # zero-pad K to a tile multiple
            x_flat = jnp.pad(x_flat, ((0, 0), (0, k_pad - k)))
            w1 = jnp.pad(w1, ((0, k_pad - k), (0, 0)))
            k = k_pad
    else:
        tk = k
    nk = k // tk

    if nk > 2:   # deep-buffer the weight stream only when there is a real K loop
        w1_spec = pl.BlockSpec((tk, n1), lambda i: (i, 0),
                               pipeline_mode=pl.Buffered(3))
    else:
        w1_spec = pl.BlockSpec((tk, n1), lambda i: (i, 0))

    return pl.pallas_call(
        _fc1_relu_fc2_kernel,
        out_shape=jax.ShapeDtypeStruct((m, n2), jnp.float32),
        grid_spec=pltpu.PrefetchScalarGridSpec(
            num_scalar_prefetch=0,
            grid=(nk,),
            in_specs=[
                pl.BlockSpec((m, tk), lambda i: (0, i)),
                w1_spec,
                pl.BlockSpec((1, n1), lambda i: (0, 0)),
                pl.BlockSpec((n1, n2), lambda i: (0, 0)),
                pl.BlockSpec((1, n2), lambda i: (0, 0)),
            ],
            out_specs=pl.BlockSpec((m, n2), lambda i: (0, 0)),
            scratch_shapes=[pltpu.VMEM((m, n1), jnp.float32)],
        ),
        compiler_params=pltpu.CompilerParams(
            dimension_semantics=("arbitrary",),        # K is a reduction axis
            vmem_limit_bytes=_VMEM_LIMIT,
        ),
    )(x_flat, w1,
      b1.reshape(1, n1).astype(jnp.float32),
      w2.astype(jnp.float32),
      b2.reshape(1, n2).astype(jnp.float32))


# ---------------------------------------------------------------------------
# Forward pass
# ---------------------------------------------------------------------------
def cnn_regression_forward(x_nchw, params):
    """Forward pass of CNNRegression. x_nchw: (N, 3, H, W) float32."""
    x = jnp.transpose(x_nchw, (0, 2, 3, 1))                     # NCHW -> NHWC once
    x = conv3x3_relu_pool(x, params["conv1_w"], params["conv1_b"])
    x = conv3x3_relu_pool(x, params["conv2_w"], params["conv2_b"])
    n, hp, wp, c = x.shape
    flat = x.reshape(n, hp * wp * c)                            # free NHWC flatten
    # Honour PyTorch's (C,H,W) flatten by permuting fc1_w ROWS (trace-time, zero
    # runtime cost) instead of transposing the activation back to NCHW.
    w1_hwc = (params["fc1_w"].reshape(-1, c, hp, wp)
              .transpose(2, 3, 1, 0).reshape(hp * wp * c, -1))
    return fc1_relu_fc2(flat, w1_hwc, params["fc1_b"],
                        params["fc2_w"].T, params["fc2_b"])


# ---------------------------------------------------------------------------
# Pure-JAX reference (XLA ops) for a numerical sanity check
# ---------------------------------------------------------------------------
def reference_forward(x_nchw, params):
    y = jax.lax.conv_general_dilated(
        x_nchw, params["conv1_w"], (1, 1), "VALID",
        dimension_numbers=("NCHW", "OIHW", "NCHW"))
    y = jnp.maximum(y + params["conv1_b"][None, :, None, None], 0.0)
    y = jax.lax.reduce_window(y, -jnp.inf, jax.lax.max,
                              (1, 1, 2, 2), (1, 1, 2, 2), "VALID")
    y = jax.lax.conv_general_dilated(
        y, params["conv2_w"], (1, 1), "VALID",
        dimension_numbers=("NCHW", "OIHW", "NCHW"))
    y = jnp.maximum(y + params["conv2_b"][None, :, None, None], 0.0)
    y = jax.lax.reduce_window(y, -jnp.inf, jax.lax.max,
                              (1, 1, 2, 2), (1, 1, 2, 2), "VALID")
    flat = y.reshape(y.shape[0], -1)                            # PyTorch CHW flatten
    h1 = jnp.maximum(flat @ params["fc1_w"].T + params["fc1_b"], 0.0)
    return h1 @ params["fc2_w"].T + params["fc2_b"]


def init_params(key, fc1_in):
    """Deterministic synthetic parameters with PyTorch-style shapes."""
    ks = jax.random.split(key, 8)

    def u(k, shape, fan_in):
        bound = 1.0 / jnp.sqrt(jnp.float32(fan_in))
        return jax.random.uniform(k, shape, jnp.float32, -bound, bound)

    return {
        "conv1_w": u(ks[0], (32, 3, 3, 3), 3 * 9),
        "conv1_b": u(ks[1], (32,), 3 * 9),
        "conv2_w": u(ks[2], (64, 32, 3, 3), 32 * 9),
        "conv2_b": u(ks[3], (64,), 32 * 9),
        "fc1_w": u(ks[4], (128, fc1_in), fc1_in),   # (out, in) like nn.Linear
        "fc1_b": u(ks[5], (128,), fc1_in),
        "fc2_w": u(ks[6], (2, 128), 128),
        "fc2_b": u(ks[7], (2,), 128),
    }


if __name__ == "__main__":
    N, C, H, W = 2, 3, 20, 20
    x = jax.random.normal(jax.random.PRNGKey(0), (N, C, H, W), jnp.float32)

    h1 = H - 2            # conv1 (valid 3x3)
    h2 = h1 // 2          # pool
    h3 = h2 - 2           # conv2 (valid 3x3)
    h4 = h3 // 2          # pool : 20 -> 18 -> 9 -> 7 -> 3
    fc1_in = 64 * h4 * h4
    params = init_params(jax.random.PRNGKey(1), fc1_in)

    fwd = jax.jit(cnn_regression_forward)
    out = jax.block_until_ready(fwd(x, params))
    assert out.shape == (N, 2), out.shape
    assert bool(jnp.all(jnp.isfinite(out)))

    ref = reference_forward(x, params)
    err = float(jnp.max(jnp.abs(out - ref)))
    assert err < 5e-2, f"max abs err vs reference: {err}"

    print("KERNEL_OK")
</pallas_src>

<mosaic_0001>
module attributes {stable_mosaic.version = 11 : i64} {
  func.func @_conv3x3_relu_pool_kernel(%arg0: i32, %arg1: memref<1x20x20x3xf32, #tpu.memory_space<vmem>>, %arg2: memref<3x3x3x32xf32, #tpu.memory_space<vmem>>, %arg3: memref<1x32xf32, #tpu.memory_space<vmem>>, %arg4: memref<1x9x9x32xf32, #tpu.memory_space<vmem>>) attributes {dimension_semantics = [#tpu.dimension_semantics<parallel>], iteration_bounds = array<i64: 2>, scalar_prefetch = 0 : i64, scratch_operands = 0 : i64, tpu.core_type = #tpu.core_type<tc>, window_params = [{transform_indices = @transform_0, window_bounds = array<i64: 1, 20, 20, 3>}, {pipeline_mode = #tpu.pipeline_mode<synchronous>, transform_indices = @transform_1, window_bounds = array<i64: 3, 3, 3, 32>}, {pipeline_mode = #tpu.pipeline_mode<synchronous>, transform_indices = @transform_2, window_bounds = array<i64: 1, 32>}, {transform_indices = @transform_3, window_bounds = array<i64: 1, 9, 9, 32>}]} {
    %cst = arith.constant 0.000000e+00 : f32
    %0 = vector.broadcast %cst : f32 to vector<324x32xf32>
    %c0 = arith.constant 0 : index
    %c0_0 = arith.constant 0 : index
    %c0_1 = arith.constant 0 : index
    %c0_2 = arith.constant 0 : index
    %1 = vector.load %arg1[%c0, %c0_0, %c0_1, %c0_2] : memref<1x20x20x3xf32, #tpu.memory_space<vmem>>, vector<1x18x18x3xf32>
    %2 = vector.shape_cast %1 : vector<1x18x18x3xf32> to vector<18x18x3xf32>
    %3 = vector.shape_cast %2 : vector<18x18x3xf32> to vector<324x3xf32>
    %c0_3 = arith.constant 0 : index
    %c0_4 = arith.constant 0 : index
    %c0_5 = arith.constant 0 : index
    %c0_6 = arith.constant 0 : index
    %4 = vector.load %arg2[%c0_3, %c0_4, %c0_5, %c0_6] : memref<3x3x3x32xf32, #tpu.memory_space<vmem>>, vector<1x1x3x32xf32>
    %5 = vector.shape_cast %4 : vector<1x1x3x32xf32> to vector<3x32xf32>
    %cst_7 = arith.constant dense<0.000000e+00> : vector<324x32xf32>
    %6 = tpu.matmul %3, %5, %cst_7 {dimension_numbers = #tpu.dot_dimension_numbers<[1], [0], [0], [1], [0, 0, 1, 1], [], []>} : vector<324x3xf32>, vector<3x32xf32>, vector<324x32xf32> -> vector<324x32xf32>
    %7 = arith.addf %0, %6 : vector<324x32xf32>
    %c0_8 = arith.constant 0 : index
    %c0_9 = arith.constant 0 : index
    %c1 = arith.constant 1 : index
    %c0_10 = arith.constant 0 : index
    %8 = vector.load %arg1[%c0_8, %c0_9, %c1, %c0_10] : memref<1x20x20x3xf32, #tpu.memory_space<vmem>>, vector<1x18x18x3xf32>
    %9 = vector.shape_cast %8 : vector<1x18x18x3xf32> to vector<18x18x3xf32>
    %10 = vector.shape_cast %9 : vector<18x18x3xf32> to vector<324x3xf32>
    %c0_11 = arith.constant 0 : index
    %c1_12 = arith.constant 1 : index
    %c0_13 = arith.constant 0 : index
    %c0_14 = arith.constant 0 : index
    %11 = vector.load %arg2[%c0_11, %c1_12, %c0_13, %c0_14] : memref<3x3x3x32xf32, #tpu.memory_space<vmem>>, vector<1x1x3x32xf32>
    %12 = vector.shape_cast %11 : vector<1x1x3x32xf32> to vector<3x32xf32>
    %cst_15 = arith.constant dense<0.000000e+00> : vector<324x32xf32>
    %13 = tpu.matmul %10, %12, %cst_15 {dimension_numbers = #tpu.dot_dimension_numbers<[1], [0], [0], [1], [0, 0, 1, 1], [], []>} : vector<324x3xf32>, vector<3x32xf32>, vector<324x32xf32> -> vector<324x32xf32>
    %14 = arith.addf %7, %13 : vector<324x32xf32>
    %c0_16 = arith.constant 0 : index
    %c0_17 = arith.constant 0 : index
    %c2 = arith.constant 2 : index
    %c0_18 = arith.constant 0 : index
    %15 = vector.load %arg1[%c0_16, %c0_17, %c2, %c0_18] : memref<1x20x20x3xf32, #tpu.memory_space<vmem>>, vector<1x18x18x3xf32>
    %16 = vector.shape_cast %15 : vector<1x18x18x3xf32> to vector<18x18x3xf32>
    %17 = vector.shape_cast %16 : vector<18x18x3xf32> to vector<324x3xf32>
    %c0_19 = arith.constant 0 : index
    %c2_20 = arith.constant 2 : index
    %c0_21 = arith.constant 0 : index
    %c0_22 = arith.constant 0 : index
    %18 = vector.load %arg2[%c0_19, %c2_20, %c0_21, %c0_22] : memref<3x3x3x32xf32, #tpu.memory_space<vmem>>, vector<1x1x3x32xf32>
    %19 = vector.shape_cast %18 : vector<1x1x3x32xf32> to vector<3x32xf32>
    %cst_23 = arith.constant dense<0.000000e+00> : vector<324x32xf32>
    %20 = tpu.matmul %17, %19, %cst_23 {dimension_numbers = #tpu.dot_dimension_numbers<[1], [0], [0], [1], [0, 0, 1, 1], [], []>} : vector<324x3xf32>, vector<3x32xf32>, vector<324x32xf32> -> vector<324x32xf32>
    %21 = arith.addf %14, %20 : vector<324x32xf32>
    %c0_24 = arith.constant 0 : index
    %c1_25 = arith.constant 1 : index
    %c0_26 = arith.constant 0 : index
    %c0_27 = arith.constant 0 : index
    %22 = vector.load %arg1[%c0_24, %c1_25, %c0_26, %c0_27] : memref<1x20x20x3xf32, #tpu.memory_space<vmem>>, vector<1x18x18x3xf32>
    %23 = vector.shape_cast %22 : vector<1x18x18x3xf32> to vector<18x18x3xf32>
    %24 = vector.shape_cast %23 : vector<18x18x3xf32> to vector<324x3xf32>
    %c1_28 = arith.constant 1 : index
    %c0_29 = arith.constant 0 : index
    %c0_30 = arith.constant 0 : index
    %c0_31 = arith.constant 0 : index
    %25 = vector.load %arg2[%c1_28, %c0_29, %c0_30, %c0_31] : memref<3x3x3x32xf32, #tpu.memory_space<vmem>>, vector<1x1x3x32xf32>
    %26 = vector.shape_cast %25 : vector<1x1x3x32xf32> to vector<3x32xf32>
    %cst_32 = arith.constant dense<0.000000e+00> : vector<324x32xf32>
    %27 = tpu.matmul %24, %26, %cst_32 {dimension_numbers = #tpu.dot_dimension_numbers<[1], [0], [0], [1], [0, 0, 1, 1], [], []>} : vector<324x3xf32>, vector<3x32xf32>, vector<324x32xf32> -> vector<324x32xf32>
    %28 = arith.addf %21, %27 : vector<324x32xf32>
    %c0_33 = arith.constant 0 : index
    %c1_34 = arith.constant 1 : index
    %c1_35 = arith.constant 1 : index
    %c0_36 = arith.constant 0 : index
    %29 = vector.load %arg1[%c0_33, %c1_34, %c1_35, %c0_36] : memref<1x20x20x3xf32, #tpu.memory_space<vmem>>, vector<1x18x18x3xf32>
    %30 = vector.shape_cast %29 : vector<1x18x18x3xf32> to vector<18x18x3xf32>
    %31 = vector.shape_cast %30 : vector<18x18x3xf32> to vector<324x3xf32>
    %c1_37 = arith.constant 1 : index
    %c1_38 = arith.constant 1 : index
    %c0_39 = arith.constant 0 : index
    %c0_40 = arith.constant 0 : index
    %32 = vector.load %arg2[%c1_37, %c1_38, %c0_39, %c0_40] : memref<3x3x3x32xf32, #tpu.memory_space<vmem>>, vector<1x1x3x32xf32>
    %33 = vector.shape_cast %32 : vector<1x1x3x32xf32> to vector<3x32xf32>
    %cst_41 = arith.constant dense<0.000000e+00> : vector<324x32xf32>
    %34 = tpu.matmul %31, %33, %cst_41 {dimension_numbers = #tpu.dot_dimension_numbers<[1], [0], [0], [1], [0, 0, 1, 1], [], []>} : vector<324x3xf32>, vector<3x32xf32>, vector<324x32xf32> -> vector<324x32xf32>
    %35 = arith.addf %28, %34 : vector<324x32xf32>
    %c0_42 = arith.constant 0 : index
    %c1_43 = arith.constant 1 : index
    %c2_44 = arith.constant 2 : index
    %c0_45 = arith.constant 0 : index
    %36 = vector.load %arg1[%c0_42, %c1_43, %c2_44, %c0_45] : memref<1x20x20x3xf32, #tpu.memory_space<vmem>>, vector<1x18x18x3xf32>
    %37 = vector.shape_cast %36 : vector<1x18x18x3xf32> to vector<18x18x3xf32>
    %38 = vector.shape_cast %37 : vector<18x18x3xf32> to vector<324x3xf32>
    %c1_46 = arith.constant 1 : index
    %c2_47 = arith.constant 2 : index
    %c0_48 = arith.constant 0 : index
    %c0_49 = arith.constant 0 : index
    %39 = vector.load %arg2[%c1_46, %c2_47, %c0_48, %c0_49] : memref<3x3x3x32xf32, #tpu.memory_space<vmem>>, vector<1x1x3x32xf32>
    %40 = vector.shape_cast %39 : vector<1x1x3x32xf32> to vector<3x32xf32>
    %cst_50 = arith.constant dense<0.000000e+00> : vector<324x32xf32>
    %41 = tpu.matmul %38, %40, %cst_50 {dimension_numbers = #tpu.dot_dimension_numbers<[1], [0], [0], [1], [0, 0, 1, 1], [], []>} : vector<324x3xf32>, vector<3x32xf32>, vector<324x32xf32> -> vector<324x32xf32>
    %42 = arith.addf %35, %41 : vector<324x32xf32>
    %c0_51 = arith.constant 0 : index
    %c2_52 = arith.constant 2 : index
    %c0_53 = arith.constant 0 : index
    %c0_54 = arith.constant 0 : index
    %43 = vector.load %arg1[%c0_51, %c2_52, %c0_53, %c0_54] : memref<1x20x20x3xf32, #tpu.memory_space<vmem>>, vector<1x18x18x3xf32>
    %44 = vector.shape_cast %43 : vector<1x18x18x3xf32> to vector<18x18x3xf32>
    %45 = vector.shape_cast %44 : vector<18x18x3xf32> to vector<324x3xf32>
    %c2_55 = arith.constant 2 : index
    %c0_56 = arith.constant 0 : index
    %c0_57 = arith.constant 0 : index
    %c0_58 = arith.constant 0 : index
    %46 = vector.load %arg2[%c2_55, %c0_56, %c0_57, %c0_58] : memref<3x3x3x32xf32, #tpu.memory_space<vmem>>, vector<1x1x3x32xf32>
    %47 = vector.shape_cast %46 : vector<1x1x3x32xf32> to vector<3x32xf32>
    %cst_59 = arith.constant dense<0.000000e+00> : vector<324x32xf32>
    %48 = tpu.matmul %45, %47, %cst_59 {dimension_numbers = #tpu.dot_dimension_numbers<[1], [0], [0], [1], [0, 0, 1, 1], [], []>} : vector<324x3xf32>, vector<3x32xf32>, vector<324x32xf32> -> vector<324x32xf32>
    %49 = arith.addf %42, %48 : vector<324x32xf32>
    %c0_60 = arith.constant 0 : index
    %c2_61 = arith.constant 2 : index
    %c1_62 = arith.constant 1 : index
    %c0_63 = arith.constant 0 : index
    %50 = vector.load %arg1[%c0_60, %c2_61, %c1_62, %c0_63] : memref<1x20x20x3xf32, #tpu.memory_space<vmem>>, vector<1x18x18x3xf32>
    %51 = vector.shape_cast %50 : vector<1x18x18x3xf32> to vector<18x18x3xf32>
    %52 = vector.shape_cast %51 : vector<18x18x3xf32> to vector<324x3xf32>
    %c2_64 = arith.constant 2 : index
    %c1_65 = arith.constant 1 : index
    %c0_66 = arith.constant 0 : index
    %c0_67 = arith.constant 0 : index
    %53 = vector.load %arg2[%c2_64, %c1_65, %c0_66, %c0_67] : memref<3x3x3x32xf32, #tpu.memory_space<vmem>>, vector<1x1x3x32xf32>
    %54 = vector.shape_cast %53 : vector<1x1x3x32xf32> to vector<3x32xf32>
    %cst_68 = arith.constant dense<0.000000e+00> : vector<324x32xf32>
    %55 = tpu.matmul %52, %54, %cst_68 {dimension_numbers = #tpu.dot_dimension_numbers<[1], [0], [0], [1], [0, 0, 1, 1], [], []>} : vector<324x3xf32>, vector<3x32xf32>, vector<324x32xf32> -> vector<324x32xf32>
    %56 = arith.addf %49, %55 : vector<324x32xf32>
    %c0_69 = arith.constant 0 : index
    %c2_70 = arith.constant 2 : index
    %c2_71 = arith.constant 2 : index
    %c0_72 = arith.constant 0 : index
    %57 = vector.load %arg1[%c0_69, %c2_70, %c2_71, %c0_72] : memref<1x20x20x3xf32, #tpu.memory_space<vmem>>, vector<1x18x18x3xf32>
    %58 = vector.shape_cast %57 : vector<1x18x18x3xf32> to vector<18x18x3xf32>
    %59 = vector.shape_cast %58 : vector<18x18x3xf32> to vector<324x3xf32>
    %c2_73 = arith.constant 2 : index
    %c2_74 = arith.constant 2 : index
    %c0_75 = arith.constant 0 : index
    %c0_76 = arith.constant 0 : index
    %60 = vector.load %arg2[%c2_73, %c2_74, %c0_75, %c0_76] : memref<3x3x3x32xf32, #tpu.memory_space<vmem>>, vector<1x1x3x32xf32>
    %61 = vector.shape_cast %60 : vector<1x1x3x32xf32> to vector<3x32xf32>
    %cst_77 = arith.constant dense<0.000000e+00> : vector<324x32xf32>
    %62 = tpu.matmul %59, %61, %cst_77 {dimension_numbers = #tpu.dot_dimension_numbers<[1], [0], [0], [1], [0, 0, 1, 1], [], []>} : vector<324x3xf32>, vector<3x32xf32>, vector<324x32xf32> -> vector<324x32xf32>
    %63 = arith.addf %56, %62 : vector<324x32xf32>
    %c0_78 = arith.constant 0 : index
    %c0_79 = arith.constant 0 : index
    %64 = vector.load %arg3[%c0_78, %c0_79] : memref<1x32xf32, #tpu.memory_space<vmem>>, vector<1x32xf32>
    %65 = vector.broadcast %64 : vector<1x32xf32> to vector<324x32xf32>
    %66 = arith.addf %63, %65 : vector<324x32xf32>
    %cst_80 = arith.constant 0.000000e+00 : f32
    %67 = vector.broadcast %cst_80 : f32 to vector<324x32xf32>
    %68 = arith.maximumf %66, %67 : vector<324x32xf32>
    %69 = vector.shape_cast %68 : vector<324x32xf32> to vector<18x18x32xf32>
    %70 = vector.shape_cast %69 : vector<18x18x32xf32> to vector<9x2x18x32xf32>
    %cst_81 = arith.constant dense<0xFF800000> : vector<9x18x32xf32>
    %71 = vector.multi_reduction <maximumf>, %70, %cst_81 [1] : vector<9x2x18x32xf32> to vector<9x18x32xf32>
    %72 = vector.shape_cast %71 : vector<9x18x32xf32> to vector<9x9x2x32xf32>
    %cst_82 = arith.constant dense<0xFF800000> : vector<9x9x32xf32>
    %73 = vector.multi_reduction <maximumf>, %72, %cst_82 [2] : vector<9x9x2x32xf32> to vector<9x9x32xf32>
    %c0_83 = arith.constant 0 : index
    %c0_84 = arith.constant 0 : index
    %c0_85 = arith.constant 0 : index
    %c0_86 = arith.constant 0 : index
    %74 = vector.load %arg4[%c0_83, %c0_84, %c0_85, %c0_86] : memref<1x9x9x32xf32, #tpu.memory_space<vmem>>, vector<1x9x9x32xf32>
    %75 = vector.shape_cast %74 : vector<1x9x9x32xf32> to vector<9x9x32xf32>
    %76 = vector.shape_cast %73 : vector<9x9x32xf32> to vector<1x9x9x32xf32>
    tpu.vector_store %arg4[%c0_83, %c0_84, %c0_85, %c0_86], %76 {strides = array<i32>} : memref<1x9x9x32xf32, #tpu.memory_space<vmem>>, vector<1x9x9x32xf32>,
    return
  }
  func.func @transform_0(%arg0: i32) -> (i32, i32, i32, i32) {
    %c0_i32 = arith.constant 0 : i32
    %c0_i32_0 = arith.constant 0 : i32
    %c0_i32_1 = arith.constant 0 : i32
    %c0_i32_2 = arith.constant 0 : i32
    return %arg0, %c0_i32, %c0_i32_0, %c0_i32_1 : i32, i32, i32, i32
  }
  func.func @transform_1(%arg0: i32) -> (i32, i32, i32, i32) {
    %c0_i32 = arith.constant 0 : i32
    %c0_i32_0 = arith.constant 0 : i32
    %c0_i32_1 = arith.constant 0 : i32
    %c0_i32_2 = arith.constant 0 : i32
    %c0_i32_3 = arith.constant 0 : i32
    return %c0_i32, %c0_i32_0, %c0_i32_1, %c0_i32_2 : i32, i32, i32, i32
  }
  func.func @transform_2(%arg0: i32) -> (i32, i32) {
    %c0_i32 = arith.constant 0 : i32
    %c0_i32_0 = arith.constant 0 : i32
    %c0_i32_1 = arith.constant 0 : i32
    return %c0_i32, %c0_i32_0 : i32, i32
  }
  func.func @transform_3(%arg0: i32) -> (i32, i32, i32, i32) {
    %c0_i32 = arith.constant 0 : i32
    %c0_i32_0 = arith.constant 0 : i32
    %c0_i32_1 = arith.constant 0 : i32
    %c0_i32_2 = arith.constant 0 : i32
    return %arg0, %c0_i32, %c0_i32_0, %c0_i32_1 : i32, i32, i32, i32
  }
}

module attributes {stable_mosaic.version = 11 : i64} {
  func.func @_conv3x3_relu_pool_kernel(%arg0: i32, %arg1: memref<1x9x9x32xf32, #tpu.memory_space<vmem>>, %arg2: memref<3x3x32x64xf32, #tpu.memory_space<vmem>>, %arg3: memref<1x64xf32, #tpu.memory_space<vmem>>, %arg4: memref<1x3x3x64xf32, #tpu.memory_space<vmem>>) attributes {dimension_semantics = [#tpu.dimension_semantics<parallel>], iteration_bounds = array<i64: 2>, scalar_prefetch = 0 : i64, scratch_operands = 0 : i64, tpu.core_type = #tpu.core_type<tc>, window_params = [{transform_indices = @transform_0, window_bounds = array<i64: 1, 9, 9, 32>}, {pipeline_mode = #tpu.pipeline_mode<synchronous>, transform_indices = @transform_1, window_bounds = array<i64: 3, 3, 32, 64>}, {pipeline_mode = #tpu.pipeline_mode<synchronous>, transform_indices = @transform_2, window_bounds = array<i64: 1, 64>}, {transform_indices = @transform_3, window_bounds = array<i64: 1, 3, 3, 64>}]} {
    %cst = arith.constant 0.000000e+00 : f32
    %0 = vector.broadcast %cst : f32 to vector<49x64xf32>
    %c0 = arith.constant 0 : index
    %c0_0 = arith.constant 0 : index
    %c0_1 = arith.constant 0 : index
    %c0_2 = arith.constant 0 : index
    %1 = vector.load %arg1[%c0, %c0_0, %c0_1, %c0_2] : memref<1x9x9x32xf32, #tpu.memory_space<vmem>>, vector<1x7x7x32xf32>
    %2 = vector.shape_cast %1 : vector<1x7x7x32xf32> to vector<7x7x32xf32>
    %3 = vector.shape_cast %2 : vector<7x7x32xf32> to vector<49x32xf32>
    %c0_3 = arith.constant 0 : index
    %c0_4 = arith.constant 0 : index
    %c0_5 = arith.constant 0 : index
    %c0_6 = arith.constant 0 : index
    %4 = vector.load %arg2[%c0_3, %c0_4, %c0_5, %c0_6] : memref<3x3x32x64xf32, #tpu.memory_space<vmem>>, vector<1x1x32x64xf32>
    %5 = vector.shape_cast %4 : vector<1x1x32x64xf32> to vector<32x64xf32>
    %cst_7 = arith.constant dense<0.000000e+00> : vector<49x64xf32>
    %6 = tpu.matmul %3, %5, %cst_7 {dimension_numbers = #tpu.dot_dimension_numbers<[1], [0], [0], [1], [0, 0, 1, 1], [], []>} : vector<49x32xf32>, vector<32x64xf32>, vector<49x64xf32> -> vector<49x64xf32>
    %7 = arith.addf %0, %6 : vector<49x64xf32>
    %c0_8 = arith.constant 0 : index
    %c0_9 = arith.constant 0 : index
    %c1 = arith.constant 1 : index
    %c0_10 = arith.constant 0 : index
    %8 = vector.load %arg1[%c0_8, %c0_9, %c1, %c0_10] : memref<1x9x9x32xf32, #tpu.memory_space<vmem>>, vector<1x7x7x32xf32>
    %9 = vector.shape_cast %8 : vector<1x7x7x32xf32> to vector<7x7x32xf32>
    %10 = vector.shape_cast %9 : vector<7x7x32xf32> to vector<49x32xf32>
    %c0_11 = arith.constant 0 : index
    %c1_12 = arith.constant 1 : index
    %c0_13 = arith.constant 0 : index
    %c0_14 = arith.constant 0 : index
    %11 = vector.load %arg2[%c0_11, %c1_12, %c0_13, %c0_14] : memref<3x3x32x64xf32, #tpu.memory_space<vmem>>, vector<1x1x32x64xf32>
    %12 = vector.shape_cast %11 : vector<1x1x32x64xf32> to vector<32x64xf32>
    %cst_15 = arith.constant dense<0.000000e+00> : vector<49x64xf32>
    %13 = tpu.matmul %10, %12, %cst_15 {dimension_numbers = #tpu.dot_dimension_numbers<[1], [0], [0], [1], [0, 0, 1, 1], [], []>} : vector<49x32xf32>, vector<32x64xf32>, vector<49x64xf32> -> vector<49x64xf32>
    %14 = arith.addf %7, %13 : vector<49x64xf32>
    %c0_16 = arith.constant 0 : index
    %c0_17 = arith.constant 0 : index
    %c2 = arith.constant 2 : index
    %c0_18 = arith.constant 0 : index
    %15 = vector.load %arg1[%c0_16, %c0_17, %c2, %c0_18] : memref<1x9x9x32xf32, #tpu.memory_space<vmem>>, vector<1x7x7x32xf32>
    %16 = vector.shape_cast %15 : vector<1x7x7x32xf32> to vector<7x7x32xf32>
    %17 = vector.shape_cast %16 : vector<7x7x32xf32> to vector<49x32xf32>
    %c0_19 = arith.constant 0 : index
    %c2_20 = arith.constant 2 : index
    %c0_21 = arith.constant 0 : index
    %c0_22 = arith.constant 0 : index
    %18 = vector.load %arg2[%c0_19, %c2_20, %c0_21, %c0_22] : memref<3x3x32x64xf32, #tpu.memory_space<vmem>>, vector<1x1x32x64xf32>
    %19 = vector.shape_cast %18 : vector<1x1x32x64xf32> to vector<32x64xf32>
    %cst_23 = arith.constant dense<0.000000e+00> : vector<49x64xf32>
    %20 = tpu.matmul %17, %19, %cst_23 {dimension_numbers = #tpu.dot_dimension_numbers<[1], [0], [0], [1], [0, 0, 1, 1], [], []>} : vector<49x32xf32>, vector<32x64xf32>, vector<49x64xf32> -> vector<49x64xf32>
    %21 = arith.addf %14, %20 : vector<49x64xf32>
    %c0_24 = arith.constant 0 : index
    %c1_25 = arith.constant 1 : index
    %c0_26 = arith.constant 0 : index
    %c0_27 = arith.constant 0 : index
    %22 = vector.load %arg1[%c0_24, %c1_25, %c0_26, %c0_27] : memref<1x9x9x32xf32, #tpu.memory_space<vmem>>, vector<1x7x7x32xf32>
    %23 = vector.shape_cast %22 : vector<1x7x7x32xf32> to vector<7x7x32xf32>
    %24 = vector.shape_cast %23 : vector<7x7x32xf32> to vector<49x32xf32>
    %c1_28 = arith.constant 1 : index
    %c0_29 = arith.constant 0 : index
    %c0_30 = arith.constant 0 : index
    %c0_31 = arith.constant 0 : index
    %25 = vector.load %arg2[%c1_28, %c0_29, %c0_30, %c0_31] : memref<3x3x32x64xf32, #tpu.memory_space<vmem>>, vector<1x1x32x64xf32>
    %26 = vector.shape_cast %25 : vector<1x1x32x64xf32> to vector<32x64xf32>
    %cst_32 = arith.constant dense<0.000000e+00> : vector<49x64xf32>
    %27 = tpu.matmul %24, %26, %cst_32 {dimension_numbers = #tpu.dot_dimension_numbers<[1], [0], [0], [1], [0, 0, 1, 1], [], []>} : vector<49x32xf32>, vector<32x64xf32>, vector<49x64xf32> -> vector<49x64xf32>
    %28 = arith.addf %21, %27 : vector<49x64xf32>
    %c0_33 = arith.constant 0 : index
    %c1_34 = arith.constant 1 : index
    %c1_35 = arith.constant 1 : index
    %c0_36 = arith.constant 0 : index
    %29 = vector.load %arg1[%c0_33, %c1_34, %c1_35, %c0_36] : memref<1x9x9x32xf32, #tpu.memory_space<vmem>>, vector<1x7x7x32xf32>
    %30 = vector.shape_cast %29 : vector<1x7x7x32xf32> to vector<7x7x32xf32>
    %31 = vector.shape_cast %30 : vector<7x7x32xf32> to vector<49x32xf32>
    %c1_37 = arith.constant 1 : index
    %c1_38 = arith.constant 1 : index
    %c0_39 = arith.constant 0 : index
    %c0_40 = arith.constant 0 : index
    %32 = vector.load %arg2[%c1_37, %c1_38, %c0_39, %c0_40] : memref<3x3x32x64xf32, #tpu.memory_space<vmem>>, vector<1x1x32x64xf32>
    %33 = vector.shape_cast %32 : vector<1x1x32x64xf32> to vector<32x64xf32>
    %cst_41 = arith.constant dense<0.000000e+00> : vector<49x64xf32>
    %34 = tpu.matmul %31, %33, %cst_41 {dimension_numbers = #tpu.dot_dimension_numbers<[1], [0], [0], [1], [0, 0, 1, 1], [], []>} : vector<49x32xf32>, vector<32x64xf32>, vector<49x64xf32> -> vector<49x64xf32>
    %35 = arith.addf %28, %34 : vector<49x64xf32>
    %c0_42 = arith.constant 0 : index
    %c1_43 = arith.constant 1 : index
    %c2_44 = arith.constant 2 : index
    %c0_45 = arith.constant 0 : index
    %36 = vector.load %arg1[%c0_42, %c1_43, %c2_44, %c0_45] : memref<1x9x9x32xf32, #tpu.memory_space<vmem>>, vector<1x7x7x32xf32>
    %37 = vector.shape_cast %36 : vector<1x7x7x32xf32> to vector<7x7x32xf32>
    %38 = vector.shape_cast %37 : vector<7x7x32xf32> to vector<49x32xf32>
    %c1_46 = arith.constant 1 : index
    %c2_47 = arith.constant 2 : index
    %c0_48 = arith.constant 0 : index
    %c0_49 = arith.constant 0 : index
    %39 = vector.load %arg2[%c1_46, %c2_47, %c0_48, %c0_49] : memref<3x3x32x64xf32, #tpu.memory_space<vmem>>, vector<1x1x32x64xf32>
    %40 = vector.shape_cast %39 : vector<1x1x32x64xf32> to vector<32x64xf32>
    %cst_50 = arith.constant dense<0.000000e+00> : vector<49x64xf32>
    %41 = tpu.matmul %38, %40, %cst_50 {dimension_numbers = #tpu.dot_dimension_numbers<[1], [0], [0], [1], [0, 0, 1, 1], [], []>} : vector<49x32xf32>, vector<32x64xf32>, vector<49x64xf32> -> vector<49x64xf32>
    %42 = arith.addf %35, %41 : vector<49x64xf32>
    %c0_51 = arith.constant 0 : index
    %c2_52 = arith.constant 2 : index
    %c0_53 = arith.constant 0 : index
    %c0_54 = arith.constant 0 : index
    %43 = vector.load %arg1[%c0_51, %c2_52, %c0_53, %c0_54] : memref<1x9x9x32xf32, #tpu.memory_space<vmem>>, vector<1x7x7x32xf32>
    %44 = vector.shape_cast %43 : vector<1x7x7x32xf32> to vector<7x7x32xf32>
    %45 = vector.shape_cast %44 : vector<7x7x32xf32> to vector<49x32xf32>
    %c2_55 = arith.constant 2 : index
    %c0_56 = arith.constant 0 : index
    %c0_57 = arith.constant 0 : index
    %c0_58 = arith.constant 0 : index
    %46 = vector.load %arg2[%c2_55, %c0_56, %c0_57, %c0_58] : memref<3x3x32x64xf32, #tpu.memory_space<vmem>>, vector<1x1x32x64xf32>
    %47 = vector.shape_cast %46 : vector<1x1x32x64xf32> to vector<32x64xf32>
    %cst_59 = arith.constant dense<0.000000e+00> : vector<49x64xf32>
    %48 = tpu.matmul %45, %47, %cst_59 {dimension_numbers = #tpu.dot_dimension_numbers<[1], [0], [0], [1], [0, 0, 1, 1], [], []>} : vector<49x32xf32>, vector<32x64xf32>, vector<49x64xf32> -> vector<49x64xf32>
    %49 = arith.addf %42, %48 : vector<49x64xf32>
    %c0_60 = arith.constant 0 : index
    %c2_61 = arith.constant 2 : index
    %c1_62 = arith.constant 1 : index
    %c0_63 = arith.constant 0 : index
    %50 = vector.load %arg1[%c0_60, %c2_61, %c1_62, %c0_63] : memref<1x9x9x32xf32, #tpu.memory_space<vmem>>, vector<1x7x7x32xf32>
    %51 = vector.shape_cast %50 : vector<1x7x7x32xf32> to vector<7x7x32xf32>
    %52 = vector.shape_cast %51 : vector<7x7x32xf32> to vector<49x32xf32>
    %c2_64 = arith.constant 2 : index
    %c1_65 = arith.constant 1 : index
    %c0_66 = arith.constant 0 : index
    %c0_67 = arith.constant 0 : index
    %53 = vector.load %arg2[%c2_64, %c1_65, %c0_66, %c0_67] : memref<3x3x32x64xf32, #tpu.memory_space<vmem>>, vector<1x1x32x64xf32>
    %54 = vector.shape_cast %53 : vector<1x1x32x64xf32> to vector<32x64xf32>
    %cst_68 = arith.constant dense<0.000000e+00> : vector<49x64xf32>
    %55 = tpu.matmul %52, %54, %cst_68 {dimension_numbers = #tpu.dot_dimension_numbers<[1], [0], [0], [1], [0, 0, 1, 1], [], []>} : vector<49x32xf32>, vector<32x64xf32>, vector<49x64xf32> -> vector<49x64xf32>
    %56 = arith.addf %49, %55 : vector<49x64xf32>
    %c0_69 = arith.constant 0 : index
    %c2_70 = arith.constant 2 : index
    %c2_71 = arith.constant 2 : index
    %c0_72 = arith.constant 0 : index
    %57 = vector.load %arg1[%c0_69, %c2_70, %c2_71, %c0_72] : memref<1x9x9x32xf32, #tpu.memory_space<vmem>>, vector<1x7x7x32xf32>
    %58 = vector.shape_cast %57 : vector<1x7x7x32xf32> to vector<7x7x32xf32>
    %59 = vector.shape_cast %58 : vector<7x7x32xf32> to vector<49x32xf32>
    %c2_73 = arith.constant 2 : index
    %c2_74 = arith.constant 2 : index
    %c0_75 = arith.constant 0 : index
    %c0_76 = arith.constant 0 : index
    %60 = vector.load %arg2[%c2_73, %c2_74, %c0_75, %c0_76] : memref<3x3x32x64xf32, #tpu.memory_space<vmem>>, vector<1x1x32x64xf32>
    %61 = vector.shape_cast %60 : vector<1x1x32x64xf32> to vector<32x64xf32>
    %cst_77 = arith.constant dense<0.000000e+00> : vector<49x64xf32>
    %62 = tpu.matmul %59, %61, %cst_77 {dimension_numbers = #tpu.dot_dimension_numbers<[1], [0], [0], [1], [0, 0, 1, 1], [], []>} : vector<49x32xf32>, vector<32x64xf32>, vector<49x64xf32> -> vector<49x64xf32>
    %63 = arith.addf %56, %62 : vector<49x64xf32>
    %c0_78 = arith.constant 0 : index
    %c0_79 = arith.constant 0 : index
    %64 = vector.load %arg3[%c0_78, %c0_79] : memref<1x64xf32, #tpu.memory_space<vmem>>, vector<1x64xf32>
    %65 = vector.broadcast %64 : vector<1x64xf32> to vector<49x64xf32>
    %66 = arith.addf %63, %65 : vector<49x64xf32>
    %cst_80 = arith.constant 0.000000e+00 : f32
    %67 = vector.broadcast %cst_80 : f32 to vector<49x64xf32>
    %68 = arith.maximumf %66, %67 : vector<49x64xf32>
    %69 = vector.shape_cast %68 : vector<49x64xf32> to vector<7x7x64xf32>
    %70 = vector.extract_strided_slice %69 {offsets = [0, 0, 0], sizes = [6, 7, 64], strides = [1, 1, 1]} : vector<7x7x64xf32> to vector<6x7x64xf32>
    %71 = vector.shape_cast %70 : vector<6x7x64xf32> to vector<3x2x7x64xf32>
    %cst_81 = arith.constant dense<0xFF800000> : vector<3x7x64xf32>
    %72 = vector.multi_reduction <maximumf>, %71, %cst_81 [1] : vector<3x2x7x64xf32> to vector<3x7x64xf32>
    %73 = vector.extract_strided_slice %72 {offsets = [0, 0, 0], sizes = [3, 6, 64], strides = [1, 1, 1]} : vector<3x7x64xf32> to vector<3x6x64xf32>
    %74 = vector.shape_cast %73 : vector<3x6x64xf32> to vector<3x3x2x64xf32>
    %cst_82 = arith.constant dense<0xFF800000> : vector<3x3x64xf32>
    %75 = vector.multi_reduction <maximumf>, %74, %cst_82 [2] : vector<3x3x2x64xf32> to vector<3x3x64xf32>
    %c0_83 = arith.constant 0 : index
    %c0_84 = arith.constant 0 : index
    %c0_85 = arith.constant 0 : index
    %c0_86 = arith.constant 0 : index
    %76 = vector.load %arg4[%c0_83, %c0_84, %c0_85, %c0_86] : memref<1x3x3x64xf32, #tpu.memory_space<vmem>>, vector<1x3x3x64xf32>
    %77 = vector.shape_cast %76 : vector<1x3x3x64xf32> to vector<3x3x64xf32>
    %78 = vector.shape_cast %75 : vector<3x3x64xf32> to vector<1x3x3x64xf32>
    tpu.vector_store %arg4[%c0_83, %c0_84, %c0_85, %c0_86], %78 {strides = array<i32>} : memref<1x3x3x64xf32, #tpu.memory_space<vmem>>, vector<1x3x3x64xf32>,
    return
  }
  func.func @transform_0(%arg0: i32) -> (i32, i32, i32, i32) {
    %c0_i32 = arith.constant 0 : i32
    %c0_i32_0 = arith.constant 0 : i32
    %c0_i32_1 = arith.constant 0 : i32
    %c0_i32_2 = arith.constant 0 : i32
    return %arg0, %c0_i32, %c0_i32_0, %c0_i32_1 : i32, i32, i32, i32
  }
  func.func @transform_1(%arg0: i32) -> (i32, i32, i32, i32) {
    %c0_i32 = arith.constant 0 : i32
    %c0_i32_0 = arith.constant 0 : i32
    %c0_i32_1 = arith.constant 0 : i32
    %c0_i32_2 = arith.constant 0 : i32
    %c0_i32_3 = arith.constant 0 : i32
    return %c0_i32, %c0_i32_0, %c0_i32_1, %c0_i32_2 : i32, i32, i32, i32
  }
  func.func @transform_2(%arg0: i32) -> (i32, i32) {
    %c0_i32 = arith.constant 0 : i32
    %c0_i32_0 = arith.constant 0 : i32
    %c0_i32_1 = arith.constant 0 : i32
    return %c0_i32, %c0_i32_0 : i32, i32
  }
  func.func @transform_3(%arg0: i32) -> (i32, i32, i32, i32) {
    %c0_i32 = arith.constant 0 : i32
    %c0_i32_0 = arith.constant 0 : i32
    %c0_i32_1 = arith.constant 0 : i32
    %c0_i32_2 = arith.constant 0 : i32
    return %arg0, %c0_i32, %c0_i32_0, %c0_i32_1 : i32, i32, i32, i32
  }
}

module attributes {stable_mosaic.version = 11 : i64} {
  func.func @_fc1_relu_fc2_kernel(%arg0: i32, %arg1: memref<2x512xbf16, #tpu.memory_space<vmem>>, %arg2: memref<512x128xbf16, #tpu.memory_space<vmem>>, %arg3: memref<1x128xf32, #tpu.memory_space<vmem>>, %arg4: memref<128x2xf32, #tpu.memory_space<vmem>>, %arg5: memref<1x2xf32, #tpu.memory_space<vmem>>, %arg6: memref<2x2xf32, #tpu.memory_space<vmem>>, %arg7: memref<2x128xf32, #tpu.memory_space<vmem>>) attributes {dimension_semantics = [#tpu.dimension_semantics<arbitrary>], iteration_bounds = array<i64: 2>, scalar_prefetch = 0 : i64, scratch_operands = 1 : i64, tpu.core_type = #tpu.core_type<tc>, window_params = [{transform_indices = @transform_0, window_bounds = array<i64: 2, 512>}, {transform_indices = @transform_1, window_bounds = array<i64: 512, 128>}, {pipeline_mode = #tpu.pipeline_mode<synchronous>, transform_indices = @transform_2, window_bounds = array<i64: 1, 128>}, {pipeline_mode = #tpu.pipeline_mode<synchronous>, transform_indices = @transform_3, window_bounds = array<i64: 128, 2>}, {pipeline_mode = #tpu.pipeline_mode<synchronous>, transform_indices = @transform_4, window_bounds = array<i64: 1, 2>}, {pipeline_mode = #tpu.pipeline_mode<synchronous>, transform_indices = @transform_5, window_bounds = array<i64: 2, 2>}]} {
    %c0_i32 = arith.constant 0 : i32
    %0 = arith.cmpi eq, %arg0, %c0_i32 : i32
    %1 = arith.extui %0 : i1 to i32
    %c0_i32_0 = arith.constant 0 : i32
    %2 = arith.cmpi ne, %1, %c0_i32_0 : i32
    scf.if %2 {
      %cst_9 = arith.constant 0.000000e+00 : f32
      %12 = vector.broadcast %cst_9 : f32 to vector<2x128xf32>
      %c0_10 = arith.constant 0 : index
      %c0_11 = arith.constant 0 : index
      %13 = vector.load %arg7[%c0_10, %c0_11] : memref<2x128xf32, #tpu.memory_space<vmem>>, vector<2x128xf32>
      tpu.vector_store %arg7[%c0_10, %c0_11], %12 {strides = array<i32>} : memref<2x128xf32, #tpu.memory_space<vmem>>, vector<2x128xf32>,
    } else {
    }
    %c0 = arith.constant 0 : index
    %c0_1 = arith.constant 0 : index
    %3 = vector.load %arg7[%c0, %c0_1] : memref<2x128xf32, #tpu.memory_space<vmem>>, vector<2x128xf32>
    %c0_2 = arith.constant 0 : index
    %c0_3 = arith.constant 0 : index
    %4 = vector.load %arg1[%c0_2, %c0_3] : memref<2x512xbf16, #tpu.memory_space<vmem>>, vector<2x512xbf16>
    %c0_4 = arith.constant 0 : index
    %c0_5 = arith.constant 0 : index
    %5 = vector.load %arg2[%c0_4, %c0_5] : memref<512x128xbf16, #tpu.memory_space<vmem>>, vector<512x128xbf16>
    %cst = arith.constant dense<0.000000e+00> : vector<2x128xf32>
    %6 = tpu.matmul %4, %5, %cst {dimension_numbers = #tpu.dot_dimension_numbers<[1], [0], [0], [1], [0, 0, 1, 1], [], []>} : vector<2x512xbf16>, vector<512x128xbf16>, vector<2x128xf32> -> vector<2x128xf32>
    %7 = arith.addf %3, %6 : vector<2x128xf32>
    %c0_6 = arith.constant 0 : index
    %c0_7 = arith.constant 0 : index
    %8 = vector.load %arg7[%c0_6, %c0_7] : memref<2x128xf32, #tpu.memory_space<vmem>>, vector<2x128xf32>
    tpu.vector_store %arg7[%c0_6, %c0_7], %7 {strides = array<i32>} : memref<2x128xf32, #tpu.memory_space<vmem>>, vector<2x128xf32>,
    %c1_i32 = arith.constant 1 : i32
    %9 = arith.cmpi eq, %arg0, %c1_i32 : i32
    %10 = arith.extui %9 : i1 to i32
    %c0_i32_8 = arith.constant 0 : i32
    %11 = arith.cmpi ne, %10, %c0_i32_8 : i32
    scf.if %11 {
      %c0_9 = arith.constant 0 : index
      %c0_10 = arith.constant 0 : index
      %12 = vector.load %arg7[%c0_9, %c0_10] : memref<2x128xf32, #tpu.memory_space<vmem>>, vector<2x128xf32>
      %c0_11 = arith.constant 0 : index
      %c0_12 = arith.constant 0 : index
      %13 = vector.load %arg3[%c0_11, %c0_12] : memref<1x128xf32, #tpu.memory_space<vmem>>, vector<1x128xf32>
      %14 = vector.broadcast %13 : vector<1x128xf32> to vector<2x128xf32>
      %15 = arith.addf %12, %14 : vector<2x128xf32>
      %cst_13 = arith.constant 0.000000e+00 : f32
      %16 = vector.broadcast %cst_13 : f32 to vector<2x128xf32>
      %17 = arith.maximumf %15, %16 : vector<2x128xf32>
      %c0_14 = arith.constant 0 : index
      %c0_15 = arith.constant 0 : index
      %18 = vector.load %arg4[%c0_14, %c0_15] : memref<128x2xf32, #tpu.memory_space<vmem>>, vector<128x2xf32>
      %cst_16 = arith.constant dense<0.000000e+00> : vector<2x2xf32>
      %19 = tpu.matmul %17, %18, %cst_16 {dimension_numbers = #tpu.dot_dimension_numbers<[1], [0], [0], [1], [0, 0, 1, 1], [], []>} : vector<2x128xf32>, vector<128x2xf32>, vector<2x2xf32> -> vector<2x2xf32>
      %c0_17 = arith.constant 0 : index
      %c0_18 = arith.constant 0 : index
      %20 = vector.load %arg5[%c0_17, %c0_18] : memref<1x2xf32, #tpu.memory_space<vmem>>, vector<1x2xf32>
      %21 = vector.broadcast %20 : vector<1x2xf32> to vector<2x2xf32>
      %22 = arith.addf %19, %21 : vector<2x2xf32>
      %c0_19 = arith.constant 0 : index
      %c0_20 = arith.constant 0 : index
      %23 = vector.load %arg6[%c0_19, %c0_20] : memref<2x2xf32, #tpu.memory_space<vmem>>, vector<2x2xf32>
      tpu.vector_store %arg6[%c0_19, %c0_20], %22 {strides = array<i32>} : memref<2x2xf32, #tpu.memory_space<vmem>>, vector<2x2xf32>,
    } else {
    }
    return
  }
  func.func @transform_0(%arg0: i32) -> (i32, i32) {
    %c0_i32 = arith.constant 0 : i32
    %c0_i32_0 = arith.constant 0 : i32
    return %c0_i32, %arg0 : i32, i32
  }
  func.func @transform_1(%arg0: i32) -> (i32, i32) {
    %c0_i32 = arith.constant 0 : i32
    %c0_i32_0 = arith.constant 0 : i32
    return %arg0, %c0_i32 : i32, i32
  }
  func.func @transform_2(%arg0: i32) -> (i32, i32) {
    %c0_i32 = arith.constant 0 : i32
    %c0_i32_0 = arith.constant 0 : i32
    %c0_i32_1 = arith.constant 0 : i32
    return %c0_i32, %c0_i32_0 : i32, i32
  }
  func.func @transform_3(%arg0: i32) -> (i32, i32) {
    %c0_i32 = arith.constant 0 : i32
    %c0_i32_0 = arith.constant 0 : i32
    %c0_i32_1 = arith.constant 0 : i32
    return %c0_i32, %c0_i32_0 : i32, i32
  }
  func.func @transform_4(%arg0: i32) -> (i32, i32) {
    %c0_i32 = arith.constant 0 : i32
    %c0_i32_0 = arith.constant 0 : i32
    %c0_i32_1 = arith.constant 0 : i32
    return %c0_i32, %c0_i32_0 : i32, i32
  }
  func.func @transform_5(%arg0: i32) -> (i32, i32) {
    %c0_i32 = arith.constant 0 : i32
    %c0_i32_0 = arith.constant 0 : i32
    %c0_i32_1 = arith.constant 0 : i32
    return %c0_i32, %c0_i32_0 : i32, i32
  }
}

</mosaic_0001>

<llo_original>
// kernel: cnn_regression_forward.5
$region0: #{cnn_regression_forward.5}
  #allocation0 [shape = 'u32[]', space=smem, size = 0x4, offset = 0x4, fixed_abs, tag = 'smem constant byte address 0x4 - core index']
  #allocation1 [shape = 'u32[72,128]{1,0:T(1,128)}', space=vmem, size = 0x9000, scoped, tag = 'internal scratch']
  #allocation2 [shape = 'f32[2,128]{1,0:T(2,128)}', space=vmem, size = 0x400, scoped, tag = 'scratch operand']
  %s0 = inlined_call_operand.vmem [shape: bf16[2,1024], index: 0, kind: input, shape index: {}]
  %s1 = inlined_call_operand.vmem [shape: bf16[1024,128], index: 1, kind: input, shape index: {}]
  %s2 = inlined_call_operand.vmem [shape: f32[1,128], index: 2, kind: input, shape index: {}]
  %s3 = inlined_call_operand.vmem [shape: f32[128,2], index: 3, kind: input, shape index: {}]
  %s4 = inlined_call_operand.vmem [shape: f32[1,2], index: 4, kind: input, shape index: {}]
  %s5 = inlined_call_operand.hbm [shape: f32[2,2], index: 5, kind: output, shape index: {}]
  %s6 = sld [smem:[#allocation0]]
  $region61: #{cnn_regression_forward.5} parent=0
    _
  %s8 = ssub.s32 1, %s6
  %s9 = scalar_select 0, %s8, %s6
  $region1: #{cnn_regression_forward.5} parent=0
    #allocation3 [shape = 'u8[1024]{0}', space=vmem, size = 0x400, scoped, tag = 'output window, operand 0, single buffered']
    #allocation4 [shape = 's32[2]{0}', space=sflag, size = 0x8, scoped, tag = 'scoped memory for cnn_regression_forward.5']
    %10 = vsyncpa [#allocation4], 0
    loop: start=0, step=1, limit=4
    $region2: #{cnn_regression_forward.5} parent=1 // loop_pre_header
      _
    $region3: #{cnn_regression_forward.5} parent=1 // loop_header
      %s12 = sphi 0, %s16
      %p13 = scmp.ge.s32.totalorder %s12, 4
      %s22 = sphi 0, %s24
      %s25 = sphi 0, %s22
      %s26 = sphi 0, %s25
      %s42 = sphi 0, %s26
      %s48 = sphi 0, %s50
      %s51 = sphi 0, %s48
      %s52 = sphi 0, %s51
      %s68 = sphi 0, %s52
      %s72 = sphi 0, %s72
      %s74 = sphi 0, %s72
      %s75 = sphi 0, %s74
      %s89 = sphi 0, %s75
      %s93 = sphi 0, %s93
      %s95 = sphi 0, %s93
      %s96 = sphi 0, %s95
      %s110 = sphi 0, %s96
      %s114 = sphi 0, %s114
      %s116 = sphi 0, %s114
      %s117 = sphi 0, %s116
      %s131 = sphi 0, %s117
      %s135 = sphi 0, %s135
      %s137 = sphi 0, %s135
      %s138 = sphi 0, %s137
      %s152 = sphi 0, %s138
    $region4: #{cnn_regression_forward.5} parent=1 // loop_header_branch
      %15 = sbr.rel (%p13) target = $region8
    $region5: #{cnn_regression_forward.5} parent=1 // loop_body
      %s17 = ssub.s32 %s12, 1
      %s18 = ssub.s32 %s12, 2
      %s19 = sadd.s32 %s12, 1
      %s20 = ssub.s32 %s12, %s19
      %p21 = scmp.eq.s32.totalorder %s20, 0
      %s23 = sadd.s32 %s22, 1
      %s24 = scalar_select %p21, %s22, %s23
      %p27 = pneg %p21
      %p28 = scmp.eq.s32.totalorder %s12, 1
      %p29 = por %p27, %p28
      %p30 = scmp.ne.s32.totalorder %s22, %s25
      %p31 = scmp.eq.s32.totalorder %s12, 0
      %p32 = por %p30, %p31
      %p33 = scmp.ne.s32.totalorder %s22, %s25
      %p34 = scmp.eq.s32.totalorder %s17, 1
      %p35 = por %p33, %p34
      %p36 = scmp.ne.s32.totalorder %s25, %s26
      %p37 = scmp.eq.s32.totalorder %s17, 0
      %p38 = por %p36, %p37
      %p39 = scmp.ne.s32.totalorder %s25, %s26
      %p40 = scmp.eq.s32.totalorder %s18, 1
      %p41 = por %p39, %p40
      %p43 = scmp.ne.s32.totalorder %s26, %s42
      %p44 = scmp.eq.s32.totalorder %s18, 0
      %p45 = por %p43, %p44
      %s46 = ssub.s32 %s12, %s19
      %p47 = scmp.eq.s32.totalorder %s46, 0
      %s49 = sadd.s32 %s48, 1
      %s50 = scalar_select %p47, %s48, %s49
      %p53 = pneg %p47
      %p54 = scmp.eq.s32.totalorder %s12, 1
      %p55 = por %p53, %p54
      %p56 = scmp.ne.s32.totalorder %s48, %s51
      %p57 = scmp.eq.s32.totalorder %s12, 0
      %p58 = por %p56, %p57
      %p59 = scmp.ne.s32.totalorder %s48, %s51
      %p60 = scmp.eq.s32.totalorder %s17, 1
      %p61 = por %p59, %p60
      %p62 = scmp.ne.s32.totalorder %s51, %s52
      %p63 = scmp.eq.s32.totalorder %s17, 0
      %p64 = por %p62, %p63
      %p65 = scmp.ne.s32.totalorder %s51, %s52
      %p66 = scmp.eq.s32.totalorder %s18, 1
      %p67 = por %p65, %p66
      %p69 = scmp.ne.s32.totalorder %s52, %s68
      %p70 = scmp.eq.s32.totalorder %s18, 0
      %p71 = por %p69, %p70
      %s73 = sadd.s32 %s72, 1
      %p76 = scmp.eq.s32.totalorder %s12, 1
      %p77 = scmp.ne.s32.totalorder %s72, %s74
      %p78 = scmp.eq.s32.totalorder %s12, 0
      %p79 = por %p77, %p78
      %p80 = scmp.ne.s32.totalorder %s72, %s74
      %p81 = scmp.eq.s32.totalorder %s17, 1
      %p82 = por %p80, %p81
      %p83 = scmp.ne.s32.totalorder %s74, %s75
      %p84 = scmp.eq.s32.totalorder %s17, 0
      %p85 = por %p83, %p84
      %p86 = scmp.ne.s32.totalorder %s74, %s75
      %p87 = scmp.eq.s32.totalorder %s18, 1
      %p88 = por %p86, %p87
      %p90 = scmp.ne.s32.totalorder %s75, %s89
      %p91 = scmp.eq.s32.totalorder %s18, 0
      %p92 = por %p90, %p91
      %s94 = sadd.s32 %s93, 1
      %p97 = scmp.eq.s32.totalorder %s12, 1
      %p98 = scmp.ne.s32.totalorder %s93, %s95
      %p99 = scmp.eq.s32.totalorder %s12, 0
      %p100 = por %p98, %p99
      %p101 = scmp.ne.s32.totalorder %s93, %s95
      %p102 = scmp.eq.s32.totalorder %s17, 1
      %p103 = por %p101, %p102
      %p104 = scmp.ne.s32.totalorder %s95, %s96
      %p105 = scmp.eq.s32.totalorder %s17, 0
      %p106 = por %p104, %p105
      %p107 = scmp.ne.s32.totalorder %s95, %s96
      %p108 = scmp.eq.s32.totalorder %s18, 1
      %p109 = por %p107, %p108
      %p111 = scmp.ne.s32.totalorder %s96, %s110
      %p112 = scmp.eq.s32.totalorder %s18, 0
      %p113 = por %p111, %p112
      %s115 = sadd.s32 %s114, 1
      %p118 = scmp.eq.s32.totalorder %s12, 1
      %p119 = scmp.ne.s32.totalorder %s114, %s116
      %p120 = scmp.eq.s32.totalorder %s12, 0
      %p121 = por %p119, %p120
      %p122 = scmp.ne.s32.totalorder %s114, %s116
      %p123 = scmp.eq.s32.totalorder %s17, 1
      %p124 = por %p122, %p123
      %p125 = scmp.ne.s32.totalorder %s116, %s117
      %p126 = scmp.eq.s32.totalorder %s17, 0
      %p127 = por %p125, %p126
      %p128 = scmp.ne.s32.totalorder %s116, %s117
      %p129 = scmp.eq.s32.totalorder %s18, 1
      %p130 = por %p128, %p129
      %p132 = scmp.ne.s32.totalorder %s117, %s131
      %p133 = scmp.eq.s32.totalorder %s18, 0
      %p134 = por %p132, %p133
      %s136 = sadd.s32 %s135, 1
      %p139 = scmp.eq.s32.totalorder %s12, 1
      %p140 = scmp.ne.s32.totalorder %s135, %s137
      %p141 = scmp.eq.s32.totalorder %s12, 0
      %p142 = por %p140, %p141
      %p143 = scmp.ne.s32.totalorder %s135, %s137
      %p144 = scmp.eq.s32.totalorder %s17, 1
      %p145 = por %p143, %p144
      %p146 = scmp.ne.s32.totalorder %s137, %s138
      %p147 = scmp.eq.s32.totalorder %s17, 0
      %p148 = por %p146, %p147
      %p149 = scmp.ne.s32.totalorder %s137, %s138
      %p150 = scmp.eq.s32.totalorder %s18, 1
      %p151 = por %p149, %p150
      %p153 = scmp.ne.s32.totalorder %s138, %s152
      %p154 = scmp.eq.s32.totalorder %s18, 0
      %p155 = por %p153, %p154
      %p156 = scmp.le.s32.totalorder 1, %s12
      %p157 = scmp.lt.s32.totalorder %s12, 3
      %p158 = pnand %p156, %p157
      %p159 = pneg %p158
      // Predicated region
      $region9: #{cnn_regression_forward.5} parent=5 // pred_check
        _
      $region10: #{cnn_regression_forward.5} parent=5 // pred_check_branch
        %161 = sbr.rel (%p158) target = $region12
      $region11: #{cnn_regression_forward.5} parent=5 // pred_region
        %s162 = ssub.s32 %s12, 1
        // Predicated region
        $region13: #{cnn_regression_forward.5} parent=11 // pred_check
          %p163 = pneg %p85
        $region14: #{cnn_regression_forward.5} parent=11 // pred_check_branch
          %165 = sbr.rel (%p163) target = $region16
        $region15: #{cnn_regression_forward.5} parent=11 // pred_region
          _
        $region16: #{cnn_regression_forward.5} parent=11 // pred_fallthru
          _
        // Predicated region
        $region17: #{cnn_regression_forward.5} parent=11 // pred_check
          %p166 = pneg %p106
        $region18: #{cnn_regression_forward.5} parent=11 // pred_check_branch
          %168 = sbr.rel (%p166) target = $region20
        $region19: #{cnn_regression_forward.5} parent=11 // pred_region
          _
        $region20: #{cnn_regression_forward.5} parent=11 // pred_fallthru
          _
        // Predicated region
        $region21: #{cnn_regression_forward.5} parent=11 // pred_check
          %p169 = pneg %p127
        $region22: #{cnn_regression_forward.5} parent=11 // pred_check_branch
          %171 = sbr.rel (%p169) target = $region24
        $region23: #{cnn_regression_forward.5} parent=11 // pred_region
          _
        $region24: #{cnn_regression_forward.5} parent=11 // pred_fallthru
          _
      $region12: #{cnn_regression_forward.5} parent=5 // pred_fallthru
        _
      %p172 = scmp.lt.s32.totalorder %s12, 2
      // Predicated region
      $region25: #{cnn_regression_forward.5} parent=5 // pred_check
        %p173 = pneg %p172
      $region26: #{cnn_regression_forward.5} parent=5 // pred_check_branch
        %175 = sbr.rel (%p173) target = $region28
      $region27: #{cnn_regression_forward.5} parent=5 // pred_region
        // Predicated region
        $region29: #{cnn_regression_forward.5} parent=27 // pred_check
          %p176 = pneg %p32
        $region30: #{cnn_regression_forward.5} parent=27 // pred_check_branch
          %178 = sbr.rel (%p176) target = $region32
        $region31: #{cnn_regression_forward.5} parent=27 // pred_region
          %s179 = smul.u32 4, %s12
          %p180 = scmp.lt.s32.totalorder %s179, 7
          %s181 = scalar_select %p180, %s179, 7
          %s182 = scalar_lea.vmem %s0, %s181
          %s183 = smul.u32 4, %s12
        $region32: #{cnn_regression_forward.5} parent=27 // pred_fallthru
          _
        // Predicated region
        $region33: #{cnn_regression_forward.5} parent=27 // pred_check
          %p184 = pneg %p58
        $region34: #{cnn_regression_forward.5} parent=27 // pred_check_branch
          %186 = sbr.rel (%p184) target = $region36
        $region35: #{cnn_regression_forward.5} parent=27 // pred_region
          %s187 = smul.u32 64, %s12
          %p188 = scmp.lt.s32.totalorder %s187, 127
          %s189 = scalar_select %p188, %s187, 127
          %s190 = smul.addr %s189, 4
          %s191 = scalar_lea.vmem %s1, %s190
          %s192 = smul.u32 64, %s12
        $region36: #{cnn_regression_forward.5} parent=27 // pred_fallthru
          _
      $region28: #{cnn_regression_forward.5} parent=5 // pred_fallthru
        _
      %p193 = scmp.le.s32.totalorder 1, %s12
      %p194 = scmp.lt.s32.totalorder %s12, 3
      %p195 = pnand %p193, %p194
      %p196 = pneg %p195
      // Predicated region
      $region37: #{cnn_regression_forward.5} parent=5 // pred_check
        _
      $region38: #{cnn_regression_forward.5} parent=5 // pred_check_branch
        %198 = sbr.rel (%p195) target = $region40
      $region39: #{cnn_regression_forward.5} parent=5 // pred_region
        %s199 = ssub.s32 %s12, 1
        %s200 = smul.u32 4, %s17
        %p201 = scmp.lt.s32.totalorder %s200, 7
        %s202 = scalar_select %p201, %s200, 7
        %s203 = scalar_lea.vmem %s0, %s202
        %p204 = pneg %p38
        %p205 = pneg %p35
        %s206 = smul.u32 64, %s17
        %p207 = scmp.lt.s32.totalorder %s206, 127
        %s208 = scalar_select %p207, %s206, 127
        %s209 = smul.addr %s208, 4
        %s210 = scalar_lea.vmem %s1, %s209
        %p211 = pneg %p64
        %p212 = pneg %p61
        %p213 = pneg %p85
        %p214 = pneg %p82
        %p215 = pneg %p106
        %p216 = pneg %p103
        %p217 = pneg %p127
        %p218 = pneg %p124
        %p219 = pneg %p148
        %p220 = pneg %p145
        %s221 = smul.u32 4, %s17
        %p222 = scmp.lt.s32.totalorder %s221, 7
        %s223 = scalar_select %p222, %s221, 7
        %s224 = scalar_lea.vmem %s0, %s223
        %s225 = smul.u32 4, %s17
        %s226 = smul.u32 64, %s17
        %p227 = scmp.lt.s32.totalorder %s226, 127
        %s228 = scalar_select %p227, %s226, 127
        %s229 = smul.addr %s228, 4
        %s230 = scalar_lea.vmem %s1, %s229
        %s231 = smul.u32 64, %s17
        %p232 = scmp.eq.s32.totalorder %s17, 0
        // Predicated region
        $region41: #{cnn_regression_forward.5} parent=39 // pred_check
          %p233 = pneg %p232
        $region42: #{cnn_regression_forward.5} parent=39 // pred_check_branch
          %235 = sbr.rel (%p233) target = $region44
        $region43: #{cnn_regression_forward.5} parent=39 // pred_region
          %236 = vst [vmem:[#allocation2] sm:$0x3] 0.0
        $region44: #{cnn_regression_forward.5} parent=39 // pred_fallthru
          _
        %v237 = vld [vmem:[#allocation2] sm:$0x3]
        %v238 = vld [vmem:[%s224] sm:$0xf]
        %v239 = vld [vmem:[%s230] sm:$0xf]
        %v240 = vld [vmem:[%s230 + $0x4] sm:$0xf]
        %v241 = vld [vmem:[%s230 + $0x8] sm:$0xf]
        %v242 = vld [vmem:[%s230 + $0xc] sm:$0xf]
        %v243 = vld [vmem:[%s230 + $0x10] sm:$0xf]
        %v244 = vld [vmem:[%s230 + $0x14] sm:$0xf]
        %v245 = vld [vmem:[%s230 + $0x18] sm:$0xf]
        %v246 = vld [vmem:[%s230 + $0x1c] sm:$0xf]
        %v247 = vld [vmem:[%s230 + $0x20] sm:$0xf]
        %v248 = vld [vmem:[%s230 + $0x24] sm:$0xf]
        %v249 = vld [vmem:[%s230 + $0x28] sm:$0xf]
        %v250 = vld [vmem:[%s230 + $0x2c] sm:$0xf]
        %v251 = vld [vmem:[%s230 + $0x30] sm:$0xf]
        %v252 = vld [vmem:[%s230 + $0x34] sm:$0xf]
        %v253 = vld [vmem:[%s230 + $0x38] sm:$0xf]
        %v254 = vld [vmem:[%s230 + $0x3c] sm:$0xf]
        %v255 = vld [vmem:[%s230 + $0x40] sm:$0xf]
        %v256 = vld [vmem:[%s230 + $0x44] sm:$0xf]
        %v257 = vld [vmem:[%s230 + $0x48] sm:$0xf]
        %v258 = vld [vmem:[%s230 + $0x4c] sm:$0xf]
        %v259 = vld [vmem:[%s230 + $0x50] sm:$0xf]
        %v260 = vld [vmem:[%s230 + $0x54] sm:$0xf]
        %v261 = vld [vmem:[%s230 + $0x58] sm:$0xf]
        %v262 = vld [vmem:[%s230 + $0x5c] sm:$0xf]
        %v263 = vld [vmem:[%s230 + $0x60] sm:$0xf]
        %v264 = vld [vmem:[%s230 + $0x64] sm:$0xf]
        %v265 = vld [vmem:[%s230 + $0x68] sm:$0xf]
        %v266 = vld [vmem:[%s230 + $0x6c] sm:$0xf]
        %v267 = vld [vmem:[%s230 + $0x70] sm:$0xf]
        %v268 = vld [vmem:[%s230 + $0x74] sm:$0xf]
        %v269 = vld [vmem:[%s230 + $0x78] sm:$0xf]
        %v270 = vld [vmem:[%s230 + $0x7c] sm:$0xf]
        %v271 = vld [vmem:[%s230 + $0x80] sm:$0xf]
        %v272 = vld [vmem:[%s230 + $0x84] sm:$0xf]
        %v273 = vld [vmem:[%s230 + $0x88] sm:$0xf]
        %v274 = vld [vmem:[%s230 + $0x8c] sm:$0xf]
        %v275 = vld [vmem:[%s230 + $0x90] sm:$0xf]
        %v276 = vld [vmem:[%s230 + $0x94] sm:$0xf]
        %v277 = vld [vmem:[%s230 + $0x98] sm:$0xf]
        %v278 = vld [vmem:[%s230 + $0x9c] sm:$0xf]
        %v279 = vld [vmem:[%s230 + $0xa0] sm:$0xf]
        %v280 = vld [vmem:[%s230 + $0xa4] sm:$0xf]
        %v281 = vld [vmem:[%s230 + $0xa8] sm:$0xf]
        %v282 = vld [vmem:[%s230 + $0xac] sm:$0xf]
        %v283 = vld [vmem:[%s230 + $0xb0] sm:$0xf]
        %v284 = vld [vmem:[%s230 + $0xb4] sm:$0xf]
        %v285 = vld [vmem:[%s230 + $0xb8] sm:$0xf]
        %v286 = vld [vmem:[%s230 + $0xbc] sm:$0xf]
        %v287 = vld [vmem:[%s230 + $0xc0] sm:$0xf]
        %v288 = vld [vmem:[%s230 + $0xc4] sm:$0xf]
        %v289 = vld [vmem:[%s230 + $0xc8] sm:$0xf]
        %v290 = vld [vmem:[%s230 + $0xcc] sm:$0xf]
        %v291 = vld [vmem:[%s230 + $0xd0] sm:$0xf]
        %v292 = vld [vmem:[%s230 + $0xd4] sm:$0xf]
        %v293 = vld [vmem:[%s230 + $0xd8] sm:$0xf]
        %v294 = vld [vmem:[%s230 + $0xdc] sm:$0xf]
        %v295 = vld [vmem:[%s230 + $0xe0] sm:$0xf]
        %v296 = vld [vmem:[%s230 + $0xe4] sm:$0xf]
        %v297 = vld [vmem:[%s230 + $0xe8] sm:$0xf]
        %v298 = vld [vmem:[%s230 + $0xec] sm:$0xf]
        %v299 = vld [vmem:[%s230 + $0xf0] sm:$0xf]
        %v300 = vld [vmem:[%s230 + $0xf4] sm:$0xf]
        %v301 = vld [vmem:[%s230 + $0xf8] sm:$0xf]
        %v302 = vld [vmem:[%s230 + $0xfc] sm:$0xf]
        %304 = vst [vmem:[#allocation1] ss:$9 sm:$0xff] %v238
        %v305 = vld [vmem:[#allocation1] sm:$0xff]
        %v306 = vld [vmem:[#allocation1 + $0x9] sm:$0xff]
        %v307 = vld [vmem:[#allocation1 + $0x12] sm:$0xff]
        %v308 = vld [vmem:[#allocation1 + $0x1b] sm:$0xff]
        %v377 = vunpack.c.l.b16 %v239
        %v378 = vunpack.c.l.b16 %v240
        %v379 = vunpack.c.l.b16 %v241
        %v380 = vunpack.c.l.b16 %v242
        %v381 = vunpack.c.l.b16 %v243
        %v382 = vunpack.c.l.b16 %v244
        %v383 = vunpack.c.l.b16 %v245
        %v384 = vunpack.c.l.b16 %v246
        %v385 = vunpack.c.l.b16 %v247
        %v386 = vunpack.c.l.b16 %v248
        %v387 = vunpack.c.l.b16 %v249
        %v388 = vunpack.c.l.b16 %v250
        %v389 = vunpack.c.l.b16 %v251
        %v390 = vunpack.c.l.b16 %v252
        %v391 = vunpack.c.l.b16 %v253
        %v392 = vunpack.c.l.b16 %v254
        %v393 = vunpack.c.l.b16 %v255
        %v394 = vunpack.c.l.b16 %v256
        %v395 = vunpack.c.l.b16 %v257
        %v396 = vunpack.c.l.b16 %v258
        %v397 = vunpack.c.l.b16 %v259
        %v398 = vunpack.c.l.b16 %v260
        %v399 = vunpack.c.l.b16 %v261
        %v400 = vunpack.c.l.b16 %v262
        %v401 = vunpack.c.l.b16 %v263
        %v402 = vunpack.c.l.b16 %v264
        %v403 = vunpack.c.l.b16 %v265
        %v404 = vunpack.c.l.b16 %v266
        %v405 = vunpack.c.l.b16 %v267
        %v406 = vunpack.c.l.b16 %v268
        %v407 = vunpack.c.l.b16 %v269
        %v408 = vunpack.c.l.b16 %v270
        %v409 = vunpack.c.l.b16 %v271
        %v410 = vunpack.c.l.b16 %v272
        %v411 = vunpack.c.l.b16 %v273
        %v412 = vunpack.c.l.b16 %v274
        %v413 = vunpack.c.l.b16 %v275
        %v414 = vunpack.c.l.b16 %v276
        %v415 = vunpack.c.l.b16 %v277
        %v416 = vunpack.c.l.b16 %v278
        %v417 = vunpack.c.l.b16 %v279
        %v418 = vunpack.c.l.b16 %v280
        %v419 = vunpack.c.l.b16 %v281
        %v420 = vunpack.c.l.b16 %v282
        %v421 = vunpack.c.l.b16 %v283
        %v422 = vunpack.c.l.b16 %v284
        %v423 = vunpack.c.l.b16 %v285
        %v424 = vunpack.c.l.b16 %v286
        %v425 = vunpack.c.l.b16 %v287
        %v426 = vunpack.c.l.b16 %v288
        %v427 = vunpack.c.l.b16 %v289
        %v428 = vunpack.c.l.b16 %v290
        %v429 = vunpack.c.l.b16 %v291
        %v430 = vunpack.c.l.b16 %v292
        %v431 = vunpack.c.l.b16 %v293
        %v432 = vunpack.c.l.b16 %v294
        %v433 = vunpack.c.l.b16 %v295
        %v434 = vunpack.c.l.b16 %v296
        %v435 = vunpack.c.l.b16 %v297
        %v436 = vunpack.c.l.b16 %v298
        %v437 = vunpack.c.l.b16 %v299
        %v438 = vunpack.c.l.b16 %v300
        %v439 = vunpack.c.l.b16 %v301
        %v440 = vunpack.c.l.b16 %v302
        %v441 = vpack.c.b16 %v378, %v377
        %v442 = vpack.c.b16 %v380, %v379
        %v443 = vpack.c.b16 %v382, %v381
        %v444 = vpack.c.b16 %v384, %v383
        %v445 = vpack.c.b16 %v386, %v385
        %v446 = vpack.c.b16 %v388, %v387
        %v447 = vpack.c.b16 %v390, %v389
        %v448 = vpack.c.b16 %v392, %v391
        %v449 = vpack.c.b16 %v394, %v393
        %v450 = vpack.c.b16 %v396, %v395
        %v451 = vpack.c.b16 %v398, %v397
        %v452 = vpack.c.b16 %v400, %v399
        %v453 = vpack.c.b16 %v402, %v401
        %v454 = vpack.c.b16 %v404, %v403
        %v455 = vpack.c.b16 %v406, %v405
        %v456 = vpack.c.b16 %v408, %v407
        %v457 = vpack.c.b16 %v410, %v409
        %v458 = vpack.c.b16 %v412, %v411
        %v459 = vpack.c.b16 %v414, %v413
        %v460 = vpack.c.b16 %v416, %v415
        %v461 = vpack.c.b16 %v418, %v417
        %v462 = vpack.c.b16 %v420, %v419
        %v463 = vpack.c.b16 %v422, %v421
        %v464 = vpack.c.b16 %v424, %v423
        %v465 = vpack.c.b16 %v426, %v425
        %v466 = vpack.c.b16 %v428, %v427
        %v467 = vpack.c.b16 %v430, %v429
        %v468 = vpack.c.b16 %v432, %v431
        %v469 = vpack.c.b16 %v434, %v433
        %v470 = vpack.c.b16 %v436, %v435
        %v471 = vpack.c.b16 %v438, %v437
        %v472 = vpack.c.b16 %v440, %v439
        %505 = vmatpush.bf16.msra.mxu0 %v448
        %506 = vmatpush.bf16.msra.mxu0 %v447
        %507 = vmatpush.bf16.msra.mxu0 %v446
        %508 = vmatpush.bf16.msra.mxu0 %v445
        %509 = vmatpush.bf16.msra.mxu0 %v444
        %510 = vmatpush.bf16.msra.mxu0 %v443
        %511 = vmatpush.bf16.msra.mxu0 %v442
        %512 = vmatpush.bf16.msra.mxu0 %v441
        %513 = vmatmul.bf16.gmra.mxu0 %v305
        %v514 = vpop.f32.mrf.mxu0
        %v515 = vadd.f32 0.0, %v514
        %v516 = vpop.f32.mrf.mxu0
        %517 = vdwg.mxu0
        %518 = vmatpush.bf16.msra.mxu0 %v456
        %519 = vmatpush.bf16.msra.mxu0 %v455
        %520 = vmatpush.bf16.msra.mxu0 %v454
        %521 = vmatpush.bf16.msra.mxu0 %v453
        %522 = vmatpush.bf16.msra.mxu0 %v452
        %523 = vmatpush.bf16.msra.mxu0 %v451
        %524 = vmatpush.bf16.msra.mxu0 %v450
        %525 = vmatpush.bf16.msra.mxu0 %v449
        %526 = vmatmul.bf16.gmra.mxu0 %v306
        %v527 = vpop.f32.mrf.mxu0
        %v528 = vadd.f32 %v515, %v527
        %v529 = vpop.f32.mrf.mxu0
        %530 = vdwg.mxu0
        %531 = vmatpush.bf16.msra.mxu0 %v464
        %532 = vmatpush.bf16.msra.mxu0 %v463
        %533 = vmatpush.bf16.msra.mxu0 %v462
        %534 = vmatpush.bf16.msra.mxu0 %v461
        %535 = vmatpush.bf16.msra.mxu0 %v460
        %536 = vmatpush.bf16.msra.mxu0 %v459
        %537 = vmatpush.bf16.msra.mxu0 %v458
        %538 = vmatpush.bf16.msra.mxu0 %v457
        %539 = vmatmul.bf16.gmra.mxu0 %v307
        %v540 = vpop.f32.mrf.mxu0
        %v541 = vadd.f32 %v528, %v540
        %v542 = vpop.f32.mrf.mxu0
        %543 = vdwg.mxu0
        %544 = vmatpush.bf16.msra.mxu0 %v472
        %545 = vmatpush.bf16.msra.mxu0 %v471
        %546 = vmatpush.bf16.msra.mxu0 %v470
        %547 = vmatpush.bf16.msra.mxu0 %v469
        %548 = vmatpush.bf16.msra.mxu0 %v468
        %549 = vmatpush.bf16.msra.mxu0 %v467
        %550 = vmatpush.bf16.msra.mxu0 %v466
        %551 = vmatpush.bf16.msra.mxu0 %v465
        %552 = vmatmul.bf16.gmra.mxu0 %v308
        %v553 = vpop.f32.mrf.mxu0
        %v554 = vadd.f32 %v541, %v553
        %v555 = vpop.f32.mrf.mxu0
        %556 = vdwg.mxu0
        %v557 = vadd.f32 %v237, %v554
        %558 = vst [vmem:[#allocation2] sm:$0x3] %v557
        %p559 = scmp.eq.s32.totalorder %s17, 1
        // Predicated region
        $region45: #{cnn_regression_forward.5} parent=39 // pred_check
          %p560 = pneg %p559
        $region46: #{cnn_regression_forward.5} parent=39 // pred_check_branch
          %562 = sbr.rel (%p560) target = $region48
        $region47: #{cnn_regression_forward.5} parent=39 // pred_region
          %v563 = vld [vmem:[#allocation2] sm:$0x3]
          %v564 = vld [vmem:[%s2] sm:$0x1]
          %v566 = vperm.slane %v564, 0
          %v568 = vadd.f32 %v563, %v566
          %v569 = vmax.f32 %v568, 0.0
          %v570 = vld [vmem:[%s3] sm:$0xff]
          %v571 = vld [vmem:[%s3 + $0x8] sm:$0xff]
          %v572 = vld [vmem:[%s3 + $0x10] sm:$0xff]
          %v573 = vld [vmem:[%s3 + $0x18] sm:$0xff]
          %v574 = vld [vmem:[%s3 + $0x20] sm:$0xff]
          %v575 = vld [vmem:[%s3 + $0x28] sm:$0xff]
          %v576 = vld [vmem:[%s3 + $0x30] sm:$0xff]
          %v577 = vld [vmem:[%s3 + $0x38] sm:$0xff]
          %v578 = vld [vmem:[%s3 + $0x40] sm:$0xff]
          %v579 = vld [vmem:[%s3 + $0x48] sm:$0xff]
          %v580 = vld [vmem:[%s3 + $0x50] sm:$0xff]
          %v581 = vld [vmem:[%s3 + $0x58] sm:$0xff]
          %v582 = vld [vmem:[%s3 + $0x60] sm:$0xff]
          %v583 = vld [vmem:[%s3 + $0x68] sm:$0xff]
          %v584 = vld [vmem:[%s3 + $0x70] sm:$0xff]
          %v585 = vld [vmem:[%s3 + $0x78] sm:$0xff]
          %v586 = vld [vmem:[%s4] sm:$0x1]
          %v588 = vperm.slane %v586, 0
          %590 = vmatpush.msra.mxu0 %v585
          %591 = vmatpush.msra.mxu0 %v584
          %592 = vmatpush.msra.mxu0 %v583
          %593 = vmatpush.msra.mxu0 %v582
          %594 = vmatpush.msra.mxu0 %v581
          %595 = vmatpush.msra.mxu0 %v580
          %596 = vmatpush.msra.mxu0 %v579
          %597 = vmatpush.msra.mxu0 %v578
          %598 = vmatpush.msra.mxu0 %v577
          %599 = vmatpush.msra.mxu0 %v576
          %600 = vmatpush.msra.mxu0 %v575
          %601 = vmatpush.msra.mxu0 %v574
          %602 = vmatpush.msra.mxu0 %v573
          %603 = vmatpush.msra.mxu0 %v572
          %604 = vmatpush.msra.mxu0 %v571
          %605 = vmatpush.msra.mxu0 %v570
          %606 = vmatmul.f32.gmra.mxu0 %v569
          %v607 = vpop.f32.mrf.mxu0
          %v608 = vadd.f32 %v588, %v607
          %609 = vdwg.mxu0
          %vm610 = vcmask 9216
          %611 = vst.msk [vmem:[#allocation3] sm:$0x3] %vm610, %v608
        $region48: #{cnn_regression_forward.5} parent=39 // pred_fallthru
          _
        // Predicated region
        $region49: #{cnn_regression_forward.5} parent=39 // pred_check
          %p612 = pneg %p145
        $region50: #{cnn_regression_forward.5} parent=39 // pred_check_branch
          %614 = sbr.rel (%p612) target = $region52
        $region51: #{cnn_regression_forward.5} parent=39 // pred_region
          %616 = vsyncadd [#allocation4], 0
          %s618 = sshll.u32 [#allocation3], 4
          %s619 = int_to_ptr.vmem [resolvable:$true] %s618
          %s620 = sshll.u32 %s5, 4
          %s621 = int_to_ptr.hbm [resolvable:$true] %s620
          %623 = dma.vmem_to_hbm [thread:$0]  %s619, 32, %s621, [#allocation4]
        $region52: #{cnn_regression_forward.5} parent=39 // pred_fallthru
          _
        // Predicated region
        $region53: #{cnn_regression_forward.5} parent=39 // pred_check
          %p624 = pneg %p145
        $region54: #{cnn_regression_forward.5} parent=39 // pred_check_branch
          %626 = sbr.rel (%p624) target = $region56
        $region55: #{cnn_regression_forward.5} parent=39 // pred_region
          %628 = dma.done [#allocation4], 32
        $region56: #{cnn_regression_forward.5} parent=39 // pred_fallthru
          _
      $region40: #{cnn_regression_forward.5} parent=5 // pred_fallthru
        _
      %p629 = scmp.le.s32.totalorder 2, %s12
      // Predicated region
      $region57: #{cnn_regression_forward.5} parent=5 // pred_check
        %p630 = pneg %p629
      $region58: #{cnn_regression_forward.5} parent=5 // pred_check_branch
        %632 = sbr.rel (%p630) target = $region60
      $region59: #{cnn_regression_forward.5} parent=5 // pred_region
        %s633 = ssub.s32 %s12, 2
      $region60: #{cnn_regression_forward.5} parent=5 // pred_fallthru
        _
    $region6: #{cnn_regression_forward.5} parent=1 // loop_footer
      %s16 = sadd.s32 1, %s12
    $region7: #{cnn_regression_forward.5} parent=1 // loop_footer_branch
      %11 = sbr.rel target = $region3
    $region8: #{cnn_regression_forward.5} parent=1 // loop_exit
      _
    %634 = vsyncpa [#allocation4], 1
    %s635 = scalar_lea.sflag [#allocation4], 1
    %636 = vsyncpa %s635, 1

// kernel: cnn_regression_forward.4
$region0: #{cnn_regression_forward.4}
  #allocation0 [shape = 'u32[]', space=smem, size = 0x4, offset = 0x4, fixed_abs, tag = 'smem constant byte address 0x4 - core index']
  #allocation1 [shape = 'u32[72,128]{1,0:T(1,128)}', space=vmem, size = 0x9000, scoped, tag = 'internal scratch']
  %s0 = inlined_call_operand.vmem [shape: f32[2,9,9,32], index: 0, kind: input, shape index: {}]
  %s1 = inlined_call_operand.vmem [shape: f32[3,3,32,64], index: 1, kind: input, shape index: {}]
  %s2 = inlined_call_operand.vmem [shape: f32[1,64], index: 2, kind: input, shape index: {}]
  %s3 = inlined_call_operand.vmem [shape: f32[2,3,3,64], index: 3, kind: output, shape index: {}]
  %s4 = sld [smem:[#allocation0]]
  $region45: #{cnn_regression_forward.4} parent=0
    _
  %s6 = ssub.s32 1, %s4
  %s7 = scalar_select 0, %s6, %s4
  loop: start=0, step=1, limit=4
  $region2: #{cnn_regression_forward.4} parent=0 // loop_pre_header
    _
  $region3: #{cnn_regression_forward.4} parent=0 // loop_header
    %s9 = sphi 0, %s13
    %p10 = scmp.ge.s32.totalorder %s9, 4
    %s19 = sphi 0, %s21
    %s22 = sphi 0, %s19
    %s23 = sphi 0, %s22
    %s39 = sphi 0, %s23
    %s43 = sphi 0, %s43
    %s45 = sphi 0, %s43
    %s46 = sphi 0, %s45
    %s60 = sphi 0, %s46
    %s64 = sphi 0, %s64
    %s66 = sphi 0, %s64
    %s67 = sphi 0, %s66
    %s81 = sphi 0, %s67
    %s87 = sphi 0, %s89
    %s90 = sphi 0, %s87
    %s91 = sphi 0, %s90
    %s107 = sphi 0, %s91
  $region4: #{cnn_regression_forward.4} parent=0 // loop_header_branch
    %12 = sbr.rel (%p10) target = $region8
  $region5: #{cnn_regression_forward.4} parent=0 // loop_body
    %s14 = ssub.s32 %s9, 1
    %s15 = ssub.s32 %s9, 2
    %s16 = sadd.s32 %s9, 1
    %s17 = ssub.s32 %s9, %s16
    %p18 = scmp.eq.s32.totalorder %s17, 0
    %s20 = sadd.s32 %s19, 1
    %s21 = scalar_select %p18, %s19, %s20
    %p24 = pneg %p18
    %p25 = scmp.eq.s32.totalorder %s9, 1
    %p26 = por %p24, %p25
    %p27 = scmp.ne.s32.totalorder %s19, %s22
    %p28 = scmp.eq.s32.totalorder %s9, 0
    %p29 = por %p27, %p28
    %p30 = scmp.ne.s32.totalorder %s19, %s22
    %p31 = scmp.eq.s32.totalorder %s14, 1
    %p32 = por %p30, %p31
    %p33 = scmp.ne.s32.totalorder %s22, %s23
    %p34 = scmp.eq.s32.totalorder %s14, 0
    %p35 = por %p33, %p34
    %p36 = scmp.ne.s32.totalorder %s22, %s23
    %p37 = scmp.eq.s32.totalorder %s15, 1
    %p38 = por %p36, %p37
    %p40 = scmp.ne.s32.totalorder %s23, %s39
    %p41 = scmp.eq.s32.totalorder %s15, 0
    %p42 = por %p40, %p41
    %s44 = sadd.s32 %s43, 1
    %p47 = scmp.eq.s32.totalorder %s9, 1
    %p48 = scmp.ne.s32.totalorder %s43, %s45
    %p49 = scmp.eq.s32.totalorder %s9, 0
    %p50 = por %p48, %p49
    %p51 = scmp.ne.s32.totalorder %s43, %s45
    %p52 = scmp.eq.s32.totalorder %s14, 1
    %p53 = por %p51, %p52
    %p54 = scmp.ne.s32.totalorder %s45, %s46
    %p55 = scmp.eq.s32.totalorder %s14, 0
    %p56 = por %p54, %p55
    %p57 = scmp.ne.s32.totalorder %s45, %s46
    %p58 = scmp.eq.s32.totalorder %s15, 1
    %p59 = por %p57, %p58
    %p61 = scmp.ne.s32.totalorder %s46, %s60
    %p62 = scmp.eq.s32.totalorder %s15, 0
    %p63 = por %p61, %p62
    %s65 = sadd.s32 %s64, 1
    %p68 = scmp.eq.s32.totalorder %s9, 1
    %p69 = scmp.ne.s32.totalorder %s64, %s66
    %p70 = scmp.eq.s32.totalorder %s9, 0
    %p71 = por %p69, %p70
    %p72 = scmp.ne.s32.totalorder %s64, %s66
    %p73 = scmp.eq.s32.totalorder %s14, 1
    %p74 = por %p72, %p73
    %p75 = scmp.ne.s32.totalorder %s66, %s67
    %p76 = scmp.eq.s32.totalorder %s14, 0
    %p77 = por %p75, %p76
    %p78 = scmp.ne.s32.totalorder %s66, %s67
    %p79 = scmp.eq.s32.totalorder %s15, 1
    %p80 = por %p78, %p79
    %p82 = scmp.ne.s32.totalorder %s67, %s81
    %p83 = scmp.eq.s32.totalorder %s15, 0
    %p84 = por %p82, %p83
    %s85 = ssub.s32 %s9, %s16
    %p86 = scmp.eq.s32.totalorder %s85, 0
    %s88 = sadd.s32 %s87, 1
    %s89 = scalar_select %p86, %s87, %s88
    %p92 = pneg %p86
    %p93 = scmp.eq.s32.totalorder %s9, 1
    %p94 = por %p92, %p93
    %p95 = scmp.ne.s32.totalorder %s87, %s90
    %p96 = scmp.eq.s32.totalorder %s9, 0
    %p97 = por %p95, %p96
    %p98 = scmp.ne.s32.totalorder %s87, %s90
    %p99 = scmp.eq.s32.totalorder %s14, 1
    %p100 = por %p98, %p99
    %p101 = scmp.ne.s32.totalorder %s90, %s91
    %p102 = scmp.eq.s32.totalorder %s14, 0
    %p103 = por %p101, %p102
    %p104 = scmp.ne.s32.totalorder %s90, %s91
    %p105 = scmp.eq.s32.totalorder %s15, 1
    %p106 = por %p104, %p105
    %p108 = scmp.ne.s32.totalorder %s91, %s107
    %p109 = scmp.eq.s32.totalorder %s15, 0
    %p110 = por %p108, %p109
    %p111 = scmp.le.s32.totalorder 1, %s9
    %p112 = scmp.lt.s32.totalorder %s9, 3
    %p113 = pnand %p111, %p112
    %p114 = pneg %p113
    // Predicated region
    $region9: #{cnn_regression_forward.4} parent=5 // pred_check
      _
    $region10: #{cnn_regression_forward.4} parent=5 // pred_check_branch
      %116 = sbr.rel (%p113) target = $region12
    $region11: #{cnn_regression_forward.4} parent=5 // pred_region
      %s117 = ssub.s32 %s9, 1
      // Predicated region
      $region13: #{cnn_regression_forward.4} parent=11 // pred_check
        %p118 = pneg %p56
      $region14: #{cnn_regression_forward.4} parent=11 // pred_check_branch
        %120 = sbr.rel (%p118) target = $region16
      $region15: #{cnn_regression_forward.4} parent=11 // pred_region
        _
      $region16: #{cnn_regression_forward.4} parent=11 // pred_fallthru
        _
      // Predicated region
      $region17: #{cnn_regression_forward.4} parent=11 // pred_check
        %p121 = pneg %p77
      $region18: #{cnn_regression_forward.4} parent=11 // pred_check_branch
        %123 = sbr.rel (%p121) target = $region20
      $region19: #{cnn_regression_forward.4} parent=11 // pred_region
        _
      $region20: #{cnn_regression_forward.4} parent=11 // pred_fallthru
        _
    $region12: #{cnn_regression_forward.4} parent=5 // pred_fallthru
      _
    %p124 = scmp.lt.s32.totalorder %s9, 2
    // Predicated region
    $region21: #{cnn_regression_forward.4} parent=5 // pred_check
      %p125 = pneg %p124
    $region22: #{cnn_regression_forward.4} parent=5 // pred_check_branch
      %127 = sbr.rel (%p125) target = $region24
    $region23: #{cnn_regression_forward.4} parent=5 // pred_region
      // Predicated region
      $region25: #{cnn_regression_forward.4} parent=23 // pred_check
        %p128 = pneg %p29
      $region26: #{cnn_regression_forward.4} parent=23 // pred_check_branch
        %130 = sbr.rel (%p128) target = $region28
      $region27: #{cnn_regression_forward.4} parent=23 // pred_region
        %p131 = scmp.lt.s32.totalorder %s9, 1
        %s132 = scalar_select %p131, %s9, 1
        %s133 = smul.addr %s132, 18
        %s134 = smul.addr %s133, 8
        %s135 = scalar_lea.vmem %s0, %s134
      $region28: #{cnn_regression_forward.4} parent=23 // pred_fallthru
        _
    $region24: #{cnn_regression_forward.4} parent=5 // pred_fallthru
      _
    %p136 = scmp.le.s32.totalorder 1, %s9
    %p137 = scmp.lt.s32.totalorder %s9, 3
    %p138 = pnand %p136, %p137
    %p139 = pneg %p138
    // Predicated region
    $region29: #{cnn_regression_forward.4} parent=5 // pred_check
      _
    $region30: #{cnn_regression_forward.4} parent=5 // pred_check_branch
      %141 = sbr.rel (%p138) target = $region32
    $region31: #{cnn_regression_forward.4} parent=5 // pred_region
      %s142 = ssub.s32 %s9, 1
      %p143 = scmp.lt.s32.totalorder %s14, 1
      %s144 = scalar_select %p143, %s14, 1
      %s145 = smul.addr %s144, 18
      %s146 = smul.addr %s145, 8
      %s147 = scalar_lea.vmem %s0, %s146
      %p148 = pneg %p35
      %p149 = pneg %p32
      %p150 = pneg %p56
      %p151 = pneg %p53
      %p152 = pneg %p77
      %p153 = pneg %p74
      %p154 = pneg %p103
      %p155 = pneg %p100
      %p156 = scmp.lt.s32.totalorder %s14, 1
      %s157 = scalar_select %p156, %s14, 1
      %s158 = smul.addr %s157, 3
      %s159 = smul.addr %s158, 4
      %s160 = scalar_lea.vmem %s3, %s159
      %p161 = scmp.lt.s32.totalorder %s14, 1
      %s162 = scalar_select %p161, %s14, 1
      %s163 = smul.addr %s162, 18
      %s164 = smul.addr %s163, 8
      %s165 = scalar_lea.vmem %s0, %s164
      %p166 = scmp.lt.s32.totalorder %s14, 1
      %s167 = scalar_select %p166, %s14, 1
      %s168 = smul.addr %s167, 3
      %s169 = smul.addr %s168, 4
      %s170 = scalar_lea.vmem %s3, %s169
      %v171 = vld [vmem:[%s165] sm:$0x7f]
      %v172 = vld [vmem:[%s165 + $0x10] sm:$0x7f]
      %v173 = vld [vmem:[%s165 + $0x20] sm:$0x7f]
      %v174 = vld [vmem:[%s165 + $0x30] sm:$0x7f]
      %v175 = vld [vmem:[%s165 + $0x40] sm:$0x7f]
      %v176 = vld [vmem:[%s165 + $0x50] sm:$0x7f]
      %v177 = vld [vmem:[%s165 + $0x60] sm:$0x7f]
      %v185 = vrot.slane %v171, 1
      %v186 = vrot.slane %v171, 2
      %v187 = vrot.slane %v171, 3
      %v188 = vrot.slane %v171, 4
      %v189 = vrot.slane %v171, 5
      %v190 = vrot.slane %v171, 6
      %v191 = vrot.slane %v172, 1
      %v192 = vrot.slane %v172, 2
      %v193 = vrot.slane %v172, 3
      %v194 = vrot.slane %v172, 4
      %v195 = vrot.slane %v172, 5
      %v196 = vrot.slane %v172, 6
      %v197 = vrot.slane %v173, 1
      %v198 = vrot.slane %v173, 2
      %v199 = vrot.slane %v173, 3
      %v200 = vrot.slane %v173, 4
      %v201 = vrot.slane %v173, 5
      %v202 = vrot.slane %v173, 6
      %v203 = vrot.slane %v174, 1
      %v204 = vrot.slane %v174, 2
      %v205 = vrot.slane %v174, 3
      %v206 = vrot.slane %v174, 4
      %v207 = vrot.slane %v174, 5
      %v208 = vrot.slane %v174, 6
      %v209 = vrot.slane %v175, 1
      %v210 = vrot.slane %v175, 2
      %v211 = vrot.slane %v175, 3
      %v212 = vrot.slane %v175, 4
      %v213 = vrot.slane %v175, 5
      %v214 = vrot.slane %v175, 6
      %v215 = vrot.slane %v176, 1
      %v216 = vrot.slane %v176, 2
      %v217 = vrot.slane %v176, 3
      %v218 = vrot.slane %v176, 4
      %v219 = vrot.slane %v176, 5
      %v220 = vrot.slane %v176, 6
      %v221 = vrot.slane %v177, 1
      %v222 = vrot.slane %v177, 2
      %v223 = vrot.slane %v177, 3
      %v224 = vrot.slane %v177, 4
      %v225 = vrot.slane %v177, 5
      %v226 = vrot.slane %v177, 6
      %v227 = vld [vmem:[%s1] sm:$0xff]
      %v228 = vld [vmem:[%s1 + $0x8] sm:$0xff]
      %v229 = vld [vmem:[%s1 + $0x10] sm:$0xff]
      %v230 = vld [vmem:[%s1 + $0x18] sm:$0xff]
      %v231 = vld [vmem:[%s165 + $0x1] sm:$0x7f]
      %v232 = vld [vmem:[%s165 + $0x11] sm:$0x7f]
      %v233 = vld [vmem:[%s165 + $0x21] sm:$0x7f]
      %v234 = vld [vmem:[%s165 + $0x31] sm:$0x7f]
      %v235 = vld [vmem:[%s165 + $0x41] sm:$0x7f]
      %v236 = vld [vmem:[%s165 + $0x51] sm:$0x7f]
      %v237 = vld [vmem:[%s165 + $0x61] sm:$0x7f]
      %v245 = vrot.slane %v231, 1
      %v246 = vrot.slane %v231, 2
      %v247 = vrot.slane %v231, 3
      %v248 = vrot.slane %v231, 4
      %v249 = vrot.slane %v231, 5
      %v250 = vrot.slane %v231, 6
      %v251 = vrot.slane %v232, 1
      %v252 = vrot.slane %v232, 2
      %v253 = vrot.slane %v232, 3
      %v254 = vrot.slane %v232, 4
      %v255 = vrot.slane %v232, 5
      %v256 = vrot.slane %v232, 6
      %v257 = vrot.slane %v233, 1
      %v258 = vrot.slane %v233, 2
      %v259 = vrot.slane %v233, 3
      %v260 = vrot.slane %v233, 4
      %v261 = vrot.slane %v233, 5
      %v262 = vrot.slane %v233, 6
      %v263 = vrot.slane %v234, 1
      %v264 = vrot.slane %v234, 2
      %v265 = vrot.slane %v234, 3
      %v266 = vrot.slane %v234, 4
      %v267 = vrot.slane %v234, 5
      %v268 = vrot.slane %v234, 6
      %v269 = vrot.slane %v235, 1
      %v270 = vrot.slane %v235, 2
      %v271 = vrot.slane %v235, 3
      %v272 = vrot.slane %v235, 4
      %v273 = vrot.slane %v235, 5
      %v274 = vrot.slane %v235, 6
      %v275 = vrot.slane %v236, 1
      %v276 = vrot.slane %v236, 2
      %v277 = vrot.slane %v236, 3
      %v278 = vrot.slane %v236, 4
      %v279 = vrot.slane %v236, 5
      %v280 = vrot.slane %v236, 6
      %v281 = vrot.slane %v237, 1
      %v282 = vrot.slane %v237, 2
      %v283 = vrot.slane %v237, 3
      %v284 = vrot.slane %v237, 4
      %v285 = vrot.slane %v237, 5
      %v286 = vrot.slane %v237, 6
      %s287 = scalar_lea.vmem %s1, 32
      %v288 = vld [vmem:[%s287] sm:$0xff]
      %v289 = vld [vmem:[%s287 + $0x8] sm:$0xff]
      %v290 = vld [vmem:[%s287 + $0x10] sm:$0xff]
      %v291 = vld [vmem:[%s287 + $0x18] sm:$0xff]
      %292 = vst [vmem:[#allocation1] ss:$9 sm:$0xff] %v231
      %s293 = scalar_lea.vmem [#allocation1], 1
      %294 = vst [vmem:[%s293] ss:$9 sm:$0xff] %v245
      %s295 = scalar_lea.vmem [#allocation1], 2
      %296 = vst [vmem:[%s295] ss:$9 sm:$0xff] %v246
      %s297 = scalar_lea.vmem [#allocation1], 3
      %298 = vst [vmem:[%s297] ss:$9 sm:$0xff] %v247
      %s299 = scalar_lea.vmem [#allocation1], 4
      %300 = vst [vmem:[%s299] ss:$9 sm:$0xff] %v248
      %s301 = scalar_lea.vmem [#allocation1], 5
      %302 = vst [vmem:[%s301] ss:$9 sm:$0xff] %v249
      %s303 = scalar_lea.vmem [#allocation1], 6
      %304 = vst [vmem:[%s303] ss:$9 sm:$0xff] %v250
      %s305 = scalar_lea.vmem [#allocation1], 7
      %306 = vst [vmem:[%s305] ss:$9 sm:$0xff] %v232
      %v307 = vld [vmem:[#allocation1] sm:$0xff]
      %308 = vst [vmem:[#allocation1] ss:$9 sm:$0xff] %v251
      %309 = vst [vmem:[%s293] ss:$9 sm:$0xff] %v252
      %310 = vst [vmem:[%s295] ss:$9 sm:$0xff] %v253
      %311 = vst [vmem:[%s297] ss:$9 sm:$0xff] %v254
      %312 = vst [vmem:[%s299] ss:$9 sm:$0xff] %v255
      %313 = vst [vmem:[%s301] ss:$9 sm:$0xff] %v256
      %314 = vst [vmem:[%s303] ss:$9 sm:$0xff] %v233
      %315 = vst [vmem:[%s305] ss:$9 sm:$0xff] %v257
      %v316 = vld [vmem:[#allocation1] sm:$0xff]
      %317 = vst [vmem:[#allocation1] ss:$9 sm:$0xff] %v258
      %318 = vst [vmem:[%s293] ss:$9 sm:$0xff] %v259
      %319 = vst [vmem:[%s295] ss:$9 sm:$0xff] %v260
      %320 = vst [vmem:[%s297] ss:$9 sm:$0xff] %v261
      %321 = vst [vmem:[%s299] ss:$9 sm:$0xff] %v262
      %322 = vst [vmem:[%s301] ss:$9 sm:$0xff] %v234
      %323 = vst [vmem:[%s303] ss:$9 sm:$0xff] %v263
      %324 = vst [vmem:[%s305] ss:$9 sm:$0xff] %v264
      %v325 = vld [vmem:[#allocation1] sm:$0xff]
      %326 = vst [vmem:[#allocation1] ss:$9 sm:$0xff] %v265
      %327 = vst [vmem:[%s293] ss:$9 sm:$0xff] %v266
      %328 = vst [vmem:[%s295] ss:$9 sm:$0xff] %v267
      %329 = vst [vmem:[%s297] ss:$9 sm:$0xff] %v268
      %330 = vst [vmem:[%s299] ss:$9 sm:$0xff] %v235
      %331 = vst [vmem:[%s301] ss:$9 sm:$0xff] %v269
      %332 = vst [vmem:[%s303] ss:$9 sm:$0xff] %v270
      %333 = vst [vmem:[%s305] ss:$9 sm:$0xff] %v271
      %v334 = vld [vmem:[#allocation1] sm:$0xff]
      %335 = vst [vmem:[#allocation1] ss:$9 sm:$0xff] %v272
      %336 = vst [vmem:[%s293] ss:$9 sm:$0xff] %v273
      %337 = vst [vmem:[%s295] ss:$9 sm:$0xff] %v274
      %338 = vst [vmem:[%s297] ss:$9 sm:$0xff] %v236
      %339 = vst [vmem:[%s299] ss:$9 sm:$0xff] %v275
      %340 = vst [vmem:[%s301] ss:$9 sm:$0xff] %v276
      %341 = vst [vmem:[%s303] ss:$9 sm:$0xff] %v277
      %342 = vst [vmem:[%s305] ss:$9 sm:$0xff] %v278
      %v343 = vld [vmem:[#allocation1] sm:$0xff]
      %344 = vst [vmem:[#allocation1] ss:$9 sm:$0xff] %v279
      %345 = vst [vmem:[%s293] ss:$9 sm:$0xff] %v280
      %346 = vst [vmem:[%s295] ss:$9 sm:$0xff] %v237
      %347 = vst [vmem:[%s297] ss:$9 sm:$0xff] %v281
      %348 = vst [vmem:[%s299] ss:$9 sm:$0xff] %v282
      %349 = vst [vmem:[%s301] ss:$9 sm:$0xff] %v283
      %350 = vst [vmem:[%s303] ss:$9 sm:$0xff] %v284
      %351 = vst [vmem:[%s305] ss:$9 sm:$0xff] %v285
      %v352 = vld [vmem:[#allocation1] sm:$0xff]
      %353 = vst [vmem:[#allocation1] ss:$9 sm:$0xff] %v286
      %v354 = vld [vmem:[#allocation1] sm:$0xff]
      %vm355 = vcmask 261120
      %v356 = vsel %vm355, %v307, 0
      %v358 = vsel %vm355, %v316, 0
      %v360 = vsel %vm355, %v325, 0
      %v362 = vsel %vm355, %v334, 0
      %v364 = vsel %vm355, %v343, 0
      %v366 = vsel %vm355, %v352, 0
      %v368 = vsel %vm355, %v354, 0
      %370 = vmatpush.msra.mxu0 0.0
      %371 = vmatpush.msra.mxu0 0.0
      %372 = vmatpush.msra.mxu0 0.0
      %373 = vmatpush.msra.mxu0 0.0
      %374 = vmatpush.msra.mxu0 0.0
      %375 = vmatpush.msra.mxu0 0.0
      %376 = vmatpush.msra.mxu0 0.0
      %377 = vmatpush.msra.mxu0 0.0
      %378 = vmatpush.msra.mxu0 0.0
      %379 = vmatpush.msra.mxu0 0.0
      %380 = vmatpush.msra.mxu0 0.0
      %381 = vmatpush.msra.mxu0 0.0
      %382 = vmatpush.msra.mxu0 %v291
      %383 = vmatpush.msra.mxu0 %v290
      %384 = vmatpush.msra.mxu0 %v289
      %385 = vmatpush.msra.mxu0 %v288
      %386 = vmatmul.f32.gmra.mxu0 %v356
      %v387 = vpop.f32.mrf.mxu0
      %v388 = vadd.f32 0.0, %v387
      %389 = vmatmul.f32.gmra.mxu0 %v358
      %v390 = vpop.f32.mrf.mxu0
      %v391 = vadd.f32 0.0, %v390
      %392 = vmatmul.f32.gmra.mxu0 %v360
      %v393 = vpop.f32.mrf.mxu0
      %v394 = vadd.f32 0.0, %v393
      %395 = vmatmul.f32.gmra.mxu0 %v362
      %v396 = vpop.f32.mrf.mxu0
      %v397 = vadd.f32 0.0, %v396
      %398 = vmatmul.f32.gmra.mxu0 %v364
      %v399 = vpop.f32.mrf.mxu0
      %v400 = vadd.f32 0.0, %v399
      %401 = vmatmul.f32.gmra.mxu0 %v366
      %v402 = vpop.f32.mrf.mxu0
      %v403 = vadd.f32 0.0, %v402
      %404 = vmatmul.f32.gmra.mxu0 %v368
      %v405 = vpop.f32.mrf.mxu0
      %406 = vdwg.mxu0
      %407 = vst [vmem:[#allocation1] ss:$9 sm:$0xff] %v171
      %s408 = scalar_lea.vmem [#allocation1], 1
      %409 = vst [vmem:[%s408] ss:$9 sm:$0xff] %v185
      %s410 = scalar_lea.vmem [#allocation1], 2
      %411 = vst [vmem:[%s410] ss:$9 sm:$0xff] %v186
      %s412 = scalar_lea.vmem [#allocation1], 3
      %413 = vst [vmem:[%s412] ss:$9 sm:$0xff] %v187
      %s414 = scalar_lea.vmem [#allocation1], 4
      %415 = vst [vmem:[%s414] ss:$9 sm:$0xff] %v188
      %s416 = scalar_lea.vmem [#allocation1], 5
      %417 = vst [vmem:[%s416] ss:$9 sm:$0xff] %v189
      %s418 = scalar_lea.vmem [#allocation1], 6
      %419 = vst [vmem:[%s418] ss:$9 sm:$0xff] %v190
      %s420 = scalar_lea.vmem [#allocation1], 7
      %421 = vst [vmem:[%s420] ss:$9 sm:$0xff] %v172
      %v422 = vld [vmem:[#allocation1] sm:$0xff]
      %423 = vst [vmem:[#allocation1] ss:$9 sm:$0xff] %v191
      %424 = vst [vmem:[%s408] ss:$9 sm:$0xff] %v192
      %425 = vst [vmem:[%s410] ss:$9 sm:$0xff] %v193
      %426 = vst [vmem:[%s412] ss:$9 sm:$0xff] %v194
      %427 = vst [vmem:[%s414] ss:$9 sm:$0xff] %v195
      %428 = vst [vmem:[%s416] ss:$9 sm:$0xff] %v196
      %429 = vst [vmem:[%s418] ss:$9 sm:$0xff] %v173
      %430 = vst [vmem:[%s420] ss:$9 sm:$0xff] %v197
      %v431 = vld [vmem:[#allocation1] sm:$0xff]
      %432 = vst [vmem:[#allocation1] ss:$9 sm:$0xff] %v198
      %433 = vst [vmem:[%s408] ss:$9 sm:$0xff] %v199
      %434 = vst [vmem:[%s410] ss:$9 sm:$0xff] %v200
      %435 = vst [vmem:[%s412] ss:$9 sm:$0xff] %v201
      %436 = vst [vmem:[%s414] ss:$9 sm:$0xff] %v202
      %437 = vst [vmem:[%s416] ss:$9 sm:$0xff] %v174
      %438 = vst [vmem:[%s418] ss:$9 sm:$0xff] %v203
      %439 = vst [vmem:[%s420] ss:$9 sm:$0xff] %v204
      %v440 = vld [vmem:[#allocation1] sm:$0xff]
      %441 = vst [vmem:[#allocation1] ss:$9 sm:$0xff] %v205
      %442 = vst [vmem:[%s408] ss:$9 sm:$0xff] %v206
      %443 = vst [vmem:[%s410] ss:$9 sm:$0xff] %v207
      %444 = vst [vmem:[%s412] ss:$9 sm:$0xff] %v208
      %445 = vst [vmem:[%s414] ss:$9 sm:$0xff] %v175
      %446 = vst [vmem:[%s416] ss:$9 sm:$0xff] %v209
      %447 = vst [vmem:[%s418] ss:$9 sm:$0xff] %v210
      %448 = vst [vmem:[%s420] ss:$9 sm:$0xff] %v211
      %v449 = vld [vmem:[#allocation1] sm:$0xff]
      %450 = vst [vmem:[#allocation1] ss:$9 sm:$0xff] %v212
      %451 = vst [vmem:[%s408] ss:$9 sm:$0xff] %v213
      %452 = vst [vmem:[%s410] ss:$9 sm:$0xff] %v214
      %453 = vst [vmem:[%s412] ss:$9 sm:$0xff] %v176
      %454 = vst [vmem:[%s414] ss:$9 sm:$0xff] %v215
      %455 = vst [vmem:[%s416] ss:$9 sm:$0xff] %v216
      %456 = vst [vmem:[%s418] ss:$9 sm:$0xff] %v217
      %457 = vst [vmem:[%s420] ss:$9 sm:$0xff] %v218
      %v458 = vld [vmem:[#allocation1] sm:$0xff]
      %459 = vst [vmem:[#allocation1] ss:$9 sm:$0xff] %v219
      %460 = vst [vmem:[%s408] ss:$9 sm:$0xff] %v220
      %461 = vst [vmem:[%s410] ss:$9 sm:$0xff] %v177
      %462 = vst [vmem:[%s412] ss:$9 sm:$0xff] %v221
      %463 = vst [vmem:[%s414] ss:$9 sm:$0xff] %v222
      %464 = vst [vmem:[%s416] ss:$9 sm:$0xff] %v223
      %465 = vst [vmem:[%s418] ss:$9 sm:$0xff] %v224
      %466 = vst [vmem:[%s420] ss:$9 sm:$0xff] %v225
      %v467 = vld [vmem:[#allocation1] sm:$0xff]
      %468 = vst [vmem:[#allocation1] ss:$9 sm:$0xff] %v226
      %v469 = vld [vmem:[#allocation1] sm:$0xff]
      %v470 = vsel %vm355, %v422, 0
      %v472 = vsel %vm355, %v431, 0
      %v474 = vsel %vm355, %v440, 0
      %v476 = vsel %vm355, %v449, 0
      %v478 = vsel %vm355, %v458, 0
      %v480 = vsel %vm355, %v467, 0
      %v482 = vsel %vm355, %v469, 0
      %484 = vmatpush.msra.mxu0 0.0
      %485 = vmatpush.msra.mxu0 0.0
      %486 = vmatpush.msra.mxu0 0.0
      %487 = vmatpush.msra.mxu0 0.0
      %488 = vmatpush.msra.mxu0 0.0
      %489 = vmatpush.msra.mxu0 0.0
      %490 = vmatpush.msra.mxu0 0.0
      %491 = vmatpush.msra.mxu0 0.0
      %492 = vmatpush.msra.mxu0 0.0
      %493 = vmatpush.msra.mxu0 0.0
      %494 = vmatpush.msra.mxu0 0.0
      %495 = vmatpush.msra.mxu0 0.0
      %496 = vmatpush.msra.mxu0 %v230
      %497 = vmatpush.msra.mxu0 %v229
      %498 = vmatpush.msra.mxu0 %v228
      %499 = vmatpush.msra.mxu0 %v227
      %500 = vmatmul.f32.gmra.mxu0 %v470
      %v501 = vpop.f32.mrf.mxu0
      %v502 = vadd.f32 %v388, %v501
      %503 = vmatmul.f32.gmra.mxu0 %v472
      %v504 = vpop.f32.mrf.mxu0
      %v505 = vadd.f32 %v391, %v504
      %506 = vmatmul.f32.gmra.mxu0 %v474
      %v507 = vpop.f32.mrf.mxu0
      %v508 = vadd.f32 %v394, %v507
      %509 = vmatmul.f32.gmra.mxu0 %v476
      %v510 = vpop.f32.mrf.mxu0
      %v511 = vadd.f32 %v397, %v510
      %512 = vmatmul.f32.gmra.mxu0 %v478
      %v513 = vpop.f32.mrf.mxu0
      %v514 = vadd.f32 %v400, %v513
      %515 = vmatmul.f32.gmra.mxu0 %v480
      %v516 = vpop.f32.mrf.mxu0
      %v517 = vadd.f32 %v403, %v516
      %518 = vmatmul.f32.gmra.mxu0 %v482
      %v519 = vpop.f32.mrf.mxu0
      %520 = vdwg.mxu0
      %v521 = vld [vmem:[%s165 + $0x2] sm:$0x7f]
      %v522 = vld [vmem:[%s165 + $0x12] sm:$0x7f]
      %v523 = vld [vmem:[%s165 + $0x22] sm:$0x7f]
      %v524 = vld [vmem:[%s165 + $0x32] sm:$0x7f]
      %v525 = vld [vmem:[%s165 + $0x42] sm:$0x7f]
      %v526 = vld [vmem:[%s165 + $0x52] sm:$0x7f]
      %v527 = vld [vmem:[%s165 + $0x62] sm:$0x7f]
      %v535 = vrot.slane %v521, 1
      %v536 = vrot.slane %v521, 2
      %v537 = vrot.slane %v521, 3
      %v538 = vrot.slane %v521, 4
      %v539 = vrot.slane %v521, 5
      %v540 = vrot.slane %v521, 6
      %v541 = vrot.slane %v522, 1
      %v542 = vrot.slane %v522, 2
      %v543 = vrot.slane %v522, 3
      %v544 = vrot.slane %v522, 4
      %v545 = vrot.slane %v522, 5
      %v546 = vrot.slane %v522, 6
      %v547 = vrot.slane %v523, 1
      %v548 = vrot.slane %v523, 2
      %v549 = vrot.slane %v523, 3
      %v550 = vrot.slane %v523, 4
      %v551 = vrot.slane %v523, 5
      %v552 = vrot.slane %v523, 6
      %v553 = vrot.slane %v524, 1
      %v554 = vrot.slane %v524, 2
      %v555 = vrot.slane %v524, 3
      %v556 = vrot.slane %v524, 4
      %v557 = vrot.slane %v524, 5
      %v558 = vrot.slane %v524, 6
      %v559 = vrot.slane %v525, 1
      %v560 = vrot.slane %v525, 2
      %v561 = vrot.slane %v525, 3
      %v562 = vrot.slane %v525, 4
      %v563 = vrot.slane %v525, 5
      %v564 = vrot.slane %v525, 6
      %v565 = vrot.slane %v526, 1
      %v566 = vrot.slane %v526, 2
      %v567 = vrot.slane %v526, 3
      %v568 = vrot.slane %v526, 4
      %v569 = vrot.slane %v526, 5
      %v570 = vrot.slane %v526, 6
      %v571 = vrot.slane %v527, 1
      %v572 = vrot.slane %v527, 2
      %v573 = vrot.slane %v527, 3
      %v574 = vrot.slane %v527, 4
      %v575 = vrot.slane %v527, 5
      %v576 = vrot.slane %v527, 6
      %s577 = scalar_lea.vmem %s1, 64
      %v578 = vld [vmem:[%s577] sm:$0xff]
      %v579 = vld [vmem:[%s577 + $0x8] sm:$0xff]
      %v580 = vld [vmem:[%s577 + $0x10] sm:$0xff]
      %v581 = vld [vmem:[%s577 + $0x18] sm:$0xff]
      %582 = vst [vmem:[#allocation1] ss:$9 sm:$0xff] %v521
      %s583 = scalar_lea.vmem [#allocation1], 1
      %584 = vst [vmem:[%s583] ss:$9 sm:$0xff] %v535
      %s585 = scalar_lea.vmem [#allocation1], 2
      %586 = vst [vmem:[%s585] ss:$9 sm:$0xff] %v536
      %s587 = scalar_lea.vmem [#allocation1], 3
      %588 = vst [vmem:[%s587] ss:$9 sm:$0xff] %v537
      %s589 = scalar_lea.vmem [#allocation1], 4
      %590 = vst [vmem:[%s589] ss:$9 sm:$0xff] %v538
      %s591 = scalar_lea.vmem [#allocation1], 5
      %592 = vst [vmem:[%s591] ss:$9 sm:$0xff] %v539
      %s593 = scalar_lea.vmem [#allocation1], 6
      %594 = vst [vmem:[%s593] ss:$9 sm:$0xff] %v540
      %s595 = scalar_lea.vmem [#allocation1], 7
      %596 = vst [vmem:[%s595] ss:$9 sm:$0xff] %v522
      %v597 = vld [vmem:[#allocation1] sm:$0xff]
      %598 = vst [vmem:[#allocation1] ss:$9 sm:$0xff] %v541
      %599 = vst [vmem:[%s583] ss:$9 sm:$0xff] %v542
      %600 = vst [vmem:[%s585] ss:$9 sm:$0xff] %v543
      %601 = vst [vmem:[%s587] ss:$9 sm:$0xff] %v544
      %602 = vst [vmem:[%s589] ss:$9 sm:$0xff] %v545
      %603 = vst [vmem:[%s591] ss:$9 sm:$0xff] %v546
      %604 = vst [vmem:[%s593] ss:$9 sm:$0xff] %v523
      %605 = vst [vmem:[%s595] ss:$9 sm:$0xff] %v547
      %v606 = vld [vmem:[#allocation1] sm:$0xff]
      %607 = vst [vmem:[#allocation1] ss:$9 sm:$0xff] %v548
      %608 = vst [vmem:[%s583] ss:$9 sm:$0xff] %v549
      %609 = vst [vmem:[%s585] ss:$9 sm:$0xff] %v550
      %610 = vst [vmem:[%s587] ss:$9 sm:$0xff] %v551
      %611 = vst [vmem:[%s589] ss:$9 sm:$0xff] %v552
      %612 = vst [vmem:[%s591] ss:$9 sm:$0xff] %v524
      %613 = vst [vmem:[%s593] ss:$9 sm:$0xff] %v553
      %614 = vst [vmem:[%s595] ss:$9 sm:$0xff] %v554
      %v615 = vld [vmem:[#allocation1] sm:$0xff]
      %616 = vst [vmem:[#allocation1] ss:$9 sm:$0xff] %v555
      %617 = vst [vmem:[%s583] ss:$9 sm:$0xff] %v556
      %618 = vst [vmem:[%s585] ss:$9 sm:$0xff] %v557
      %619 = vst [vmem:[%s587] ss:$9 sm:$0xff] %v558
      %620 = vst [vmem:[%s589] ss:$9 sm:$0xff] %v525
      %621 = vst [vmem:[%s591] ss:$9 sm:$0xff] %v559
      %622 = vst [vmem:[%s593] ss:$9 sm:$0xff] %v560
      %623 = vst [vmem:[%s595] ss:$9 sm:$0xff] %v561
      %v624 = vld [vmem:[#allocation1] sm:$0xff]
      %625 = vst [vmem:[#allocation1] ss:$9 sm:$0xff] %v562
      %626 = vst [vmem:[%s583] ss:$9 sm:$0xff] %v563
      %627 = vst [vmem:[%s585] ss:$9 sm:$0xff] %v564
      %628 = vst [vmem:[%s587] ss:$9 sm:$0xff] %v526
      %629 = vst [vmem:[%s589] ss:$9 sm:$0xff] %v565
      %630 = vst [vmem:[%s591] ss:$9 sm:$0xff] %v566
      %631 = vst [vmem:[%s593] ss:$9 sm:$0xff] %v567
      %632 = vst [vmem:[%s595] ss:$9 sm:$0xff] %v568
      %v633 = vld [vmem:[#allocation1] sm:$0xff]
      %634 = vst [vmem:[#allocation1] ss:$9 sm:$0xff] %v569
      %635 = vst [vmem:[%s583] ss:$9 sm:$0xff] %v570
      %636 = vst [vmem:[%s585] ss:$9 sm:$0xff] %v527
      %637 = vst [vmem:[%s587] ss:$9 sm:$0xff] %v571
      %638 = vst [vmem:[%s589] ss:$9 sm:$0xff] %v572
      %639 = vst [vmem:[%s591] ss:$9 sm:$0xff] %v573
      %640 = vst [vmem:[%s593] ss:$9 sm:$0xff] %v574
      %641 = vst [vmem:[%s595] ss:$9 sm:$0xff] %v575
      %v642 = vld [vmem:[#allocation1] sm:$0xff]
      %643 = vst [vmem:[#allocation1] ss:$9 sm:$0xff] %v576
      %v644 = vld [vmem:[#allocation1] sm:$0xff]
      %v645 = vsel %vm355, %v597, 0
      %v647 = vsel %vm355, %v606, 0
      %v649 = vsel %vm355, %v615, 0
      %v651 = vsel %vm355, %v624, 0
      %v653 = vsel %vm355, %v633, 0
      %v655 = vsel %vm355, %v642, 0
      %v657 = vsel %vm355, %v644, 0
      %659 = vmatpush.msra.mxu0 0.0
      %660 = vmatpush.msra.mxu0 0.0
      %661 = vmatpush.msra.mxu0 0.0
      %662 = vmatpush.msra.mxu0 0.0
      %663 = vmatpush.msra.mxu0 0.0
      %664 = vmatpush.msra.mxu0 0.0
      %665 = vmatpush.msra.mxu0 0.0
      %666 = vmatpush.msra.mxu0 0.0
      %667 = vmatpush.msra.mxu0 0.0
      %668 = vmatpush.msra.mxu0 0.0
      %669 = vmatpush.msra.mxu0 0.0
      %670 = vmatpush.msra.mxu0 0.0
      %671 = vmatpush.msra.mxu0 %v581
      %672 = vmatpush.msra.mxu0 %v580
      %673 = vmatpush.msra.mxu0 %v579
      %674 = vmatpush.msra.mxu0 %v578
      %675 = vmatmul.f32.gmra.mxu0 %v645
      %v676 = vpop.f32.mrf.mxu0
      %v677 = vadd.f32 0.0, %v676
      %678 = vmatmul.f32.gmra.mxu0 %v647
      %v679 = vpop.f32.mrf.mxu0
      %v680 = vadd.f32 0.0, %v679
      %681 = vmatmul.f32.gmra.mxu0 %v649
      %v682 = vpop.f32.mrf.mxu0
      %v683 = vadd.f32 0.0, %v682
      %684 = vmatmul.f32.gmra.mxu0 %v651
      %v685 = vpop.f32.mrf.mxu0
      %v686 = vadd.f32 0.0, %v685
      %687 = vmatmul.f32.gmra.mxu0 %v653
      %v688 = vpop.f32.mrf.mxu0
      %v689 = vadd.f32 0.0, %v688
      %690 = vmatmul.f32.gmra.mxu0 %v655
      %v691 = vpop.f32.mrf.mxu0
      %v692 = vadd.f32 0.0, %v691
      %693 = vmatmul.f32.gmra.mxu0 %v657
      %v694 = vpop.f32.mrf.mxu0
      %695 = vdwg.mxu0
      %v696 = vadd.f32 %v502, %v677
      %v697 = vadd.f32 %v505, %v680
      %v698 = vadd.f32 %v508, %v683
      %v699 = vadd.f32 %v511, %v686
      %v700 = vadd.f32 %v514, %v689
      %v701 = vadd.f32 %v517, %v692
      %s702 = scalar_lea.vmem %s165, 16
      %v703 = vld [vmem:[%s702] sm:$0x7f]
      %v704 = vld [vmem:[%s702 + $0x10] sm:$0x7f]
      %v705 = vld [vmem:[%s702 + $0x20] sm:$0x7f]
      %v706 = vld [vmem:[%s702 + $0x30] sm:$0x7f]
      %v707 = vld [vmem:[%s702 + $0x40] sm:$0x7f]
      %v708 = vld [vmem:[%s702 + $0x50] sm:$0x7f]
      %v709 = vld [vmem:[%s702 + $0x60] sm:$0x7f]
      %v717 = vrot.slane %v703, 1
      %v718 = vrot.slane %v703, 2
      %v719 = vrot.slane %v703, 3
      %v720 = vrot.slane %v703, 4
      %v721 = vrot.slane %v703, 5
      %v722 = vrot.slane %v703, 6
      %v723 = vrot.slane %v704, 1
      %v724 = vrot.slane %v704, 2
      %v725 = vrot.slane %v704, 3
      %v726 = vrot.slane %v704, 4
      %v727 = vrot.slane %v704, 5
      %v728 = vrot.slane %v704, 6
      %v729 = vrot.slane %v705, 1
      %v730 = vrot.slane %v705, 2
      %v731 = vrot.slane %v705, 3
      %v732 = vrot.slane %v705, 4
      %v733 = vrot.slane %v705, 5
      %v734 = vrot.slane %v705, 6
      %v735 = vrot.slane %v706, 1
      %v736 = vrot.slane %v706, 2
      %v737 = vrot.slane %v706, 3
      %v738 = vrot.slane %v706, 4
      %v739 = vrot.slane %v706, 5
      %v740 = vrot.slane %v706, 6
      %v741 = vrot.slane %v707, 1
      %v742 = vrot.slane %v707, 2
      %v743 = vrot.slane %v707, 3
      %v744 = vrot.slane %v707, 4
      %v745 = vrot.slane %v707, 5
      %v746 = vrot.slane %v707, 6
      %v747 = vrot.slane %v708, 1
      %v748 = vrot.slane %v708, 2
      %v749 = vrot.slane %v708, 3
      %v750 = vrot.slane %v708, 4
      %v751 = vrot.slane %v708, 5
      %v752 = vrot.slane %v708, 6
      %v753 = vrot.slane %v709, 1
      %v754 = vrot.slane %v709, 2
      %v755 = vrot.slane %v709, 3
      %v756 = vrot.slane %v709, 4
      %v757 = vrot.slane %v709, 5
      %v758 = vrot.slane %v709, 6
      %s759 = scalar_lea.vmem %s1, 96
      %v760 = vld [vmem:[%s759] sm:$0xff]
      %v761 = vld [vmem:[%s759 + $0x8] sm:$0xff]
      %v762 = vld [vmem:[%s759 + $0x10] sm:$0xff]
      %v763 = vld [vmem:[%s759 + $0x18] sm:$0xff]
      %764 = vst [vmem:[#allocation1] ss:$9 sm:$0xff] %v703
      %s765 = scalar_lea.vmem [#allocation1], 1
      %766 = vst [vmem:[%s765] ss:$9 sm:$0xff] %v717
      %s767 = scalar_lea.vmem [#allocation1], 2
      %768 = vst [vmem:[%s767] ss:$9 sm:$0xff] %v718
      %s769 = scalar_lea.vmem [#allocation1], 3
      %770 = vst [vmem:[%s769] ss:$9 sm:$0xff] %v719
      %s771 = scalar_lea.vmem [#allocation1], 4
      %772 = vst [vmem:[%s771] ss:$9 sm:$0xff] %v720
      %s773 = scalar_lea.vmem [#allocation1], 5
      %774 = vst [vmem:[%s773] ss:$9 sm:$0xff] %v721
      %s775 = scalar_lea.vmem [#allocation1], 6
      %776 = vst [vmem:[%s775] ss:$9 sm:$0xff] %v722
      %s777 = scalar_lea.vmem [#allocation1], 7
      %778 = vst [vmem:[%s777] ss:$9 sm:$0xff] %v704
      %v779 = vld [vmem:[#allocation1] sm:$0xff]
      %780 = vst [vmem:[#allocation1] ss:$9 sm:$0xff] %v723
      %781 = vst [vmem:[%s765] ss:$9 sm:$0xff] %v724
      %782 = vst [vmem:[%s767] ss:$9 sm:$0xff] %v725
      %783 = vst [vmem:[%s769] ss:$9 sm:$0xff] %v726
      %784 = vst [vmem:[%s771] ss:$9 sm:$0xff] %v727
      %785 = vst [vmem:[%s773] ss:$9 sm:$0xff] %v728
      %786 = vst [vmem:[%s775] ss:$9 sm:$0xff] %v705
      %787 = vst [vmem:[%s777] ss:$9 sm:$0xff] %v729
      %v788 = vld [vmem:[#allocation1] sm:$0xff]
      %789 = vst [vmem:[#allocation1] ss:$9 sm:$0xff] %v730
      %790 = vst [vmem:[%s765] ss:$9 sm:$0xff] %v731
      %791 = vst [vmem:[%s767] ss:$9 sm:$0xff] %v732
      %792 = vst [vmem:[%s769] ss:$9 sm:$0xff] %v733
      %793 = vst [vmem:[%s771] ss:$9 sm:$0xff] %v734
      %794 = vst [vmem:[%s773] ss:$9 sm:$0xff] %v706
      %795 = vst [vmem:[%s775] ss:$9 sm:$0xff] %v735
      %796 = vst [vmem:[%s777] ss:$9 sm:$0xff] %v736
      %v797 = vld [vmem:[#allocation1] sm:$0xff]
      %798 = vst [vmem:[#allocation1] ss:$9 sm:$0xff] %v737
      %799 = vst [vmem:[%s765] ss:$9 sm:$0xff] %v738
      %800 = vst [vmem:[%s767] ss:$9 sm:$0xff] %v739
      %801 = vst [vmem:[%s769] ss:$9 sm:$0xff] %v740
      %802 = vst [vmem:[%s771] ss:$9 sm:$0xff] %v707
      %803 = vst [vmem:[%s773] ss:$9 sm:$0xff] %v741
      %804 = vst [vmem:[%s775] ss:$9 sm:$0xff] %v742
      %805 = vst [vmem:[%s777] ss:$9 sm:$0xff] %v743
      %v806 = vld [vmem:[#allocation1] sm:$0xff]
      %807 = vst [vmem:[#allocation1] ss:$9 sm:$0xff] %v744
      %808 = vst [vmem:[%s765] ss:$9 sm:$0xff] %v745
      %809 = vst [vmem:[%s767] ss:$9 sm:$0xff] %v746
      %810 = vst [vmem:[%s769] ss:$9 sm:$0xff] %v708
      %811 = vst [vmem:[%s771] ss:$9 sm:$0xff] %v747
      %812 = vst [vmem:[%s773] ss:$9 sm:$0xff] %v748
      %813 = vst [vmem:[%s775] ss:$9 sm:$0xff] %v749
      %814 = vst [vmem:[%s777] ss:$9 sm:$0xff] %v750
      %v815 = vld [vmem:[#allocation1] sm:$0xff]
      %816 = vst [vmem:[#allocation1] ss:$9 sm:$0xff] %v751
      %817 = vst [vmem:[%s765] ss:$9 sm:$0xff] %v752
      %818 = vst [vmem:[%s767] ss:$9 sm:$0xff] %v709
      %819 = vst [vmem:[%s769] ss:$9 sm:$0xff] %v753
      %820 = vst [vmem:[%s771] ss:$9 sm:$0xff] %v754
      %821 = vst [vmem:[%s773] ss:$9 sm:$0xff] %v755
      %822 = vst [vmem:[%s775] ss:$9 sm:$0xff] %v756
      %823 = vst [vmem:[%s777] ss:$9 sm:$0xff] %v757
      %v824 = vld [vmem:[#allocation1] sm:$0xff]
      %825 = vst [vmem:[#allocation1] ss:$9 sm:$0xff] %v758
      %v826 = vld [vmem:[#allocation1] sm:$0xff]
      %v827 = vsel %vm355, %v779, 0
      %v829 = vsel %vm355, %v788, 0
      %v831 = vsel %vm355, %v797, 0
      %v833 = vsel %vm355, %v806, 0
      %v835 = vsel %vm355, %v815, 0
      %v837 = vsel %vm355, %v824, 0
      %v839 = vsel %vm355, %v826, 0
      %841 = vmatpush.msra.mxu0 0.0
      %842 = vmatpush.msra.mxu0 0.0
      %843 = vmatpush.msra.mxu0 0.0
      %844 = vmatpush.msra.mxu0 0.0
      %845 = vmatpush.msra.mxu0 0.0
      %846 = vmatpush.msra.mxu0 0.0
      %847 = vmatpush.msra.mxu0 0.0
      %848 = vmatpush.msra.mxu0 0.0
      %849 = vmatpush.msra.mxu0 0.0
      %850 = vmatpush.msra.mxu0 0.0
      %851 = vmatpush.msra.mxu0 0.0
      %852 = vmatpush.msra.mxu0 0.0
      %853 = vmatpush.msra.mxu0 %v763
      %854 = vmatpush.msra.mxu0 %v762
      %855 = vmatpush.msra.mxu0 %v761
      %856 = vmatpush.msra.mxu0 %v760
      %857 = vmatmul.f32.gmra.mxu0 %v827
      %v858 = vpop.f32.mrf.mxu0
      %v859 = vadd.f32 0.0, %v858
      %860 = vmatmul.f32.gmra.mxu0 %v829
      %v861 = vpop.f32.mrf.mxu0
      %v862 = vadd.f32 0.0, %v861
      %863 = vmatmul.f32.gmra.mxu0 %v831
      %v864 = vpop.f32.mrf.mxu0
      %v865 = vadd.f32 0.0, %v864
      %866 = vmatmul.f32.gmra.mxu0 %v833
      %v867 = vpop.f32.mrf.mxu0
      %v868 = vadd.f32 0.0, %v867
      %869 = vmatmul.f32.gmra.mxu0 %v835
      %v870 = vpop.f32.mrf.mxu0
      %v871 = vadd.f32 0.0, %v870
      %872 = vmatmul.f32.gmra.mxu0 %v837
      %v873 = vpop.f32.mrf.mxu0
      %v874 = vadd.f32 0.0, %v873
      %875 = vmatmul.f32.gmra.mxu0 %v839
      %v876 = vpop.f32.mrf.mxu0
      %877 = vdwg.mxu0
      %v878 = vadd.f32 %v696, %v859
      %v879 = vadd.f32 %v697, %v862
      %v880 = vadd.f32 %v698, %v865
      %v881 = vadd.f32 %v699, %v868
      %v882 = vadd.f32 %v700, %v871
      %v883 = vadd.f32 %v701, %v874
      %v884 = vld [vmem:[%s702 + $0x1] sm:$0x7f]
      %v885 = vld [vmem:[%s702 + $0x11] sm:$0x7f]
      %v886 = vld [vmem:[%s702 + $0x21] sm:$0x7f]
      %v887 = vld [vmem:[%s702 + $0x31] sm:$0x7f]
      %v888 = vld [vmem:[%s702 + $0x41] sm:$0x7f]
      %v889 = vld [vmem:[%s702 + $0x51] sm:$0x7f]
      %v890 = vld [vmem:[%s702 + $0x61] sm:$0x7f]
      %v898 = vrot.slane %v884, 1
      %v899 = vrot.slane %v884, 2
      %v900 = vrot.slane %v884, 3
      %v901 = vrot.slane %v884, 4
      %v902 = vrot.slane %v884, 5
      %v903 = vrot.slane %v884, 6
      %v904 = vrot.slane %v885, 1
      %v905 = vrot.slane %v885, 2
      %v906 = vrot.slane %v885, 3
      %v907 = vrot.slane %v885, 4
      %v908 = vrot.slane %v885, 5
      %v909 = vrot.slane %v885, 6
      %v910 = vrot.slane %v886, 1
      %v911 = vrot.slane %v886, 2
      %v912 = vrot.slane %v886, 3
      %v913 = vrot.slane %v886, 4
      %v914 = vrot.slane %v886, 5
      %v915 = vrot.slane %v886, 6
      %v916 = vrot.slane %v887, 1
      %v917 = vrot.slane %v887, 2
      %v918 = vrot.slane %v887, 3
      %v919 = vrot.slane %v887, 4
      %v920 = vrot.slane %v887, 5
      %v921 = vrot.slane %v887, 6
      %v922 = vrot.slane %v888, 1
      %v923 = vrot.slane %v888, 2
      %v924 = vrot.slane %v888, 3
      %v925 = vrot.slane %v888, 4
      %v926 = vrot.slane %v888, 5
      %v927 = vrot.slane %v888, 6
      %v928 = vrot.slane %v889, 1
      %v929 = vrot.slane %v889, 2
      %v930 = vrot.slane %v889, 3
      %v931 = vrot.slane %v889, 4
      %v932 = vrot.slane %v889, 5
      %v933 = vrot.slane %v889, 6
      %v934 = vrot.slane %v890, 1
      %v935 = vrot.slane %v890, 2
      %v936 = vrot.slane %v890, 3
      %v937 = vrot.slane %v890, 4
      %v938 = vrot.slane %v890, 5
      %v939 = vrot.slane %v890, 6
      %s940 = scalar_lea.vmem %s1, 128
      %v941 = vld [vmem:[%s940] sm:$0xff]
      %v942 = vld [vmem:[%s940 + $0x8] sm:$0xff]
      %v943 = vld [vmem:[%s940 + $0x10] sm:$0xff]
      %v944 = vld [vmem:[%s940 + $0x18] sm:$0xff]
      %945 = vst [vmem:[#allocation1] ss:$9 sm:$0xff] %v884
      %s946 = scalar_lea.vmem [#allocation1], 1
      %947 = vst [vmem:[%s946] ss:$9 sm:$0xff] %v898
      %s948 = scalar_lea.vmem [#allocation1], 2
      %949 = vst [vmem:[%s948] ss:$9 sm:$0xff] %v899
      %s950 = scalar_lea.vmem [#allocation1], 3
      %951 = vst [vmem:[%s950] ss:$9 sm:$0xff] %v900
      %s952 = scalar_lea.vmem [#allocation1], 4
      %953 = vst [vmem:[%s952] ss:$9 sm:$0xff] %v901
      %s954 = scalar_lea.vmem [#allocation1], 5
      %955 = vst [vmem:[%s954] ss:$9 sm:$0xff] %v902
      %s956 = scalar_lea.vmem [#allocation1], 6
      %957 = vst [vmem:[%s956] ss:$9 sm:$0xff] %v903
      %s958 = scalar_lea.vmem [#allocation1], 7
      %959 = vst [vmem:[%s958] ss:$9 sm:$0xff] %v885
      %v960 = vld [vmem:[#allocation1] sm:$0xff]
      %961 = vst [vmem:[#allocation1] ss:$9 sm:$0xff] %v904
      %962 = vst [vmem:[%s946] ss:$9 sm:$0xff] %v905
      %963 = vst [vmem:[%s948] ss:$9 sm:$0xff] %v906
      %964 = vst [vmem:[%s950] ss:$9 sm:$0xff] %v907
      %965 = vst [vmem:[%s952] ss:$9 sm:$0xff] %v908
      %966 = vst [vmem:[%s954] ss:$9 sm:$0xff] %v909
      %967 = vst [vmem:[%s956] ss:$9 sm:$0xff] %v886
      %968 = vst [vmem:[%s958] ss:$9 sm:$0xff] %v910
      %v969 = vld [vmem:[#allocation1] sm:$0xff]
      %970 = vst [vmem:[#allocation1] ss:$9 sm:$0xff] %v911
      %971 = vst [vmem:[%s946] ss:$9 sm:$0xff] %v912
      %972 = vst [vmem:[%s948] ss:$9 sm:$0xff] %v913
      %973 = vst [vmem:[%s950] ss:$9 sm:$0xff] %v914
      %974 = vst [vmem:[%s952] ss:$9 sm:$0xff] %v915
      %975 = vst [vmem:[%s954] ss:$9 sm:$0xff] %v887
      %976 = vst [vmem:[%s956] ss:$9 sm:$0xff] %v916
      %977 = vst [vmem:[%s958] ss:$9 sm:$0xff] %v917
      %v978 = vld [vmem:[#allocation1] sm:$0xff]
      %979 = vst [vmem:[#allocation1] ss:$9 sm:$0xff] %v918
      %980 = vst [vmem:[%s946] ss:$9 sm:$0xff] %v919
      %981 = vst [vmem:[%s948] ss:$9 sm:$0xff] %v920
      %982 = vst [vmem:[%s950] ss:$9 sm:$0xff] %v921
      %983 = vst [vmem:[%s952] ss:$9 sm:$0xff] %v888
      %984 = vst [vmem:[%s954] ss:$9 sm:$0xff] %v922
      %985 = vst [vmem:[%s956] ss:$9 sm:$0xff] %v923
      %986 = vst [vmem:[%s958] ss:$9 sm:$0xff] %v924
      %v987 = vld [vmem:[#allocation1] sm:$0xff]
      %988 = vst [vmem:[#allocation1] ss:$9 sm:$0xff] %v925
      %989 = vst [vmem:[%s946] ss:$9 sm:$0xff] %v926
      %990 = vst [vmem:[%s948] ss:$9 sm:$0xff] %v927
      %991 = vst [vmem:[%s950] ss:$9 sm:$0xff] %v889
      %992 = vst [vmem:[%s952] ss:$9 sm:$0xff] %v928
      %993 = vst [vmem:[%s954] ss:$9 sm:$0xff] %v929
      %994 = vst [vmem:[%s956] ss:$9 sm:$0xff] %v930
      %995 = vst [vmem:[%s958] ss:$9 sm:$0xff] %v931
      %v996 = vld [vmem:[#allocation1] sm:$0xff]
      %997 = vst [vmem:[#allocation1] ss:$9 sm:$0xff] %v932
      %998 = vst [vmem:[%s946] ss:$9 sm:$0xff] %v933
      %999 = vst [vmem:[%s948] ss:$9 sm:$0xff] %v890
      %1000 = vst [vmem:[%s950] ss:$9 sm:$0xff] %v934
      %1001 = vst [vmem:[%s952] ss:$9 sm:$0xff] %v935
      %1002 = vst [vmem:[%s954] ss:$9 sm:$0xff] %v936
      %1003 = vst [vmem:[%s956] ss:$9 sm:$0xff] %v937
      %1004 = vst [vmem:[%s958] ss:$9 sm:$0xff] %v938
      %v1005 = vld [vmem:[#allocation1] sm:$0xff]
      %1006 = vst [vmem:[#allocation1] ss:$9 sm:$0xff] %v939
      %v1007 = vld [vmem:[#allocation1] sm:$0xff]
      %v1008 = vsel %vm355, %v960, 0
      %v1010 = vsel %vm355, %v969, 0
      %v1012 = vsel %vm355, %v978, 0
      %v1014 = vsel %vm355, %v987, 0
      %v1016 = vsel %vm355, %v996, 0
      %v1018 = vsel %vm355, %v1005, 0
      %v1020 = vsel %vm355, %v1007, 0
      %1022 = vmatpush.msra.mxu0 0.0
      %1023 = vmatpush.msra.mxu0 0.0
      %1024 = vmatpush.msra.mxu0 0.0
      %1025 = vmatpush.msra.mxu0 0.0
      %1026 = vmatpush.msra.mxu0 0.0
      %1027 = vmatpush.msra.mxu0 0.0
      %1028 = vmatpush.msra.mxu0 0.0
      %1029 = vmatpush.msra.mxu0 0.0
      %1030 = vmatpush.msra.mxu0 0.0
      %1031 = vmatpush.msra.mxu0 0.0
      %1032 = vmatpush.msra.mxu0 0.0
      %1033 = vmatpush.msra.mxu0 0.0
      %1034 = vmatpush.msra.mxu0 %v944
      %1035 = vmatpush.msra.mxu0 %v943
      %1036 = vmatpush.msra.mxu0 %v942
      %1037 = vmatpush.msra.mxu0 %v941
      %1038 = vmatmul.f32.gmra.mxu0 %v1008
      %v1039 = vpop.f32.mrf.mxu0
      %v1040 = vadd.f32 0.0, %v1039
      %1041 = vmatmul.f32.gmra.mxu0 %v1010
      %v1042 = vpop.f32.mrf.mxu0
      %v1043 = vadd.f32 0.0, %v1042
      %1044 = vmatmul.f32.gmra.mxu0 %v1012
      %v1045 = vpop.f32.mrf.mxu0
      %v1046 = vadd.f32 0.0, %v1045
      %1047 = vmatmul.f32.gmra.mxu0 %v1014
      %v1048 = vpop.f32.mrf.mxu0
      %v1049 = vadd.f32 0.0, %v1048
      %1050 = vmatmul.f32.gmra.mxu0 %v1016
      %v1051 = vpop.f32.mrf.mxu0
      %v1052 = vadd.f32 0.0, %v1051
      %1053 = vmatmul.f32.gmra.mxu0 %v1018
      %v1054 = vpop.f32.mrf.mxu0
      %v1055 = vadd.f32 0.0, %v1054
      %1056 = vmatmul.f32.gmra.mxu0 %v1020
      %v1057 = vpop.f32.mrf.mxu0
      %1058 = vdwg.mxu0
      %v1059 = vadd.f32 %v878, %v1040
      %v1060 = vadd.f32 %v879, %v1043
      %v1061 = vadd.f32 %v880, %v1046
      %v1062 = vadd.f32 %v881, %v1049
      %v1063 = vadd.f32 %v882, %v1052
      %v1064 = vadd.f32 %v883, %v1055
      %v1065 = vld [vmem:[%s702 + $0x2] sm:$0x7f]
      %v1066 = vld [vmem:[%s702 + $0x12] sm:$0x7f]
      %v1067 = vld [vmem:[%s702 + $0x22] sm:$0x7f]
      %v1068 = vld [vmem:[%s702 + $0x32] sm:$0x7f]
      %v1069 = vld [vmem:[%s702 + $0x42] sm:$0x7f]
      %v1070 = vld [vmem:[%s702 + $0x52] sm:$0x7f]
      %v1071 = vld [vmem:[%s702 + $0x62] sm:$0x7f]
      %v1079 = vrot.slane %v1065, 1
      %v1080 = vrot.slane %v1065, 2
      %v1081 = vrot.slane %v1065, 3
      %v1082 = vrot.slane %v1065, 4
      %v1083 = vrot.slane %v1065, 5
      %v1084 = vrot.slane %v1065, 6
      %v1085 = vrot.slane %v1066, 1
      %v1086 = vrot.slane %v1066, 2
      %v1087 = vrot.slane %v1066, 3
      %v1088 = vrot.slane %v1066, 4
      %v1089 = vrot.slane %v1066, 5
      %v1090 = vrot.slane %v1066, 6
      %v1091 = vrot.slane %v1067, 1
      %v1092 = vrot.slane %v1067, 2
      %v1093 = vrot.slane %v1067, 3
      %v1094 = vrot.slane %v1067, 4
      %v1095 = vrot.slane %v1067, 5
      %v1096 = vrot.slane %v1067, 6
      %v1097 = vrot.slane %v1068, 1
      %v1098 = vrot.slane %v1068, 2
      %v1099 = vrot.slane %v1068, 3
      %v1100 = vrot.slane %v1068, 4
      %v1101 = vrot.slane %v1068, 5
      %v1102 = vrot.slane %v1068, 6
      %v1103 = vrot.slane %v1069, 1
      %v1104 = vrot.slane %v1069, 2
      %v1105 = vrot.slane %v1069, 3
      %v1106 = vrot.slane %v1069, 4
      %v1107 = vrot.slane %v1069, 5
      %v1108 = vrot.slane %v1069, 6
      %v1109 = vrot.slane %v1070, 1
      %v1110 = vrot.slane %v1070, 2
      %v1111 = vrot.slane %v1070, 3
      %v1112 = vrot.slane %v1070, 4
      %v1113 = vrot.slane %v1070, 5
      %v1114 = vrot.slane %v1070, 6
      %v1115 = vrot.slane %v1071, 1
      %v1116 = vrot.slane %v1071, 2
      %v1117 = vrot.slane %v1071, 3
      %v1118 = vrot.slane %v1071, 4
      %v1119 = vrot.slane %v1071, 5
      %v1120 = vrot.slane %v1071, 6
      %s1121 = scalar_lea.vmem %s1, 160
      %v1122 = vld [vmem:[%s1121] sm:$0xff]
      %v1123 = vld [vmem:[%s1121 + $0x8] sm:$0xff]
      %v1124 = vld [vmem:[%s1121 + $0x10] sm:$0xff]
      %v1125 = vld [vmem:[%s1121 + $0x18] sm:$0xff]
      %1126 = vst [vmem:[#allocation1] ss:$9 sm:$0xff] %v1065
      %s1127 = scalar_lea.vmem [#allocation1], 1
      %1128 = vst [vmem:[%s1127] ss:$9 sm:$0xff] %v1079
      %s1129 = scalar_lea.vmem [#allocation1], 2
      %1130 = vst [vmem:[%s1129] ss:$9 sm:$0xff] %v1080
      %s1131 = scalar_lea.vmem [#allocation1], 3
      %1132 = vst [vmem:[%s1131] ss:$9 sm:$0xff] %v1081
      %s1133 = scalar_lea.vmem [#allocation1], 4
      %1134 = vst [vmem:[%s1133] ss:$9 sm:$0xff] %v1082
      %s1135 = scalar_lea.vmem [#allocation1], 5
      %1136 = vst [vmem:[%s1135] ss:$9 sm:$0xff] %v1083
      %s1137 = scalar_lea.vmem [#allocation1], 6
      %1138 = vst [vmem:[%s1137] ss:$9 sm:$0xff] %v1084
      %s1139 = scalar_lea.vmem [#allocation1], 7
      %1140 = vst [vmem:[%s1139] ss:$9 sm:$0xff] %v1066
      %v1141 = vld [vmem:[#allocation1] sm:$0xff]
      %1142 = vst [vmem:[#allocation1] ss:$9 sm:$0xff] %v1085
      %1143 = vst [vmem:[%s1127] ss:$9 sm:$0xff] %v1086
      %1144 = vst [vmem:[%s1129] ss:$9 sm:$0xff] %v1087
      %1145 = vst [vmem:[%s1131] ss:$9 sm:$0xff] %v1088
      %1146 = vst [vmem:[%s1133] ss:$9 sm:$0xff] %v1089
      %1147 = vst [vmem:[%s1135] ss:$9 sm:$0xff] %v1090
      %1148 = vst [vmem:[%s1137] ss:$9 sm:$0xff] %v1067
      %1149 = vst [vmem:[%s1139] ss:$9 sm:$0xff] %v1091
      %v1150 = vld [vmem:[#allocation1] sm:$0xff]
      %1151 = vst [vmem:[#allocation1] ss:$9 sm:$0xff] %v1092
      %1152 = vst [vmem:[%s1127] ss:$9 sm:$0xff] %v1093
      %1153 = vst [vmem:[%s1129] ss:$9 sm:$0xff] %v1094
      %1154 = vst [vmem:[%s1131] ss:$9 sm:$0xff] %v1095
      %1155 = vst [vmem:[%s1133] ss:$9 sm:$0xff] %v1096
      %1156 = vst [vmem:[%s1135] ss:$9 sm:$0xff] %v1068
      %1157 = vst [vmem:[%s1137] ss:$9 sm:$0xff] %v1097
      %1158 = vst [vmem:[%s1139] ss:$9 sm:$0xff] %v1098
      %v1159 = vld [vmem:[#allocation1] sm:$0xff]
      %1160 = vst [vmem:[#allocation1] ss:$9 sm:$0xff] %v1099
      %1161 = vst [vmem:[%s1127] ss:$9 sm:$0xff] %v1100
      %1162 = vst [vmem:[%s1129] ss:$9 sm:$0xff] %v1101
      %1163 = vst [vmem:[%s1131] ss:$9 sm:$0xff] %v1102
      %1164 = vst [vmem:[%s1133] ss:$9 sm:$0xff] %v1069
      %1165 = vst [vmem:[%s1135] ss:$9 sm:$0xff] %v1103
      %1166 = vst [vmem:[%s1137] ss:$9 sm:$0xff] %v1104
      %1167 = vst [vmem:[%s1139] ss:$9 sm:$0xff] %v1105
      %v1168 = vld [vmem:[#allocation1] sm:$0xff]
      %1169 = vst [vmem:[#allocation1] ss:$9 sm:$0xff] %v1106
      %1170 = vst [vmem:[%s1127] ss:$9 sm:$0xff] %v1107
      %1171 = vst [vmem:[%s1129] ss:$9 sm:$0xff] %v1108
      %1172 = vst [vmem:[%s1131] ss:$9 sm:$0xff] %v1070
      %1173 = vst [vmem:[%s1133] ss:$9 sm:$0xff] %v1109
      %1174 = vst [vmem:[%s1135] ss:$9 sm:$0xff] %v1110
      %1175 = vst [vmem:[%s1137] ss:$9 sm:$0xff] %v1111
      %1176 = vst [vmem:[%s1139] ss:$9 sm:$0xff] %v1112
      %v1177 = vld [vmem:[#allocation1] sm:$0xff]
      %1178 = vst [vmem:[#allocation1] ss:$9 sm:$0xff] %v1113
      %1179 = vst [vmem:[%s1127] ss:$9 sm:$0xff] %v1114
      %1180 = vst [vmem:[%s1129] ss:$9 sm:$0xff] %v1071
      %1181 = vst [vmem:[%s1131] ss:$9 sm:$0xff] %v1115
      %1182 = vst [vmem:[%s1133] ss:$9 sm:$0xff] %v1116
      %1183 = vst [vmem:[%s1135] ss:$9 sm:$0xff] %v1117
      %1184 = vst [vmem:[%s1137] ss:$9 sm:$0xff] %v1118
      %1185 = vst [vmem:[%s1139] ss:$9 sm:$0xff] %v1119
      %v1186 = vld [vmem:[#allocation1] sm:$0xff]
      %1187 = vst [vmem:[#allocation1] ss:$9 sm:$0xff] %v1120
      %v1188 = vld [vmem:[#allocation1] sm:$0xff]
      %v1189 = vsel %vm355, %v1141, 0
      %v1191 = vsel %vm355, %v1150, 0
      %v1193 = vsel %vm355, %v1159, 0
      %v1195 = vsel %vm355, %v1168, 0
      %v1197 = vsel %vm355, %v1177, 0
      %v1199 = vsel %vm355, %v1186, 0
      %v1201 = vsel %vm355, %v1188, 0
      %1203 = vmatpush.msra.mxu0 0.0
      %1204 = vmatpush.msra.mxu0 0.0
      %1205 = vmatpush.msra.mxu0 0.0
      %1206 = vmatpush.msra.mxu0 0.0
      %1207 = vmatpush.msra.mxu0 0.0
      %1208 = vmatpush.msra.mxu0 0.0
      %1209 = vmatpush.msra.mxu0 0.0
      %1210 = vmatpush.msra.mxu0 0.0
      %1211 = vmatpush.msra.mxu0 0.0
      %1212 = vmatpush.msra.mxu0 0.0
      %1213 = vmatpush.msra.mxu0 0.0
      %1214 = vmatpush.msra.mxu0 0.0
      %1215 = vmatpush.msra.mxu0 %v1125
      %1216 = vmatpush.msra.mxu0 %v1124
      %1217 = vmatpush.msra.mxu0 %v1123
      %1218 = vmatpush.msra.mxu0 %v1122
      %1219 = vmatmul.f32.gmra.mxu0 %v1189
      %v1220 = vpop.f32.mrf.mxu0
      %v1221 = vadd.f32 0.0, %v1220
      %1222 = vmatmul.f32.gmra.mxu0 %v1191
      %v1223 = vpop.f32.mrf.mxu0
      %v1224 = vadd.f32 0.0, %v1223
      %1225 = vmatmul.f32.gmra.mxu0 %v1193
      %v1226 = vpop.f32.mrf.mxu0
      %v1227 = vadd.f32 0.0, %v1226
      %1228 = vmatmul.f32.gmra.mxu0 %v1195
      %v1229 = vpop.f32.mrf.mxu0
      %v1230 = vadd.f32 0.0, %v1229
      %1231 = vmatmul.f32.gmra.mxu0 %v1197
      %v1232 = vpop.f32.mrf.mxu0
      %v1233 = vadd.f32 0.0, %v1232
      %1234 = vmatmul.f32.gmra.mxu0 %v1199
      %v1235 = vpop.f32.mrf.mxu0
      %v1236 = vadd.f32 0.0, %v1235
      %1237 = vmatmul.f32.gmra.mxu0 %v1201
      %v1238 = vpop.f32.mrf.mxu0
      %1239 = vdwg.mxu0
      %v1240 = vadd.f32 %v1059, %v1221
      %v1241 = vadd.f32 %v1060, %v1224
      %v1242 = vadd.f32 %v1061, %v1227
      %v1243 = vadd.f32 %v1062, %v1230
      %v1244 = vadd.f32 %v1063, %v1233
      %v1245 = vadd.f32 %v1064, %v1236
      %s1246 = scalar_lea.vmem %s165, 32
      %v1247 = vld [vmem:[%s1246] sm:$0x7f]
      %v1248 = vld [vmem:[%s1246 + $0x10] sm:$0x7f]
      %v1249 = vld [vmem:[%s1246 + $0x20] sm:$0x7f]
      %v1250 = vld [vmem:[%s1246 + $0x30] sm:$0x7f]
      %v1251 = vld [vmem:[%s1246 + $0x40] sm:$0x7f]
      %v1252 = vld [vmem:[%s1246 + $0x50] sm:$0x7f]
      %v1253 = vld [vmem:[%s1246 + $0x60] sm:$0x7f]
      %v1261 = vrot.slane %v1247, 1
      %v1262 = vrot.slane %v1247, 2
      %v1263 = vrot.slane %v1247, 3
      %v1264 = vrot.slane %v1247, 4
      %v1265 = vrot.slane %v1247, 5
      %v1266 = vrot.slane %v1247, 6
      %v1267 = vrot.slane %v1248, 1
      %v1268 = vrot.slane %v1248, 2
      %v1269 = vrot.slane %v1248, 3
      %v1270 = vrot.slane %v1248, 4
      %v1271 = vrot.slane %v1248, 5
      %v1272 = vrot.slane %v1248, 6
      %v1273 = vrot.slane %v1249, 1
      %v1274 = vrot.slane %v1249, 2
      %v1275 = vrot.slane %v1249, 3
      %v1276 = vrot.slane %v1249, 4
      %v1277 = vrot.slane %v1249, 5
      %v1278 = vrot.slane %v1249, 6
      %v1279 = vrot.slane %v1250, 1
      %v1280 = vrot.slane %v1250, 2
      %v1281 = vrot.slane %v1250, 3
      %v1282 = vrot.slane %v1250, 4
      %v1283 = vrot.slane %v1250, 5
      %v1284 = vrot.slane %v1250, 6
      %v1285 = vrot.slane %v1251, 1
      %v1286 = vrot.slane %v1251, 2
      %v1287 = vrot.slane %v1251, 3
      %v1288 = vrot.slane %v1251, 4
      %v1289 = vrot.slane %v1251, 5
      %v1290 = vrot.slane %v1251, 6
      %v1291 = vrot.slane %v1252, 1
      %v1292 = vrot.slane %v1252, 2
      %v1293 = vrot.slane %v1252, 3
      %v1294 = vrot.slane %v1252, 4
      %v1295 = vrot.slane %v1252, 5
      %v1296 = vrot.slane %v1252, 6
      %v1297 = vrot.slane %v1253, 1
      %v1298 = vrot.slane %v1253, 2
      %v1299 = vrot.slane %v1253, 3
      %v1300 = vrot.slane %v1253, 4
      %v1301 = vrot.slane %v1253, 5
      %v1302 = vrot.slane %v1253, 6
      %s1303 = scalar_lea.vmem %s1, 192
      %v1304 = vld [vmem:[%s1303] sm:$0xff]
      %v1305 = vld [vmem:[%s1303 + $0x8] sm:$0xff]
      %v1306 = vld [vmem:[%s1303 + $0x10] sm:$0xff]
      %v1307 = vld [vmem:[%s1303 + $0x18] sm:$0xff]
      %1308 = vst [vmem:[#allocation1] ss:$9 sm:$0xff] %v1247
      %s1309 = scalar_lea.vmem [#allocation1], 1
      %1310 = vst [vmem:[%s1309] ss:$9 sm:$0xff] %v1261
      %s1311 = scalar_lea.vmem [#allocation1], 2
      %1312 = vst [vmem:[%s1311] ss:$9 sm:$0xff] %v1262
      %s1313 = scalar_lea.vmem [#allocation1], 3
      %1314 = vst [vmem:[%s1313] ss:$9 sm:$0xff] %v1263
      %s1315 = scalar_lea.vmem [#allocation1], 4
      %1316 = vst [vmem:[%s1315] ss:$9 sm:$0xff] %v1264
      %s1317 = scalar_lea.vmem [#allocation1], 5
      %1318 = vst [vmem:[%s1317] ss:$9 sm:$0xff] %v1265
      %s1319 = scalar_lea.vmem [#allocation1], 6
      %1320 = vst [vmem:[%s1319] ss:$9 sm:$0xff] %v1266
      %s1321 = scalar_lea.vmem [#allocation1], 7
      %1322 = vst [vmem:[%s1321] ss:$9 sm:$0xff] %v1248
      %v1323 = vld [vmem:[#allocation1] sm:$0xff]
      %1324 = vst [vmem:[#allocation1] ss:$9 sm:$0xff] %v1267
      %1325 = vst [vmem:[%s1309] ss:$9 sm:$0xff] %v1268
      %1326 = vst [vmem:[%s1311] ss:$9 sm:$0xff] %v1269
      %1327 = vst [vmem:[%s1313] ss:$9 sm:$0xff] %v1270
      %1328 = vst [vmem:[%s1315] ss:$9 sm:$0xff] %v1271
      %1329 = vst [vmem:[%s1317] ss:$9 sm:$0xff] %v1272
      %1330 = vst [vmem:[%s1319] ss:$9 sm:$0xff] %v1249
      %1331 = vst [vmem:[%s1321] ss:$9 sm:$0xff] %v1273
      %v1332 = vld [vmem:[#allocation1] sm:$0xff]
      %1333 = vst [vmem:[#allocation1] ss:$9 sm:$0xff] %v1274
      %1334 = vst [vmem:[%s1309] ss:$9 sm:$0xff] %v1275
      %1335 = vst [vmem:[%s1311] ss:$9 sm:$0xff] %v1276
      %1336 = vst [vmem:[%s1313] ss:$9 sm:$0xff] %v1277
      %1337 = vst [vmem:[%s1315] ss:$9 sm:$0xff] %v1278
      %1338 = vst [vmem:[%s1317] ss:$9 sm:$0xff] %v1250
      %1339 = vst [vmem:[%s1319] ss:$9 sm:$0xff] %v1279
      %1340 = vst [vmem:[%s1321] ss:$9 sm:$0xff] %v1280
      %v1341 = vld [vmem:[#allocation1] sm:$0xff]
      %1342 = vst [vmem:[#allocation1] ss:$9 sm:$0xff] %v1281
      %1343 = vst [vmem:[%s1309] ss:$9 sm:$0xff] %v1282
      %1344 = vst [vmem:[%s1311] ss:$9 sm:$0xff] %v1283
      %1345 = vst [vmem:[%s1313] ss:$9 sm:$0xff] %v1284
      %1346 = vst [vmem:[%s1315] ss:$9 sm:$0xff] %v1251
      %1347 = vst [vmem:[%s1317] ss:$9 sm:$0xff] %v1285
      %1348 = vst [vmem:[%s1319] ss:$9 sm:$0xff] %v1286
      %1349 = vst [vmem:[%s1321] ss:$9 sm:$0xff] %v1287
      %v1350 = vld [vmem:[#allocation1] sm:$0xff]
      %1351 = vst [vmem:[#allocation1] ss:$9 sm:$0xff] %v1288
      %1352 = vst [vmem:[%s1309] ss:$9 sm:$0xff] %v1289
      %1353 = vst [vmem:[%s1311] ss:$9 sm:$0xff] %v1290
      %1354 = vst [vmem:[%s1313] ss:$9 sm:$0xff] %v1252
      %1355 = vst [vmem:[%s1315] ss:$9 sm:$0xff] %v1291
      %1356 = vst [vmem:[%s1317] ss:$9 sm:$0xff] %v1292
      %1357 = vst [vmem:[%s1319] ss:$9 sm:$0xff] %v1293
      %1358 = vst [vmem:[%s1321] ss:$9 sm:$0xff] %v1294
      %v1359 = vld [vmem:[#allocation1] sm:$0xff]
      %1360 = vst [vmem:[#allocation1] ss:$9 sm:$0xff] %v1295
      %1361 = vst [vmem:[%s1309] ss:$9 sm:$0xff] %v1296
      %1362 = vst [vmem:[%s1311] ss:$9 sm:$0xff] %v1253
      %1363 = vst [vmem:[%s1313] ss:$9 sm:$0xff] %v1297
      %1364 = vst [vmem:[%s1315] ss:$9 sm:$0xff] %v1298
      %1365 = vst [vmem:[%s1317] ss:$9 sm:$0xff] %v1299
      %1366 = vst [vmem:[%s1319] ss:$9 sm:$0xff] %v1300
      %1367 = vst [vmem:[%s1321] ss:$9 sm:$0xff] %v1301
      %v1368 = vld [vmem:[#allocation1] sm:$0xff]
      %1369 = vst [vmem:[#allocation1] ss:$9 sm:$0xff] %v1302
      %v1370 = vld [vmem:[#allocation1] sm:$0xff]
      %v1371 = vsel %vm355, %v1323, 0
      %v1373 = vsel %vm355, %v1332, 0
      %v1375 = vsel %vm355, %v1341, 0
      %v1377 = vsel %vm355, %v1350, 0
      %v1379 = vsel %vm355, %v1359, 0
      %v1381 = vsel %vm355, %v1368, 0
      %v1383 = vsel %vm355, %v1370, 0
      %1385 = vmatpush.msra.mxu0 0.0
      %1386 = vmatpush.msra.mxu0 0.0
      %1387 = vmatpush.msra.mxu0 0.0
      %1388 = vmatpush.msra.mxu0 0.0
      %1389 = vmatpush.msra.mxu0 0.0
      %1390 = vmatpush.msra.mxu0 0.0
      %1391 = vmatpush.msra.mxu0 0.0
      %1392 = vmatpush.msra.mxu0 0.0
      %1393 = vmatpush.msra.mxu0 0.0
      %1394 = vmatpush.msra.mxu0 0.0
      %1395 = vmatpush.msra.mxu0 0.0
      %1396 = vmatpush.msra.mxu0 0.0
      %1397 = vmatpush.msra.mxu0 %v1307
      %1398 = vmatpush.msra.mxu0 %v1306
      %1399 = vmatpush.msra.mxu0 %v1305
      %1400 = vmatpush.msra.mxu0 %v1304
      %1401 = vmatmul.f32.gmra.mxu0 %v1371
      %v1402 = vpop.f32.mrf.mxu0
      %v1403 = vadd.f32 0.0, %v1402
      %1404 = vmatmul.f32.gmra.mxu0 %v1373
      %v1405 = vpop.f32.mrf.mxu0
      %v1406 = vadd.f32 0.0, %v1405
      %1407 = vmatmul.f32.gmra.mxu0 %v1375
      %v1408 = vpop.f32.mrf.mxu0
      %v1409 = vadd.f32 0.0, %v1408
      %1410 = vmatmul.f32.gmra.mxu0 %v1377
      %v1411 = vpop.f32.mrf.mxu0
      %v1412 = vadd.f32 0.0, %v1411
      %1413 = vmatmul.f32.gmra.mxu0 %v1379
      %v1414 = vpop.f32.mrf.mxu0
      %v1415 = vadd.f32 0.0, %v1414
      %1416 = vmatmul.f32.gmra.mxu0 %v1381
      %v1417 = vpop.f32.mrf.mxu0
      %v1418 = vadd.f32 0.0, %v1417
      %1419 = vmatmul.f32.gmra.mxu0 %v1383
      %v1420 = vpop.f32.mrf.mxu0
      %1421 = vdwg.mxu0
      %v1422 = vadd.f32 %v1240, %v1403
      %v1423 = vadd.f32 %v1241, %v1406
      %v1424 = vadd.f32 %v1242, %v1409
      %v1425 = vadd.f32 %v1243, %v1412
      %v1426 = vadd.f32 %v1244, %v1415
      %v1427 = vadd.f32 %v1245, %v1418
      %v1428 = vld [vmem:[%s1246 + $0x1] sm:$0x7f]
      %v1429 = vld [vmem:[%s1246 + $0x11] sm:$0x7f]
      %v1430 = vld [vmem:[%s1246 + $0x21] sm:$0x7f]
      %v1431 = vld [vmem:[%s1246 + $0x31] sm:$0x7f]
      %v1432 = vld [vmem:[%s1246 + $0x41] sm:$0x7f]
      %v1433 = vld [vmem:[%s1246 + $0x51] sm:$0x7f]
      %v1434 = vld [vmem:[%s1246 + $0x61] sm:$0x7f]
      %v1442 = vrot.slane %v1428, 1
      %v1443 = vrot.slane %v1428, 2
      %v1444 = vrot.slane %v1428, 3
      %v1445 = vrot.slane %v1428, 4
      %v1446 = vrot.slane %v1428, 5
      %v1447 = vrot.slane %v1428, 6
      %v1448 = vrot.slane %v1429, 1
      %v1449 = vrot.slane %v1429, 2
      %v1450 = vrot.slane %v1429, 3
      %v1451 = vrot.slane %v1429, 4
      %v1452 = vrot.slane %v1429, 5
      %v1453 = vrot.slane %v1429, 6
      %v1454 = vrot.slane %v1430, 1
      %v1455 = vrot.slane %v1430, 2
      %v1456 = vrot.slane %v1430, 3
      %v1457 = vrot.slane %v1430, 4
      %v1458 = vrot.slane %v1430, 5
      %v1459 = vrot.slane %v1430, 6
      %v1460 = vrot.slane %v1431, 1
      %v1461 = vrot.slane %v1431, 2
      %v1462 = vrot.slane %v1431, 3
      %v1463 = vrot.slane %v1431, 4
      %v1464 = vrot.slane %v1431, 5
      %v1465 = vrot.slane %v1431, 6
      %v1466 = vrot.slane %v1432, 1
      %v1467 = vrot.slane %v1432, 2
      %v1468 = vrot.slane %v1432, 3
      %v1469 = vrot.slane %v1432, 4
      %v1470 = vrot.slane %v1432, 5
      %v1471 = vrot.slane %v1432, 6
      %v1472 = vrot.slane %v1433, 1
      %v1473 = vrot.slane %v1433, 2
      %v1474 = vrot.slane %v1433, 3
      %v1475 = vrot.slane %v1433, 4
      %v1476 = vrot.slane %v1433, 5
      %v1477 = vrot.slane %v1433, 6
      %v1478 = vrot.slane %v1434, 1
      %v1479 = vrot.slane %v1434, 2
      %v1480 = vrot.slane %v1434, 3
      %v1481 = vrot.slane %v1434, 4
      %v1482 = vrot.slane %v1434, 5
      %v1483 = vrot.slane %v1434, 6
      %s1484 = scalar_lea.vmem %s1, 224
      %v1485 = vld [vmem:[%s1484] sm:$0xff]
      %v1486 = vld [vmem:[%s1484 + $0x8] sm:$0xff]
      %v1487 = vld [vmem:[%s1484 + $0x10] sm:$0xff]
      %v1488 = vld [vmem:[%s1484 + $0x18] sm:$0xff]
      %1489 = vst [vmem:[#allocation1] ss:$9 sm:$0xff] %v1428
      %s1490 = scalar_lea.vmem [#allocation1], 1
      %1491 = vst [vmem:[%s1490] ss:$9 sm:$0xff] %v1442
      %s1492 = scalar_lea.vmem [#allocation1], 2
      %1493 = vst [vmem:[%s1492] ss:$9 sm:$0xff] %v1443
      %s1494 = scalar_lea.vmem [#allocation1], 3
      %1495 = vst [vmem:[%s1494] ss:$9 sm:$0xff] %v1444
      %s1496 = scalar_lea.vmem [#allocation1], 4
      %1497 = vst [vmem:[%s1496] ss:$9 sm:$0xff] %v1445
      %s1498 = scalar_lea.vmem [#allocation1], 5
      %1499 = vst [vmem:[%s1498] ss:$9 sm:$0xff] %v1446
      %s1500 = scalar_lea.vmem [#allocation1], 6
      %1501 = vst [vmem:[%s1500] ss:$9 sm:$0xff] %v1447
      %s1502 = scalar_lea.vmem [#allocation1], 7
      %1503 = vst [vmem:[%s1502] ss:$9 sm:$0xff] %v1429
      %v1504 = vld [vmem:[#allocation1] sm:$0xff]
      %1505 = vst [vmem:[#allocation1] ss:$9 sm:$0xff] %v1448
      %1506 = vst [vmem:[%s1490] ss:$9 sm:$0xff] %v1449
      %1507 = vst [vmem:[%s1492] ss:$9 sm:$0xff] %v1450
      %1508 = vst [vmem:[%s1494] ss:$9 sm:$0xff] %v1451
      %1509 = vst [vmem:[%s1496] ss:$9 sm:$0xff] %v1452
      %1510 = vst [vmem:[%s1498] ss:$9 sm:$0xff] %v1453
      %1511 = vst [vmem:[%s1500] ss:$9 sm:$0xff] %v1430
      %1512 = vst [vmem:[%s1502] ss:$9 sm:$0xff] %v1454
      %v1513 = vld [vmem:[#allocation1] sm:$0xff]
      %1514 = vst [vmem:[#allocation1] ss:$9 sm:$0xff] %v1455
      %1515 = vst [vmem:[%s1490] ss:$9 sm:$0xff] %v1456
      %1516 = vst [vmem:[%s1492] ss:$9 sm:$0xff] %v1457
      %1517 = vst [vmem:[%s1494] ss:$9 sm:$0xff] %v1458
      %1518 = vst [vmem:[%s1496] ss:$9 sm:$0xff] %v1459
      %1519 = vst [vmem:[%s1498] ss:$9 sm:$0xff] %v1431
      %1520 = vst [vmem:[%s1500] ss:$9 sm:$0xff] %v1460
      %1521 = vst [vmem:[%s1502] ss:$9 sm:$0xff] %v1461
      %v1522 = vld [vmem:[#allocation1] sm:$0xff]
      %1523 = vst [vmem:[#allocation1] ss:$9 sm:$0xff] %v1462
      %1524 = vst [vmem:[%s1490] ss:$9 sm:$0xff] %v1463
      %1525 = vst [vmem:[%s1492] ss:$9 sm:$0xff] %v1464
      %1526 = vst [vmem:[%s1494] ss:$9 sm:$0xff] %v1465
      %1527 = vst [vmem:[%s1496] ss:$9 sm:$0xff] %v1432
      %1528 = vst [vmem:[%s1498] ss:$9 sm:$0xff] %v1466
      %1529 = vst [vmem:[%s1500] ss:$9 sm:$0xff] %v1467
      %1530 = vst [vmem:[%s1502] ss:$9 sm:$0xff] %v1468
      %v1531 = vld [vmem:[#allocation1] sm:$0xff]
      %1532 = vst [vmem:[#allocation1] ss:$9 sm:$0xff] %v1469
      %1533 = vst [vmem:[%s1490] ss:$9 sm:$0xff] %v1470
      %1534 = vst [vmem:[%s1492] ss:$9 sm:$0xff] %v1471
      %1535 = vst [vmem:[%s1494] ss:$9 sm:$0xff] %v1433
      %1536 = vst [vmem:[%s1496] ss:$9 sm:$0xff] %v1472
      %1537 = vst [vmem:[%s1498] ss:$9 sm:$0xff] %v1473
      %1538 = vst [vmem:[%s1500] ss:$9 sm:$0xff] %v1474
      %1539 = vst [vmem:[%s1502] ss:$9 sm:$0xff] %v1475
      %v1540 = vld [vmem:[#allocation1] sm:$0xff]
      %1541 = vst [vmem:[#allocation1] ss:$9 sm:$0xff] %v1476
      %1542 = vst [vmem:[%s1490] ss:$9 sm:$0xff] %v1477
      %1543 = vst [vmem:[%s1492] ss:$9 sm:$0xff] %v1434
      %1544 = vst [vmem:[%s1494] ss:$9 sm:$0xff] %v1478
      %1545 = vst [vmem:[%s1496] ss:$9 sm:$0xff] %v1479
      %1546 = vst [vmem:[%s1498] ss:$9 sm:$0xff] %v1480
      %1547 = vst [vmem:[%s1500] ss:$9 sm:$0xff] %v1481
      %1548 = vst [vmem:[%s1502] ss:$9 sm:$0xff] %v1482
      %v1549 = vld [vmem:[#allocation1] sm:$0xff]
      %1550 = vst [vmem:[#allocation1] ss:$9 sm:$0xff] %v1483
      %v1551 = vld [vmem:[#allocation1] sm:$0xff]
      %v1552 = vsel %vm355, %v1504, 0
      %v1554 = vsel %vm355, %v1513, 0
      %v1556 = vsel %vm355, %v1522, 0
      %v1558 = vsel %vm355, %v1531, 0
      %v1560 = vsel %vm355, %v1540, 0
      %v1562 = vsel %vm355, %v1549, 0
      %v1564 = vsel %vm355, %v1551, 0
      %1566 = vmatpush.msra.mxu0 0.0
      %1567 = vmatpush.msra.mxu0 0.0
      %1568 = vmatpush.msra.mxu0 0.0
      %1569 = vmatpush.msra.mxu0 0.0
      %1570 = vmatpush.msra.mxu0 0.0
      %1571 = vmatpush.msra.mxu0 0.0
      %1572 = vmatpush.msra.mxu0 0.0
      %1573 = vmatpush.msra.mxu0 0.0
      %1574 = vmatpush.msra.mxu0 0.0
      %1575 = vmatpush.msra.mxu0 0.0
      %1576 = vmatpush.msra.mxu0 0.0
      %1577 = vmatpush.msra.mxu0 0.0
      %1578 = vmatpush.msra.mxu0 %v1488
      %1579 = vmatpush.msra.mxu0 %v1487
      %1580 = vmatpush.msra.mxu0 %v1486
      %1581 = vmatpush.msra.mxu0 %v1485
      %1582 = vmatmul.f32.gmra.mxu0 %v1552
      %v1583 = vpop.f32.mrf.mxu0
      %v1584 = vadd.f32 0.0, %v1583
      %1585 = vmatmul.f32.gmra.mxu0 %v1554
      %v1586 = vpop.f32.mrf.mxu0
      %v1587 = vadd.f32 0.0, %v1586
      %1588 = vmatmul.f32.gmra.mxu0 %v1556
      %v1589 = vpop.f32.mrf.mxu0
      %v1590 = vadd.f32 0.0, %v1589
      %1591 = vmatmul.f32.gmra.mxu0 %v1558
      %v1592 = vpop.f32.mrf.mxu0
      %v1593 = vadd.f32 0.0, %v1592
      %1594 = vmatmul.f32.gmra.mxu0 %v1560
      %v1595 = vpop.f32.mrf.mxu0
      %v1596 = vadd.f32 0.0, %v1595
      %1597 = vmatmul.f32.gmra.mxu0 %v1562
      %v1598 = vpop.f32.mrf.mxu0
      %v1599 = vadd.f32 0.0, %v1598
      %1600 = vmatmul.f32.gmra.mxu0 %v1564
      %v1601 = vpop.f32.mrf.mxu0
      %1602 = vdwg.mxu0
      %v1603 = vadd.f32 %v1422, %v1584
      %v1604 = vadd.f32 %v1423, %v1587
      %v1605 = vadd.f32 %v1424, %v1590
      %v1606 = vadd.f32 %v1425, %v1593
      %v1607 = vadd.f32 %v1426, %v1596
      %v1608 = vadd.f32 %v1427, %v1599
      %v1609 = vld [vmem:[%s1246 + $0x2] sm:$0x7f]
      %v1610 = vld [vmem:[%s1246 + $0x12] sm:$0x7f]
      %v1611 = vld [vmem:[%s1246 + $0x22] sm:$0x7f]
      %v1612 = vld [vmem:[%s1246 + $0x32] sm:$0x7f]
      %v1613 = vld [vmem:[%s1246 + $0x42] sm:$0x7f]
      %v1614 = vld [vmem:[%s1246 + $0x52] sm:$0x7f]
      %v1615 = vld [vmem:[%s1246 + $0x62] sm:$0x7f]
      %v1623 = vrot.slane %v1609, 1
      %v1624 = vrot.slane %v1609, 2
      %v1625 = vrot.slane %v1609, 3
      %v1626 = vrot.slane %v1609, 4
      %v1627 = vrot.slane %v1609, 5
      %v1628 = vrot.slane %v1609, 6
      %v1629 = vrot.slane %v1610, 1
      %v1630 = vrot.slane %v1610, 2
      %v1631 = vrot.slane %v1610, 3
      %v1632 = vrot.slane %v1610, 4
      %v1633 = vrot.slane %v1610, 5
      %v1634 = vrot.slane %v1610, 6
      %v1635 = vrot.slane %v1611, 1
      %v1636 = vrot.slane %v1611, 2
      %v1637 = vrot.slane %v1611, 3
      %v1638 = vrot.slane %v1611, 4
      %v1639 = vrot.slane %v1611, 5
      %v1640 = vrot.slane %v1611, 6
      %v1641 = vrot.slane %v1612, 1
      %v1642 = vrot.slane %v1612, 2
      %v1643 = vrot.slane %v1612, 3
      %v1644 = vrot.slane %v1612, 4
      %v1645 = vrot.slane %v1612, 5
      %v1646 = vrot.slane %v1612, 6
      %v1647 = vrot.slane %v1613, 1
      %v1648 = vrot.slane %v1613, 2
      %v1649 = vrot.slane %v1613, 3
      %v1650 = vrot.slane %v1613, 4
      %v1651 = vrot.slane %v1613, 5
      %v1652 = vrot.slane %v1613, 6
      %v1653 = vrot.slane %v1614, 1
      %v1654 = vrot.slane %v1614, 2
      %v1655 = vrot.slane %v1614, 3
      %v1656 = vrot.slane %v1614, 4
      %v1657 = vrot.slane %v1614, 5
      %v1658 = vrot.slane %v1614, 6
      %v1659 = vrot.slane %v1615, 1
      %v1660 = vrot.slane %v1615, 2
      %v1661 = vrot.slane %v1615, 3
      %v1662 = vrot.slane %v1615, 4
      %v1663 = vrot.slane %v1615, 5
      %v1664 = vrot.slane %v1615, 6
      %s1665 = scalar_lea.vmem %s1, 256
      %v1666 = vld [vmem:[%s1665] sm:$0xff]
      %v1667 = vld [vmem:[%s1665 + $0x8] sm:$0xff]
      %v1668 = vld [vmem:[%s1665 + $0x10] sm:$0xff]
      %v1669 = vld [vmem:[%s1665 + $0x18] sm:$0xff]
      %1670 = vst [vmem:[#allocation1] ss:$9 sm:$0xff] %v1609
      %s1671 = scalar_lea.vmem [#allocation1], 1
      %1672 = vst [vmem:[%s1671] ss:$9 sm:$0xff] %v1623
      %s1673 = scalar_lea.vmem [#allocation1], 2
      %1674 = vst [vmem:[%s1673] ss:$9 sm:$0xff] %v1624
      %s1675 = scalar_lea.vmem [#allocation1], 3
      %1676 = vst [vmem:[%s1675] ss:$9 sm:$0xff] %v1625
      %s1677 = scalar_lea.vmem [#allocation1], 4
      %1678 = vst [vmem:[%s1677] ss:$9 sm:$0xff] %v1626
      %s1679 = scalar_lea.vmem [#allocation1], 5
      %1680 = vst [vmem:[%s1679] ss:$9 sm:$0xff] %v1627
      %s1681 = scalar_lea.vmem [#allocation1], 6
      %1682 = vst [vmem:[%s1681] ss:$9 sm:$0xff] %v1628
      %s1683 = scalar_lea.vmem [#allocation1], 7
      %1684 = vst [vmem:[%s1683] ss:$9 sm:$0xff] %v1610
      %v1685 = vld [vmem:[#allocation1] sm:$0xff]
      %1686 = vst [vmem:[#allocation1] ss:$9 sm:$0xff] %v1629
      %1687 = vst [vmem:[%s1671] ss:$9 sm:$0xff] %v1630
      %1688 = vst [vmem:[%s1673] ss:$9 sm:$0xff] %v1631
      %1689 = vst [vmem:[%s1675] ss:$9 sm:$0xff] %v1632
      %1690 = vst [vmem:[%s1677] ss:$9 sm:$0xff] %v1633
      %1691 = vst [vmem:[%s1679] ss:$9 sm:$0xff] %v1634
      %1692 = vst [vmem:[%s1681] ss:$9 sm:$0xff] %v1611
      %1693 = vst [vmem:[%s1683] ss:$9 sm:$0xff] %v1635
      %v1694 = vld [vmem:[#allocation1] sm:$0xff]
      %1695 = vst [vmem:[#allocation1] ss:$9 sm:$0xff] %v1636
      %1696 = vst [vmem:[%s1671] ss:$9 sm:$0xff] %v1637
      %1697 = vst [vmem:[%s1673] ss:$9 sm:$0xff] %v1638
      %1698 = vst [vmem:[%s1675] ss:$9 sm:$0xff] %v1639
      %1699 = vst [vmem:[%s1677] ss:$9 sm:$0xff] %v1640
      %1700 = vst [vmem:[%s1679] ss:$9 sm:$0xff] %v1612
      %1701 = vst [vmem:[%s1681] ss:$9 sm:$0xff] %v1641
      %1702 = vst [vmem:[%s1683] ss:$9 sm:$0xff] %v1642
      %v1703 = vld [vmem:[#allocation1] sm:$0xff]
      %1704 = vst [vmem:[#allocation1] ss:$9 sm:$0xff] %v1643
      %1705 = vst [vmem:[%s1671] ss:$9 sm:$0xff] %v1644
      %1706 = vst [vmem:[%s1673] ss:$9 sm:$0xff] %v1645
      %1707 = vst [vmem:[%s1675] ss:$9 sm:$0xff] %v1646
      %1708 = vst [vmem:[%s1677] ss:$9 sm:$0xff] %v1613
      %1709 = vst [vmem:[%s1679] ss:$9 sm:$0xff] %v1647
      %1710 = vst [vmem:[%s1681] ss:$9 sm:$0xff] %v1648
      %1711 = vst [vmem:[%s1683] ss:$9 sm:$0xff] %v1649
      %v1712 = vld [vmem:[#allocation1] sm:$0xff]
      %1713 = vst [vmem:[#allocation1] ss:$9 sm:$0xff] %v1650
      %1714 = vst [vmem:[%s1671] ss:$9 sm:$0xff] %v1651
      %1715 = vst [vmem:[%s1673] ss:$9 sm:$0xff] %v1652
      %1716 = vst [vmem:[%s1675] ss:$9 sm:$0xff] %v1614
      %1717 = vst [vmem:[%s1677] ss:$9 sm:$0xff] %v1653
      %1718 = vst [vmem:[%s1679] ss:$9 sm:$0xff] %v1654
      %1719 = vst [vmem:[%s1681] ss:$9 sm:$0xff] %v1655
      %1720 = vst [vmem:[%s1683] ss:$9 sm:$0xff] %v1656
      %v1721 = vld [vmem:[#allocation1] sm:$0xff]
      %1722 = vst [vmem:[#allocation1] ss:$9 sm:$0xff] %v1657
      %1723 = vst [vmem:[%s1671] ss:$9 sm:$0xff] %v1658
      %1724 = vst [vmem:[%s1673] ss:$9 sm:$0xff] %v1615
      %1725 = vst [vmem:[%s1675] ss:$9 sm:$0xff] %v1659
      %1726 = vst [vmem:[%s1677] ss:$9 sm:$0xff] %v1660
      %1727 = vst [vmem:[%s1679] ss:$9 sm:$0xff] %v1661
      %1728 = vst [vmem:[%s1681] ss:$9 sm:$0xff] %v1662
      %1729 = vst [vmem:[%s1683] ss:$9 sm:$0xff] %v1663
      %v1730 = vld [vmem:[#allocation1] sm:$0xff]
      %1731 = vst [vmem:[#allocation1] ss:$9 sm:$0xff] %v1664
      %v1732 = vld [vmem:[#allocation1] sm:$0xff]
      %v1733 = vsel %vm355, %v1685, 0
      %v1735 = vsel %vm355, %v1694, 0
      %v1737 = vsel %vm355, %v1703, 0
      %v1739 = vsel %vm355, %v1712, 0
      %v1741 = vsel %vm355, %v1721, 0
      %v1743 = vsel %vm355, %v1730, 0
      %v1745 = vsel %vm355, %v1732, 0
      %1747 = vmatpush.msra.mxu0 0.0
      %1748 = vmatpush.msra.mxu0 0.0
      %1749 = vmatpush.msra.mxu0 0.0
      %1750 = vmatpush.msra.mxu0 0.0
      %1751 = vmatpush.msra.mxu0 0.0
      %1752 = vmatpush.msra.mxu0 0.0
      %1753 = vmatpush.msra.mxu0 0.0
      %1754 = vmatpush.msra.mxu0 0.0
      %1755 = vmatpush.msra.mxu0 0.0
      %1756 = vmatpush.msra.mxu0 0.0
      %1757 = vmatpush.msra.mxu0 0.0
      %1758 = vmatpush.msra.mxu0 0.0
      %1759 = vmatpush.msra.mxu0 %v1669
      %1760 = vmatpush.msra.mxu0 %v1668
      %1761 = vmatpush.msra.mxu0 %v1667
      %1762 = vmatpush.msra.mxu0 %v1666
      %1763 = vmatmul.f32.gmra.mxu0 %v1733
      %v1764 = vpop.f32.mrf.mxu0
      %v1765 = vadd.f32 0.0, %v1764
      %1766 = vmatmul.f32.gmra.mxu0 %v1735
      %v1767 = vpop.f32.mrf.mxu0
      %v1768 = vadd.f32 0.0, %v1767
      %1769 = vmatmul.f32.gmra.mxu0 %v1737
      %v1770 = vpop.f32.mrf.mxu0
      %v1771 = vadd.f32 0.0, %v1770
      %1772 = vmatmul.f32.gmra.mxu0 %v1739
      %v1773 = vpop.f32.mrf.mxu0
      %v1774 = vadd.f32 0.0, %v1773
      %1775 = vmatmul.f32.gmra.mxu0 %v1741
      %v1776 = vpop.f32.mrf.mxu0
      %v1777 = vadd.f32 0.0, %v1776
      %1778 = vmatmul.f32.gmra.mxu0 %v1743
      %v1779 = vpop.f32.mrf.mxu0
      %v1780 = vadd.f32 0.0, %v1779
      %1781 = vmatmul.f32.gmra.mxu0 %v1745
      %v1782 = vpop.f32.mrf.mxu0
      %1783 = vdwg.mxu0
      %v1784 = vadd.f32 %v1603, %v1765
      %v1785 = vadd.f32 %v1604, %v1768
      %v1786 = vadd.f32 %v1605, %v1771
      %v1787 = vadd.f32 %v1606, %v1774
      %v1788 = vadd.f32 %v1607, %v1777
      %v1789 = vadd.f32 %v1608, %v1780
      %v1790 = vld [vmem:[%s2] sm:$0x1]
      %v1792 = vperm.slane %v1790, 0
      %v1794 = vadd.f32 %v1784, %v1792
      %v1795 = vadd.f32 %v1785, %v1792
      %v1796 = vadd.f32 %v1786, %v1792
      %v1797 = vadd.f32 %v1787, %v1792
      %v1798 = vadd.f32 %v1788, %v1792
      %v1799 = vadd.f32 %v1789, %v1792
      %v1800 = vmax.f32 %v1794, 0.0
      %v1801 = vmax.f32 %v1795, 0.0
      %v1802 = vmax.f32 %v1796, 0.0
      %v1803 = vmax.f32 %v1797, 0.0
      %v1804 = vmax.f32 %v1798, 0.0
      %v1805 = vmax.f32 %v1799, 0.0
      %v1811 = vrot.slane %v1800, 1
      %v1812 = vrot.slane %v1800, 2
      %v1813 = vrot.slane %v1800, 3
      %v1814 = vrot.slane %v1800, 4
      %v1815 = vrot.slane %v1800, 5
      %v1816 = vrot.slane %v1800, 7
      %v1817 = vrot.slane %v1801, 1
      %v1818 = vrot.slane %v1801, 2
      %v1819 = vrot.slane %v1801, 3
      %v1820 = vrot.slane %v1801, 4
      %v1821 = vrot.slane %v1801, 6
      %v1822 = vrot.slane %v1801, 7
      %v1823 = vrot.slane %v1802, 1
      %v1824 = vrot.slane %v1802, 2
      %v1825 = vrot.slane %v1802, 3
      %v1826 = vrot.slane %v1802, 5
      %v1827 = vrot.slane %v1802, 6
      %v1828 = vrot.slane %v1802, 7
      %v1829 = vrot.slane %v1803, 1
      %v1830 = vrot.slane %v1803, 2
      %v1831 = vrot.slane %v1803, 4
      %v1832 = vrot.slane %v1803, 5
      %v1833 = vrot.slane %v1803, 6
      %v1834 = vrot.slane %v1803, 7
      %v1835 = vrot.slane %v1804, 1
      %v1836 = vrot.slane %v1804, 3
      %v1837 = vrot.slane %v1804, 4
      %v1838 = vrot.slane %v1804, 5
      %v1839 = vrot.slane %v1804, 6
      %v1840 = vrot.slane %v1804, 7
      %v1871 = vlaneseq
      %vm1872 = vcmp.ge.s32.totalorder %v1871, 0
      %vm1873 = vcmp.lt.s32.totalorder %v1871, 64
      %vm1874 = vmand %vm1872, %vm1873
      %v1875 = vsel %vm1874, %v1800, -inf
      %v1876 = vsel %vm1874, %v1816, -inf
      %v1877 = vmax.f32 %v1875, %v1876
      %v1878 = vsel %vm1874, %v1811, -inf
      %v1879 = vsel %vm1874, %v1801, -inf
      %v1880 = vmax.f32 %v1878, %v1879
      %v1881 = vsel %vm1874, %v1812, -inf
      %v1882 = vsel %vm1874, %v1817, -inf
      %v1883 = vmax.f32 %v1881, %v1882
      %v1884 = vsel %vm1874, %v1813, -inf
      %v1885 = vsel %vm1874, %v1818, -inf
      %v1886 = vmax.f32 %v1884, %v1885
      %v1887 = vsel %vm1874, %v1814, -inf
      %v1888 = vsel %vm1874, %v1819, -inf
      %v1889 = vmax.f32 %v1887, %v1888
      %v1890 = vsel %vm1874, %v1815, -inf
      %v1891 = vsel %vm1874, %v1820, -inf
      %v1892 = vmax.f32 %v1890, %v1891
      %v1893 = vsel %vm1874, %v1821, -inf
      %v1894 = vsel %vm1874, %v1826, -inf
      %v1895 = vmax.f32 %v1893, %v1894
      %v1896 = vsel %vm1874, %v1822, -inf
      %v1897 = vsel %vm1874, %v1827, -inf
      %v1898 = vmax.f32 %v1896, %v1897
      %v1899 = vsel %vm1874, %v1802, -inf
      %v1900 = vsel %vm1874, %v1828, -inf
      %v1901 = vmax.f32 %v1899, %v1900
      %v1902 = vsel %vm1874, %v1823, -inf
      %v1903 = vsel %vm1874, %v1803, -inf
      %v1904 = vmax.f32 %v1902, %v1903
      %v1905 = vsel %vm1874, %v1824, -inf
      %v1906 = vsel %vm1874, %v1829, -inf
      %v1907 = vmax.f32 %v1905, %v1906
      %v1908 = vsel %vm1874, %v1825, -inf
      %v1909 = vsel %vm1874, %v1830, -inf
      %v1910 = vmax.f32 %v1908, %v1909
      %v1911 = vsel %vm1874, %v1831, -inf
      %v1912 = vsel %vm1874, %v1836, -inf
      %v1913 = vmax.f32 %v1911, %v1912
      %v1914 = vsel %vm1874, %v1832, -inf
      %v1915 = vsel %vm1874, %v1837, -inf
      %v1916 = vmax.f32 %v1914, %v1915
      %v1917 = vsel %vm1874, %v1833, -inf
      %v1918 = vsel %vm1874, %v1838, -inf
      %v1919 = vmax.f32 %v1917, %v1918
      %v1920 = vsel %vm1874, %v1834, -inf
      %v1921 = vsel %vm1874, %v1839, -inf
      %v1922 = vmax.f32 %v1920, %v1921
      %v1923 = vsel %vm1874, %v1804, -inf
      %v1924 = vsel %vm1874, %v1840, -inf
      %v1925 = vmax.f32 %v1923, %v1924
      %v1926 = vsel %vm1874, %v1835, -inf
      %v1927 = vsel %vm1874, %v1805, -inf
      %v1928 = vmax.f32 %v1926, %v1927
      %1947 = vst [vmem:[#allocation1] ss:$9 sm:$0xff] %v1877
      %s1948 = scalar_lea.vmem [#allocation1], 1
      %1949 = vst [vmem:[%s1948] ss:$9 sm:$0xff] %v1880
      %v1950 = vld [vmem:[#allocation1] sm:$0xff]
      %1951 = vst [vmem:[#allocation1] ss:$9 sm:$0xff] %v1883
      %1952 = vst [vmem:[%s1948] ss:$9 sm:$0xff] %v1886
      %v1953 = vld [vmem:[#allocation1] sm:$0xff]
      %1954 = vst [vmem:[#allocation1] ss:$9 sm:$0xff] %v1889
      %1955 = vst [vmem:[%s1948] ss:$9 sm:$0xff] %v1892
      %v1956 = vld [vmem:[#allocation1] sm:$0xff]
      %1957 = vst [vmem:[#allocation1] ss:$9 sm:$0xff] %v1895
      %1958 = vst [vmem:[%s1948] ss:$9 sm:$0xff] %v1898
      %v1959 = vld [vmem:[#allocation1] sm:$0xff]
      %1960 = vst [vmem:[#allocation1] ss:$9 sm:$0xff] %v1901
      %1961 = vst [vmem:[%s1948] ss:$9 sm:$0xff] %v1904
      %v1962 = vld [vmem:[#allocation1] sm:$0xff]
      %1963 = vst [vmem:[#allocation1] ss:$9 sm:$0xff] %v1907
      %1964 = vst [vmem:[%s1948] ss:$9 sm:$0xff] %v1910
      %v1965 = vld [vmem:[#allocation1] sm:$0xff]
      %1966 = vst [vmem:[#allocation1] ss:$9 sm:$0xff] %v1913
      %1967 = vst [vmem:[%s1948] ss:$9 sm:$0xff] %v1916
      %v1968 = vld [vmem:[#allocation1] sm:$0xff]
      %1969 = vst [vmem:[#allocation1] ss:$9 sm:$0xff] %v1919
      %1970 = vst [vmem:[%s1948] ss:$9 sm:$0xff] %v1922
      %v1971 = vld [vmem:[#allocation1] sm:$0xff]
      %1972 = vst [vmem:[#allocation1] ss:$9 sm:$0xff] %v1925
      %1973 = vst [vmem:[%s1948] ss:$9 sm:$0xff] %v1928
      %v1974 = vld [vmem:[#allocation1] sm:$0xff]
      %vm1984 = vcmask 517120
      %v1985 = vsel %vm1984, %v1950, -inf
      %v1986 = vrot.slane %v1985, 4
      %v1987 = vmax.f32 %v1985, %v1986
      %v1988 = vrot.slane %v1987, 2
      %v1989 = vmax.f32 %v1987, %v1988
      %v1990 = vrot.slane %v1989, 1
      %v1991 = vmax.f32 %v1989, %v1990
      %v1992 = vsel %vm1984, %v1953, -inf
      %v1993 = vrot.slane %v1992, 4
      %v1994 = vmax.f32 %v1992, %v1993
      %v1995 = vrot.slane %v1994, 2
      %v1996 = vmax.f32 %v1994, %v1995
      %v1997 = vrot.slane %v1996, 1
      %v1998 = vmax.f32 %v1996, %v1997
      %v1999 = vsel %vm1984, %v1956, -inf
      %v2000 = vrot.slane %v1999, 4
      %v2001 = vmax.f32 %v1999, %v2000
      %v2002 = vrot.slane %v2001, 2
      %v2003 = vmax.f32 %v2001, %v2002
      %v2004 = vrot.slane %v2003, 1
      %v2005 = vmax.f32 %v2003, %v2004
      %v2006 = vsel %vm1984, %v1959, -inf
      %v2007 = vrot.slane %v2006, 4
      %v2008 = vmax.f32 %v2006, %v2007
      %v2009 = vrot.slane %v2008, 2
      %v2010 = vmax.f32 %v2008, %v2009
      %v2011 = vrot.slane %v2010, 1
      %v2012 = vmax.f32 %v2010, %v2011
      %v2013 = vsel %vm1984, %v1962, -inf
      %v2014 = vrot.slane %v2013, 4
      %v2015 = vmax.f32 %v2013, %v2014
      %v2016 = vrot.slane %v2015, 2
      %v2017 = vmax.f32 %v2015, %v2016
      %v2018 = vrot.slane %v2017, 1
      %v2019 = vmax.f32 %v2017, %v2018
      %v2020 = vsel %vm1984, %v1965, -inf
      %v2021 = vrot.slane %v2020, 4
      %v2022 = vmax.f32 %v2020, %v2021
      %v2023 = vrot.slane %v2022, 2
      %v2024 = vmax.f32 %v2022, %v2023
      %v2025 = vrot.slane %v2024, 1
      %v2026 = vmax.f32 %v2024, %v2025
      %v2027 = vsel %vm1984, %v1968, -inf
      %v2028 = vrot.slane %v2027, 4
      %v2029 = vmax.f32 %v2027, %v2028
      %v2030 = vrot.slane %v2029, 2
      %v2031 = vmax.f32 %v2029, %v2030
      %v2032 = vrot.slane %v2031, 1
      %v2033 = vmax.f32 %v2031, %v2032
      %v2034 = vsel %vm1984, %v1971, -inf
      %v2035 = vrot.slane %v2034, 4
      %v2036 = vmax.f32 %v2034, %v2035
      %v2037 = vrot.slane %v2036, 2
      %v2038 = vmax.f32 %v2036, %v2037
      %v2039 = vrot.slane %v2038, 1
      %v2040 = vmax.f32 %v2038, %v2039
      %v2041 = vsel %vm1984, %v1974, -inf
      %v2042 = vrot.slane %v2041, 4
      %v2043 = vmax.f32 %v2041, %v2042
      %v2044 = vrot.slane %v2043, 2
      %v2045 = vmax.f32 %v2043, %v2044
      %v2046 = vrot.slane %v2045, 1
      %v2047 = vmax.f32 %v2045, %v2046
      %vm2057 = vcmask 1041409
      %v2058 = vsel %vm2057, %v1998, %v1991
      %vm2059 = vcmask 1042434
      %v2060 = vsel %vm2059, %v2005, %v2058
      %v2061 = vsel %vm2057, %v2019, %v2012
      %v2062 = vsel %vm2059, %v2026, %v2061
      %v2063 = vsel %vm2057, %v2040, %v2033
      %v2064 = vsel %vm2059, %v2047, %v2063
      %vm2068 = vcmask 518144
      %2069 = vst.msk [vmem:[%s170] sm:$0x7] %vm2068, %v2060
      %2070 = vst.msk [vmem:[%s170 + $0x4] sm:$0x7] %vm2068, %v2062
      %2071 = vst.msk [vmem:[%s170 + $0x8] sm:$0x7] %vm2068, %v2064
      %p2072 = scmp.lt.s32.totalorder %s14, 1
      %s2073 = scalar_select %p2072, %s14, 1
      %s2074 = smul.addr %s2073, 3
      %s2075 = smul.addr %s2074, 4
      %s2076 = scalar_lea.vmem %s3, %s2075
      // Predicated region
      $region33: #{cnn_regression_forward.4} parent=31 // pred_check
        %p2077 = pneg %p100
      $region34: #{cnn_regression_forward.4} parent=31 // pred_check_branch
        %2079 = sbr.rel (%p2077) target = $region36
      $region35: #{cnn_regression_forward.4} parent=31 // pred_region
        _
      $region36: #{cnn_regression_forward.4} parent=31 // pred_fallthru
        _
    $region32: #{cnn_regression_forward.4} parent=5 // pred_fallthru
      _
    %p2080 = scmp.le.s32.totalorder 2, %s9
    // Predicated region
    $region37: #{cnn_regression_forward.4} parent=5 // pred_check
      %p2081 = pneg %p2080
    $region38: #{cnn_regression_forward.4} parent=5 // pred_check_branch
      %2083 = sbr.rel (%p2081) target = $region40
    $region39: #{cnn_regression_forward.4} parent=5 // pred_region
      %s2084 = ssub.s32 %s9, 2
      // Predicated region
      $region41: #{cnn_regression_forward.4} parent=39 // pred_check
        %p2085 = pneg %p106
      $region42: #{cnn_regression_forward.4} parent=39 // pred_check_branch
        %2087 = sbr.rel (%p2085) target = $region44
      $region43: #{cnn_regression_forward.4} parent=39 // pred_region
        %p2088 = scmp.lt.s32.totalorder %s15, 1
        %s2089 = scalar_select %p2088, %s15, 1
        %s2090 = smul.addr %s2089, 3
        %s2091 = smul.addr %s2090, 4
        %s2092 = scalar_lea.vmem %s3, %s2091
      $region44: #{cnn_regression_forward.4} parent=39 // pred_fallthru
        _
    $region40: #{cnn_regression_forward.4} parent=5 // pred_fallthru
      _
  $region6: #{cnn_regression_forward.4} parent=0 // loop_footer
    %s13 = sadd.s32 1, %s9
  $region7: #{cnn_regression_forward.4} parent=0 // loop_footer_branch
    %8 = sbr.rel target = $region3
  $region8: #{cnn_regression_forward.4} parent=0 // loop_exit
    _

// kernel: cnn_regression_forward.3
$region0: #{cnn_regression_forward.3}
  #allocation0 [shape = 'u32[]', space=smem, size = 0x4, offset = 0x4, fixed_abs, tag = 'smem constant byte address 0x4 - core index']
  #allocation1 [shape = 'u32[72,128]{1,0:T(1,128)}', space=vmem, size = 0x9000, scoped, tag = 'internal scratch']
  %s0 = inlined_call_operand.vmem [shape: f32[2,20,20,3], index: 0, kind: input, shape index: {}]
  %s1 = inlined_call_operand.vmem [shape: f32[3,3,3,32], index: 1, kind: input, shape index: {}]
  %s2 = inlined_call_operand.vmem [shape: f32[1,32], index: 2, kind: input, shape index: {}]
  %s3 = inlined_call_operand.vmem [shape: f32[2,9,9,32], index: 3, kind: output, shape index: {}]
  %s4 = sld [smem:[#allocation0]]
  $region45: #{cnn_regression_forward.3} parent=0
    _
  %s6 = ssub.s32 1, %s4
  %s7 = scalar_select 0, %s6, %s4
  loop: start=0, step=1, limit=4
  $region2: #{cnn_regression_forward.3} parent=0 // loop_pre_header
    _
  $region3: #{cnn_regression_forward.3} parent=0 // loop_header
    %s9 = sphi 0, %s13
    %p10 = scmp.ge.s32.totalorder %s9, 4
    %s19 = sphi 0, %s21
    %s22 = sphi 0, %s19
    %s23 = sphi 0, %s22
    %s39 = sphi 0, %s23
    %s43 = sphi 0, %s43
    %s45 = sphi 0, %s43
    %s46 = sphi 0, %s45
    %s60 = sphi 0, %s46
    %s64 = sphi 0, %s64
    %s66 = sphi 0, %s64
    %s67 = sphi 0, %s66
    %s81 = sphi 0, %s67
    %s87 = sphi 0, %s89
    %s90 = sphi 0, %s87
    %s91 = sphi 0, %s90
    %s107 = sphi 0, %s91
  $region4: #{cnn_regression_forward.3} parent=0 // loop_header_branch
    %12 = sbr.rel (%p10) target = $region8
  $region5: #{cnn_regression_forward.3} parent=0 // loop_body
    %s14 = ssub.s32 %s9, 1
    %s15 = ssub.s32 %s9, 2
    %s16 = sadd.s32 %s9, 1
    %s17 = ssub.s32 %s9, %s16
    %p18 = scmp.eq.s32.totalorder %s17, 0
    %s20 = sadd.s32 %s19, 1
    %s21 = scalar_select %p18, %s19, %s20
    %p24 = pneg %p18
    %p25 = scmp.eq.s32.totalorder %s9, 1
    %p26 = por %p24, %p25
    %p27 = scmp.ne.s32.totalorder %s19, %s22
    %p28 = scmp.eq.s32.totalorder %s9, 0
    %p29 = por %p27, %p28
    %p30 = scmp.ne.s32.totalorder %s19, %s22
    %p31 = scmp.eq.s32.totalorder %s14, 1
    %p32 = por %p30, %p31
    %p33 = scmp.ne.s32.totalorder %s22, %s23
    %p34 = scmp.eq.s32.totalorder %s14, 0
    %p35 = por %p33, %p34
    %p36 = scmp.ne.s32.totalorder %s22, %s23
    %p37 = scmp.eq.s32.totalorder %s15, 1
    %p38 = por %p36, %p37
    %p40 = scmp.ne.s32.totalorder %s23, %s39
    %p41 = scmp.eq.s32.totalorder %s15, 0
    %p42 = por %p40, %p41
    %s44 = sadd.s32 %s43, 1
    %p47 = scmp.eq.s32.totalorder %s9, 1
    %p48 = scmp.ne.s32.totalorder %s43, %s45
    %p49 = scmp.eq.s32.totalorder %s9, 0
    %p50 = por %p48, %p49
    %p51 = scmp.ne.s32.totalorder %s43, %s45
    %p52 = scmp.eq.s32.totalorder %s14, 1
    %p53 = por %p51, %p52
    %p54 = scmp.ne.s32.totalorder %s45, %s46
    %p55 = scmp.eq.s32.totalorder %s14, 0
    %p56 = por %p54, %p55
    %p57 = scmp.ne.s32.totalorder %s45, %s46
    %p58 = scmp.eq.s32.totalorder %s15, 1
    %p59 = por %p57, %p58
    %p61 = scmp.ne.s32.totalorder %s46, %s60
    %p62 = scmp.eq.s32.totalorder %s15, 0
    %p63 = por %p61, %p62
    %s65 = sadd.s32 %s64, 1
    %p68 = scmp.eq.s32.totalorder %s9, 1
    %p69 = scmp.ne.s32.totalorder %s64, %s66
    %p70 = scmp.eq.s32.totalorder %s9, 0
    %p71 = por %p69, %p70
    %p72 = scmp.ne.s32.totalorder %s64, %s66
    %p73 = scmp.eq.s32.totalorder %s14, 1
    %p74 = por %p72, %p73
    %p75 = scmp.ne.s32.totalorder %s66, %s67
    %p76 = scmp.eq.s32.totalorder %s14, 0
    %p77 = por %p75, %p76
    %p78 = scmp.ne.s32.totalorder %s66, %s67
    %p79 = scmp.eq.s32.totalorder %s15, 1
    %p80 = por %p78, %p79
    %p82 = scmp.ne.s32.totalorder %s67, %s81
    %p83 = scmp.eq.s32.totalorder %s15, 0
    %p84 = por %p82, %p83
    %s85 = ssub.s32 %s9, %s16
    %p86 = scmp.eq.s32.totalorder %s85, 0
    %s88 = sadd.s32 %s87, 1
    %s89 = scalar_select %p86, %s87, %s88
    %p92 = pneg %p86
    %p93 = scmp.eq.s32.totalorder %s9, 1
    %p94 = por %p92, %p93
    %p95 = scmp.ne.s32.totalorder %s87, %s90
    %p96 = scmp.eq.s32.totalorder %s9, 0
    %p97 = por %p95, %p96
    %p98 = scmp.ne.s32.totalorder %s87, %s90
    %p99 = scmp.eq.s32.totalorder %s14, 1
    %p100 = por %p98, %p99
    %p101 = scmp.ne.s32.totalorder %s90, %s91
    %p102 = scmp.eq.s32.totalorder %s14, 0
    %p103 = por %p101, %p102
    %p104 = scmp.ne.s32.totalorder %s90, %s91
    %p105 = scmp.eq.s32.totalorder %s15, 1
    %p106 = por %p104, %p105
    %p108 = scmp.ne.s32.totalorder %s91, %s107
    %p109 = scmp.eq.s32.totalorder %s15, 0
    %p110 = por %p108, %p109
    %p111 = scmp.le.s32.totalorder 1, %s9
    %p112 = scmp.lt.s32.totalorder %s9, 3
    %p113 = pnand %p111, %p112
    %p114 = pneg %p113
    // Predicated region
    $region9: #{cnn_regression_forward.3} parent=5 // pred_check
      _
    $region10: #{cnn_regression_forward.3} parent=5 // pred_check_branch
      %116 = sbr.rel (%p113) target = $region12
    $region11: #{cnn_regression_forward.3} parent=5 // pred_region
      %s117 = ssub.s32 %s9, 1
      // Predicated region
      $region13: #{cnn_regression_forward.3} parent=11 // pred_check
        %p118 = pneg %p56
      $region14: #{cnn_regression_forward.3} parent=11 // pred_check_branch
        %120 = sbr.rel (%p118) target = $region16
      $region15: #{cnn_regression_forward.3} parent=11 // pred_region
        _
      $region16: #{cnn_regression_forward.3} parent=11 // pred_fallthru
        _
      // Predicated region
      $region17: #{cnn_regression_forward.3} parent=11 // pred_check
        %p121 = pneg %p77
      $region18: #{cnn_regression_forward.3} parent=11 // pred_check_branch
        %123 = sbr.rel (%p121) target = $region20
      $region19: #{cnn_regression_forward.3} parent=11 // pred_region
        _
      $region20: #{cnn_regression_forward.3} parent=11 // pred_fallthru
        _
    $region12: #{cnn_regression_forward.3} parent=5 // pred_fallthru
      _
    %p124 = scmp.lt.s32.totalorder %s9, 2
    // Predicated region
    $region21: #{cnn_regression_forward.3} parent=5 // pred_check
      %p125 = pneg %p124
    $region22: #{cnn_regression_forward.3} parent=5 // pred_check_branch
      %127 = sbr.rel (%p125) target = $region24
    $region23: #{cnn_regression_forward.3} parent=5 // pred_region
      // Predicated region
      $region25: #{cnn_regression_forward.3} parent=23 // pred_check
        %p128 = pneg %p29
      $region26: #{cnn_regression_forward.3} parent=23 // pred_check_branch
        %130 = sbr.rel (%p128) target = $region28
      $region27: #{cnn_regression_forward.3} parent=23 // pred_region
        %p131 = scmp.lt.s32.totalorder %s9, 1
        %s132 = scalar_select %p131, %s9, 1
        %s133 = smul.addr %s132, 60
        %s134 = smul.addr %s133, 8
        %s135 = scalar_lea.vmem %s0, %s134
      $region28: #{cnn_regression_forward.3} parent=23 // pred_fallthru
        _
    $region24: #{cnn_regression_forward.3} parent=5 // pred_fallthru
      _
    %p136 = scmp.le.s32.totalorder 1, %s9
    %p137 = scmp.lt.s32.totalorder %s9, 3
    %p138 = pnand %p136, %p137
    %p139 = pneg %p138
    // Predicated region
    $region29: #{cnn_regression_forward.3} parent=5 // pred_check
      _
    $region30: #{cnn_regression_forward.3} parent=5 // pred_check_branch
      %141 = sbr.rel (%p138) target = $region32
    $region31: #{cnn_regression_forward.3} parent=5 // pred_region
      %s142 = ssub.s32 %s9, 1
      %p143 = scmp.lt.s32.totalorder %s14, 1
      %s144 = scalar_select %p143, %s14, 1
      %s145 = smul.addr %s144, 60
      %s146 = smul.addr %s145, 8
      %s147 = scalar_lea.vmem %s0, %s146
      %p148 = pneg %p35
      %p149 = pneg %p32
      %p150 = pneg %p56
      %p151 = pneg %p53
      %p152 = pneg %p77
      %p153 = pneg %p74
      %p154 = pneg %p103
      %p155 = pneg %p100
      %p156 = scmp.lt.s32.totalorder %s14, 1
      %s157 = scalar_select %p156, %s14, 1
      %s158 = smul.addr %s157, 18
      %s159 = smul.addr %s158, 8
      %s160 = scalar_lea.vmem %s3, %s159
      %p161 = scmp.lt.s32.totalorder %s14, 1
      %s162 = scalar_select %p161, %s14, 1
      %s163 = smul.addr %s162, 60
      %s164 = smul.addr %s163, 8
      %s165 = scalar_lea.vmem %s0, %s164
      %p166 = scmp.lt.s32.totalorder %s14, 1
      %s167 = scalar_select %p166, %s14, 1
      %s168 = smul.addr %s167, 18
      %s169 = smul.addr %s168, 8
      %s170 = scalar_lea.vmem %s3, %s169
      %v171 = vld [vmem:[%s165] sm:$0xff]
      %v172 = vld [vmem:[%s165 + $0x8] sm:$0xff]
      %v173 = vld [vmem:[%s165 + $0x10] sm:$0x3]
      %v174 = vld [vmem:[%s165 + $0x18] sm:$0xff]
      %v175 = vld [vmem:[%s165 + $0x20] sm:$0xff]
      %v176 = vld [vmem:[%s165 + $0x28] sm:$0x3]
      %v177 = vld [vmem:[%s165 + $0x30] sm:$0xff]
      %v178 = vld [vmem:[%s165 + $0x38] sm:$0xff]
      %v179 = vld [vmem:[%s165 + $0x40] sm:$0x3]
      %v180 = vld [vmem:[%s165 + $0x48] sm:$0xff]
      %v181 = vld [vmem:[%s165 + $0x50] sm:$0xff]
      %v182 = vld [vmem:[%s165 + $0x58] sm:$0x3]
      %v183 = vld [vmem:[%s165 + $0x60] sm:$0xff]
      %v184 = vld [vmem:[%s165 + $0x68] sm:$0xff]
      %v185 = vld [vmem:[%s165 + $0x70] sm:$0x3]
      %v186 = vld [vmem:[%s165 + $0x78] sm:$0xff]
      %v187 = vld [vmem:[%s165 + $0x80] sm:$0xff]
      %v188 = vld [vmem:[%s165 + $0x88] sm:$0x3]
      %v189 = vld [vmem:[%s165 + $0x90] sm:$0xff]
      %v190 = vld [vmem:[%s165 + $0x98] sm:$0xff]
      %v191 = vld [vmem:[%s165 + $0xa0] sm:$0x3]
      %v192 = vld [vmem:[%s165 + $0xa8] sm:$0xff]
      %v193 = vld [vmem:[%s165 + $0xb0] sm:$0xff]
      %v194 = vld [vmem:[%s165 + $0xb8] sm:$0x3]
      %v195 = vld [vmem:[%s165 + $0xc0] sm:$0xff]
      %v196 = vld [vmem:[%s165 + $0xc8] sm:$0xff]
      %v197 = vld [vmem:[%s165 + $0xd0] sm:$0x3]
      %v198 = vld [vmem:[%s165 + $0xd8] sm:$0xff]
      %v199 = vld [vmem:[%s165 + $0xe0] sm:$0xff]
      %v200 = vld [vmem:[%s165 + $0xe8] sm:$0x3]
      %v201 = vld [vmem:[%s165 + $0xf0] sm:$0xff]
      %v202 = vld [vmem:[%s165 + $0xf8] sm:$0xff]
      %v203 = vld [vmem:[%s165 + $0x100] sm:$0x3]
      %v204 = vld [vmem:[%s165 + $0x108] sm:$0xff]
      %v205 = vld [vmem:[%s165 + $0x110] sm:$0xff]
      %v206 = vld [vmem:[%s165 + $0x118] sm:$0x3]
      %v207 = vld [vmem:[%s165 + $0x120] sm:$0xff]
      %v208 = vld [vmem:[%s165 + $0x128] sm:$0xff]
      %v209 = vld [vmem:[%s165 + $0x130] sm:$0x3]
      %v210 = vld [vmem:[%s165 + $0x138] sm:$0xff]
      %v211 = vld [vmem:[%s165 + $0x140] sm:$0xff]
      %v212 = vld [vmem:[%s165 + $0x148] sm:$0x3]
      %v213 = vld [vmem:[%s165 + $0x150] sm:$0xff]
      %v214 = vld [vmem:[%s165 + $0x158] sm:$0xff]
      %v215 = vld [vmem:[%s165 + $0x160] sm:$0x3]
      %v216 = vld [vmem:[%s165 + $0x168] sm:$0xff]
      %v217 = vld [vmem:[%s165 + $0x170] sm:$0xff]
      %v218 = vld [vmem:[%s165 + $0x178] sm:$0x3]
      %v219 = vld [vmem:[%s165 + $0x180] sm:$0xff]
      %v220 = vld [vmem:[%s165 + $0x188] sm:$0xff]
      %v221 = vld [vmem:[%s165 + $0x190] sm:$0x3]
      %v222 = vld [vmem:[%s165 + $0x198] sm:$0xff]
      %v223 = vld [vmem:[%s165 + $0x1a0] sm:$0xff]
      %v224 = vld [vmem:[%s165 + $0x1a8] sm:$0x3]
      %v279 = vrot.slane %v171, 2
      %v280 = vrot.slane %v171, 4
      %v281 = vrot.slane %v171, 6
      %v282 = vrot.slane %v172, 2
      %v283 = vrot.slane %v172, 4
      %v284 = vrot.slane %v172, 6
      %v285 = vrot.slane %v174, 2
      %v286 = vrot.slane %v174, 4
      %v287 = vrot.slane %v174, 6
      %v288 = vrot.slane %v175, 2
      %v289 = vrot.slane %v175, 4
      %v290 = vrot.slane %v175, 6
      %v291 = vrot.slane %v177, 2
      %v292 = vrot.slane %v177, 4
      %v293 = vrot.slane %v177, 6
      %v294 = vrot.slane %v178, 2
      %v295 = vrot.slane %v178, 4
      %v296 = vrot.slane %v178, 6
      %v297 = vrot.slane %v180, 2
      %v298 = vrot.slane %v180, 4
      %v299 = vrot.slane %v180, 6
      %v300 = vrot.slane %v181, 2
      %v301 = vrot.slane %v181, 4
      %v302 = vrot.slane %v181, 6
      %v303 = vrot.slane %v183, 2
      %v304 = vrot.slane %v183, 4
      %v305 = vrot.slane %v183, 6
      %v306 = vrot.slane %v184, 2
      %v307 = vrot.slane %v184, 4
      %v308 = vrot.slane %v184, 6
      %v309 = vrot.slane %v186, 2
      %v310 = vrot.slane %v186, 4
      %v311 = vrot.slane %v186, 6
      %v312 = vrot.slane %v187, 2
      %v313 = vrot.slane %v187, 4
      %v314 = vrot.slane %v187, 6
      %v315 = vrot.slane %v189, 2
      %v316 = vrot.slane %v189, 4
      %v317 = vrot.slane %v189, 6
      %v318 = vrot.slane %v190, 2
      %v319 = vrot.slane %v190, 4
      %v320 = vrot.slane %v190, 6
      %v321 = vrot.slane %v192, 2
      %v322 = vrot.slane %v192, 4
      %v323 = vrot.slane %v192, 6
      %v324 = vrot.slane %v193, 2
      %v325 = vrot.slane %v193, 4
      %v326 = vrot.slane %v193, 6
      %v327 = vrot.slane %v195, 2
      %v328 = vrot.slane %v195, 4
      %v329 = vrot.slane %v195, 6
      %v330 = vrot.slane %v196, 2
      %v331 = vrot.slane %v196, 4
      %v332 = vrot.slane %v196, 6
      %v333 = vrot.slane %v198, 2
      %v334 = vrot.slane %v198, 4
      %v335 = vrot.slane %v198, 6
      %v336 = vrot.slane %v199, 2
      %v337 = vrot.slane %v199, 4
      %v338 = vrot.slane %v199, 6
      %v339 = vrot.slane %v201, 2
      %v340 = vrot.slane %v201, 4
      %v341 = vrot.slane %v201, 6
      %v342 = vrot.slane %v202, 2
      %v343 = vrot.slane %v202, 4
      %v344 = vrot.slane %v202, 6
      %v345 = vrot.slane %v204, 2
      %v346 = vrot.slane %v204, 4
      %v347 = vrot.slane %v204, 6
      %v348 = vrot.slane %v205, 2
      %v349 = vrot.slane %v205, 4
      %v350 = vrot.slane %v205, 6
      %v351 = vrot.slane %v207, 2
      %v352 = vrot.slane %v207, 4
      %v353 = vrot.slane %v207, 6
      %v354 = vrot.slane %v208, 2
      %v355 = vrot.slane %v208, 4
      %v356 = vrot.slane %v208, 6
      %v357 = vrot.slane %v210, 2
      %v358 = vrot.slane %v210, 4
      %v359 = vrot.slane %v210, 6
      %v360 = vrot.slane %v211, 2
      %v361 = vrot.slane %v211, 4
      %v362 = vrot.slane %v211, 6
      %v363 = vrot.slane %v213, 2
      %v364 = vrot.slane %v213, 4
      %v365 = vrot.slane %v213, 6
      %v366 = vrot.slane %v214, 2
      %v367 = vrot.slane %v214, 4
      %v368 = vrot.slane %v214, 6
      %v369 = vrot.slane %v216, 2
      %v370 = vrot.slane %v216, 4
      %v371 = vrot.slane %v216, 6
      %v372 = vrot.slane %v217, 2
      %v373 = vrot.slane %v217, 4
      %v374 = vrot.slane %v217, 6
      %v375 = vrot.slane %v219, 2
      %v376 = vrot.slane %v219, 4
      %v377 = vrot.slane %v219, 6
      %v378 = vrot.slane %v220, 2
      %v379 = vrot.slane %v220, 4
      %v380 = vrot.slane %v220, 6
      %v381 = vrot.slane %v222, 2
      %v382 = vrot.slane %v222, 4
      %v383 = vrot.slane %v222, 6
      %v384 = vrot.slane %v223, 2
      %v385 = vrot.slane %v223, 4
      %v386 = vrot.slane %v223, 6
      %v387 = vld [vmem:[%s1] sm:$0x7]
      %v388 = vld [vmem:[%s165 + $0x1] sm:$0xff]
      %v389 = vld [vmem:[%s165 + $0x9] sm:$0xff]
      %v390 = vld [vmem:[%s165 + $0x11] sm:$0x3]
      %v391 = vld [vmem:[%s165 + $0x19] sm:$0xff]
      %v392 = vld [vmem:[%s165 + $0x21] sm:$0xff]
      %v393 = vld [vmem:[%s165 + $0x29] sm:$0x3]
      %v394 = vld [vmem:[%s165 + $0x31] sm:$0xff]
      %v395 = vld [vmem:[%s165 + $0x39] sm:$0xff]
      %v396 = vld [vmem:[%s165 + $0x41] sm:$0x3]
      %v397 = vld [vmem:[%s165 + $0x49] sm:$0xff]
      %v398 = vld [vmem:[%s165 + $0x51] sm:$0xff]
      %v399 = vld [vmem:[%s165 + $0x59] sm:$0x3]
      %v400 = vld [vmem:[%s165 + $0x61] sm:$0xff]
      %v401 = vld [vmem:[%s165 + $0x69] sm:$0xff]
      %v402 = vld [vmem:[%s165 + $0x71] sm:$0x3]
      %v403 = vld [vmem:[%s165 + $0x79] sm:$0xff]
      %v404 = vld [vmem:[%s165 + $0x81] sm:$0xff]
      %v405 = vld [vmem:[%s165 + $0x89] sm:$0x3]
      %v406 = vld [vmem:[%s165 + $0x91] sm:$0xff]
      %v407 = vld [vmem:[%s165 + $0x99] sm:$0xff]
      %v408 = vld [vmem:[%s165 + $0xa1] sm:$0x3]
      %v409 = vld [vmem:[%s165 + $0xa9] sm:$0xff]
      %v410 = vld [vmem:[%s165 + $0xb1] sm:$0xff]
      %v411 = vld [vmem:[%s165 + $0xb9] sm:$0x3]
      %v412 = vld [vmem:[%s165 + $0xc1] sm:$0xff]
      %v413 = vld [vmem:[%s165 + $0xc9] sm:$0xff]
      %v414 = vld [vmem:[%s165 + $0xd1] sm:$0x3]
      %v415 = vld [vmem:[%s165 + $0xd9] sm:$0xff]
      %v416 = vld [vmem:[%s165 + $0xe1] sm:$0xff]
      %v417 = vld [vmem:[%s165 + $0xe9] sm:$0x3]
      %v418 = vld [vmem:[%s165 + $0xf1] sm:$0xff]
      %v419 = vld [vmem:[%s165 + $0xf9] sm:$0xff]
      %v420 = vld [vmem:[%s165 + $0x101] sm:$0x3]
      %v421 = vld [vmem:[%s165 + $0x109] sm:$0xff]
      %v422 = vld [vmem:[%s165 + $0x111] sm:$0xff]
      %v423 = vld [vmem:[%s165 + $0x119] sm:$0x3]
      %v424 = vld [vmem:[%s165 + $0x121] sm:$0xff]
      %v425 = vld [vmem:[%s165 + $0x129] sm:$0xff]
      %v426 = vld [vmem:[%s165 + $0x131] sm:$0x3]
      %v427 = vld [vmem:[%s165 + $0x139] sm:$0xff]
      %v428 = vld [vmem:[%s165 + $0x141] sm:$0xff]
      %v429 = vld [vmem:[%s165 + $0x149] sm:$0x3]
      %v430 = vld [vmem:[%s165 + $0x151] sm:$0xff]
      %v431 = vld [vmem:[%s165 + $0x159] sm:$0xff]
      %v432 = vld [vmem:[%s165 + $0x161] sm:$0x3]
      %v433 = vld [vmem:[%s165 + $0x169] sm:$0xff]
      %v434 = vld [vmem:[%s165 + $0x171] sm:$0xff]
      %v435 = vld [vmem:[%s165 + $0x179] sm:$0x3]
      %v436 = vld [vmem:[%s165 + $0x181] sm:$0xff]
      %v437 = vld [vmem:[%s165 + $0x189] sm:$0xff]
      %v438 = vld [vmem:[%s165 + $0x191] sm:$0x3]
      %v439 = vld [vmem:[%s165 + $0x199] sm:$0xff]
      %v440 = vld [vmem:[%s165 + $0x1a1] sm:$0xff]
      %v441 = vld [vmem:[%s165 + $0x1a9] sm:$0x3]
      %v496 = vrot.slane %v388, 2
      %v497 = vrot.slane %v388, 4
      %v498 = vrot.slane %v388, 6
      %v499 = vrot.slane %v389, 2
      %v500 = vrot.slane %v389, 4
      %v501 = vrot.slane %v389, 6
      %v502 = vrot.slane %v391, 2
      %v503 = vrot.slane %v391, 4
      %v504 = vrot.slane %v391, 6
      %v505 = vrot.slane %v392, 2
      %v506 = vrot.slane %v392, 4
      %v507 = vrot.slane %v392, 6
      %v508 = vrot.slane %v394, 2
      %v509 = vrot.slane %v394, 4
      %v510 = vrot.slane %v394, 6
      %v511 = vrot.slane %v395, 2
      %v512 = vrot.slane %v395, 4
      %v513 = vrot.slane %v395, 6
      %v514 = vrot.slane %v397, 2
      %v515 = vrot.slane %v397, 4
      %v516 = vrot.slane %v397, 6
      %v517 = vrot.slane %v398, 2
      %v518 = vrot.slane %v398, 4
      %v519 = vrot.slane %v398, 6
      %v520 = vrot.slane %v400, 2
      %v521 = vrot.slane %v400, 4
      %v522 = vrot.slane %v400, 6
      %v523 = vrot.slane %v401, 2
      %v524 = vrot.slane %v401, 4
      %v525 = vrot.slane %v401, 6
      %v526 = vrot.slane %v403, 2
      %v527 = vrot.slane %v403, 4
      %v528 = vrot.slane %v403, 6
      %v529 = vrot.slane %v404, 2
      %v530 = vrot.slane %v404, 4
      %v531 = vrot.slane %v404, 6
      %v532 = vrot.slane %v406, 2
      %v533 = vrot.slane %v406, 4
      %v534 = vrot.slane %v406, 6
      %v535 = vrot.slane %v407, 2
      %v536 = vrot.slane %v407, 4
      %v537 = vrot.slane %v407, 6
      %v538 = vrot.slane %v409, 2
      %v539 = vrot.slane %v409, 4
      %v540 = vrot.slane %v409, 6
      %v541 = vrot.slane %v410, 2
      %v542 = vrot.slane %v410, 4
      %v543 = vrot.slane %v410, 6
      %v544 = vrot.slane %v412, 2
      %v545 = vrot.slane %v412, 4
      %v546 = vrot.slane %v412, 6
      %v547 = vrot.slane %v413, 2
      %v548 = vrot.slane %v413, 4
      %v549 = vrot.slane %v413, 6
      %v550 = vrot.slane %v415, 2
      %v551 = vrot.slane %v415, 4
      %v552 = vrot.slane %v415, 6
      %v553 = vrot.slane %v416, 2
      %v554 = vrot.slane %v416, 4
      %v555 = vrot.slane %v416, 6
      %v556 = vrot.slane %v418, 2
      %v557 = vrot.slane %v418, 4
      %v558 = vrot.slane %v418, 6
      %v559 = vrot.slane %v419, 2
      %v560 = vrot.slane %v419, 4
      %v561 = vrot.slane %v419, 6
      %v562 = vrot.slane %v421, 2
      %v563 = vrot.slane %v421, 4
      %v564 = vrot.slane %v421, 6
      %v565 = vrot.slane %v422, 2
      %v566 = vrot.slane %v422, 4
      %v567 = vrot.slane %v422, 6
      %v568 = vrot.slane %v424, 2
      %v569 = vrot.slane %v424, 4
      %v570 = vrot.slane %v424, 6
      %v571 = vrot.slane %v425, 2
      %v572 = vrot.slane %v425, 4
      %v573 = vrot.slane %v425, 6
      %v574 = vrot.slane %v427, 2
      %v575 = vrot.slane %v427, 4
      %v576 = vrot.slane %v427, 6
      %v577 = vrot.slane %v428, 2
      %v578 = vrot.slane %v428, 4
      %v579 = vrot.slane %v428, 6
      %v580 = vrot.slane %v430, 2
      %v581 = vrot.slane %v430, 4
      %v582 = vrot.slane %v430, 6
      %v583 = vrot.slane %v431, 2
      %v584 = vrot.slane %v431, 4
      %v585 = vrot.slane %v431, 6
      %v586 = vrot.slane %v433, 2
      %v587 = vrot.slane %v433, 4
      %v588 = vrot.slane %v433, 6
      %v589 = vrot.slane %v434, 2
      %v590 = vrot.slane %v434, 4
      %v591 = vrot.slane %v434, 6
      %v592 = vrot.slane %v436, 2
      %v593 = vrot.slane %v436, 4
      %v594 = vrot.slane %v436, 6
      %v595 = vrot.slane %v437, 2
      %v596 = vrot.slane %v437, 4
      %v597 = vrot.slane %v437, 6
      %v598 = vrot.slane %v439, 2
      %v599 = vrot.slane %v439, 4
      %v600 = vrot.slane %v439, 6
      %v601 = vrot.slane %v440, 2
      %v602 = vrot.slane %v440, 4
      %v603 = vrot.slane %v440, 6
      %s604 = scalar_lea.vmem %s1, 4
      %v605 = vld [vmem:[%s604] sm:$0x7]
      %606 = vst [vmem:[#allocation1] ss:$4 sm:$0xff] %v388
      %s607 = scalar_lea.vmem [#allocation1], 1
      %608 = vst [vmem:[%s607] ss:$4 sm:$0xff] %v496
      %s609 = scalar_lea.vmem [#allocation1], 2
      %610 = vst [vmem:[%s609] ss:$4 sm:$0xff] %v497
      %s611 = scalar_lea.vmem [#allocation1], 3
      %612 = vst [vmem:[%s611] ss:$4 sm:$0xff] %v498
      %s613 = scalar_lea.vmem [#allocation1], 32
      %614 = vst [vmem:[%s613] ss:$4 sm:$0xff] %v389
      %s615 = scalar_lea.vmem [#allocation1], 33
      %616 = vst [vmem:[%s615] ss:$4 sm:$0xff] %v499
      %s617 = scalar_lea.vmem [#allocation1], 34
      %618 = vst [vmem:[%s617] ss:$4 sm:$0xff] %v500
      %s619 = scalar_lea.vmem [#allocation1], 35
      %620 = vst [vmem:[%s619] ss:$4 sm:$0xff] %v501
      %v621 = vld.sshfl [vmem:[#allocation1] sm:$0xff pattern:$0x73625140]
      %v622 = vld.sshfl [vmem:[#allocation1 + $0x20] sm:$0xff pattern:$0x73625140]
      %623 = vst [vmem:[#allocation1] ss:$4 sm:$0xff] %v390
      %624 = vst [vmem:[%s607] ss:$4 sm:$0xff] %v391
      %625 = vst [vmem:[%s609] ss:$4 sm:$0xff] %v502
      %626 = vst [vmem:[%s611] ss:$4 sm:$0xff] %v503
      %627 = vst [vmem:[%s613] ss:$4 sm:$0xff] %v504
      %628 = vst [vmem:[%s615] ss:$4 sm:$0xff] %v392
      %629 = vst [vmem:[%s617] ss:$4 sm:$0xff] %v505
      %630 = vst [vmem:[%s619] ss:$4 sm:$0xff] %v506
      %v631 = vld.sshfl [vmem:[#allocation1] sm:$0xff pattern:$0x73625140]
      %v632 = vld.sshfl [vmem:[#allocation1 + $0x20] sm:$0xff pattern:$0x73625140]
      %633 = vst [vmem:[#allocation1] ss:$4 sm:$0xff] %v507
      %634 = vst [vmem:[%s607] ss:$4 sm:$0xff] %v393
      %635 = vst [vmem:[%s609] ss:$4 sm:$0xff] %v394
      %636 = vst [vmem:[%s611] ss:$4 sm:$0xff] %v508
      %637 = vst [vmem:[%s613] ss:$4 sm:$0xff] %v509
      %638 = vst [vmem:[%s615] ss:$4 sm:$0xff] %v510
      %639 = vst [vmem:[%s617] ss:$4 sm:$0xff] %v395
      %640 = vst [vmem:[%s619] ss:$4 sm:$0xff] %v511
      %v641 = vld.sshfl [vmem:[#allocation1] sm:$0xff pattern:$0x73625140]
      %v642 = vld.sshfl [vmem:[#allocation1 + $0x20] sm:$0xff pattern:$0x73625140]
      %643 = vst [vmem:[#allocation1] ss:$4 sm:$0xff] %v512
      %644 = vst [vmem:[%s607] ss:$4 sm:$0xff] %v513
      %645 = vst [vmem:[%s609] ss:$4 sm:$0xff] %v396
      %646 = vst [vmem:[%s611] ss:$4 sm:$0xff] %v397
      %647 = vst [vmem:[%s613] ss:$4 sm:$0xff] %v514
      %648 = vst [vmem:[%s615] ss:$4 sm:$0xff] %v515
      %649 = vst [vmem:[%s617] ss:$4 sm:$0xff] %v516
      %650 = vst [vmem:[%s619] ss:$4 sm:$0xff] %v398
      %v651 = vld.sshfl [vmem:[#allocation1] sm:$0xff pattern:$0x73625140]
      %v652 = vld.sshfl [vmem:[#allocation1 + $0x20] sm:$0xff pattern:$0x73625140]
      %653 = vst [vmem:[#allocation1] ss:$4 sm:$0xff] %v517
      %654 = vst [vmem:[%s607] ss:$4 sm:$0xff] %v518
      %655 = vst [vmem:[%s609] ss:$4 sm:$0xff] %v519
      %656 = vst [vmem:[%s611] ss:$4 sm:$0xff] %v399
      %657 = vst [vmem:[%s613] ss:$4 sm:$0xff] %v400
      %658 = vst [vmem:[%s615] ss:$4 sm:$0xff] %v520
      %659 = vst [vmem:[%s617] ss:$4 sm:$0xff] %v521
      %660 = vst [vmem:[%s619] ss:$4 sm:$0xff] %v522
      %v661 = vld.sshfl [vmem:[#allocation1] sm:$0xff pattern:$0x73625140]
      %v662 = vld.sshfl [vmem:[#allocation1 + $0x20] sm:$0xff pattern:$0x73625140]
      %663 = vst [vmem:[#allocation1] ss:$4 sm:$0xff] %v401
      %664 = vst [vmem:[%s607] ss:$4 sm:$0xff] %v523
      %665 = vst [vmem:[%s609] ss:$4 sm:$0xff] %v524
      %666 = vst [vmem:[%s611] ss:$4 sm:$0xff] %v525
      %667 = vst [vmem:[%s613] ss:$4 sm:$0xff] %v402
      %668 = vst [vmem:[%s615] ss:$4 sm:$0xff] %v403
      %669 = vst [vmem:[%s617] ss:$4 sm:$0xff] %v526
      %670 = vst [vmem:[%s619] ss:$4 sm:$0xff] %v527
      %v671 = vld.sshfl [vmem:[#allocation1] sm:$0xff pattern:$0x73625140]
      %v672 = vld.sshfl [vmem:[#allocation1 + $0x20] sm:$0xff pattern:$0x73625140]
      %673 = vst [vmem:[#allocation1] ss:$4 sm:$0xff] %v528
      %674 = vst [vmem:[%s607] ss:$4 sm:$0xff] %v404
      %675 = vst [vmem:[%s609] ss:$4 sm:$0xff] %v529
      %676 = vst [vmem:[%s611] ss:$4 sm:$0xff] %v530
      %677 = vst [vmem:[%s613] ss:$4 sm:$0xff] %v531
      %678 = vst [vmem:[%s615] ss:$4 sm:$0xff] %v405
      %679 = vst [vmem:[%s617] ss:$4 sm:$0xff] %v406
      %680 = vst [vmem:[%s619] ss:$4 sm:$0xff] %v532
      %v681 = vld.sshfl [vmem:[#allocation1] sm:$0xff pattern:$0x73625140]
      %v682 = vld.sshfl [vmem:[#allocation1 + $0x20] sm:$0xff pattern:$0x73625140]
      %683 = vst [vmem:[#allocation1] ss:$4 sm:$0xff] %v533
      %684 = vst [vmem:[%s607] ss:$4 sm:$0xff] %v534
      %685 = vst [vmem:[%s609] ss:$4 sm:$0xff] %v407
      %686 = vst [vmem:[%s611] ss:$4 sm:$0xff] %v535
      %687 = vst [vmem:[%s613] ss:$4 sm:$0xff] %v536
      %688 = vst [vmem:[%s615] ss:$4 sm:$0xff] %v537
      %689 = vst [vmem:[%s617] ss:$4 sm:$0xff] %v408
      %690 = vst [vmem:[%s619] ss:$4 sm:$0xff] %v409
      %v691 = vld.sshfl [vmem:[#allocation1] sm:$0xff pattern:$0x73625140]
      %v692 = vld.sshfl [vmem:[#allocation1 + $0x20] sm:$0xff pattern:$0x73625140]
      %693 = vst [vmem:[#allocation1] ss:$4 sm:$0xff] %v538
      %694 = vst [vmem:[%s607] ss:$4 sm:$0xff] %v539
      %695 = vst [vmem:[%s609] ss:$4 sm:$0xff] %v540
      %696 = vst [vmem:[%s611] ss:$4 sm:$0xff] %v410
      %697 = vst [vmem:[%s613] ss:$4 sm:$0xff] %v541
      %698 = vst [vmem:[%s615] ss:$4 sm:$0xff] %v542
      %699 = vst [vmem:[%s617] ss:$4 sm:$0xff] %v543
      %700 = vst [vmem:[%s619] ss:$4 sm:$0xff] %v411
      %v701 = vld.sshfl [vmem:[#allocation1] sm:$0xff pattern:$0x73625140]
      %v702 = vld.sshfl [vmem:[#allocation1 + $0x20] sm:$0xff pattern:$0x73625140]
      %703 = vst [vmem:[#allocation1] ss:$4 sm:$0xff] %v412
      %704 = vst [vmem:[%s607] ss:$4 sm:$0xff] %v544
      %705 = vst [vmem:[%s609] ss:$4 sm:$0xff] %v545
      %706 = vst [vmem:[%s611] ss:$4 sm:$0xff] %v546
      %707 = vst [vmem:[%s613] ss:$4 sm:$0xff] %v413
      %708 = vst [vmem:[%s615] ss:$4 sm:$0xff] %v547
      %709 = vst [vmem:[%s617] ss:$4 sm:$0xff] %v548
      %710 = vst [vmem:[%s619] ss:$4 sm:$0xff] %v549
      %v711 = vld.sshfl [vmem:[#allocation1] sm:$0xff pattern:$0x73625140]
      %v712 = vld.sshfl [vmem:[#allocation1 + $0x20] sm:$0xff pattern:$0x73625140]
      %713 = vst [vmem:[#allocation1] ss:$4 sm:$0xff] %v414
      %714 = vst [vmem:[%s607] ss:$4 sm:$0xff] %v415
      %715 = vst [vmem:[%s609] ss:$4 sm:$0xff] %v550
      %716 = vst [vmem:[%s611] ss:$4 sm:$0xff] %v551
      %717 = vst [vmem:[%s613] ss:$4 sm:$0xff] %v552
      %718 = vst [vmem:[%s615] ss:$4 sm:$0xff] %v416
      %719 = vst [vmem:[%s617] ss:$4 sm:$0xff] %v553
      %720 = vst [vmem:[%s619] ss:$4 sm:$0xff] %v554
      %v721 = vld.sshfl [vmem:[#allocation1] sm:$0xff pattern:$0x73625140]
      %v722 = vld.sshfl [vmem:[#allocation1 + $0x20] sm:$0xff pattern:$0x73625140]
      %723 = vst [vmem:[#allocation1] ss:$4 sm:$0xff] %v555
      %724 = vst [vmem:[%s607] ss:$4 sm:$0xff] %v417
      %725 = vst [vmem:[%s609] ss:$4 sm:$0xff] %v418
      %726 = vst [vmem:[%s611] ss:$4 sm:$0xff] %v556
      %727 = vst [vmem:[%s613] ss:$4 sm:$0xff] %v557
      %728 = vst [vmem:[%s615] ss:$4 sm:$0xff] %v558
      %729 = vst [vmem:[%s617] ss:$4 sm:$0xff] %v419
      %730 = vst [vmem:[%s619] ss:$4 sm:$0xff] %v559
      %v731 = vld.sshfl [vmem:[#allocation1] sm:$0xff pattern:$0x73625140]
      %v732 = vld.sshfl [vmem:[#allocation1 + $0x20] sm:$0xff pattern:$0x73625140]
      %733 = vst [vmem:[#allocation1] ss:$4 sm:$0xff] %v560
      %734 = vst [vmem:[%s607] ss:$4 sm:$0xff] %v561
      %735 = vst [vmem:[%s609] ss:$4 sm:$0xff] %v420
      %736 = vst [vmem:[%s611] ss:$4 sm:$0xff] %v421
      %737 = vst [vmem:[%s613] ss:$4 sm:$0xff] %v562
      %738 = vst [vmem:[%s615] ss:$4 sm:$0xff] %v563
      %739 = vst [vmem:[%s617] ss:$4 sm:$0xff] %v564
      %740 = vst [vmem:[%s619] ss:$4 sm:$0xff] %v422
      %v741 = vld.sshfl [vmem:[#allocation1] sm:$0xff pattern:$0x73625140]
      %v742 = vld.sshfl [vmem:[#allocation1 + $0x20] sm:$0xff pattern:$0x73625140]
      %743 = vst [vmem:[#allocation1] ss:$4 sm:$0xff] %v565
      %744 = vst [vmem:[%s607] ss:$4 sm:$0xff] %v566
      %745 = vst [vmem:[%s609] ss:$4 sm:$0xff] %v567
      %746 = vst [vmem:[%s611] ss:$4 sm:$0xff] %v423
      %747 = vst [vmem:[%s613] ss:$4 sm:$0xff] %v424
      %748 = vst [vmem:[%s615] ss:$4 sm:$0xff] %v568
      %749 = vst [vmem:[%s617] ss:$4 sm:$0xff] %v569
      %750 = vst [vmem:[%s619] ss:$4 sm:$0xff] %v570
      %v751 = vld.sshfl [vmem:[#allocation1] sm:$0xff pattern:$0x73625140]
      %v752 = vld.sshfl [vmem:[#allocation1 + $0x20] sm:$0xff pattern:$0x73625140]
      %753 = vst [vmem:[#allocation1] ss:$4 sm:$0xff] %v425
      %754 = vst [vmem:[%s607] ss:$4 sm:$0xff] %v571
      %755 = vst [vmem:[%s609] ss:$4 sm:$0xff] %v572
      %756 = vst [vmem:[%s611] ss:$4 sm:$0xff] %v573
      %757 = vst [vmem:[%s613] ss:$4 sm:$0xff] %v426
      %758 = vst [vmem:[%s615] ss:$4 sm:$0xff] %v427
      %759 = vst [vmem:[%s617] ss:$4 sm:$0xff] %v574
      %760 = vst [vmem:[%s619] ss:$4 sm:$0xff] %v575
      %v761 = vld.sshfl [vmem:[#allocation1] sm:$0xff pattern:$0x73625140]
      %v762 = vld.sshfl [vmem:[#allocation1 + $0x20] sm:$0xff pattern:$0x73625140]
      %763 = vst [vmem:[#allocation1] ss:$4 sm:$0xff] %v576
      %764 = vst [vmem:[%s607] ss:$4 sm:$0xff] %v428
      %765 = vst [vmem:[%s609] ss:$4 sm:$0xff] %v577
      %766 = vst [vmem:[%s611] ss:$4 sm:$0xff] %v578
      %767 = vst [vmem:[%s613] ss:$4 sm:$0xff] %v579
      %768 = vst [vmem:[%s615] ss:$4 sm:$0xff] %v429
      %769 = vst [vmem:[%s617] ss:$4 sm:$0xff] %v430
      %770 = vst [vmem:[%s619] ss:$4 sm:$0xff] %v580
      %v771 = vld.sshfl [vmem:[#allocation1] sm:$0xff pattern:$0x73625140]
      %v772 = vld.sshfl [vmem:[#allocation1 + $0x20] sm:$0xff pattern:$0x73625140]
      %773 = vst [vmem:[#allocation1] ss:$4 sm:$0xff] %v581
      %774 = vst [vmem:[%s607] ss:$4 sm:$0xff] %v582
      %775 = vst [vmem:[%s609] ss:$4 sm:$0xff] %v431
      %776 = vst [vmem:[%s611] ss:$4 sm:$0xff] %v583
      %777 = vst [vmem:[%s613] ss:$4 sm:$0xff] %v584
      %778 = vst [vmem:[%s615] ss:$4 sm:$0xff] %v585
      %779 = vst [vmem:[%s617] ss:$4 sm:$0xff] %v432
      %780 = vst [vmem:[%s619] ss:$4 sm:$0xff] %v433
      %v781 = vld.sshfl [vmem:[#allocation1] sm:$0xff pattern:$0x73625140]
      %v782 = vld.sshfl [vmem:[#allocation1 + $0x20] sm:$0xff pattern:$0x73625140]
      %783 = vst [vmem:[#allocation1] ss:$4 sm:$0xff] %v586
      %784 = vst [vmem:[%s607] ss:$4 sm:$0xff] %v587
      %785 = vst [vmem:[%s609] ss:$4 sm:$0xff] %v588
      %786 = vst [vmem:[%s611] ss:$4 sm:$0xff] %v434
      %787 = vst [vmem:[%s613] ss:$4 sm:$0xff] %v589
      %788 = vst [vmem:[%s615] ss:$4 sm:$0xff] %v590
      %789 = vst [vmem:[%s617] ss:$4 sm:$0xff] %v591
      %790 = vst [vmem:[%s619] ss:$4 sm:$0xff] %v435
      %v791 = vld.sshfl [vmem:[#allocation1] sm:$0xff pattern:$0x73625140]
      %v792 = vld.sshfl [vmem:[#allocation1 + $0x20] sm:$0xff pattern:$0x73625140]
      %793 = vst [vmem:[#allocation1] ss:$4 sm:$0xff] %v436
      %794 = vst [vmem:[%s607] ss:$4 sm:$0xff] %v592
      %795 = vst [vmem:[%s609] ss:$4 sm:$0xff] %v593
      %796 = vst [vmem:[%s611] ss:$4 sm:$0xff] %v594
      %797 = vst [vmem:[%s613] ss:$4 sm:$0xff] %v437
      %798 = vst [vmem:[%s615] ss:$4 sm:$0xff] %v595
      %799 = vst [vmem:[%s617] ss:$4 sm:$0xff] %v596
      %800 = vst [vmem:[%s619] ss:$4 sm:$0xff] %v597
      %v801 = vld.sshfl [vmem:[#allocation1] sm:$0xff pattern:$0x73625140]
      %v802 = vld.sshfl [vmem:[#allocation1 + $0x20] sm:$0xff pattern:$0x73625140]
      %803 = vst [vmem:[#allocation1] ss:$4 sm:$0xff] %v438
      %804 = vst [vmem:[%s607] ss:$4 sm:$0xff] %v439
      %805 = vst [vmem:[%s609] ss:$4 sm:$0xff] %v598
      %806 = vst [vmem:[%s611] ss:$4 sm:$0xff] %v599
      %807 = vst [vmem:[%s613] ss:$4 sm:$0xff] %v600
      %808 = vst [vmem:[%s615] ss:$4 sm:$0xff] %v440
      %809 = vst [vmem:[%s617] ss:$4 sm:$0xff] %v601
      %810 = vst [vmem:[%s619] ss:$4 sm:$0xff] %v602
      %v811 = vld.sshfl [vmem:[#allocation1] sm:$0xff pattern:$0x73625140]
      %v812 = vld.sshfl [vmem:[#allocation1 + $0x20] sm:$0xff pattern:$0x73625140]
      %813 = vst [vmem:[#allocation1] ss:$4 sm:$0xff] %v603
      %814 = vst [vmem:[%s607] ss:$4 sm:$0xff] %v441
      %v815 = vld.sshfl [vmem:[#allocation1] sm:$0xff pattern:$0x73625140]
      %vm816 = vcmask 23552
      %v817 = vsel %vm816, %v621, 0
      %v819 = vsel %vm816, %v622, 0
      %v821 = vsel %vm816, %v631, 0
      %v823 = vsel %vm816, %v632, 0
      %v825 = vsel %vm816, %v641, 0
      %v827 = vsel %vm816, %v642, 0
      %v829 = vsel %vm816, %v651, 0
      %v831 = vsel %vm816, %v652, 0
      %v833 = vsel %vm816, %v661, 0
      %v835 = vsel %vm816, %v662, 0
      %v837 = vsel %vm816, %v671, 0
      %v839 = vsel %vm816, %v672, 0
      %v841 = vsel %vm816, %v681, 0
      %v843 = vsel %vm816, %v682, 0
      %v845 = vsel %vm816, %v691, 0
      %v847 = vsel %vm816, %v692, 0
      %v849 = vsel %vm816, %v701, 0
      %v851 = vsel %vm816, %v702, 0
      %v853 = vsel %vm816, %v711, 0
      %v855 = vsel %vm816, %v712, 0
      %v857 = vsel %vm816, %v721, 0
      %v859 = vsel %vm816, %v722, 0
      %v861 = vsel %vm816, %v731, 0
      %v863 = vsel %vm816, %v732, 0
      %v865 = vsel %vm816, %v741, 0
      %v867 = vsel %vm816, %v742, 0
      %v869 = vsel %vm816, %v751, 0
      %v871 = vsel %vm816, %v752, 0
      %v873 = vsel %vm816, %v761, 0
      %v875 = vsel %vm816, %v762, 0
      %v877 = vsel %vm816, %v771, 0
      %v879 = vsel %vm816, %v772, 0
      %v881 = vsel %vm816, %v781, 0
      %v883 = vsel %vm816, %v782, 0
      %v885 = vsel %vm816, %v791, 0
      %v887 = vsel %vm816, %v792, 0
      %v889 = vsel %vm816, %v801, 0
      %v891 = vsel %vm816, %v802, 0
      %v893 = vsel %vm816, %v811, 0
      %v895 = vsel %vm816, %v812, 0
      %v897 = vsel %vm816, %v815, 0
      %vm899 = vcmask 1042432
      %v901 = vsel %vm899, %v605, 0
      %903 = vmatpush.msra.mxu0 0.0
      %904 = vmatpush.msra.mxu0 0.0
      %905 = vmatpush.msra.mxu0 0.0
      %906 = vmatpush.msra.mxu0 0.0
      %907 = vmatpush.msra.mxu0 0.0
      %908 = vmatpush.msra.mxu0 0.0
      %909 = vmatpush.msra.mxu0 0.0
      %910 = vmatpush.msra.mxu0 0.0
      %911 = vmatpush.msra.mxu0 0.0
      %912 = vmatpush.msra.mxu0 0.0
      %913 = vmatpush.msra.mxu0 0.0
      %914 = vmatpush.msra.mxu0 0.0
      %915 = vmatpush.msra.mxu0 0.0
      %916 = vmatpush.msra.mxu0 0.0
      %917 = vmatpush.msra.mxu0 0.0
      %918 = vmatpush.msra.mxu0 %v901
      %919 = vmatmul.f32.gmra.mxu0 %v817
      %v920 = vpop.f32.mrf.mxu0
      %v921 = vadd.f32 0.0, %v920
      %922 = vmatmul.f32.gmra.mxu0 %v819
      %v923 = vpop.f32.mrf.mxu0
      %v924 = vadd.f32 0.0, %v923
      %925 = vmatmul.f32.gmra.mxu0 %v821
      %v926 = vpop.f32.mrf.mxu0
      %v927 = vadd.f32 0.0, %v926
      %928 = vmatmul.f32.gmra.mxu0 %v823
      %v929 = vpop.f32.mrf.mxu0
      %v930 = vadd.f32 0.0, %v929
      %931 = vmatmul.f32.gmra.mxu0 %v825
      %v932 = vpop.f32.mrf.mxu0
      %v933 = vadd.f32 0.0, %v932
      %934 = vmatmul.f32.gmra.mxu0 %v827
      %v935 = vpop.f32.mrf.mxu0
      %v936 = vadd.f32 0.0, %v935
      %937 = vmatmul.f32.gmra.mxu0 %v829
      %v938 = vpop.f32.mrf.mxu0
      %v939 = vadd.f32 0.0, %v938
      %940 = vmatmul.f32.gmra.mxu0 %v831
      %v941 = vpop.f32.mrf.mxu0
      %v942 = vadd.f32 0.0, %v941
      %943 = vmatmul.f32.gmra.mxu0 %v833
      %v944 = vpop.f32.mrf.mxu0
      %v945 = vadd.f32 0.0, %v944
      %946 = vmatmul.f32.gmra.mxu0 %v835
      %v947 = vpop.f32.mrf.mxu0
      %v948 = vadd.f32 0.0, %v947
      %949 = vmatmul.f32.gmra.mxu0 %v837
      %v950 = vpop.f32.mrf.mxu0
      %v951 = vadd.f32 0.0, %v950
      %952 = vmatmul.f32.gmra.mxu0 %v839
      %v953 = vpop.f32.mrf.mxu0
      %v954 = vadd.f32 0.0, %v953
      %955 = vmatmul.f32.gmra.mxu0 %v841
      %v956 = vpop.f32.mrf.mxu0
      %v957 = vadd.f32 0.0, %v956
      %958 = vmatmul.f32.gmra.mxu0 %v843
      %v959 = vpop.f32.mrf.mxu0
      %v960 = vadd.f32 0.0, %v959
      %961 = vmatmul.f32.gmra.mxu0 %v845
      %v962 = vpop.f32.mrf.mxu0
      %v963 = vadd.f32 0.0, %v962
      %964 = vmatmul.f32.gmra.mxu0 %v847
      %v965 = vpop.f32.mrf.mxu0
      %v966 = vadd.f32 0.0, %v965
      %967 = vmatmul.f32.gmra.mxu0 %v849
      %v968 = vpop.f32.mrf.mxu0
      %v969 = vadd.f32 0.0, %v968
      %970 = vmatmul.f32.gmra.mxu0 %v851
      %v971 = vpop.f32.mrf.mxu0
      %v972 = vadd.f32 0.0, %v971
      %973 = vmatmul.f32.gmra.mxu0 %v853
      %v974 = vpop.f32.mrf.mxu0
      %v975 = vadd.f32 0.0, %v974
      %976 = vmatmul.f32.gmra.mxu0 %v855
      %v977 = vpop.f32.mrf.mxu0
      %v978 = vadd.f32 0.0, %v977
      %979 = vmatmul.f32.gmra.mxu0 %v857
      %v980 = vpop.f32.mrf.mxu0
      %v981 = vadd.f32 0.0, %v980
      %982 = vmatmul.f32.gmra.mxu0 %v859
      %v983 = vpop.f32.mrf.mxu0
      %v984 = vadd.f32 0.0, %v983
      %985 = vmatmul.f32.gmra.mxu0 %v861
      %v986 = vpop.f32.mrf.mxu0
      %v987 = vadd.f32 0.0, %v986
      %988 = vmatmul.f32.gmra.mxu0 %v863
      %v989 = vpop.f32.mrf.mxu0
      %v990 = vadd.f32 0.0, %v989
      %991 = vmatmul.f32.gmra.mxu0 %v865
      %v992 = vpop.f32.mrf.mxu0
      %v993 = vadd.f32 0.0, %v992
      %994 = vmatmul.f32.gmra.mxu0 %v867
      %v995 = vpop.f32.mrf.mxu0
      %v996 = vadd.f32 0.0, %v995
      %997 = vmatmul.f32.gmra.mxu0 %v869
      %v998 = vpop.f32.mrf.mxu0
      %v999 = vadd.f32 0.0, %v998
      %1000 = vmatmul.f32.gmra.mxu0 %v871
      %v1001 = vpop.f32.mrf.mxu0
      %v1002 = vadd.f32 0.0, %v1001
      %1003 = vmatmul.f32.gmra.mxu0 %v873
      %v1004 = vpop.f32.mrf.mxu0
      %v1005 = vadd.f32 0.0, %v1004
      %1006 = vmatmul.f32.gmra.mxu0 %v875
      %v1007 = vpop.f32.mrf.mxu0
      %v1008 = vadd.f32 0.0, %v1007
      %1009 = vmatmul.f32.gmra.mxu0 %v877
      %v1010 = vpop.f32.mrf.mxu0
      %v1011 = vadd.f32 0.0, %v1010
      %1012 = vmatmul.f32.gmra.mxu0 %v879
      %v1013 = vpop.f32.mrf.mxu0
      %v1014 = vadd.f32 0.0, %v1013
      %1015 = vmatmul.f32.gmra.mxu0 %v881
      %v1016 = vpop.f32.mrf.mxu0
      %v1017 = vadd.f32 0.0, %v1016
      %1018 = vmatmul.f32.gmra.mxu0 %v883
      %v1019 = vpop.f32.mrf.mxu0
      %v1020 = vadd.f32 0.0, %v1019
      %1021 = vmatmul.f32.gmra.mxu0 %v885
      %v1022 = vpop.f32.mrf.mxu0
      %v1023 = vadd.f32 0.0, %v1022
      %1024 = vmatmul.f32.gmra.mxu0 %v887
      %v1025 = vpop.f32.mrf.mxu0
      %v1026 = vadd.f32 0.0, %v1025
      %1027 = vmatmul.f32.gmra.mxu0 %v889
      %v1028 = vpop.f32.mrf.mxu0
      %v1029 = vadd.f32 0.0, %v1028
      %1030 = vmatmul.f32.gmra.mxu0 %v891
      %v1031 = vpop.f32.mrf.mxu0
      %v1032 = vadd.f32 0.0, %v1031
      %1033 = vmatmul.f32.gmra.mxu0 %v893
      %v1034 = vpop.f32.mrf.mxu0
      %v1035 = vadd.f32 0.0, %v1034
      %1036 = vmatmul.f32.gmra.mxu0 %v895
      %v1037 = vpop.f32.mrf.mxu0
      %v1038 = vadd.f32 0.0, %v1037
      %1039 = vmatmul.f32.gmra.mxu0 %v897
      %v1040 = vpop.f32.mrf.mxu0
      %v1041 = vadd.f32 0.0, %v1040
      %1042 = vdwg.mxu0
      %1043 = vst [vmem:[#allocation1] ss:$4 sm:$0xff] %v171
      %s1044 = scalar_lea.vmem [#allocation1], 1
      %1045 = vst [vmem:[%s1044] ss:$4 sm:$0xff] %v279
      %s1046 = scalar_lea.vmem [#allocation1], 2
      %1047 = vst [vmem:[%s1046] ss:$4 sm:$0xff] %v280
      %s1048 = scalar_lea.vmem [#allocation1], 3
      %1049 = vst [vmem:[%s1048] ss:$4 sm:$0xff] %v281
      %s1050 = scalar_lea.vmem [#allocation1], 32
      %1051 = vst [vmem:[%s1050] ss:$4 sm:$0xff] %v172
      %s1052 = scalar_lea.vmem [#allocation1], 33
      %1053 = vst [vmem:[%s1052] ss:$4 sm:$0xff] %v282
      %s1054 = scalar_lea.vmem [#allocation1], 34
      %1055 = vst [vmem:[%s1054] ss:$4 sm:$0xff] %v283
      %s1056 = scalar_lea.vmem [#allocation1], 35
      %1057 = vst [vmem:[%s1056] ss:$4 sm:$0xff] %v284
      %v1058 = vld.sshfl [vmem:[#allocation1] sm:$0xff pattern:$0x73625140]
      %v1059 = vld.sshfl [vmem:[#allocation1 + $0x20] sm:$0xff pattern:$0x73625140]
      %1060 = vst [vmem:[#allocation1] ss:$4 sm:$0xff] %v173
      %1061 = vst [vmem:[%s1044] ss:$4 sm:$0xff] %v174
      %1062 = vst [vmem:[%s1046] ss:$4 sm:$0xff] %v285
      %1063 = vst [vmem:[%s1048] ss:$4 sm:$0xff] %v286
      %1064 = vst [vmem:[%s1050] ss:$4 sm:$0xff] %v287
      %1065 = vst [vmem:[%s1052] ss:$4 sm:$0xff] %v175
      %1066 = vst [vmem:[%s1054] ss:$4 sm:$0xff] %v288
      %1067 = vst [vmem:[%s1056] ss:$4 sm:$0xff] %v289
      %v1068 = vld.sshfl [vmem:[#allocation1] sm:$0xff pattern:$0x73625140]
      %v1069 = vld.sshfl [vmem:[#allocation1 + $0x20] sm:$0xff pattern:$0x73625140]
      %1070 = vst [vmem:[#allocation1] ss:$4 sm:$0xff] %v290
      %1071 = vst [vmem:[%s1044] ss:$4 sm:$0xff] %v176
      %1072 = vst [vmem:[%s1046] ss:$4 sm:$0xff] %v177
      %1073 = vst [vmem:[%s1048] ss:$4 sm:$0xff] %v291
      %1074 = vst [vmem:[%s1050] ss:$4 sm:$0xff] %v292
      %1075 = vst [vmem:[%s1052] ss:$4 sm:$0xff] %v293
      %1076 = vst [vmem:[%s1054] ss:$4 sm:$0xff] %v178
      %1077 = vst [vmem:[%s1056] ss:$4 sm:$0xff] %v294
      %v1078 = vld.sshfl [vmem:[#allocation1] sm:$0xff pattern:$0x73625140]
      %v1079 = vld.sshfl [vmem:[#allocation1 + $0x20] sm:$0xff pattern:$0x73625140]
      %1080 = vst [vmem:[#allocation1] ss:$4 sm:$0xff] %v295
      %1081 = vst [vmem:[%s1044] ss:$4 sm:$0xff] %v296
      %1082 = vst [vmem:[%s1046] ss:$4 sm:$0xff] %v179
      %1083 = vst [vmem:[%s1048] ss:$4 sm:$0xff] %v180
      %1084 = vst [vmem:[%s1050] ss:$4 sm:$0xff] %v297
      %1085 = vst [vmem:[%s1052] ss:$4 sm:$0xff] %v298
      %1086 = vst [vmem:[%s1054] ss:$4 sm:$0xff] %v299
      %1087 = vst [vmem:[%s1056] ss:$4 sm:$0xff] %v181
      %v1088 = vld.sshfl [vmem:[#allocation1] sm:$0xff pattern:$0x73625140]
      %v1089 = vld.sshfl [vmem:[#allocation1 + $0x20] sm:$0xff pattern:$0x73625140]
      %1090 = vst [vmem:[#allocation1] ss:$4 sm:$0xff] %v300
      %1091 = vst [vmem:[%s1044] ss:$4 sm:$0xff] %v301
      %1092 = vst [vmem:[%s1046] ss:$4 sm:$0xff] %v302
      %1093 = vst [vmem:[%s1048] ss:$4 sm:$0xff] %v182
      %1094 = vst [vmem:[%s1050] ss:$4 sm:$0xff] %v183
      %1095 = vst [vmem:[%s1052] ss:$4 sm:$0xff] %v303
      %1096 = vst [vmem:[%s1054] ss:$4 sm:$0xff] %v304
      %1097 = vst [vmem:[%s1056] ss:$4 sm:$0xff] %v305
      %v1098 = vld.sshfl [vmem:[#allocation1] sm:$0xff pattern:$0x73625140]
      %v1099 = vld.sshfl [vmem:[#allocation1 + $0x20] sm:$0xff pattern:$0x73625140]
      %1100 = vst [vmem:[#allocation1] ss:$4 sm:$0xff] %v184
      %1101 = vst [vmem:[%s1044] ss:$4 sm:$0xff] %v306
      %1102 = vst [vmem:[%s1046] ss:$4 sm:$0xff] %v307
      %1103 = vst [vmem:[%s1048] ss:$4 sm:$0xff] %v308
      %1104 = vst [vmem:[%s1050] ss:$4 sm:$0xff] %v185
      %1105 = vst [vmem:[%s1052] ss:$4 sm:$0xff] %v186
      %1106 = vst [vmem:[%s1054] ss:$4 sm:$0xff] %v309
      %1107 = vst [vmem:[%s1056] ss:$4 sm:$0xff] %v310
      %v1108 = vld.sshfl [vmem:[#allocation1] sm:$0xff pattern:$0x73625140]
      %v1109 = vld.sshfl [vmem:[#allocation1 + $0x20] sm:$0xff pattern:$0x73625140]
      %1110 = vst [vmem:[#allocation1] ss:$4 sm:$0xff] %v311
      %1111 = vst [vmem:[%s1044] ss:$4 sm:$0xff] %v187
      %1112 = vst [vmem:[%s1046] ss:$4 sm:$0xff] %v312
      %1113 = vst [vmem:[%s1048] ss:$4 sm:$0xff] %v313
      %1114 = vst [vmem:[%s1050] ss:$4 sm:$0xff] %v314
      %1115 = vst [vmem:[%s1052] ss:$4 sm:$0xff] %v188
      %1116 = vst [vmem:[%s1054] ss:$4 sm:$0xff] %v189
      %1117 = vst [vmem:[%s1056] ss:$4 sm:$0xff] %v315
      %v1118 = vld.sshfl [vmem:[#allocation1] sm:$0xff pattern:$0x73625140]
      %v1119 = vld.sshfl [vmem:[#allocation1 + $0x20] sm:$0xff pattern:$0x73625140]
      %1120 = vst [vmem:[#allocation1] ss:$4 sm:$0xff] %v316
      %1121 = vst [vmem:[%s1044] ss:$4 sm:$0xff] %v317
      %1122 = vst [vmem:[%s1046] ss:$4 sm:$0xff] %v190
      %1123 = vst [vmem:[%s1048] ss:$4 sm:$0xff] %v318
      %1124 = vst [vmem:[%s1050] ss:$4 sm:$0xff] %v319
      %1125 = vst [vmem:[%s1052] ss:$4 sm:$0xff] %v320
      %1126 = vst [vmem:[%s1054] ss:$4 sm:$0xff] %v191
      %1127 = vst [vmem:[%s1056] ss:$4 sm:$0xff] %v192
      %v1128 = vld.sshfl [vmem:[#allocation1] sm:$0xff pattern:$0x73625140]
      %v1129 = vld.sshfl [vmem:[#allocation1 + $0x20] sm:$0xff pattern:$0x73625140]
      %1130 = vst [vmem:[#allocation1] ss:$4 sm:$0xff] %v321
      %1131 = vst [vmem:[%s1044] ss:$4 sm:$0xff] %v322
      %1132 = vst [vmem:[%s1046] ss:$4 sm:$0xff] %v323
      %1133 = vst [vmem:[%s1048] ss:$4 sm:$0xff] %v193
      %1134 = vst [vmem:[%s1050] ss:$4 sm:$0xff] %v324
      %1135 = vst [vmem:[%s1052] ss:$4 sm:$0xff] %v325
      %1136 = vst [vmem:[%s1054] ss:$4 sm:$0xff] %v326
      %1137 = vst [vmem:[%s1056] ss:$4 sm:$0xff] %v194
      %v1138 = vld.sshfl [vmem:[#allocation1] sm:$0xff pattern:$0x73625140]
      %v1139 = vld.sshfl [vmem:[#allocation1 + $0x20] sm:$0xff pattern:$0x73625140]
      %1140 = vst [vmem:[#allocation1] ss:$4 sm:$0xff] %v195
      %1141 = vst [vmem:[%s1044] ss:$4 sm:$0xff] %v327
      %1142 = vst [vmem:[%s1046] ss:$4 sm:$0xff] %v328
      %1143 = vst [vmem:[%s1048] ss:$4 sm:$0xff] %v329
      %1144 = vst [vmem:[%s1050] ss:$4 sm:$0xff] %v196
      %1145 = vst [vmem:[%s1052] ss:$4 sm:$0xff] %v330
      %1146 = vst [vmem:[%s1054] ss:$4 sm:$0xff] %v331
      %1147 = vst [vmem:[%s1056] ss:$4 sm:$0xff] %v332
      %v1148 = vld.sshfl [vmem:[#allocation1] sm:$0xff pattern:$0x73625140]
      %v1149 = vld.sshfl [vmem:[#allocation1 + $0x20] sm:$0xff pattern:$0x73625140]
      %1150 = vst [vmem:[#allocation1] ss:$4 sm:$0xff] %v197
      %1151 = vst [vmem:[%s1044] ss:$4 sm:$0xff] %v198
      %1152 = vst [vmem:[%s1046] ss:$4 sm:$0xff] %v333
      %1153 = vst [vmem:[%s1048] ss:$4 sm:$0xff] %v334
      %1154 = vst [vmem:[%s1050] ss:$4 sm:$0xff] %v335
      %1155 = vst [vmem:[%s1052] ss:$4 sm:$0xff] %v199
      %1156 = vst [vmem:[%s1054] ss:$4 sm:$0xff] %v336
      %1157 = vst [vmem:[%s1056] ss:$4 sm:$0xff] %v337
      %v1158 = vld.sshfl [vmem:[#allocation1] sm:$0xff pattern:$0x73625140]
      %v1159 = vld.sshfl [vmem:[#allocation1 + $0x20] sm:$0xff pattern:$0x73625140]
      %1160 = vst [vmem:[#allocation1] ss:$4 sm:$0xff] %v338
      %1161 = vst [vmem:[%s1044] ss:$4 sm:$0xff] %v200
      %1162 = vst [vmem:[%s1046] ss:$4 sm:$0xff] %v201
      %1163 = vst [vmem:[%s1048] ss:$4 sm:$0xff] %v339
      %1164 = vst [vmem:[%s1050] ss:$4 sm:$0xff] %v340
      %1165 = vst [vmem:[%s1052] ss:$4 sm:$0xff] %v341
      %1166 = vst [vmem:[%s1054] ss:$4 sm:$0xff] %v202
      %1167 = vst [vmem:[%s1056] ss:$4 sm:$0xff] %v342
      %v1168 = vld.sshfl [vmem:[#allocation1] sm:$0xff pattern:$0x73625140]
      %v1169 = vld.sshfl [vmem:[#allocation1 + $0x20] sm:$0xff pattern:$0x73625140]
      %1170 = vst [vmem:[#allocation1] ss:$4 sm:$0xff] %v343
      %1171 = vst [vmem:[%s1044] ss:$4 sm:$0xff] %v344
      %1172 = vst [vmem:[%s1046] ss:$4 sm:$0xff] %v203
      %1173 = vst [vmem:[%s1048] ss:$4 sm:$0xff] %v204
      %1174 = vst [vmem:[%s1050] ss:$4 sm:$0xff] %v345
      %1175 = vst [vmem:[%s1052] ss:$4 sm:$0xff] %v346
      %1176 = vst [vmem:[%s1054] ss:$4 sm:$0xff] %v347
      %1177 = vst [vmem:[%s1056] ss:$4 sm:$0xff] %v205
      %v1178 = vld.sshfl [vmem:[#allocation1] sm:$0xff pattern:$0x73625140]
      %v1179 = vld.sshfl [vmem:[#allocation1 + $0x20] sm:$0xff pattern:$0x73625140]
      %1180 = vst [vmem:[#allocation1] ss:$4 sm:$0xff] %v348
      %1181 = vst [vmem:[%s1044] ss:$4 sm:$0xff] %v349
      %1182 = vst [vmem:[%s1046] ss:$4 sm:$0xff] %v350
      %1183 = vst [vmem:[%s1048] ss:$4 sm:$0xff] %v206
      %1184 = vst [vmem:[%s1050] ss:$4 sm:$0xff] %v207
      %1185 = vst [vmem:[%s1052] ss:$4 sm:$0xff] %v351
      %1186 = vst [vmem:[%s1054] ss:$4 sm:$0xff] %v352
      %1187 = vst [vmem:[%s1056] ss:$4 sm:$0xff] %v353
      %v1188 = vld.sshfl [vmem:[#allocation1] sm:$0xff pattern:$0x73625140]
      %v1189 = vld.sshfl [vmem:[#allocation1 + $0x20] sm:$0xff pattern:$0x73625140]
      %1190 = vst [vmem:[#allocation1] ss:$4 sm:$0xff] %v208
      %1191 = vst [vmem:[%s1044] ss:$4 sm:$0xff] %v354
      %1192 = vst [vmem:[%s1046] ss:$4 sm:$0xff] %v355
      %1193 = vst [vmem:[%s1048] ss:$4 sm:$0xff] %v356
      %1194 = vst [vmem:[%s1050] ss:$4 sm:$0xff] %v209
      %1195 = vst [vmem:[%s1052] ss:$4 sm:$0xff] %v210
      %1196 = vst [vmem:[%s1054] ss:$4 sm:$0xff] %v357
      %1197 = vst [vmem:[%s1056] ss:$4 sm:$0xff] %v358
      %v1198 = vld.sshfl [vmem:[#allocation1] sm:$0xff pattern:$0x73625140]
      %v1199 = vld.sshfl [vmem:[#allocation1 + $0x20] sm:$0xff pattern:$0x73625140]
      %1200 = vst [vmem:[#allocation1] ss:$4 sm:$0xff] %v359
      %1201 = vst [vmem:[%s1044] ss:$4 sm:$0xff] %v211
      %1202 = vst [vmem:[%s1046] ss:$4 sm:$0xff] %v360
      %1203 = vst [vmem:[%s1048] ss:$4 sm:$0xff] %v361
      %1204 = vst [vmem:[%s1050] ss:$4 sm:$0xff] %v362
      %1205 = vst [vmem:[%s1052] ss:$4 sm:$0xff] %v212
      %1206 = vst [vmem:[%s1054] ss:$4 sm:$0xff] %v213
      %1207 = vst [vmem:[%s1056] ss:$4 sm:$0xff] %v363
      %v1208 = vld.sshfl [vmem:[#allocation1] sm:$0xff pattern:$0x73625140]
      %v1209 = vld.sshfl [vmem:[#allocation1 + $0x20] sm:$0xff pattern:$0x73625140]
      %1210 = vst [vmem:[#allocation1] ss:$4 sm:$0xff] %v364
      %1211 = vst [vmem:[%s1044] ss:$4 sm:$0xff] %v365
      %1212 = vst [vmem:[%s1046] ss:$4 sm:$0xff] %v214
      %1213 = vst [vmem:[%s1048] ss:$4 sm:$0xff] %v366
      %1214 = vst [vmem:[%s1050] ss:$4 sm:$0xff] %v367
      %1215 = vst [vmem:[%s1052] ss:$4 sm:$0xff] %v368
      %1216 = vst [vmem:[%s1054] ss:$4 sm:$0xff] %v215
      %1217 = vst [vmem:[%s1056] ss:$4 sm:$0xff] %v216
      %v1218 = vld.sshfl [vmem:[#allocation1] sm:$0xff pattern:$0x73625140]
      %v1219 = vld.sshfl [vmem:[#allocation1 + $0x20] sm:$0xff pattern:$0x73625140]
      %1220 = vst [vmem:[#allocation1] ss:$4 sm:$0xff] %v369
      %1221 = vst [vmem:[%s1044] ss:$4 sm:$0xff] %v370
      %1222 = vst [vmem:[%s1046] ss:$4 sm:$0xff] %v371
      %1223 = vst [vmem:[%s1048] ss:$4 sm:$0xff] %v217
      %1224 = vst [vmem:[%s1050] ss:$4 sm:$0xff] %v372
      %1225 = vst [vmem:[%s1052] ss:$4 sm:$0xff] %v373
      %1226 = vst [vmem:[%s1054] ss:$4 sm:$0xff] %v374
      %1227 = vst [vmem:[%s1056] ss:$4 sm:$0xff] %v218
      %v1228 = vld.sshfl [vmem:[#allocation1] sm:$0xff pattern:$0x73625140]
      %v1229 = vld.sshfl [vmem:[#allocation1 + $0x20] sm:$0xff pattern:$0x73625140]
      %1230 = vst [vmem:[#allocation1] ss:$4 sm:$0xff] %v219
      %1231 = vst [vmem:[%s1044] ss:$4 sm:$0xff] %v375
      %1232 = vst [vmem:[%s1046] ss:$4 sm:$0xff] %v376
      %1233 = vst [vmem:[%s1048] ss:$4 sm:$0xff] %v377
      %1234 = vst [vmem:[%s1050] ss:$4 sm:$0xff] %v220
      %1235 = vst [vmem:[%s1052] ss:$4 sm:$0xff] %v378
      %1236 = vst [vmem:[%s1054] ss:$4 sm:$0xff] %v379
      %1237 = vst [vmem:[%s1056] ss:$4 sm:$0xff] %v380
      %v1238 = vld.sshfl [vmem:[#allocation1] sm:$0xff pattern:$0x73625140]
      %v1239 = vld.sshfl [vmem:[#allocation1 + $0x20] sm:$0xff pattern:$0x73625140]
      %1240 = vst [vmem:[#allocation1] ss:$4 sm:$0xff] %v221
      %1241 = vst [vmem:[%s1044] ss:$4 sm:$0xff] %v222
      %1242 = vst [vmem:[%s1046] ss:$4 sm:$0xff] %v381
      %1243 = vst [vmem:[%s1048] ss:$4 sm:$0xff] %v382
      %1244 = vst [vmem:[%s1050] ss:$4 sm:$0xff] %v383
      %1245 = vst [vmem:[%s1052] ss:$4 sm:$0xff] %v223
      %1246 = vst [vmem:[%s1054] ss:$4 sm:$0xff] %v384
      %1247 = vst [vmem:[%s1056] ss:$4 sm:$0xff] %v385
      %v1248 = vld.sshfl [vmem:[#allocation1] sm:$0xff pattern:$0x73625140]
      %v1249 = vld.sshfl [vmem:[#allocation1 + $0x20] sm:$0xff pattern:$0x73625140]
      %1250 = vst [vmem:[#allocation1] ss:$4 sm:$0xff] %v386
      %1251 = vst [vmem:[%s1044] ss:$4 sm:$0xff] %v224
      %v1252 = vld.sshfl [vmem:[#allocation1] sm:$0xff pattern:$0x73625140]
      %v1253 = vsel %vm816, %v1058, 0
      %v1255 = vsel %vm816, %v1059, 0
      %v1257 = vsel %vm816, %v1068, 0
      %v1259 = vsel %vm816, %v1069, 0
      %v1261 = vsel %vm816, %v1078, 0
      %v1263 = vsel %vm816, %v1079, 0
      %v1265 = vsel %vm816, %v1088, 0
      %v1267 = vsel %vm816, %v1089, 0
      %v1269 = vsel %vm816, %v1098, 0
      %v1271 = vsel %vm816, %v1099, 0
      %v1273 = vsel %vm816, %v1108, 0
      %v1275 = vsel %vm816, %v1109, 0
      %v1277 = vsel %vm816, %v1118, 0
      %v1279 = vsel %vm816, %v1119, 0
      %v1281 = vsel %vm816, %v1128, 0
      %v1283 = vsel %vm816, %v1129, 0
      %v1285 = vsel %vm816, %v1138, 0
      %v1287 = vsel %vm816, %v1139, 0
      %v1289 = vsel %vm816, %v1148, 0
      %v1291 = vsel %vm816, %v1149, 0
      %v1293 = vsel %vm816, %v1158, 0
      %v1295 = vsel %vm816, %v1159, 0
      %v1297 = vsel %vm816, %v1168, 0
      %v1299 = vsel %vm816, %v1169, 0
      %v1301 = vsel %vm816, %v1178, 0
      %v1303 = vsel %vm816, %v1179, 0
      %v1305 = vsel %vm816, %v1188, 0
      %v1307 = vsel %vm816, %v1189, 0
      %v1309 = vsel %vm816, %v1198, 0
      %v1311 = vsel %vm816, %v1199, 0
      %v1313 = vsel %vm816, %v1208, 0
      %v1315 = vsel %vm816, %v1209, 0
      %v1317 = vsel %vm816, %v1218, 0
      %v1319 = vsel %vm816, %v1219, 0
      %v1321 = vsel %vm816, %v1228, 0
      %v1323 = vsel %vm816, %v1229, 0
      %v1325 = vsel %vm816, %v1238, 0
      %v1327 = vsel %vm816, %v1239, 0
      %v1329 = vsel %vm816, %v1248, 0
      %v1331 = vsel %vm816, %v1249, 0
      %v1333 = vsel %vm816, %v1252, 0
      %v1336 = vsel %vm899, %v387, 0
      %1338 = vmatpush.msra.mxu0 0.0
      %1339 = vmatpush.msra.mxu0 0.0
      %1340 = vmatpush.msra.mxu0 0.0
      %1341 = vmatpush.msra.mxu0 0.0
      %1342 = vmatpush.msra.mxu0 0.0
      %1343 = vmatpush.msra.mxu0 0.0
      %1344 = vmatpush.msra.mxu0 0.0
      %1345 = vmatpush.msra.mxu0 0.0
      %1346 = vmatpush.msra.mxu0 0.0
      %1347 = vmatpush.msra.mxu0 0.0
      %1348 = vmatpush.msra.mxu0 0.0
      %1349 = vmatpush.msra.mxu0 0.0
      %1350 = vmatpush.msra.mxu0 0.0
      %1351 = vmatpush.msra.mxu0 0.0
      %1352 = vmatpush.msra.mxu0 0.0
      %1353 = vmatpush.msra.mxu0 %v1336
      %1354 = vmatmul.f32.gmra.mxu0 %v1253
      %v1355 = vpop.f32.mrf.mxu0
      %v1356 = vadd.f32 %v921, %v1355
      %1357 = vmatmul.f32.gmra.mxu0 %v1255
      %v1358 = vpop.f32.mrf.mxu0
      %v1359 = vadd.f32 %v924, %v1358
      %1360 = vmatmul.f32.gmra.mxu0 %v1257
      %v1361 = vpop.f32.mrf.mxu0
      %v1362 = vadd.f32 %v927, %v1361
      %1363 = vmatmul.f32.gmra.mxu0 %v1259
      %v1364 = vpop.f32.mrf.mxu0
      %v1365 = vadd.f32 %v930, %v1364
      %1366 = vmatmul.f32.gmra.mxu0 %v1261
      %v1367 = vpop.f32.mrf.mxu0
      %v1368 = vadd.f32 %v933, %v1367
      %1369 = vmatmul.f32.gmra.mxu0 %v1263
      %v1370 = vpop.f32.mrf.mxu0
      %v1371 = vadd.f32 %v936, %v1370
      %1372 = vmatmul.f32.gmra.mxu0 %v1265
      %v1373 = vpop.f32.mrf.mxu0
      %v1374 = vadd.f32 %v939, %v1373
      %1375 = vmatmul.f32.gmra.mxu0 %v1267
      %v1376 = vpop.f32.mrf.mxu0
      %v1377 = vadd.f32 %v942, %v1376
      %1378 = vmatmul.f32.gmra.mxu0 %v1269
      %v1379 = vpop.f32.mrf.mxu0
      %v1380 = vadd.f32 %v945, %v1379
      %1381 = vmatmul.f32.gmra.mxu0 %v1271
      %v1382 = vpop.f32.mrf.mxu0
      %v1383 = vadd.f32 %v948, %v1382
      %1384 = vmatmul.f32.gmra.mxu0 %v1273
      %v1385 = vpop.f32.mrf.mxu0
      %v1386 = vadd.f32 %v951, %v1385
      %1387 = vmatmul.f32.gmra.mxu0 %v1275
      %v1388 = vpop.f32.mrf.mxu0
      %v1389 = vadd.f32 %v954, %v1388
      %1390 = vmatmul.f32.gmra.mxu0 %v1277
      %v1391 = vpop.f32.mrf.mxu0
      %v1392 = vadd.f32 %v957, %v1391
      %1393 = vmatmul.f32.gmra.mxu0 %v1279
      %v1394 = vpop.f32.mrf.mxu0
      %v1395 = vadd.f32 %v960, %v1394
      %1396 = vmatmul.f32.gmra.mxu0 %v1281
      %v1397 = vpop.f32.mrf.mxu0
      %v1398 = vadd.f32 %v963, %v1397
      %1399 = vmatmul.f32.gmra.mxu0 %v1283
      %v1400 = vpop.f32.mrf.mxu0
      %v1401 = vadd.f32 %v966, %v1400
      %1402 = vmatmul.f32.gmra.mxu0 %v1285
      %v1403 = vpop.f32.mrf.mxu0
      %v1404 = vadd.f32 %v969, %v1403
      %1405 = vmatmul.f32.gmra.mxu0 %v1287
      %v1406 = vpop.f32.mrf.mxu0
      %v1407 = vadd.f32 %v972, %v1406
      %1408 = vmatmul.f32.gmra.mxu0 %v1289
      %v1409 = vpop.f32.mrf.mxu0
      %v1410 = vadd.f32 %v975, %v1409
      %1411 = vmatmul.f32.gmra.mxu0 %v1291
      %v1412 = vpop.f32.mrf.mxu0
      %v1413 = vadd.f32 %v978, %v1412
      %1414 = vmatmul.f32.gmra.mxu0 %v1293
      %v1415 = vpop.f32.mrf.mxu0
      %v1416 = vadd.f32 %v981, %v1415
      %1417 = vmatmul.f32.gmra.mxu0 %v1295
      %v1418 = vpop.f32.mrf.mxu0
      %v1419 = vadd.f32 %v984, %v1418
      %1420 = vmatmul.f32.gmra.mxu0 %v1297
      %v1421 = vpop.f32.mrf.mxu0
      %v1422 = vadd.f32 %v987, %v1421
      %1423 = vmatmul.f32.gmra.mxu0 %v1299
      %v1424 = vpop.f32.mrf.mxu0
      %v1425 = vadd.f32 %v990, %v1424
      %1426 = vmatmul.f32.gmra.mxu0 %v1301
      %v1427 = vpop.f32.mrf.mxu0
      %v1428 = vadd.f32 %v993, %v1427
      %1429 = vmatmul.f32.gmra.mxu0 %v1303
      %v1430 = vpop.f32.mrf.mxu0
      %v1431 = vadd.f32 %v996, %v1430
      %1432 = vmatmul.f32.gmra.mxu0 %v1305
      %v1433 = vpop.f32.mrf.mxu0
      %v1434 = vadd.f32 %v999, %v1433
      %1435 = vmatmul.f32.gmra.mxu0 %v1307
      %v1436 = vpop.f32.mrf.mxu0
      %v1437 = vadd.f32 %v1002, %v1436
      %1438 = vmatmul.f32.gmra.mxu0 %v1309
      %v1439 = vpop.f32.mrf.mxu0
      %v1440 = vadd.f32 %v1005, %v1439
      %1441 = vmatmul.f32.gmra.mxu0 %v1311
      %v1442 = vpop.f32.mrf.mxu0
      %v1443 = vadd.f32 %v1008, %v1442
      %1444 = vmatmul.f32.gmra.mxu0 %v1313
      %v1445 = vpop.f32.mrf.mxu0
      %v1446 = vadd.f32 %v1011, %v1445
      %1447 = vmatmul.f32.gmra.mxu0 %v1315
      %v1448 = vpop.f32.mrf.mxu0
      %v1449 = vadd.f32 %v1014, %v1448
      %1450 = vmatmul.f32.gmra.mxu0 %v1317
      %v1451 = vpop.f32.mrf.mxu0
      %v1452 = vadd.f32 %v1017, %v1451
      %1453 = vmatmul.f32.gmra.mxu0 %v1319
      %v1454 = vpop.f32.mrf.mxu0
      %v1455 = vadd.f32 %v1020, %v1454
      %1456 = vmatmul.f32.gmra.mxu0 %v1321
      %v1457 = vpop.f32.mrf.mxu0
      %v1458 = vadd.f32 %v1023, %v1457
      %1459 = vmatmul.f32.gmra.mxu0 %v1323
      %v1460 = vpop.f32.mrf.mxu0
      %v1461 = vadd.f32 %v1026, %v1460
      %1462 = vmatmul.f32.gmra.mxu0 %v1325
      %v1463 = vpop.f32.mrf.mxu0
      %v1464 = vadd.f32 %v1029, %v1463
      %1465 = vmatmul.f32.gmra.mxu0 %v1327
      %v1466 = vpop.f32.mrf.mxu0
      %v1467 = vadd.f32 %v1032, %v1466
      %1468 = vmatmul.f32.gmra.mxu0 %v1329
      %v1469 = vpop.f32.mrf.mxu0
      %v1470 = vadd.f32 %v1035, %v1469
      %1471 = vmatmul.f32.gmra.mxu0 %v1331
      %v1472 = vpop.f32.mrf.mxu0
      %v1473 = vadd.f32 %v1038, %v1472
      %1474 = vmatmul.f32.gmra.mxu0 %v1333
      %v1475 = vpop.f32.mrf.mxu0
      %v1476 = vadd.f32 %v1041, %v1475
      %1477 = vdwg.mxu0
      %v1478 = vld [vmem:[%s165 + $0x2] sm:$0xff]
      %v1479 = vld [vmem:[%s165 + $0xa] sm:$0xff]
      %v1480 = vld [vmem:[%s165 + $0x12] sm:$0x3]
      %v1481 = vld [vmem:[%s165 + $0x1a] sm:$0xff]
      %v1482 = vld [vmem:[%s165 + $0x22] sm:$0xff]
      %v1483 = vld [vmem:[%s165 + $0x2a] sm:$0x3]
      %v1484 = vld [vmem:[%s165 + $0x32] sm:$0xff]
      %v1485 = vld [vmem:[%s165 + $0x3a] sm:$0xff]
      %v1486 = vld [vmem:[%s165 + $0x42] sm:$0x3]
      %v1487 = vld [vmem:[%s165 + $0x4a] sm:$0xff]
      %v1488 = vld [vmem:[%s165 + $0x52] sm:$0xff]
      %v1489 = vld [vmem:[%s165 + $0x5a] sm:$0x3]
      %v1490 = vld [vmem:[%s165 + $0x62] sm:$0xff]
      %v1491 = vld [vmem:[%s165 + $0x6a] sm:$0xff]
      %v1492 = vld [vmem:[%s165 + $0x72] sm:$0x3]
      %v1493 = vld [vmem:[%s165 + $0x7a] sm:$0xff]
      %v1494 = vld [vmem:[%s165 + $0x82] sm:$0xff]
      %v1495 = vld [vmem:[%s165 + $0x8a] sm:$0x3]
      %v1496 = vld [vmem:[%s165 + $0x92] sm:$0xff]
      %v1497 = vld [vmem:[%s165 + $0x9a] sm:$0xff]
      %v1498 = vld [vmem:[%s165 + $0xa2] sm:$0x3]
      %v1499 = vld [vmem:[%s165 + $0xaa] sm:$0xff]
      %v1500 = vld [vmem:[%s165 + $0xb2] sm:$0xff]
      %v1501 = vld [vmem:[%s165 + $0xba] sm:$0x3]
      %v1502 = vld [vmem:[%s165 + $0xc2] sm:$0xff]
      %v1503 = vld [vmem:[%s165 + $0xca] sm:$0xff]
      %v1504 = vld [vmem:[%s165 + $0xd2] sm:$0x3]
      %v1505 = vld [vmem:[%s165 + $0xda] sm:$0xff]
      %v1506 = vld [vmem:[%s165 + $0xe2] sm:$0xff]
      %v1507 = vld [vmem:[%s165 + $0xea] sm:$0x3]
      %v1508 = vld [vmem:[%s165 + $0xf2] sm:$0xff]
      %v1509 = vld [vmem:[%s165 + $0xfa] sm:$0xff]
      %v1510 = vld [vmem:[%s165 + $0x102] sm:$0x3]
      %v1511 = vld [vmem:[%s165 + $0x10a] sm:$0xff]
      %v1512 = vld [vmem:[%s165 + $0x112] sm:$0xff]
      %v1513 = vld [vmem:[%s165 + $0x11a] sm:$0x3]
      %v1514 = vld [vmem:[%s165 + $0x122] sm:$0xff]
      %v1515 = vld [vmem:[%s165 + $0x12a] sm:$0xff]
      %v1516 = vld [vmem:[%s165 + $0x132] sm:$0x3]
      %v1517 = vld [vmem:[%s165 + $0x13a] sm:$0xff]
      %v1518 = vld [vmem:[%s165 + $0x142] sm:$0xff]
      %v1519 = vld [vmem:[%s165 + $0x14a] sm:$0x3]
      %v1520 = vld [vmem:[%s165 + $0x152] sm:$0xff]
      %v1521 = vld [vmem:[%s165 + $0x15a] sm:$0xff]
      %v1522 = vld [vmem:[%s165 + $0x162] sm:$0x3]
      %v1523 = vld [vmem:[%s165 + $0x16a] sm:$0xff]
      %v1524 = vld [vmem:[%s165 + $0x172] sm:$0xff]
      %v1525 = vld [vmem:[%s165 + $0x17a] sm:$0x3]
      %v1526 = vld [vmem:[%s165 + $0x182] sm:$0xff]
      %v1527 = vld [vmem:[%s165 + $0x18a] sm:$0xff]
      %v1528 = vld [vmem:[%s165 + $0x192] sm:$0x3]
      %v1529 = vld [vmem:[%s165 + $0x19a] sm:$0xff]
      %v1530 = vld [vmem:[%s165 + $0x1a2] sm:$0xff]
      %v1531 = vld [vmem:[%s165 + $0x1aa] sm:$0x3]
      %v1586 = vrot.slane %v1478, 2
      %v1587 = vrot.slane %v1478, 4
      %v1588 = vrot.slane %v1478, 6
      %v1589 = vrot.slane %v1479, 2
      %v1590 = vrot.slane %v1479, 4
      %v1591 = vrot.slane %v1479, 6
      %v1592 = vrot.slane %v1481, 2
      %v1593 = vrot.slane %v1481, 4
      %v1594 = vrot.slane %v1481, 6
      %v1595 = vrot.slane %v1482, 2
      %v1596 = vrot.slane %v1482, 4
      %v1597 = vrot.slane %v1482, 6
      %v1598 = vrot.slane %v1484, 2
      %v1599 = vrot.slane %v1484, 4
      %v1600 = vrot.slane %v1484, 6
      %v1601 = vrot.slane %v1485, 2
      %v1602 = vrot.slane %v1485, 4
      %v1603 = vrot.slane %v1485, 6
      %v1604 = vrot.slane %v1487, 2
      %v1605 = vrot.slane %v1487, 4
      %v1606 = vrot.slane %v1487, 6
      %v1607 = vrot.slane %v1488, 2
      %v1608 = vrot.slane %v1488, 4
      %v1609 = vrot.slane %v1488, 6
      %v1610 = vrot.slane %v1490, 2
      %v1611 = vrot.slane %v1490, 4
      %v1612 = vrot.slane %v1490, 6
      %v1613 = vrot.slane %v1491, 2
      %v1614 = vrot.slane %v1491, 4
      %v1615 = vrot.slane %v1491, 6
      %v1616 = vrot.slane %v1493, 2
      %v1617 = vrot.slane %v1493, 4
      %v1618 = vrot.slane %v1493, 6
      %v1619 = vrot.slane %v1494, 2
      %v1620 = vrot.slane %v1494, 4
      %v1621 = vrot.slane %v1494, 6
      %v1622 = vrot.slane %v1496, 2
      %v1623 = vrot.slane %v1496, 4
      %v1624 = vrot.slane %v1496, 6
      %v1625 = vrot.slane %v1497, 2
      %v1626 = vrot.slane %v1497, 4
      %v1627 = vrot.slane %v1497, 6
      %v1628 = vrot.slane %v1499, 2
      %v1629 = vrot.slane %v1499, 4
      %v1630 = vrot.slane %v1499, 6
      %v1631 = vrot.slane %v1500, 2
      %v1632 = vrot.slane %v1500, 4
      %v1633 = vrot.slane %v1500, 6
      %v1634 = vrot.slane %v1502, 2
      %v1635 = vrot.slane %v1502, 4
      %v1636 = vrot.slane %v1502, 6
      %v1637 = vrot.slane %v1503, 2
      %v1638 = vrot.slane %v1503, 4
      %v1639 = vrot.slane %v1503, 6
      %v1640 = vrot.slane %v1505, 2
      %v1641 = vrot.slane %v1505, 4
      %v1642 = vrot.slane %v1505, 6
      %v1643 = vrot.slane %v1506, 2
      %v1644 = vrot.slane %v1506, 4
      %v1645 = vrot.slane %v1506, 6
      %v1646 = vrot.slane %v1508, 2
      %v1647 = vrot.slane %v1508, 4
      %v1648 = vrot.slane %v1508, 6
      %v1649 = vrot.slane %v1509, 2
      %v1650 = vrot.slane %v1509, 4
      %v1651 = vrot.slane %v1509, 6
      %v1652 = vrot.slane %v1511, 2
      %v1653 = vrot.slane %v1511, 4
      %v1654 = vrot.slane %v1511, 6
      %v1655 = vrot.slane %v1512, 2
      %v1656 = vrot.slane %v1512, 4
      %v1657 = vrot.slane %v1512, 6
      %v1658 = vrot.slane %v1514, 2
      %v1659 = vrot.slane %v1514, 4
      %v1660 = vrot.slane %v1514, 6
      %v1661 = vrot.slane %v1515, 2
      %v1662 = vrot.slane %v1515, 4
      %v1663 = vrot.slane %v1515, 6
      %v1664 = vrot.slane %v1517, 2
      %v1665 = vrot.slane %v1517, 4
      %v1666 = vrot.slane %v1517, 6
      %v1667 = vrot.slane %v1518, 2
      %v1668 = vrot.slane %v1518, 4
      %v1669 = vrot.slane %v1518, 6
      %v1670 = vrot.slane %v1520, 2
      %v1671 = vrot.slane %v1520, 4
      %v1672 = vrot.slane %v1520, 6
      %v1673 = vrot.slane %v1521, 2
      %v1674 = vrot.slane %v1521, 4
      %v1675 = vrot.slane %v1521, 6
      %v1676 = vrot.slane %v1523, 2
      %v1677 = vrot.slane %v1523, 4
      %v1678 = vrot.slane %v1523, 6
      %v1679 = vrot.slane %v1524, 2
      %v1680 = vrot.slane %v1524, 4
      %v1681 = vrot.slane %v1524, 6
      %v1682 = vrot.slane %v1526, 2
      %v1683 = vrot.slane %v1526, 4
      %v1684 = vrot.slane %v1526, 6
      %v1685 = vrot.slane %v1527, 2
      %v1686 = vrot.slane %v1527, 4
      %v1687 = vrot.slane %v1527, 6
      %v1688 = vrot.slane %v1529, 2
      %v1689 = vrot.slane %v1529, 4
      %v1690 = vrot.slane %v1529, 6
      %v1691 = vrot.slane %v1530, 2
      %v1692 = vrot.slane %v1530, 4
      %v1693 = vrot.slane %v1530, 6
      %s1694 = scalar_lea.vmem %s1, 8
      %v1695 = vld [vmem:[%s1694] sm:$0x7]
      %1696 = vst [vmem:[#allocation1] ss:$4 sm:$0xff] %v1478
      %s1697 = scalar_lea.vmem [#allocation1], 1
      %1698 = vst [vmem:[%s1697] ss:$4 sm:$0xff] %v1586
      %s1699 = scalar_lea.vmem [#allocation1], 2
      %1700 = vst [vmem:[%s1699] ss:$4 sm:$0xff] %v1587
      %s1701 = scalar_lea.vmem [#allocation1], 3
      %1702 = vst [vmem:[%s1701] ss:$4 sm:$0xff] %v1588
      %s1703 = scalar_lea.vmem [#allocation1], 32
      %1704 = vst [vmem:[%s1703] ss:$4 sm:$0xff] %v1479
      %s1705 = scalar_lea.vmem [#allocation1], 33
      %1706 = vst [vmem:[%s1705] ss:$4 sm:$0xff] %v1589
      %s1707 = scalar_lea.vmem [#allocation1], 34
      %1708 = vst [vmem:[%s1707] ss:$4 sm:$0xff] %v1590
      %s1709 = scalar_lea.vmem [#allocation1], 35
      %1710 = vst [vmem:[%s1709] ss:$4 sm:$0xff] %v1591
      %v1711 = vld.sshfl [vmem:[#allocation1] sm:$0xff pattern:$0x73625140]
      %v1712 = vld.sshfl [vmem:[#allocation1 + $0x20] sm:$0xff pattern:$0x73625140]
      %1713 = vst [vmem:[#allocation1] ss:$4 sm:$0xff] %v1480
      %1714 = vst [vmem:[%s1697] ss:$4 sm:$0xff] %v1481
      %1715 = vst [vmem:[%s1699] ss:$4 sm:$0xff] %v1592
      %1716 = vst [vmem:[%s1701] ss:$4 sm:$0xff] %v1593
      %1717 = vst [vmem:[%s1703] ss:$4 sm:$0xff] %v1594
      %1718 = vst [vmem:[%s1705] ss:$4 sm:$0xff] %v1482
      %1719 = vst [vmem:[%s1707] ss:$4 sm:$0xff] %v1595
      %1720 = vst [vmem:[%s1709] ss:$4 sm:$0xff] %v1596
      %v1721 = vld.sshfl [vmem:[#allocation1] sm:$0xff pattern:$0x73625140]
      %v1722 = vld.sshfl [vmem:[#allocation1 + $0x20] sm:$0xff pattern:$0x73625140]
      %1723 = vst [vmem:[#allocation1] ss:$4 sm:$0xff] %v1597
      %1724 = vst [vmem:[%s1697] ss:$4 sm:$0xff] %v1483
      %1725 = vst [vmem:[%s1699] ss:$4 sm:$0xff] %v1484
      %1726 = vst [vmem:[%s1701] ss:$4 sm:$0xff] %v1598
      %1727 = vst [vmem:[%s1703] ss:$4 sm:$0xff] %v1599
      %1728 = vst [vmem:[%s1705] ss:$4 sm:$0xff] %v1600
      %1729 = vst [vmem:[%s1707] ss:$4 sm:$0xff] %v1485
      %1730 = vst [vmem:[%s1709] ss:$4 sm:$0xff] %v1601
      %v1731 = vld.sshfl [vmem:[#allocation1] sm:$0xff pattern:$0x73625140]
      %v1732 = vld.sshfl [vmem:[#allocation1 + $0x20] sm:$0xff pattern:$0x73625140]
      %1733 = vst [vmem:[#allocation1] ss:$4 sm:$0xff] %v1602
      %1734 = vst [vmem:[%s1697] ss:$4 sm:$0xff] %v1603
      %1735 = vst [vmem:[%s1699] ss:$4 sm:$0xff] %v1486
      %1736 = vst [vmem:[%s1701] ss:$4 sm:$0xff] %v1487
      %1737 = vst [vmem:[%s1703] ss:$4 sm:$0xff] %v1604
      %1738 = vst [vmem:[%s1705] ss:$4 sm:$0xff] %v1605
      %1739 = vst [vmem:[%s1707] ss:$4 sm:$0xff] %v1606
      %1740 = vst [vmem:[%s1709] ss:$4 sm:$0xff] %v1488
      %v1741 = vld.sshfl [vmem:[#allocation1] sm:$0xff pattern:$0x73625140]
      %v1742 = vld.sshfl [vmem:[#allocation1 + $0x20] sm:$0xff pattern:$0x73625140]
      %1743 = vst [vmem:[#allocation1] ss:$4 sm:$0xff] %v1607
      %1744 = vst [vmem:[%s1697] ss:$4 sm:$0xff] %v1608
      %1745 = vst [vmem:[%s1699] ss:$4 sm:$0xff] %v1609
      %1746 = vst [vmem:[%s1701] ss:$4 sm:$0xff] %v1489
      %1747 = vst [vmem:[%s1703] ss:$4 sm:$0xff] %v1490
      %1748 = vst [vmem:[%s1705] ss:$4 sm:$0xff] %v1610
      %1749 = vst [vmem:[%s1707] ss:$4 sm:$0xff] %v1611
      %1750 = vst [vmem:[%s1709] ss:$4 sm:$0xff] %v1612
      %v1751 = vld.sshfl [vmem:[#allocation1] sm:$0xff pattern:$0x73625140]
      %v1752 = vld.sshfl [vmem:[#allocation1 + $0x20] sm:$0xff pattern:$0x73625140]
      %1753 = vst [vmem:[#allocation1] ss:$4 sm:$0xff] %v1491
      %1754 = vst [vmem:[%s1697] ss:$4 sm:$0xff] %v1613
      %1755 = vst [vmem:[%s1699] ss:$4 sm:$0xff] %v1614
      %1756 = vst [vmem:[%s1701] ss:$4 sm:$0xff] %v1615
      %1757 = vst [vmem:[%s1703] ss:$4 sm:$0xff] %v1492
      %1758 = vst [vmem:[%s1705] ss:$4 sm:$0xff] %v1493
      %1759 = vst [vmem:[%s1707] ss:$4 sm:$0xff] %v1616
      %1760 = vst [vmem:[%s1709] ss:$4 sm:$0xff] %v1617
      %v1761 = vld.sshfl [vmem:[#allocation1] sm:$0xff pattern:$0x73625140]
      %v1762 = vld.sshfl [vmem:[#allocation1 + $0x20] sm:$0xff pattern:$0x73625140]
      %1763 = vst [vmem:[#allocation1] ss:$4 sm:$0xff] %v1618
      %1764 = vst [vmem:[%s1697] ss:$4 sm:$0xff] %v1494
      %1765 = vst [vmem:[%s1699] ss:$4 sm:$0xff] %v1619
      %1766 = vst [vmem:[%s1701] ss:$4 sm:$0xff] %v1620
      %1767 = vst [vmem:[%s1703] ss:$4 sm:$0xff] %v1621
      %1768 = vst [vmem:[%s1705] ss:$4 sm:$0xff] %v1495
      %1769 = vst [vmem:[%s1707] ss:$4 sm:$0xff] %v1496
      %1770 = vst [vmem:[%s1709] ss:$4 sm:$0xff] %v1622
      %v1771 = vld.sshfl [vmem:[#allocation1] sm:$0xff pattern:$0x73625140]
      %v1772 = vld.sshfl [vmem:[#allocation1 + $0x20] sm:$0xff pattern:$0x73625140]
      %1773 = vst [vmem:[#allocation1] ss:$4 sm:$0xff] %v1623
      %1774 = vst [vmem:[%s1697] ss:$4 sm:$0xff] %v1624
      %1775 = vst [vmem:[%s1699] ss:$4 sm:$0xff] %v1497
      %1776 = vst [vmem:[%s1701] ss:$4 sm:$0xff] %v1625
      %1777 = vst [vmem:[%s1703] ss:$4 sm:$0xff] %v1626
      %1778 = vst [vmem:[%s1705] ss:$4 sm:$0xff] %v1627
      %1779 = vst [vmem:[%s1707] ss:$4 sm:$0xff] %v1498
      %1780 = vst [vmem:[%s1709] ss:$4 sm:$0xff] %v1499
      %v1781 = vld.sshfl [vmem:[#allocation1] sm:$0xff pattern:$0x73625140]
      %v1782 = vld.sshfl [vmem:[#allocation1 + $0x20] sm:$0xff pattern:$0x73625140]
      %1783 = vst [vmem:[#allocation1] ss:$4 sm:$0xff] %v1628
      %1784 = vst [vmem:[%s1697] ss:$4 sm:$0xff] %v1629
      %1785 = vst [vmem:[%s1699] ss:$4 sm:$0xff] %v1630
      %1786 = vst [vmem:[%s1701] ss:$4 sm:$0xff] %v1500
      %1787 = vst [vmem:[%s1703] ss:$4 sm:$0xff] %v1631
      %1788 = vst [vmem:[%s1705] ss:$4 sm:$0xff] %v1632
      %1789 = vst [vmem:[%s1707] ss:$4 sm:$0xff] %v1633
      %1790 = vst [vmem:[%s1709] ss:$4 sm:$0xff] %v1501
      %v1791 = vld.sshfl [vmem:[#allocation1] sm:$0xff pattern:$0x73625140]
      %v1792 = vld.sshfl [vmem:[#allocation1 + $0x20] sm:$0xff pattern:$0x73625140]
      %1793 = vst [vmem:[#allocation1] ss:$4 sm:$0xff] %v1502
      %1794 = vst [vmem:[%s1697] ss:$4 sm:$0xff] %v1634
      %1795 = vst [vmem:[%s1699] ss:$4 sm:$0xff] %v1635
      %1796 = vst [vmem:[%s1701] ss:$4 sm:$0xff] %v1636
      %1797 = vst [vmem:[%s1703] ss:$4 sm:$0xff] %v1503
      %1798 = vst [vmem:[%s1705] ss:$4 sm:$0xff] %v1637
      %1799 = vst [vmem:[%s1707] ss:$4 sm:$0xff] %v1638
      %1800 = vst [vmem:[%s1709] ss:$4 sm:$0xff] %v1639
      %v1801 = vld.sshfl [vmem:[#allocation1] sm:$0xff pattern:$0x73625140]
      %v1802 = vld.sshfl [vmem:[#allocation1 + $0x20] sm:$0xff pattern:$0x73625140]
      %1803 = vst [vmem:[#allocation1] ss:$4 sm:$0xff] %v1504
      %1804 = vst [vmem:[%s1697] ss:$4 sm:$0xff] %v1505
      %1805 = vst [vmem:[%s1699] ss:$4 sm:$0xff] %v1640
      %1806 = vst [vmem:[%s1701] ss:$4 sm:$0xff] %v1641
      %1807 = vst [vmem:[%s1703] ss:$4 sm:$0xff] %v1642
      %1808 = vst [vmem:[%s1705] ss:$4 sm:$0xff] %v1506
      %1809 = vst [vmem:[%s1707] ss:$4 sm:$0xff] %v1643
      %1810 = vst [vmem:[%s1709] ss:$4 sm:$0xff] %v1644
      %v1811 = vld.sshfl [vmem:[#allocation1] sm:$0xff pattern:$0x73625140]
      %v1812 = vld.sshfl [vmem:[#allocation1 + $0x20] sm:$0xff pattern:$0x73625140]
      %1813 = vst [vmem:[#allocation1] ss:$4 sm:$0xff] %v1645
      %1814 = vst [vmem:[%s1697] ss:$4 sm:$0xff] %v1507
      %1815 = vst [vmem:[%s1699] ss:$4 sm:$0xff] %v1508
      %1816 = vst [vmem:[%s1701] ss:$4 sm:$0xff] %v1646
      %1817 = vst [vmem:[%s1703] ss:$4 sm:$0xff] %v1647
      %1818 = vst [vmem:[%s1705] ss:$4 sm:$0xff] %v1648
      %1819 = vst [vmem:[%s1707] ss:$4 sm:$0xff] %v1509
      %1820 = vst [vmem:[%s1709] ss:$4 sm:$0xff] %v1649
      %v1821 = vld.sshfl [vmem:[#allocation1] sm:$0xff pattern:$0x73625140]
      %v1822 = vld.sshfl [vmem:[#allocation1 + $0x20] sm:$0xff pattern:$0x73625140]
      %1823 = vst [vmem:[#allocation1] ss:$4 sm:$0xff] %v1650
      %1824 = vst [vmem:[%s1697] ss:$4 sm:$0xff] %v1651
      %1825 = vst [vmem:[%s1699] ss:$4 sm:$0xff] %v1510
      %1826 = vst [vmem:[%s1701] ss:$4 sm:$0xff] %v1511
      %1827 = vst [vmem:[%s1703] ss:$4 sm:$0xff] %v1652
      %1828 = vst [vmem:[%s1705] ss:$4 sm:$0xff] %v1653
      %1829 = vst [vmem:[%s1707] ss:$4 sm:$0xff] %v1654
      %1830 = vst [vmem:[%s1709] ss:$4 sm:$0xff] %v1512
      %v1831 = vld.sshfl [vmem:[#allocation1] sm:$0xff pattern:$0x73625140]
      %v1832 = vld.sshfl [vmem:[#allocation1 + $0x20] sm:$0xff pattern:$0x73625140]
      %1833 = vst [vmem:[#allocation1] ss:$4 sm:$0xff] %v1655
      %1834 = vst [vmem:[%s1697] ss:$4 sm:$0xff] %v1656
      %1835 = vst [vmem:[%s1699] ss:$4 sm:$0xff] %v1657
      %1836 = vst [vmem:[%s1701] ss:$4 sm:$0xff] %v1513
      %1837 = vst [vmem:[%s1703] ss:$4 sm:$0xff] %v1514
      %1838 = vst [vmem:[%s1705] ss:$4 sm:$0xff] %v1658
      %1839 = vst [vmem:[%s1707] ss:$4 sm:$0xff] %v1659
      %1840 = vst [vmem:[%s1709] ss:$4 sm:$0xff] %v1660
      %v1841 = vld.sshfl [vmem:[#allocation1] sm:$0xff pattern:$0x73625140]
      %v1842 = vld.sshfl [vmem:[#allocation1 + $0x20] sm:$0xff pattern:$0x73625140]
      %1843 = vst [vmem:[#allocation1] ss:$4 sm:$0xff] %v1515
      %1844 = vst [vmem:[%s1697] ss:$4 sm:$0xff] %v1661
      %1845 = vst [vmem:[%s1699] ss:$4 sm:$0xff] %v1662
      %1846 = vst [vmem:[%s1701] ss:$4 sm:$0xff] %v1663
      %1847 = vst [vmem:[%s1703] ss:$4 sm:$0xff] %v1516
      %1848 = vst [vmem:[%s1705] ss:$4 sm:$0xff] %v1517
      %1849 = vst [vmem:[%s1707] ss:$4 sm:$0xff] %v1664
      %1850 = vst [vmem:[%s1709] ss:$4 sm:$0xff] %v1665
      %v1851 = vld.sshfl [vmem:[#allocation1] sm:$0xff pattern:$0x73625140]
      %v1852 = vld.sshfl [vmem:[#allocation1 + $0x20] sm:$0xff pattern:$0x73625140]
      %1853 = vst [vmem:[#allocation1] ss:$4 sm:$0xff] %v1666
      %1854 = vst [vmem:[%s1697] ss:$4 sm:$0xff] %v1518
      %1855 = vst [vmem:[%s1699] ss:$4 sm:$0xff] %v1667
      %1856 = vst [vmem:[%s1701] ss:$4 sm:$0xff] %v1668
      %1857 = vst [vmem:[%s1703] ss:$4 sm:$0xff] %v1669
      %1858 = vst [vmem:[%s1705] ss:$4 sm:$0xff] %v1519
      %1859 = vst [vmem:[%s1707] ss:$4 sm:$0xff] %v1520
      %1860 = vst [vmem:[%s1709] ss:$4 sm:$0xff] %v1670
      %v1861 = vld.sshfl [vmem:[#allocation1] sm:$0xff pattern:$0x73625140]
      %v1862 = vld.sshfl [vmem:[#allocation1 + $0x20] sm:$0xff pattern:$0x73625140]
      %1863 = vst [vmem:[#allocation1] ss:$4 sm:$0xff] %v1671
      %1864 = vst [vmem:[%s1697] ss:$4 sm:$0xff] %v1672
      %1865 = vst [vmem:[%s1699] ss:$4 sm:$0xff] %v1521
      %1866 = vst [vmem:[%s1701] ss:$4 sm:$0xff] %v1673
      %1867 = vst [vmem:[%s1703] ss:$4 sm:$0xff] %v1674
      %1868 = vst [vmem:[%s1705] ss:$4 sm:$0xff] %v1675
      %1869 = vst [vmem:[%s1707] ss:$4 sm:$0xff] %v1522
      %1870 = vst [vmem:[%s1709] ss:$4 sm:$0xff] %v1523
      %v1871 = vld.sshfl [vmem:[#allocation1] sm:$0xff pattern:$0x73625140]
      %v1872 = vld.sshfl [vmem:[#allocation1 + $0x20] sm:$0xff pattern:$0x73625140]
      %1873 = vst [vmem:[#allocation1] ss:$4 sm:$0xff] %v1676
      %1874 = vst [vmem:[%s1697] ss:$4 sm:$0xff] %v1677
      %1875 = vst [vmem:[%s1699] ss:$4 sm:$0xff] %v1678
      %1876 = vst [vmem:[%s1701] ss:$4 sm:$0xff] %v1524
      %1877 = vst [vmem:[%s1703] ss:$4 sm:$0xff] %v1679
      %1878 = vst [vmem:[%s1705] ss:$4 sm:$0xff] %v1680
      %1879 = vst [vmem:[%s1707] ss:$4 sm:$0xff] %v1681
      %1880 = vst [vmem:[%s1709] ss:$4 sm:$0xff] %v1525
      %v1881 = vld.sshfl [vmem:[#allocation1] sm:$0xff pattern:$0x73625140]
      %v1882 = vld.sshfl [vmem:[#allocation1 + $0x20] sm:$0xff pattern:$0x73625140]
      %1883 = vst [vmem:[#allocation1] ss:$4 sm:$0xff] %v1526
      %1884 = vst [vmem:[%s1697] ss:$4 sm:$0xff] %v1682
      %1885 = vst [vmem:[%s1699] ss:$4 sm:$0xff] %v1683
      %1886 = vst [vmem:[%s1701] ss:$4 sm:$0xff] %v1684
      %1887 = vst [vmem:[%s1703] ss:$4 sm:$0xff] %v1527
      %1888 = vst [vmem:[%s1705] ss:$4 sm:$0xff] %v1685
      %1889 = vst [vmem:[%s1707] ss:$4 sm:$0xff] %v1686
      %1890 = vst [vmem:[%s1709] ss:$4 sm:$0xff] %v1687
      %v1891 = vld.sshfl [vmem:[#allocation1] sm:$0xff pattern:$0x73625140]
      %v1892 = vld.sshfl [vmem:[#allocation1 + $0x20] sm:$0xff pattern:$0x73625140]
      %1893 = vst [vmem:[#allocation1] ss:$4 sm:$0xff] %v1528
      %1894 = vst [vmem:[%s1697] ss:$4 sm:$0xff] %v1529
      %1895 = vst [vmem:[%s1699] ss:$4 sm:$0xff] %v1688
      %1896 = vst [vmem:[%s1701] ss:$4 sm:$0xff] %v1689
      %1897 = vst [vmem:[%s1703] ss:$4 sm:$0xff] %v1690
      %1898 = vst [vmem:[%s1705] ss:$4 sm:$0xff] %v1530
      %1899 = vst [vmem:[%s1707] ss:$4 sm:$0xff] %v1691
      %1900 = vst [vmem:[%s1709] ss:$4 sm:$0xff] %v1692
      %v1901 = vld.sshfl [vmem:[#allocation1] sm:$0xff pattern:$0x73625140]
      %v1902 = vld.sshfl [vmem:[#allocation1 + $0x20] sm:$0xff pattern:$0x73625140]
      %1903 = vst [vmem:[#allocation1] ss:$4 sm:$0xff] %v1693
      %1904 = vst [vmem:[%s1697] ss:$4 sm:$0xff] %v1531
      %v1905 = vld.sshfl [vmem:[#allocation1] sm:$0xff pattern:$0x73625140]
      %v1906 = vsel %vm816, %v1711, 0
      %v1908 = vsel %vm816, %v1712, 0
      %v1910 = vsel %vm816, %v1721, 0
      %v1912 = vsel %vm816, %v1722, 0
      %v1914 = vsel %vm816, %v1731, 0
      %v1916 = vsel %vm816, %v1732, 0
      %v1918 = vsel %vm816, %v1741, 0
      %v1920 = vsel %vm816, %v1742, 0
      %v1922 = vsel %vm816, %v1751, 0
      %v1924 = vsel %vm816, %v1752, 0
      %v1926 = vsel %vm816, %v1761, 0
      %v1928 = vsel %vm816, %v1762, 0
      %v1930 = vsel %vm816, %v1771, 0
      %v1932 = vsel %vm816, %v1772, 0
      %v1934 = vsel %vm816, %v1781, 0
      %v1936 = vsel %vm816, %v1782, 0
      %v1938 = vsel %vm816, %v1791, 0
      %v1940 = vsel %vm816, %v1792, 0
      %v1942 = vsel %vm816, %v1801, 0
      %v1944 = vsel %vm816, %v1802, 0
      %v1946 = vsel %vm816, %v1811, 0
      %v1948 = vsel %vm816, %v1812, 0
      %v1950 = vsel %vm816, %v1821, 0
      %v1952 = vsel %vm816, %v1822, 0
      %v1954 = vsel %vm816, %v1831, 0
      %v1956 = vsel %vm816, %v1832, 0
      %v1958 = vsel %vm816, %v1841, 0
      %v1960 = vsel %vm816, %v1842, 0
      %v1962 = vsel %vm816, %v1851, 0
      %v1964 = vsel %vm816, %v1852, 0
      %v1966 = vsel %vm816, %v1861, 0
      %v1968 = vsel %vm816, %v1862, 0
      %v1970 = vsel %vm816, %v1871, 0
      %v1972 = vsel %vm816, %v1872, 0
      %v1974 = vsel %vm816, %v1881, 0
      %v1976 = vsel %vm816, %v1882, 0
      %v1978 = vsel %vm816, %v1891, 0
      %v1980 = vsel %vm816, %v1892, 0
      %v1982 = vsel %vm816, %v1901, 0
      %v1984 = vsel %vm816, %v1902, 0
      %v1986 = vsel %vm816, %v1905, 0
      %v1989 = vsel %vm899, %v1695, 0
      %1991 = vmatpush.msra.mxu0 0.0
      %1992 = vmatpush.msra.mxu0 0.0
      %1993 = vmatpush.msra.mxu0 0.0
      %1994 = vmatpush.msra.mxu0 0.0
      %1995 = vmatpush.msra.mxu0 0.0
      %1996 = vmatpush.msra.mxu0 0.0
      %1997 = vmatpush.msra.mxu0 0.0
      %1998 = vmatpush.msra.mxu0 0.0
      %1999 = vmatpush.msra.mxu0 0.0
      %2000 = vmatpush.msra.mxu0 0.0
      %2001 = vmatpush.msra.mxu0 0.0
      %2002 = vmatpush.msra.mxu0 0.0
      %2003 = vmatpush.msra.mxu0 0.0
      %2004 = vmatpush.msra.mxu0 0.0
      %2005 = vmatpush.msra.mxu0 0.0
      %2006 = vmatpush.msra.mxu0 %v1989
      %2007 = vmatmul.f32.gmra.mxu0 %v1906
      %v2008 = vpop.f32.mrf.mxu0
      %v2009 = vadd.f32 0.0, %v2008
      %2010 = vmatmul.f32.gmra.mxu0 %v1908
      %v2011 = vpop.f32.mrf.mxu0
      %v2012 = vadd.f32 0.0, %v2011
      %2013 = vmatmul.f32.gmra.mxu0 %v1910
      %v2014 = vpop.f32.mrf.mxu0
      %v2015 = vadd.f32 0.0, %v2014
      %2016 = vmatmul.f32.gmra.mxu0 %v1912
      %v2017 = vpop.f32.mrf.mxu0
      %v2018 = vadd.f32 0.0, %v2017
      %2019 = vmatmul.f32.gmra.mxu0 %v1914
      %v2020 = vpop.f32.mrf.mxu0
      %v2021 = vadd.f32 0.0, %v2020
      %2022 = vmatmul.f32.gmra.mxu0 %v1916
      %v2023 = vpop.f32.mrf.mxu0
      %v2024 = vadd.f32 0.0, %v2023
      %2025 = vmatmul.f32.gmra.mxu0 %v1918
      %v2026 = vpop.f32.mrf.mxu0
      %v2027 = vadd.f32 0.0, %v2026
      %2028 = vmatmul.f32.gmra.mxu0 %v1920
      %v2029 = vpop.f32.mrf.mxu0
      %v2030 = vadd.f32 0.0, %v2029
      %2031 = vmatmul.f32.gmra.mxu0 %v1922
      %v2032 = vpop.f32.mrf.mxu0
      %v2033 = vadd.f32 0.0, %v2032
      %2034 = vmatmul.f32.gmra.mxu0 %v1924
      %v2035 = vpop.f32.mrf.mxu0
      %v2036 = vadd.f32 0.0, %v2035
      %2037 = vmatmul.f32.gmra.mxu0 %v1926
      %v2038 = vpop.f32.mrf.mxu0
      %v2039 = vadd.f32 0.0, %v2038
      %2040 = vmatmul.f32.gmra.mxu0 %v1928
      %v2041 = vpop.f32.mrf.mxu0
      %v2042 = vadd.f32 0.0, %v2041
      %2043 = vmatmul.f32.gmra.mxu0 %v1930
      %v2044 = vpop.f32.mrf.mxu0
      %v2045 = vadd.f32 0.0, %v2044
      %2046 = vmatmul.f32.gmra.mxu0 %v1932
      %v2047 = vpop.f32.mrf.mxu0
      %v2048 = vadd.f32 0.0, %v2047
      %2049 = vmatmul.f32.gmra.mxu0 %v1934
      %v2050 = vpop.f32.mrf.mxu0
      %v2051 = vadd.f32 0.0, %v2050
      %2052 = vmatmul.f32.gmra.mxu0 %v1936
      %v2053 = vpop.f32.mrf.mxu0
      %v2054 = vadd.f32 0.0, %v2053
      %2055 = vmatmul.f32.gmra.mxu0 %v1938
      %v2056 = vpop.f32.mrf.mxu0
      %v2057 = vadd.f32 0.0, %v2056
      %2058 = vmatmul.f32.gmra.mxu0 %v1940
      %v2059 = vpop.f32.mrf.mxu0
      %v2060 = vadd.f32 0.0, %v2059
      %2061 = vmatmul.f32.gmra.mxu0 %v1942
      %v2062 = vpop.f32.mrf.mxu0
      %v2063 = vadd.f32 0.0, %v2062
      %2064 = vmatmul.f32.gmra.mxu0 %v1944
      %v2065 = vpop.f32.mrf.mxu0
      %v2066 = vadd.f32 0.0, %v2065
      %2067 = vmatmul.f32.gmra.mxu0 %v1946
      %v2068 = vpop.f32.mrf.mxu0
      %v2069 = vadd.f32 0.0, %v2068
      %2070 = vmatmul.f32.gmra.mxu0 %v1948
      %v2071 = vpop.f32.mrf.mxu0
      %v2072 = vadd.f32 0.0, %v2071
      %2073 = vmatmul.f32.gmra.mxu0 %v1950
      %v2074 = vpop.f32.mrf.mxu0
      %v2075 = vadd.f32 0.0, %v2074
      %2076 = vmatmul.f32.gmra.mxu0 %v1952
      %v2077 = vpop.f32.mrf.mxu0
      %v2078 = vadd.f32 0.0, %v2077
      %2079 = vmatmul.f32.gmra.mxu0 %v1954
      %v2080 = vpop.f32.mrf.mxu0
      %v2081 = vadd.f32 0.0, %v2080
      %2082 = vmatmul.f32.gmra.mxu0 %v1956
      %v2083 = vpop.f32.mrf.mxu0
      %v2084 = vadd.f32 0.0, %v2083
      %2085 = vmatmul.f32.gmra.mxu0 %v1958
      %v2086 = vpop.f32.mrf.mxu0
      %v2087 = vadd.f32 0.0, %v2086
      %2088 = vmatmul.f32.gmra.mxu0 %v1960
      %v2089 = vpop.f32.mrf.mxu0
      %v2090 = vadd.f32 0.0, %v2089
      %2091 = vmatmul.f32.gmra.mxu0 %v1962
      %v2092 = vpop.f32.mrf.mxu0
      %v2093 = vadd.f32 0.0, %v2092
      %2094 = vmatmul.f32.gmra.mxu0 %v1964
      %v2095 = vpop.f32.mrf.mxu0
      %v2096 = vadd.f32 0.0, %v2095
      %2097 = vmatmul.f32.gmra.mxu0 %v1966
      %v2098 = vpop.f32.mrf.mxu0
      %v2099 = vadd.f32 0.0, %v2098
      %2100 = vmatmul.f32.gmra.mxu0 %v1968
      %v2101 = vpop.f32.mrf.mxu0
      %v2102 = vadd.f32 0.0, %v2101
      %2103 = vmatmul.f32.gmra.mxu0 %v1970
      %v2104 = vpop.f32.mrf.mxu0
      %v2105 = vadd.f32 0.0, %v2104
      %2106 = vmatmul.f32.gmra.mxu0 %v1972
      %v2107 = vpop.f32.mrf.mxu0
      %v2108 = vadd.f32 0.0, %v2107
      %2109 = vmatmul.f32.gmra.mxu0 %v1974
      %v2110 = vpop.f32.mrf.mxu0
      %v2111 = vadd.f32 0.0, %v2110
      %2112 = vmatmul.f32.gmra.mxu0 %v1976
      %v2113 = vpop.f32.mrf.mxu0
      %v2114 = vadd.f32 0.0, %v2113
      %2115 = vmatmul.f32.gmra.mxu0 %v1978
      %v2116 = vpop.f32.mrf.mxu0
      %v2117 = vadd.f32 0.0, %v2116
      %2118 = vmatmul.f32.gmra.mxu0 %v1980
      %v2119 = vpop.f32.mrf.mxu0
      %v2120 = vadd.f32 0.0, %v2119
      %2121 = vmatmul.f32.gmra.mxu0 %v1982
      %v2122 = vpop.f32.mrf.mxu0
      %v2123 = vadd.f32 0.0, %v2122
      %2124 = vmatmul.f32.gmra.mxu0 %v1984
      %v2125 = vpop.f32.mrf.mxu0
      %v2126 = vadd.f32 0.0, %v2125
      %2127 = vmatmul.f32.gmra.mxu0 %v1986
      %v2128 = vpop.f32.mrf.mxu0
      %v2129 = vadd.f32 0.0, %v2128
      %2130 = vdwg.mxu0
      %v2131 = vadd.f32 %v1356, %v2009
      %v2132 = vadd.f32 %v1359, %v2012
      %v2133 = vadd.f32 %v1362, %v2015
      %v2134 = vadd.f32 %v1365, %v2018
      %v2135 = vadd.f32 %v1368, %v2021
      %v2136 = vadd.f32 %v1371, %v2024
      %v2137 = vadd.f32 %v1374, %v2027
      %v2138 = vadd.f32 %v1377, %v2030
      %v2139 = vadd.f32 %v1380, %v2033
      %v2140 = vadd.f32 %v1383, %v2036
      %v2141 = vadd.f32 %v1386, %v2039
      %v2142 = vadd.f32 %v1389, %v2042
      %v2143 = vadd.f32 %v1392, %v2045
      %v2144 = vadd.f32 %v1395, %v2048
      %v2145 = vadd.f32 %v1398, %v2051
      %v2146 = vadd.f32 %v1401, %v2054
      %v2147 = vadd.f32 %v1404, %v2057
      %v2148 = vadd.f32 %v1407, %v2060
      %v2149 = vadd.f32 %v1410, %v2063
      %v2150 = vadd.f32 %v1413, %v2066
      %v2151 = vadd.f32 %v1416, %v2069
      %v2152 = vadd.f32 %v1419, %v2072
      %v2153 = vadd.f32 %v1422, %v2075
      %v2154 = vadd.f32 %v1425, %v2078
      %v2155 = vadd.f32 %v1428, %v2081
      %v2156 = vadd.f32 %v1431, %v2084
      %v2157 = vadd.f32 %v1434, %v2087
      %v2158 = vadd.f32 %v1437, %v2090
      %v2159 = vadd.f32 %v1440, %v2093
      %v2160 = vadd.f32 %v1443, %v2096
      %v2161 = vadd.f32 %v1446, %v2099
      %v2162 = vadd.f32 %v1449, %v2102
      %v2163 = vadd.f32 %v1452, %v2105
      %v2164 = vadd.f32 %v1455, %v2108
      %v2165 = vadd.f32 %v1458, %v2111
      %v2166 = vadd.f32 %v1461, %v2114
      %v2167 = vadd.f32 %v1464, %v2117
      %v2168 = vadd.f32 %v1467, %v2120
      %v2169 = vadd.f32 %v1470, %v2123
      %v2170 = vadd.f32 %v1473, %v2126
      %v2171 = vadd.f32 %v1476, %v2129
      %s2172 = scalar_lea.vmem %s165, 24
      %v2173 = vld [vmem:[%s2172] sm:$0xff]
      %v2174 = vld [vmem:[%s2172 + $0x8] sm:$0xff]
      %v2175 = vld [vmem:[%s2172 + $0x10] sm:$0x3]
      %v2176 = vld [vmem:[%s2172 + $0x18] sm:$0xff]
      %v2177 = vld [vmem:[%s2172 + $0x20] sm:$0xff]
      %v2178 = vld [vmem:[%s2172 + $0x28] sm:$0x3]
      %v2179 = vld [vmem:[%s2172 + $0x30] sm:$0xff]
      %v2180 = vld [vmem:[%s2172 + $0x38] sm:$0xff]
      %v2181 = vld [vmem:[%s2172 + $0x40] sm:$0x3]
      %v2182 = vld [vmem:[%s2172 + $0x48] sm:$0xff]
      %v2183 = vld [vmem:[%s2172 + $0x50] sm:$0xff]
      %v2184 = vld [vmem:[%s2172 + $0x58] sm:$0x3]
      %v2185 = vld [vmem:[%s2172 + $0x60] sm:$0xff]
      %v2186 = vld [vmem:[%s2172 + $0x68] sm:$0xff]
      %v2187 = vld [vmem:[%s2172 + $0x70] sm:$0x3]
      %v2188 = vld [vmem:[%s2172 + $0x78] sm:$0xff]
      %v2189 = vld [vmem:[%s2172 + $0x80] sm:$0xff]
      %v2190 = vld [vmem:[%s2172 + $0x88] sm:$0x3]
      %v2191 = vld [vmem:[%s2172 + $0x90] sm:$0xff]
      %v2192 = vld [vmem:[%s2172 + $0x98] sm:$0xff]
      %v2193 = vld [vmem:[%s2172 + $0xa0] sm:$0x3]
      %v2194 = vld [vmem:[%s2172 + $0xa8] sm:$0xff]
      %v2195 = vld [vmem:[%s2172 + $0xb0] sm:$0xff]
      %v2196 = vld [vmem:[%s2172 + $0xb8] sm:$0x3]
      %v2197 = vld [vmem:[%s2172 + $0xc0] sm:$0xff]
      %v2198 = vld [vmem:[%s2172 + $0xc8] sm:$0xff]
      %v2199 = vld [vmem:[%s2172 + $0xd0] sm:$0x3]
      %v2200 = vld [vmem:[%s2172 + $0xd8] sm:$0xff]
      %v2201 = vld [vmem:[%s2172 + $0xe0] sm:$0xff]
      %v2202 = vld [vmem:[%s2172 + $0xe8] sm:$0x3]
      %v2203 = vld [vmem:[%s2172 + $0xf0] sm:$0xff]
      %v2204 = vld [vmem:[%s2172 + $0xf8] sm:$0xff]
      %v2205 = vld [vmem:[%s2172 + $0x100] sm:$0x3]
      %v2206 = vld [vmem:[%s2172 + $0x108] sm:$0xff]
      %v2207 = vld [vmem:[%s2172 + $0x110] sm:$0xff]
      %v2208 = vld [vmem:[%s2172 + $0x118] sm:$0x3]
      %v2209 = vld [vmem:[%s2172 + $0x120] sm:$0xff]
      %v2210 = vld [vmem:[%s2172 + $0x128] sm:$0xff]
      %v2211 = vld [vmem:[%s2172 + $0x130] sm:$0x3]
      %v2212 = vld [vmem:[%s2172 + $0x138] sm:$0xff]
      %v2213 = vld [vmem:[%s2172 + $0x140] sm:$0xff]
      %v2214 = vld [vmem:[%s2172 + $0x148] sm:$0x3]
      %v2215 = vld [vmem:[%s2172 + $0x150] sm:$0xff]
      %v2216 = vld [vmem:[%s2172 + $0x158] sm:$0xff]
      %v2217 = vld [vmem:[%s2172 + $0x160] sm:$0x3]
      %v2218 = vld [vmem:[%s2172 + $0x168] sm:$0xff]
      %v2219 = vld [vmem:[%s2172 + $0x170] sm:$0xff]
      %v2220 = vld [vmem:[%s2172 + $0x178] sm:$0x3]
      %v2221 = vld [vmem:[%s2172 + $0x180] sm:$0xff]
      %v2222 = vld [vmem:[%s2172 + $0x188] sm:$0xff]
      %v2223 = vld [vmem:[%s2172 + $0x190] sm:$0x3]
      %v2224 = vld [vmem:[%s2172 + $0x198] sm:$0xff]
      %v2225 = vld [vmem:[%s2172 + $0x1a0] sm:$0xff]
      %v2226 = vld [vmem:[%s2172 + $0x1a8] sm:$0x3]
      %v2281 = vrot.slane %v2173, 2
      %v2282 = vrot.slane %v2173, 4
      %v2283 = vrot.slane %v2173, 6
      %v2284 = vrot.slane %v2174, 2
      %v2285 = vrot.slane %v2174, 4
      %v2286 = vrot.slane %v2174, 6
      %v2287 = vrot.slane %v2176, 2
      %v2288 = vrot.slane %v2176, 4
      %v2289 = vrot.slane %v2176, 6
      %v2290 = vrot.slane %v2177, 2
      %v2291 = vrot.slane %v2177, 4
      %v2292 = vrot.slane %v2177, 6
      %v2293 = vrot.slane %v2179, 2
      %v2294 = vrot.slane %v2179, 4
      %v2295 = vrot.slane %v2179, 6
      %v2296 = vrot.slane %v2180, 2
      %v2297 = vrot.slane %v2180, 4
      %v2298 = vrot.slane %v2180, 6
      %v2299 = vrot.slane %v2182, 2
      %v2300 = vrot.slane %v2182, 4
      %v2301 = vrot.slane %v2182, 6
      %v2302 = vrot.slane %v2183, 2
      %v2303 = vrot.slane %v2183, 4
      %v2304 = vrot.slane %v2183, 6
      %v2305 = vrot.slane %v2185, 2
      %v2306 = vrot.slane %v2185, 4
      %v2307 = vrot.slane %v2185, 6
      %v2308 = vrot.slane %v2186, 2
      %v2309 = vrot.slane %v2186, 4
      %v2310 = vrot.slane %v2186, 6
      %v2311 = vrot.slane %v2188, 2
      %v2312 = vrot.slane %v2188, 4
      %v2313 = vrot.slane %v2188, 6
      %v2314 = vrot.slane %v2189, 2
      %v2315 = vrot.slane %v2189, 4
      %v2316 = vrot.slane %v2189, 6
      %v2317 = vrot.slane %v2191, 2
      %v2318 = vrot.slane %v2191, 4
      %v2319 = vrot.slane %v2191, 6
      %v2320 = vrot.slane %v2192, 2
      %v2321 = vrot.slane %v2192, 4
      %v2322 = vrot.slane %v2192, 6
      %v2323 = vrot.slane %v2194, 2
      %v2324 = vrot.slane %v2194, 4
      %v2325 = vrot.slane %v2194, 6
      %v2326 = vrot.slane %v2195, 2
      %v2327 = vrot.slane %v2195, 4
      %v2328 = vrot.slane %v2195, 6
      %v2329 = vrot.slane %v2197, 2
      %v2330 = vrot.slane %v2197, 4
      %v2331 = vrot.slane %v2197, 6
      %v2332 = vrot.slane %v2198, 2
      %v2333 = vrot.slane %v2198, 4
      %v2334 = vrot.slane %v2198, 6
      %v2335 = vrot.slane %v2200, 2
      %v2336 = vrot.slane %v2200, 4
      %v2337 = vrot.slane %v2200, 6
      %v2338 = vrot.slane %v2201, 2
      %v2339 = vrot.slane %v2201, 4
      %v2340 = vrot.slane %v2201, 6
      %v2341 = vrot.slane %v2203, 2
      %v2342 = vrot.slane %v2203, 4
      %v2343 = vrot.slane %v2203, 6
      %v2344 = vrot.slane %v2204, 2
      %v2345 = vrot.slane %v2204, 4
      %v2346 = vrot.slane %v2204, 6
      %v2347 = vrot.slane %v2206, 2
      %v2348 = vrot.slane %v2206, 4
      %v2349 = vrot.slane %v2206, 6
      %v2350 = vrot.slane %v2207, 2
      %v2351 = vrot.slane %v2207, 4
      %v2352 = vrot.slane %v2207, 6
      %v2353 = vrot.slane %v2209, 2
      %v2354 = vrot.slane %v2209, 4
      %v2355 = vrot.slane %v2209, 6
      %v2356 = vrot.slane %v2210, 2
      %v2357 = vrot.slane %v2210, 4
      %v2358 = vrot.slane %v2210, 6
      %v2359 = vrot.slane %v2212, 2
      %v2360 = vrot.slane %v2212, 4
      %v2361 = vrot.slane %v2212, 6
      %v2362 = vrot.slane %v2213, 2
      %v2363 = vrot.slane %v2213, 4
      %v2364 = vrot.slane %v2213, 6
      %v2365 = vrot.slane %v2215, 2
      %v2366 = vrot.slane %v2215, 4
      %v2367 = vrot.slane %v2215, 6
      %v2368 = vrot.slane %v2216, 2
      %v2369 = vrot.slane %v2216, 4
      %v2370 = vrot.slane %v2216, 6
      %v2371 = vrot.slane %v2218, 2
      %v2372 = vrot.slane %v2218, 4
      %v2373 = vrot.slane %v2218, 6
      %v2374 = vrot.slane %v2219, 2
      %v2375 = vrot.slane %v2219, 4
      %v2376 = vrot.slane %v2219, 6
      %v2377 = vrot.slane %v2221, 2
      %v2378 = vrot.slane %v2221, 4
      %v2379 = vrot.slane %v2221, 6
      %v2380 = vrot.slane %v2222, 2
      %v2381 = vrot.slane %v2222, 4
      %v2382 = vrot.slane %v2222, 6
      %v2383 = vrot.slane %v2224, 2
      %v2384 = vrot.slane %v2224, 4
      %v2385 = vrot.slane %v2224, 6
      %v2386 = vrot.slane %v2225, 2
      %v2387 = vrot.slane %v2225, 4
      %v2388 = vrot.slane %v2225, 6
      %s2389 = scalar_lea.vmem %s1, 12
      %v2390 = vld [vmem:[%s2389] sm:$0x7]
      %2391 = vst [vmem:[#allocation1] ss:$4 sm:$0xff] %v2173
      %s2392 = scalar_lea.vmem [#allocation1], 1
      %2393 = vst [vmem:[%s2392] ss:$4 sm:$0xff] %v2281
      %s2394 = scalar_lea.vmem [#allocation1], 2
      %2395 = vst [vmem:[%s2394] ss:$4 sm:$0xff] %v2282
      %s2396 = scalar_lea.vmem [#allocation1], 3
      %2397 = vst [vmem:[%s2396] ss:$4 sm:$0xff] %v2283
      %s2398 = scalar_lea.vmem [#allocation1], 32
      %2399 = vst [vmem:[%s2398] ss:$4 sm:$0xff] %v2174
      %s2400 = scalar_lea.vmem [#allocation1], 33
      %2401 = vst [vmem:[%s2400] ss:$4 sm:$0xff] %v2284
      %s2402 = scalar_lea.vmem [#allocation1], 34
      %2403 = vst [vmem:[%s2402] ss:$4 sm:$0xff] %v2285
      %s2404 = scalar_lea.vmem [#allocation1], 35
      %2405 = vst [vmem:[%s2404] ss:$4 sm:$0xff] %v2286
      %v2406 = vld.sshfl [vmem:[#allocation1] sm:$0xff pattern:$0x73625140]
      %v2407 = vld.sshfl [vmem:[#allocation1 + $0x20] sm:$0xff pattern:$0x73625140]
      %2408 = vst [vmem:[#allocation1] ss:$4 sm:$0xff] %v2175
      %2409 = vst [vmem:[%s2392] ss:$4 sm:$0xff] %v2176
      %2410 = vst [vmem:[%s2394] ss:$4 sm:$0xff] %v2287
      %2411 = vst [vmem:[%s2396] ss:$4 sm:$0xff] %v2288
      %2412 = vst [vmem:[%s2398] ss:$4 sm:$0xff] %v2289
      %2413 = vst [vmem:[%s2400] ss:$4 sm:$0xff] %v2177
      %2414 = vst [vmem:[%s2402] ss:$4 sm:$0xff] %v2290
      %2415 = vst [vmem:[%s2404] ss:$4 sm:$0xff] %v2291
      %v2416 = vld.sshfl [vmem:[#allocation1] sm:$0xff pattern:$0x73625140]
      %v2417 = vld.sshfl [vmem:[#allocation1 + $0x20] sm:$0xff pattern:$0x73625140]
      %2418 = vst [vmem:[#allocation1] ss:$4 sm:$0xff] %v2292
      %2419 = vst [vmem:[%s2392] ss:$4 sm:$0xff] %v2178
      %2420 = vst [vmem:[%s2394] ss:$4 sm:$0xff] %v2179
      %2421 = vst [vmem:[%s2396] ss:$4 sm:$0xff] %v2293
      %2422 = vst [vmem:[%s2398] ss:$4 sm:$0xff] %v2294
      %2423 = vst [vmem:[%s2400] ss:$4 sm:$0xff] %v2295
      %2424 = vst [vmem:[%s2402] ss:$4 sm:$0xff] %v2180
      %2425 = vst [vmem:[%s2404] ss:$4 sm:$0xff] %v2296
      %v2426 = vld.sshfl [vmem:[#allocation1] sm:$0xff pattern:$0x73625140]
      %v2427 = vld.sshfl [vmem:[#allocation1 + $0x20] sm:$0xff pattern:$0x73625140]
      %2428 = vst [vmem:[#allocation1] ss:$4 sm:$0xff] %v2297
      %2429 = vst [vmem:[%s2392] ss:$4 sm:$0xff] %v2298
      %2430 = vst [vmem:[%s2394] ss:$4 sm:$0xff] %v2181
      %2431 = vst [vmem:[%s2396] ss:$4 sm:$0xff] %v2182
      %2432 = vst [vmem:[%s2398] ss:$4 sm:$0xff] %v2299
      %2433 = vst [vmem:[%s2400] ss:$4 sm:$0xff] %v2300
      %2434 = vst [vmem:[%s2402] ss:$4 sm:$0xff] %v2301
      %2435 = vst [vmem:[%s2404] ss:$4 sm:$0xff] %v2183
      %v2436 = vld.sshfl [vmem:[#allocation1] sm:$0xff pattern:$0x73625140]
      %v2437 = vld.sshfl [vmem:[#allocation1 + $0x20] sm:$0xff pattern:$0x73625140]
      %2438 = vst [vmem:[#allocation1] ss:$4 sm:$0xff] %v2302
      %2439 = vst [vmem:[%s2392] ss:$4 sm:$0xff] %v2303
      %2440 = vst [vmem:[%s2394] ss:$4 sm:$0xff] %v2304
      %2441 = vst [vmem:[%s2396] ss:$4 sm:$0xff] %v2184
      %2442 = vst [vmem:[%s2398] ss:$4 sm:$0xff] %v2185
      %2443 = vst [vmem:[%s2400] ss:$4 sm:$0xff] %v2305
      %2444 = vst [vmem:[%s2402] ss:$4 sm:$0xff] %v2306
      %2445 = vst [vmem:[%s2404] ss:$4 sm:$0xff] %v2307
      %v2446 = vld.sshfl [vmem:[#allocation1] sm:$0xff pattern:$0x73625140]
      %v2447 = vld.sshfl [vmem:[#allocation1 + $0x20] sm:$0xff pattern:$0x73625140]
      %2448 = vst [vmem:[#allocation1] ss:$4 sm:$0xff] %v2186
      %2449 = vst [vmem:[%s2392] ss:$4 sm:$0xff] %v2308
      %2450 = vst [vmem:[%s2394] ss:$4 sm:$0xff] %v2309
      %2451 = vst [vmem:[%s2396] ss:$4 sm:$0xff] %v2310
      %2452 = vst [vmem:[%s2398] ss:$4 sm:$0xff] %v2187
      %2453 = vst [vmem:[%s2400] ss:$4 sm:$0xff] %v2188
      %2454 = vst [vmem:[%s2402] ss:$4 sm:$0xff] %v2311
      %2455 = vst [vmem:[%s2404] ss:$4 sm:$0xff] %v2312
      %v2456 = vld.sshfl [vmem:[#allocation1] sm:$0xff pattern:$0x73625140]
      %v2457 = vld.sshfl [vmem:[#allocation1 + $0x20] sm:$0xff pattern:$0x73625140]
      %2458 = vst [vmem:[#allocation1] ss:$4 sm:$0xff] %v2313
      %2459 = vst [vmem:[%s2392] ss:$4 sm:$0xff] %v2189
      %2460 = vst [vmem:[%s2394] ss:$4 sm:$0xff] %v2314
      %2461 = vst [vmem:[%s2396] ss:$4 sm:$0xff] %v2315
      %2462 = vst [vmem:[%s2398] ss:$4 sm:$0xff] %v2316
      %2463 = vst [vmem:[%s2400] ss:$4 sm:$0xff] %v2190
      %2464 = vst [vmem:[%s2402] ss:$4 sm:$0xff] %v2191
      %2465 = vst [vmem:[%s2404] ss:$4 sm:$0xff] %v2317
      %v2466 = vld.sshfl [vmem:[#allocation1] sm:$0xff pattern:$0x73625140]
      %v2467 = vld.sshfl [vmem:[#allocation1 + $0x20] sm:$0xff pattern:$0x73625140]
      %2468 = vst [vmem:[#allocation1] ss:$4 sm:$0xff] %v2318
      %2469 = vst [vmem:[%s2392] ss:$4 sm:$0xff] %v2319
      %2470 = vst [vmem:[%s2394] ss:$4 sm:$0xff] %v2192
      %2471 = vst [vmem:[%s2396] ss:$4 sm:$0xff] %v2320
      %2472 = vst [vmem:[%s2398] ss:$4 sm:$0xff] %v2321
      %2473 = vst [vmem:[%s2400] ss:$4 sm:$0xff] %v2322
      %2474 = vst [vmem:[%s2402] ss:$4 sm:$0xff] %v2193
      %2475 = vst [vmem:[%s2404] ss:$4 sm:$0xff] %v2194
      %v2476 = vld.sshfl [vmem:[#allocation1] sm:$0xff pattern:$0x73625140]
      %v2477 = vld.sshfl [vmem:[#allocation1 + $0x20] sm:$0xff pattern:$0x73625140]
      %2478 = vst [vmem:[#allocation1] ss:$4 sm:$0xff] %v2323
      %2479 = vst [vmem:[%s2392] ss:$4 sm:$0xff] %v2324
      %2480 = vst [vmem:[%s2394] ss:$4 sm:$0xff] %v2325
      %2481 = vst [vmem:[%s2396] ss:$4 sm:$0xff] %v2195
      %2482 = vst [vmem:[%s2398] ss:$4 sm:$0xff] %v2326
      %2483 = vst [vmem:[%s2400] ss:$4 sm:$0xff] %v2327
      %2484 = vst [vmem:[%s2402] ss:$4 sm:$0xff] %v2328
      %2485 = vst [vmem:[%s2404] ss:$4 sm:$0xff] %v2196
      %v2486 = vld.sshfl [vmem:[#allocation1] sm:$0xff pattern:$0x73625140]
      %v2487 = vld.sshfl [vmem:[#allocation1 + $0x20] sm:$0xff pattern:$0x73625140]
      %2488 = vst [vmem:[#allocation1] ss:$4 sm:$0xff] %v2197
      %2489 = vst [vmem:[%s2392] ss:$4 sm:$0xff] %v2329
      %2490 = vst [vmem:[%s2394] ss:$4 sm:$0xff] %v2330
      %2491 = vst [vmem:[%s2396] ss:$4 sm:$0xff] %v2331
      %2492 = vst [vmem:[%s2398] ss:$4 sm:$0xff] %v2198
      %2493 = vst [vmem:[%s2400] ss:$4 sm:$0xff] %v2332
      %2494 = vst [vmem:[%s2402] ss:$4 sm:$0xff] %v2333
      %2495 = vst [vmem:[%s2404] ss:$4 sm:$0xff] %v2334
      %v2496 = vld.sshfl [vmem:[#allocation1] sm:$0xff pattern:$0x73625140]
      %v2497 = vld.sshfl [vmem:[#allocation1 + $0x20] sm:$0xff pattern:$0x73625140]
      %2498 = vst [vmem:[#allocation1] ss:$4 sm:$0xff] %v2199
      %2499 = vst [vmem:[%s2392] ss:$4 sm:$0xff] %v2200
      %2500 = vst [vmem:[%s2394] ss:$4 sm:$0xff] %v2335
      %2501 = vst [vmem:[%s2396] ss:$4 sm:$0xff] %v2336
      %2502 = vst [vmem:[%s2398] ss:$4 sm:$0xff] %v2337
      %2503 = vst [vmem:[%s2400] ss:$4 sm:$0xff] %v2201
      %2504 = vst [vmem:[%s2402] ss:$4 sm:$0xff] %v2338
      %2505 = vst [vmem:[%s2404] ss:$4 sm:$0xff] %v2339
      %v2506 = vld.sshfl [vmem:[#allocation1] sm:$0xff pattern:$0x73625140]
      %v2507 = vld.sshfl [vmem:[#allocation1 + $0x20] sm:$0xff pattern:$0x73625140]
      %2508 = vst [vmem:[#allocation1] ss:$4 sm:$0xff] %v2340
      %2509 = vst [vmem:[%s2392] ss:$4 sm:$0xff] %v2202
      %2510 = vst [vmem:[%s2394] ss:$4 sm:$0xff] %v2203
      %2511 = vst [vmem:[%s2396] ss:$4 sm:$0xff] %v2341
      %2512 = vst [vmem:[%s2398] ss:$4 sm:$0xff] %v2342
      %2513 = vst [vmem:[%s2400] ss:$4 sm:$0xff] %v2343
      %2514 = vst [vmem:[%s2402] ss:$4 sm:$0xff] %v2204
      %2515 = vst [vmem:[%s2404] ss:$4 sm:$0xff] %v2344
      %v2516 = vld.sshfl [vmem:[#allocation1] sm:$0xff pattern:$0x73625140]
      %v2517 = vld.sshfl [vmem:[#allocation1 + $0x20] sm:$0xff pattern:$0x73625140]
      %2518 = vst [vmem:[#allocation1] ss:$4 sm:$0xff] %v2345
      %2519 = vst [vmem:[%s2392] ss:$4 sm:$0xff] %v2346
      %2520 = vst [vmem:[%s2394] ss:$4 sm:$0xff] %v2205
      %2521 = vst [vmem:[%s2396] ss:$4 sm:$0xff] %v2206
      %2522 = vst [vmem:[%s2398] ss:$4 sm:$0xff] %v2347
      %2523 = vst [vmem:[%s2400] ss:$4 sm:$0xff] %v2348
      %2524 = vst [vmem:[%s2402] ss:$4 sm:$0xff] %v2349
      %2525 = vst [vmem:[%s2404] ss:$4 sm:$0xff] %v2207
      %v2526 = vld.sshfl [vmem:[#allocation1] sm:$0xff pattern:$0x73625140]
      %v2527 = vld.sshfl [vmem:[#allocation1 + $0x20] sm:$0xff pattern:$0x73625140]
      %2528 = vst [vmem:[#allocation1] ss:$4 sm:$0xff] %v2350
      %2529 = vst [vmem:[%s2392] ss:$4 sm:$0xff] %v2351
      %2530 = vst [vmem:[%s2394] ss:$4 sm:$0xff] %v2352
      %2531 = vst [vmem:[%s2396] ss:$4 sm:$0xff] %v2208
      %2532 = vst [vmem:[%s2398] ss:$4 sm:$0xff] %v2209
      %2533 = vst [vmem:[%s2400] ss:$4 sm:$0xff] %v2353
      %2534 = vst [vmem:[%s2402] ss:$4 sm:$0xff] %v2354
      %2535 = vst [vmem:[%s2404] ss:$4 sm:$0xff] %v2355
      %v2536 = vld.sshfl [vmem:[#allocation1] sm:$0xff pattern:$0x73625140]
      %v2537 = vld.sshfl [vmem:[#allocation1 + $0x20] sm:$0xff pattern:$0x73625140]
      %2538 = vst [vmem:[#allocation1] ss:$4 sm:$0xff] %v2210
      %2539 = vst [vmem:[%s2392] ss:$4 sm:$0xff] %v2356
      %2540 = vst [vmem:[%s2394] ss:$4 sm:$0xff] %v2357
      %2541 = vst [vmem:[%s2396] ss:$4 sm:$0xff] %v2358
      %2542 = vst [vmem:[%s2398] ss:$4 sm:$0xff] %v2211
      %2543 = vst [vmem:[%s2400] ss:$4 sm:$0xff] %v2212
      %2544 = vst [vmem:[%s2402] ss:$4 sm:$0xff] %v2359
      %2545 = vst [vmem:[%s2404] ss:$4 sm:$0xff] %v2360
      %v2546 = vld.sshfl [vmem:[#allocation1] sm:$0xff pattern:$0x73625140]
      %v2547 = vld.sshfl [vmem:[#allocation1 + $0x20] sm:$0xff pattern:$0x73625140]
      %2548 = vst [vmem:[#allocation1] ss:$4 sm:$0xff] %v2361
      %2549 = vst [vmem:[%s2392] ss:$4 sm:$0xff] %v2213
      %2550 = vst [vmem:[%s2394] ss:$4 sm:$0xff] %v2362
      %2551 = vst [vmem:[%s2396] ss:$4 sm:$0xff] %v2363
      %2552 = vst [vmem:[%s2398] ss:$4 sm:$0xff] %v2364
      %2553 = vst [vmem:[%s2400] ss:$4 sm:$0xff] %v2214
      %2554 = vst [vmem:[%s2402] ss:$4 sm:$0xff] %v2215
      %2555 = vst [vmem:[%s2404] ss:$4 sm:$0xff] %v2365
      %v2556 = vld.sshfl [vmem:[#allocation1] sm:$0xff pattern:$0x73625140]
      %v2557 = vld.sshfl [vmem:[#allocation1 + $0x20] sm:$0xff pattern:$0x73625140]
      %2558 = vst [vmem:[#allocation1] ss:$4 sm:$0xff] %v2366
      %2559 = vst [vmem:[%s2392] ss:$4 sm:$0xff] %v2367
      %2560 = vst [vmem:[%s2394] ss:$4 sm:$0xff] %v2216
      %2561 = vst [vmem:[%s2396] ss:$4 sm:$0xff] %v2368
      %2562 = vst [vmem:[%s2398] ss:$4 sm:$0xff] %v2369
      %2563 = vst [vmem:[%s2400] ss:$4 sm:$0xff] %v2370
      %2564 = vst [vmem:[%s2402] ss:$4 sm:$0xff] %v2217
      %2565 = vst [vmem:[%s2404] ss:$4 sm:$0xff] %v2218
      %v2566 = vld.sshfl [vmem:[#allocation1] sm:$0xff pattern:$0x73625140]
      %v2567 = vld.sshfl [vmem:[#allocation1 + $0x20] sm:$0xff pattern:$0x73625140]
      %2568 = vst [vmem:[#allocation1] ss:$4 sm:$0xff] %v2371
      %2569 = vst [vmem:[%s2392] ss:$4 sm:$0xff] %v2372
      %2570 = vst [vmem:[%s2394] ss:$4 sm:$0xff] %v2373
      %2571 = vst [vmem:[%s2396] ss:$4 sm:$0xff] %v2219
      %2572 = vst [vmem:[%s2398] ss:$4 sm:$0xff] %v2374
      %2573 = vst [vmem:[%s2400] ss:$4 sm:$0xff] %v2375
      %2574 = vst [vmem:[%s2402] ss:$4 sm:$0xff] %v2376
      %2575 = vst [vmem:[%s2404] ss:$4 sm:$0xff] %v2220
      %v2576 = vld.sshfl [vmem:[#allocation1] sm:$0xff pattern:$0x73625140]
      %v2577 = vld.sshfl [vmem:[#allocation1 + $0x20] sm:$0xff pattern:$0x73625140]
      %2578 = vst [vmem:[#allocation1] ss:$4 sm:$0xff] %v2221
      %2579 = vst [vmem:[%s2392] ss:$4 sm:$0xff] %v2377
      %2580 = vst [vmem:[%s2394] ss:$4 sm:$0xff] %v2378
      %2581 = vst [vmem:[%s2396] ss:$4 sm:$0xff] %v2379
      %2582 = vst [vmem:[%s2398] ss:$4 sm:$0xff] %v2222
      %2583 = vst [vmem:[%s2400] ss:$4 sm:$0xff] %v2380
      %2584 = vst [vmem:[%s2402] ss:$4 sm:$0xff] %v2381
      %2585 = vst [vmem:[%s2404] ss:$4 sm:$0xff] %v2382
      %v2586 = vld.sshfl [vmem:[#allocation1] sm:$0xff pattern:$0x73625140]
      %v2587 = vld.sshfl [vmem:[#allocation1 + $0x20] sm:$0xff pattern:$0x73625140]
      %2588 = vst [vmem:[#allocation1] ss:$4 sm:$0xff] %v2223
      %2589 = vst [vmem:[%s2392] ss:$4 sm:$0xff] %v2224
      %2590 = vst [vmem:[%s2394] ss:$4 sm:$0xff] %v2383
      %2591 = vst [vmem:[%s2396] ss:$4 sm:$0xff] %v2384
      %2592 = vst [vmem:[%s2398] ss:$4 sm:$0xff] %v2385
      %2593 = vst [vmem:[%s2400] ss:$4 sm:$0xff] %v2225
      %2594 = vst [vmem:[%s2402] ss:$4 sm:$0xff] %v2386
      %2595 = vst [vmem:[%s2404] ss:$4 sm:$0xff] %v2387
      %v2596 = vld.sshfl [vmem:[#allocation1] sm:$0xff pattern:$0x73625140]
      %v2597 = vld.sshfl [vmem:[#allocation1 + $0x20] sm:$0xff pattern:$0x73625140]
      %2598 = vst [vmem:[#allocation1] ss:$4 sm:$0xff] %v2388
      %2599 = vst [vmem:[%s2392] ss:$4 sm:$0xff] %v2226
      %v2600 = vld.sshfl [vmem:[#allocation1] sm:$0xff pattern:$0x73625140]
      %v2601 = vsel %vm816, %v2406, 0
      %v2603 = vsel %vm816, %v2407, 0
      %v2605 = vsel %vm816, %v2416, 0
      %v2607 = vsel %vm816, %v2417, 0
      %v2609 = vsel %vm816, %v2426, 0
      %v2611 = vsel %vm816, %v2427, 0
      %v2613 = vsel %vm816, %v2436, 0
      %v2615 = vsel %vm816, %v2437, 0
      %v2617 = vsel %vm816, %v2446, 0
      %v2619 = vsel %vm816, %v2447, 0
      %v2621 = vsel %vm816, %v2456, 0
      %v2623 = vsel %vm816, %v2457, 0
      %v2625 = vsel %vm816, %v2466, 0
      %v2627 = vsel %vm816, %v2467, 0
      %v2629 = vsel %vm816, %v2476, 0
      %v2631 = vsel %vm816, %v2477, 0
      %v2633 = vsel %vm816, %v2486, 0
      %v2635 = vsel %vm816, %v2487, 0
      %v2637 = vsel %vm816, %v2496, 0
      %v2639 = vsel %vm816, %v2497, 0
      %v2641 = vsel %vm816, %v2506, 0
      %v2643 = vsel %vm816, %v2507, 0
      %v2645 = vsel %vm816, %v2516, 0
      %v2647 = vsel %vm816, %v2517, 0
      %v2649 = vsel %vm816, %v2526, 0
      %v2651 = vsel %vm816, %v2527, 0
      %v2653 = vsel %vm816, %v2536, 0
      %v2655 = vsel %vm816, %v2537, 0
      %v2657 = vsel %vm816, %v2546, 0
      %v2659 = vsel %vm816, %v2547, 0
      %v2661 = vsel %vm816, %v2556, 0
      %v2663 = vsel %vm816, %v2557, 0
      %v2665 = vsel %vm816, %v2566, 0
      %v2667 = vsel %vm816, %v2567, 0
      %v2669 = vsel %vm816, %v2576, 0
      %v2671 = vsel %vm816, %v2577, 0
      %v2673 = vsel %vm816, %v2586, 0
      %v2675 = vsel %vm816, %v2587, 0
      %v2677 = vsel %vm816, %v2596, 0
      %v2679 = vsel %vm816, %v2597, 0
      %v2681 = vsel %vm816, %v2600, 0
      %v2684 = vsel %vm899, %v2390, 0
      %2686 = vmatpush.msra.mxu0 0.0
      %2687 = vmatpush.msra.mxu0 0.0
      %2688 = vmatpush.msra.mxu0 0.0
      %2689 = vmatpush.msra.mxu0 0.0
      %2690 = vmatpush.msra.mxu0 0.0
      %2691 = vmatpush.msra.mxu0 0.0
      %2692 = vmatpush.msra.mxu0 0.0
      %2693 = vmatpush.msra.mxu0 0.0
      %2694 = vmatpush.msra.mxu0 0.0
      %2695 = vmatpush.msra.mxu0 0.0
      %2696 = vmatpush.msra.mxu0 0.0
      %2697 = vmatpush.msra.mxu0 0.0
      %2698 = vmatpush.msra.mxu0 0.0
      %2699 = vmatpush.msra.mxu0 0.0
      %2700 = vmatpush.msra.mxu0 0.0
      %2701 = vmatpush.msra.mxu0 %v2684
      %2702 = vmatmul.f32.gmra.mxu0 %v2601
      %v2703 = vpop.f32.mrf.mxu0
      %v2704 = vadd.f32 0.0, %v2703
      %2705 = vmatmul.f32.gmra.mxu0 %v2603
      %v2706 = vpop.f32.mrf.mxu0
      %v2707 = vadd.f32 0.0, %v2706
      %2708 = vmatmul.f32.gmra.mxu0 %v2605
      %v2709 = vpop.f32.mrf.mxu0
      %v2710 = vadd.f32 0.0, %v2709
      %2711 = vmatmul.f32.gmra.mxu0 %v2607
      %v2712 = vpop.f32.mrf.mxu0
      %v2713 = vadd.f32 0.0, %v2712
      %2714 = vmatmul.f32.gmra.mxu0 %v2609
      %v2715 = vpop.f32.mrf.mxu0
      %v2716 = vadd.f32 0.0, %v2715
      %2717 = vmatmul.f32.gmra.mxu0 %v2611
      %v2718 = vpop.f32.mrf.mxu0
      %v2719 = vadd.f32 0.0, %v2718
      %2720 = vmatmul.f32.gmra.mxu0 %v2613
      %v2721 = vpop.f32.mrf.mxu0
      %v2722 = vadd.f32 0.0, %v2721
      %2723 = vmatmul.f32.gmra.mxu0 %v2615
      %v2724 = vpop.f32.mrf.mxu0
      %v2725 = vadd.f32 0.0, %v2724
      %2726 = vmatmul.f32.gmra.mxu0 %v2617
      %v2727 = vpop.f32.mrf.mxu0
      %v2728 = vadd.f32 0.0, %v2727
      %2729 = vmatmul.f32.gmra.mxu0 %v2619
      %v2730 = vpop.f32.mrf.mxu0
      %v2731 = vadd.f32 0.0, %v2730
      %2732 = vmatmul.f32.gmra.mxu0 %v2621
      %v2733 = vpop.f32.mrf.mxu0
      %v2734 = vadd.f32 0.0, %v2733
      %2735 = vmatmul.f32.gmra.mxu0 %v2623
      %v2736 = vpop.f32.mrf.mxu0
      %v2737 = vadd.f32 0.0, %v2736
      %2738 = vmatmul.f32.gmra.mxu0 %v2625
      %v2739 = vpop.f32.mrf.mxu0
      %v2740 = vadd.f32 0.0, %v2739
      %2741 = vmatmul.f32.gmra.mxu0 %v2627
      %v2742 = vpop.f32.mrf.mxu0
      %v2743 = vadd.f32 0.0, %v2742
      %2744 = vmatmul.f32.gmra.mxu0 %v2629
      %v2745 = vpop.f32.mrf.mxu0
      %v2746 = vadd.f32 0.0, %v2745
      %2747 = vmatmul.f32.gmra.mxu0 %v2631
      %v2748 = vpop.f32.mrf.mxu0
      %v2749 = vadd.f32 0.0, %v2748
      %2750 = vmatmul.f32.gmra.mxu0 %v2633
      %v2751 = vpop.f32.mrf.mxu0
      %v2752 = vadd.f32 0.0, %v2751
      %2753 = vmatmul.f32.gmra.mxu0 %v2635
      %v2754 = vpop.f32.mrf.mxu0
      %v2755 = vadd.f32 0.0, %v2754
      %2756 = vmatmul.f32.gmra.mxu0 %v2637
      %v2757 = vpop.f32.mrf.mxu0
      %v2758 = vadd.f32 0.0, %v2757
      %2759 = vmatmul.f32.gmra.mxu0 %v2639
      %v2760 = vpop.f32.mrf.mxu0
      %v2761 = vadd.f32 0.0, %v2760
      %2762 = vmatmul.f32.gmra.mxu0 %v2641
      %v2763 = vpop.f32.mrf.mxu0
      %v2764 = vadd.f32 0.0, %v2763
      %2765 = vmatmul.f32.gmra.mxu0 %v2643
      %v2766 = vpop.f32.mrf.mxu0
      %v2767 = vadd.f32 0.0, %v2766
      %2768 = vmatmul.f32.gmra.mxu0 %v2645
      %v2769 = vpop.f32.mrf.mxu0
      %v2770 = vadd.f32 0.0, %v2769
      %2771 = vmatmul.f32.gmra.mxu0 %v2647
      %v2772 = vpop.f32.mrf.mxu0
      %v2773 = vadd.f32 0.0, %v2772
      %2774 = vmatmul.f32.gmra.mxu0 %v2649
      %v2775 = vpop.f32.mrf.mxu0
      %v2776 = vadd.f32 0.0, %v2775
      %2777 = vmatmul.f32.gmra.mxu0 %v2651
      %v2778 = vpop.f32.mrf.mxu0
      %v2779 = vadd.f32 0.0, %v2778
      %2780 = vmatmul.f32.gmra.mxu0 %v2653
      %v2781 = vpop.f32.mrf.mxu0
      %v2782 = vadd.f32 0.0, %v2781
      %2783 = vmatmul.f32.gmra.mxu0 %v2655
      %v2784 = vpop.f32.mrf.mxu0
      %v2785 = vadd.f32 0.0, %v2784
      %2786 = vmatmul.f32.gmra.mxu0 %v2657
      %v2787 = vpop.f32.mrf.mxu0
      %v2788 = vadd.f32 0.0, %v2787
      %2789 = vmatmul.f32.gmra.mxu0 %v2659
      %v2790 = vpop.f32.mrf.mxu0
      %v2791 = vadd.f32 0.0, %v2790
      %2792 = vmatmul.f32.gmra.mxu0 %v2661
      %v2793 = vpop.f32.mrf.mxu0
      %v2794 = vadd.f32 0.0, %v2793
      %2795 = vmatmul.f32.gmra.mxu0 %v2663
      %v2796 = vpop.f32.mrf.mxu0
      %v2797 = vadd.f32 0.0, %v2796
      %2798 = vmatmul.f32.gmra.mxu0 %v2665
      %v2799 = vpop.f32.mrf.mxu0
      %v2800 = vadd.f32 0.0, %v2799
      %2801 = vmatmul.f32.gmra.mxu0 %v2667
      %v2802 = vpop.f32.mrf.mxu0
      %v2803 = vadd.f32 0.0, %v2802
      %2804 = vmatmul.f32.gmra.mxu0 %v2669
      %v2805 = vpop.f32.mrf.mxu0
      %v2806 = vadd.f32 0.0, %v2805
      %2807 = vmatmul.f32.gmra.mxu0 %v2671
      %v2808 = vpop.f32.mrf.mxu0
      %v2809 = vadd.f32 0.0, %v2808
      %2810 = vmatmul.f32.gmra.mxu0 %v2673
      %v2811 = vpop.f32.mrf.mxu0
      %v2812 = vadd.f32 0.0, %v2811
      %2813 = vmatmul.f32.gmra.mxu0 %v2675
      %v2814 = vpop.f32.mrf.mxu0
      %v2815 = vadd.f32 0.0, %v2814
      %2816 = vmatmul.f32.gmra.mxu0 %v2677
      %v2817 = vpop.f32.mrf.mxu0
      %v2818 = vadd.f32 0.0, %v2817
      %2819 = vmatmul.f32.gmra.mxu0 %v2679
      %v2820 = vpop.f32.mrf.mxu0
      %v2821 = vadd.f32 0.0, %v2820
      %2822 = vmatmul.f32.gmra.mxu0 %v2681
      %v2823 = vpop.f32.mrf.mxu0
      %v2824 = vadd.f32 0.0, %v2823
      %2825 = vdwg.mxu0
      %v2826 = vadd.f32 %v2131, %v2704
      %v2827 = vadd.f32 %v2132, %v2707
      %v2828 = vadd.f32 %v2133, %v2710
      %v2829 = vadd.f32 %v2134, %v2713
      %v2830 = vadd.f32 %v2135, %v2716
      %v2831 = vadd.f32 %v2136, %v2719
      %v2832 = vadd.f32 %v2137, %v2722
      %v2833 = vadd.f32 %v2138, %v2725
      %v2834 = vadd.f32 %v2139, %v2728
      %v2835 = vadd.f32 %v2140, %v2731
      %v2836 = vadd.f32 %v2141, %v2734
      %v2837 = vadd.f32 %v2142, %v2737
      %v2838 = vadd.f32 %v2143, %v2740
      %v2839 = vadd.f32 %v2144, %v2743
      %v2840 = vadd.f32 %v2145, %v2746
      %v2841 = vadd.f32 %v2146, %v2749
      %v2842 = vadd.f32 %v2147, %v2752
      %v2843 = vadd.f32 %v2148, %v2755
      %v2844 = vadd.f32 %v2149, %v2758
      %v2845 = vadd.f32 %v2150, %v2761
      %v2846 = vadd.f32 %v2151, %v2764
      %v2847 = vadd.f32 %v2152, %v2767
      %v2848 = vadd.f32 %v2153, %v2770
      %v2849 = vadd.f32 %v2154, %v2773
      %v2850 = vadd.f32 %v2155, %v2776
      %v2851 = vadd.f32 %v2156, %v2779
      %v2852 = vadd.f32 %v2157, %v2782
      %v2853 = vadd.f32 %v2158, %v2785
      %v2854 = vadd.f32 %v2159, %v2788
      %v2855 = vadd.f32 %v2160, %v2791
      %v2856 = vadd.f32 %v2161, %v2794
      %v2857 = vadd.f32 %v2162, %v2797
      %v2858 = vadd.f32 %v2163, %v2800
      %v2859 = vadd.f32 %v2164, %v2803
      %v2860 = vadd.f32 %v2165, %v2806
      %v2861 = vadd.f32 %v2166, %v2809
      %v2862 = vadd.f32 %v2167, %v2812
      %v2863 = vadd.f32 %v2168, %v2815
      %v2864 = vadd.f32 %v2169, %v2818
      %v2865 = vadd.f32 %v2170, %v2821
      %v2866 = vadd.f32 %v2171, %v2824
      %v2867 = vld [vmem:[%s2172 + $0x1] sm:$0xff]
      %v2868 = vld [vmem:[%s2172 + $0x9] sm:$0xff]
      %v2869 = vld [vmem:[%s2172 + $0x11] sm:$0x3]
      %v2870 = vld [vmem:[%s2172 + $0x19] sm:$0xff]
      %v2871 = vld [vmem:[%s2172 + $0x21] sm:$0xff]
      %v2872 = vld [vmem:[%s2172 + $0x29] sm:$0x3]
      %v2873 = vld [vmem:[%s2172 + $0x31] sm:$0xff]
      %v2874 = vld [vmem:[%s2172 + $0x39] sm:$0xff]
      %v2875 = vld [vmem:[%s2172 + $0x41] sm:$0x3]
      %v2876 = vld [vmem:[%s2172 + $0x49] sm:$0xff]
      %v2877 = vld [vmem:[%s2172 + $0x51] sm:$0xff]
      %v2878 = vld [vmem:[%s2172 + $0x59] sm:$0x3]
      %v2879 = vld [vmem:[%s2172 + $0x61] sm:$0xff]
      %v2880 = vld [vmem:[%s2172 + $0x69] sm:$0xff]
      %v2881 = vld [vmem:[%s2172 + $0x71] sm:$0x3]
      %v2882 = vld [vmem:[%s2172 + $0x79] sm:$0xff]
      %v2883 = vld [vmem:[%s2172 + $0x81] sm:$0xff]
      %v2884 = vld [vmem:[%s2172 + $0x89] sm:$0x3]
      %v2885 = vld [vmem:[%s2172 + $0x91] sm:$0xff]
      %v2886 = vld [vmem:[%s2172 + $0x99] sm:$0xff]
      %v2887 = vld [vmem:[%s2172 + $0xa1] sm:$0x3]
      %v2888 = vld [vmem:[%s2172 + $0xa9] sm:$0xff]
      %v2889 = vld [vmem:[%s2172 + $0xb1] sm:$0xff]
      %v2890 = vld [vmem:[%s2172 + $0xb9] sm:$0x3]
      %v2891 = vld [vmem:[%s2172 + $0xc1] sm:$0xff]
      %v2892 = vld [vmem:[%s2172 + $0xc9] sm:$0xff]
      %v2893 = vld [vmem:[%s2172 + $0xd1] sm:$0x3]
      %v2894 = vld [vmem:[%s2172 + $0xd9] sm:$0xff]
      %v2895 = vld [vmem:[%s2172 + $0xe1] sm:$0xff]
      %v2896 = vld [vmem:[%s2172 + $0xe9] sm:$0x3]
      %v2897 = vld [vmem:[%s2172 + $0xf1] sm:$0xff]
      %v2898 = vld [vmem:[%s2172 + $0xf9] sm:$0xff]
      %v2899 = vld [vmem:[%s2172 + $0x101] sm:$0x3]
      %v2900 = vld [vmem:[%s2172 + $0x109] sm:$0xff]
      %v2901 = vld [vmem:[%s2172 + $0x111] sm:$0xff]
      %v2902 = vld [vmem:[%s2172 + $0x119] sm:$0x3]
      %v2903 = vld [vmem:[%s2172 + $0x121] sm:$0xff]
      %v2904 = vld [vmem:[%s2172 + $0x129] sm:$0xff]
      %v2905 = vld [vmem:[%s2172 + $0x131] sm:$0x3]
      %v2906 = vld [vmem:[%s2172 + $0x139] sm:$0xff]
      %v2907 = vld [vmem:[%s2172 + $0x141] sm:$0xff]
      %v2908 = vld [vmem:[%s2172 + $0x149] sm:$0x3]
      %v2909 = vld [vmem:[%s2172 + $0x151] sm:$0xff]
      %v2910 = vld [vmem:[%s2172 + $0x159] sm:$0xff]
      %v2911 = vld [vmem:[%s2172 + $0x161] sm:$0x3]
      %v2912 = vld [vmem:[%s2172 + $0x169] sm:$0xff]
      %v2913 = vld [vmem:[%s2172 + $0x171] sm:$0xff]
      %v2914 = vld [vmem:[%s2172 + $0x179] sm:$0x3]
      %v2915 = vld [vmem:[%s2172 + $0x181] sm:$0xff]
      %v2916 = vld [vmem:[%s2172 + $0x189] sm:$0xff]
      %v2917 = vld [vmem:[%s2172 + $0x191] sm:$0x3]
      %v2918 = vld [vmem:[%s2172 + $0x199] sm:$0xff]
      %v2919 = vld [vmem:[%s2172 + $0x1a1] sm:$0xff]
      %v2920 = vld [vmem:[%s2172 + $0x1a9] sm:$0x3]
      %v2975 = vrot.slane %v2867, 2
      %v2976 = vrot.slane %v2867, 4
      %v2977 = vrot.slane %v2867, 6
      %v2978 = vrot.slane %v2868, 2
      %v2979 = vrot.slane %v2868, 4
      %v2980 = vrot.slane %v2868, 6
      %v2981 = vrot.slane %v2870, 2
      %v2982 = vrot.slane %v2870, 4
      %v2983 = vrot.slane %v2870, 6
      %v2984 = vrot.slane %v2871, 2
      %v2985 = vrot.slane %v2871, 4
      %v2986 = vrot.slane %v2871, 6
      %v2987 = vrot.slane %v2873, 2
      %v2988 = vrot.slane %v2873, 4
      %v2989 = vrot.slane %v2873, 6
      %v2990 = vrot.slane %v2874, 2
      %v2991 = vrot.slane %v2874, 4
      %v2992 = vrot.slane %v2874, 6
      %v2993 = vrot.slane %v2876, 2
      %v2994 = vrot.slane %v2876, 4
      %v2995 = vrot.slane %v2876, 6
      %v2996 = vrot.slane %v2877, 2
      %v2997 = vrot.slane %v2877, 4
      %v2998 = vrot.slane %v2877, 6
      %v2999 = vrot.slane %v2879, 2
      %v3000 = vrot.slane %v2879, 4
      %v3001 = vrot.slane %v2879, 6
      %v3002 = vrot.slane %v2880, 2
      %v3003 = vrot.slane %v2880, 4
      %v3004 = vrot.slane %v2880, 6
      %v3005 = vrot.slane %v2882, 2
      %v3006 = vrot.slane %v2882, 4
      %v3007 = vrot.slane %v2882, 6
      %v3008 = vrot.slane %v2883, 2
      %v3009 = vrot.slane %v2883, 4
      %v3010 = vrot.slane %v2883, 6
      %v3011 = vrot.slane %v2885, 2
      %v3012 = vrot.slane %v2885, 4
      %v3013 = vrot.slane %v2885, 6
      %v3014 = vrot.slane %v2886, 2
      %v3015 = vrot.slane %v2886, 4
      %v3016 = vrot.slane %v2886, 6
      %v3017 = vrot.slane %v2888, 2
      %v3018 = vrot.slane %v2888, 4
      %v3019 = vrot.slane %v2888, 6
      %v3020 = vrot.slane %v2889, 2
      %v3021 = vrot.slane %v2889, 4
      %v3022 = vrot.slane %v2889, 6
      %v3023 = vrot.slane %v2891, 2
      %v3024 = vrot.slane %v2891, 4
      %v3025 = vrot.slane %v2891, 6
      %v3026 = vrot.slane %v2892, 2
      %v3027 = vrot.slane %v2892, 4
      %v3028 = vrot.slane %v2892, 6
      %v3029 = vrot.slane %v2894, 2
      %v3030 = vrot.slane %v2894, 4
      %v3031 = vrot.slane %v2894, 6
      %v3032 = vrot.slane %v2895, 2
      %v3033 = vrot.slane %v2895, 4
      %v3034 = vrot.slane %v2895, 6
      %v3035 = vrot.slane %v2897, 2
      %v3036 = vrot.slane %v2897, 4
      %v3037 = vrot.slane %v2897, 6
      %v3038 = vrot.slane %v2898, 2
      %v3039 = vrot.slane %v2898, 4
      %v3040 = vrot.slane %v2898, 6
      %v3041 = vrot.slane %v2900, 2
      %v3042 = vrot.slane %v2900, 4
      %v3043 = vrot.slane %v2900, 6
      %v3044 = vrot.slane %v2901, 2
      %v3045 = vrot.slane %v2901, 4
      %v3046 = vrot.slane %v2901, 6
      %v3047 = vrot.slane %v2903, 2
      %v3048 = vrot.slane %v2903, 4
      %v3049 = vrot.slane %v2903, 6
      %v3050 = vrot.slane %v2904, 2
      %v3051 = vrot.slane %v2904, 4
      %v3052 = vrot.slane %v2904, 6
      %v3053 = vrot.slane %v2906, 2
      %v3054 = vrot.slane %v2906, 4
      %v3055 = vrot.slane %v2906, 6
      %v3056 = vrot.slane %v2907, 2
      %v3057 = vrot.slane %v2907, 4
      %v3058 = vrot.slane %v2907, 6
      %v3059 = vrot.slane %v2909, 2
      %v3060 = vrot.slane %v2909, 4
      %v3061 = vrot.slane %v2909, 6
      %v3062 = vrot.slane %v2910, 2
      %v3063 = vrot.slane %v2910, 4
      %v3064 = vrot.slane %v2910, 6
      %v3065 = vrot.slane %v2912, 2
      %v3066 = vrot.slane %v2912, 4
      %v3067 = vrot.slane %v2912, 6
      %v3068 = vrot.slane %v2913, 2
      %v3069 = vrot.slane %v2913, 4
      %v3070 = vrot.slane %v2913, 6
      %v3071 = vrot.slane %v2915, 2
      %v3072 = vrot.slane %v2915, 4
      %v3073 = vrot.slane %v2915, 6
      %v3074 = vrot.slane %v2916, 2
      %v3075 = vrot.slane %v2916, 4
      %v3076 = vrot.slane %v2916, 6
      %v3077 = vrot.slane %v2918, 2
      %v3078 = vrot.slane %v2918, 4
      %v3079 = vrot.slane %v2918, 6
      %v3080 = vrot.slane %v2919, 2
      %v3081 = vrot.slane %v2919, 4
      %v3082 = vrot.slane %v2919, 6
      %s3083 = scalar_lea.vmem %s1, 16
      %v3084 = vld [vmem:[%s3083] sm:$0x7]
      %3085 = vst [vmem:[#allocation1] ss:$4 sm:$0xff] %v2867
      %s3086 = scalar_lea.vmem [#allocation1], 1
      %3087 = vst [vmem:[%s3086] ss:$4 sm:$0xff] %v2975
      %s3088 = scalar_lea.vmem [#allocation1], 2
      %3089 = vst [vmem:[%s3088] ss:$4 sm:$0xff] %v2976
      %s3090 = scalar_lea.vmem [#allocation1], 3
      %3091 = vst [vmem:[%s3090] ss:$4 sm:$0xff] %v2977
      %s3092 = scalar_lea.vmem [#allocation1], 32
      %3093 = vst [vmem:[%s3092] ss:$4 sm:$0xff] %v2868
      %s3094 = scalar_lea.vmem [#allocation1], 33
      %3095 = vst [vmem:[%s3094] ss:$4 sm:$0xff] %v2978
      %s3096 = scalar_lea.vmem [#allocation1], 34
      %3097 = vst [vmem:[%s3096] ss:$4 sm:$0xff] %v2979
      %s3098 = scalar_lea.vmem [#allocation1], 35
      %3099 = vst [vmem:[%s3098] ss:$4 sm:$0xff] %v2980
      %v3100 = vld.sshfl [vmem:[#allocation1] sm:$0xff pattern:$0x73625140]
      %v3101 = vld.sshfl [vmem:[#allocation1 + $0x20] sm:$0xff pattern:$0x73625140]
      %3102 = vst [vmem:[#allocation1] ss:$4 sm:$0xff] %v2869
      %3103 = vst [vmem:[%s3086] ss:$4 sm:$0xff] %v2870
      %3104 = vst [vmem:[%s3088] ss:$4 sm:$0xff] %v2981
      %3105 = vst [vmem:[%s3090] ss:$4 sm:$0xff] %v2982
      %3106 = vst [vmem:[%s3092] ss:$4 sm:$0xff] %v2983
      %3107 = vst [vmem:[%s3094] ss:$4 sm:$0xff] %v2871
      %3108 = vst [vmem:[%s3096] ss:$4 sm:$0xff] %v2984
      %3109 = vst [vmem:[%s3098] ss:$4 sm:$0xff] %v2985
      %v3110 = vld.sshfl [vmem:[#allocation1] sm:$0xff pattern:$0x73625140]
      %v3111 = vld.sshfl [vmem:[#allocation1 + $0x20] sm:$0xff pattern:$0x73625140]
      %3112 = vst [vmem:[#allocation1] ss:$4 sm:$0xff] %v2986
      %3113 = vst [vmem:[%s3086] ss:$4 sm:$0xff] %v2872
      %3114 = vst [vmem:[%s3088] ss:$4 sm:$0xff] %v2873
      %3115 = vst [vmem:[%s3090] ss:$4 sm:$0xff] %v2987
      %3116 = vst [vmem:[%s3092] ss:$4 sm:$0xff] %v2988
      %3117 = vst [vmem:[%s3094] ss:$4 sm:$0xff] %v2989
      %3118 = vst [vmem:[%s3096] ss:$4 sm:$0xff] %v2874
      %3119 = vst [vmem:[%s3098] ss:$4 sm:$0xff] %v2990
      %v3120 = vld.sshfl [vmem:[#allocation1] sm:$0xff pattern:$0x73625140]
      %v3121 = vld.sshfl [vmem:[#allocation1 + $0x20] sm:$0xff pattern:$0x73625140]
      %3122 = vst [vmem:[#allocation1] ss:$4 sm:$0xff] %v2991
      %3123 = vst [vmem:[%s3086] ss:$4 sm:$0xff] %v2992
      %3124 = vst [vmem:[%s3088] ss:$4 sm:$0xff] %v2875
      %3125 = vst [vmem:[%s3090] ss:$4 sm:$0xff] %v2876
      %3126 = vst [vmem:[%s3092] ss:$4 sm:$0xff] %v2993
      %3127 = vst [vmem:[%s3094] ss:$4 sm:$0xff] %v2994
      %3128 = vst [vmem:[%s3096] ss:$4 sm:$0xff] %v2995
      %3129 = vst [vmem:[%s3098] ss:$4 sm:$0xff] %v2877
      %v3130 = vld.sshfl [vmem:[#allocation1] sm:$0xff pattern:$0x73625140]
      %v3131 = vld.sshfl [vmem:[#allocation1 + $0x20] sm:$0xff pattern:$0x73625140]
      %3132 = vst [vmem:[#allocation1] ss:$4 sm:$0xff] %v2996
      %3133 = vst [vmem:[%s3086] ss:$4 sm:$0xff] %v2997
      %3134 = vst [vmem:[%s3088] ss:$4 sm:$0xff] %v2998
      %3135 = vst [vmem:[%s3090] ss:$4 sm:$0xff] %v2878
      %3136 = vst [vmem:[%s3092] ss:$4 sm:$0xff] %v2879
      %3137 = vst [vmem:[%s3094] ss:$4 sm:$0xff] %v2999
      %3138 = vst [vmem:[%s3096] ss:$4 sm:$0xff] %v3000
      %3139 = vst [vmem:[%s3098] ss:$4 sm:$0xff] %v3001
      %v3140 = vld.sshfl [vmem:[#allocation1] sm:$0xff pattern:$0x73625140]
      %v3141 = vld.sshfl [vmem:[#allocation1 + $0x20] sm:$0xff pattern:$0x73625140]
      %3142 = vst [vmem:[#allocation1] ss:$4 sm:$0xff] %v2880
      %3143 = vst [vmem:[%s3086] ss:$4 sm:$0xff] %v3002
      %3144 = vst [vmem:[%s3088] ss:$4 sm:$0xff] %v3003
      %3145 = vst [vmem:[%s3090] ss:$4 sm:$0xff] %v3004
      %3146 = vst [vmem:[%s3092] ss:$4 sm:$0xff] %v2881
      %3147 = vst [vmem:[%s3094] ss:$4 sm:$0xff] %v2882
      %3148 = vst [vmem:[%s3096] ss:$4 sm:$0xff] %v3005
      %3149 = vst [vmem:[%s3098] ss:$4 sm:$0xff] %v3006
      %v3150 = vld.sshfl [vmem:[#allocation1] sm:$0xff pattern:$0x73625140]
      %v3151 = vld.sshfl [vmem:[#allocation1 + $0x20] sm:$0xff pattern:$0x73625140]
      %3152 = vst [vmem:[#allocation1] ss:$4 sm:$0xff] %v3007
      %3153 = vst [vmem:[%s3086] ss:$4 sm:$0xff] %v2883
      %3154 = vst [vmem:[%s3088] ss:$4 sm:$0xff] %v3008
      %3155 = vst [vmem:[%s3090] ss:$4 sm:$0xff] %v3009
      %3156 = vst [vmem:[%s3092] ss:$4 sm:$0xff] %v3010
      %3157 = vst [vmem:[%s3094] ss:$4 sm:$0xff] %v2884
      %3158 = vst [vmem:[%s3096] ss:$4 sm:$0xff] %v2885
      %3159 = vst [vmem:[%s3098] ss:$4 sm:$0xff] %v3011
      %v3160 = vld.sshfl [vmem:[#allocation1] sm:$0xff pattern:$0x73625140]
      %v3161 = vld.sshfl [vmem:[#allocation1 + $0x20] sm:$0xff pattern:$0x73625140]
      %3162 = vst [vmem:[#allocation1] ss:$4 sm:$0xff] %v3012
      %3163 = vst [vmem:[%s3086] ss:$4 sm:$0xff] %v3013
      %3164 = vst [vmem:[%s3088] ss:$4 sm:$0xff] %v2886
      %3165 = vst [vmem:[%s3090] ss:$4 sm:$0xff] %v3014
      %3166 = vst [vmem:[%s3092] ss:$4 sm:$0xff] %v3015
      %3167 = vst [vmem:[%s3094] ss:$4 sm:$0xff] %v3016
      %3168 = vst [vmem:[%s3096] ss:$4 sm:$0xff] %v2887
      %3169 = vst [vmem:[%s3098] ss:$4 sm:$0xff] %v2888
      %v3170 = vld.sshfl [vmem:[#allocation1] sm:$0xff pattern:$0x73625140]
      %v3171 = vld.sshfl [vmem:[#allocation1 + $0x20] sm:$0xff pattern:$0x73625140]
      %3172 = vst [vmem:[#allocation1] ss:$4 sm:$0xff] %v3017
      %3173 = vst [vmem:[%s3086] ss:$4 sm:$0xff] %v3018
      %3174 = vst [vmem:[%s3088] ss:$4 sm:$0xff] %v3019
      %3175 = vst [vmem:[%s3090] ss:$4 sm:$0xff] %v2889
      %3176 = vst [vmem:[%s3092] ss:$4 sm:$0xff] %v3020
      %3177 = vst [vmem:[%s3094] ss:$4 sm:$0xff] %v3021
      %3178 = vst [vmem:[%s3096] ss:$4 sm:$0xff] %v3022
      %3179 = vst [vmem:[%s3098] ss:$4 sm:$0xff] %v2890
      %v3180 = vld.sshfl [vmem:[#allocation1] sm:$0xff pattern:$0x73625140]
      %v3181 = vld.sshfl [vmem:[#allocation1 + $0x20] sm:$0xff pattern:$0x73625140]
      %3182 = vst [vmem:[#allocation1] ss:$4 sm:$0xff] %v2891
      %3183 = vst [vmem:[%s3086] ss:$4 sm:$0xff] %v3023
      %3184 = vst [vmem:[%s3088] ss:$4 sm:$0xff] %v3024
      %3185 = vst [vmem:[%s3090] ss:$4 sm:$0xff] %v3025
      %3186 = vst [vmem:[%s3092] ss:$4 sm:$0xff] %v2892
      %3187 = vst [vmem:[%s3094] ss:$4 sm:$0xff] %v3026
      %3188 = vst [vmem:[%s3096] ss:$4 sm:$0xff] %v3027
      %3189 = vst [vmem:[%s3098] ss:$4 sm:$0xff] %v3028
      %v3190 = vld.sshfl [vmem:[#allocation1] sm:$0xff pattern:$0x73625140]
      %v3191 = vld.sshfl [vmem:[#allocation1 + $0x20] sm:$0xff pattern:$0x73625140]
      %3192 = vst [vmem:[#allocation1] ss:$4 sm:$0xff] %v2893
      %3193 = vst [vmem:[%s3086] ss:$4 sm:$0xff] %v2894
      %3194 = vst [vmem:[%s3088] ss:$4 sm:$0xff] %v3029
      %3195 = vst [vmem:[%s3090] ss:$4 sm:$0xff] %v3030
      %3196 = vst [vmem:[%s3092] ss:$4 sm:$0xff] %v3031
      %3197 = vst [vmem:[%s3094] ss:$4 sm:$0xff] %v2895
      %3198 = vst [vmem:[%s3096] ss:$4 sm:$0xff] %v3032
      %3199 = vst [vmem:[%s3098] ss:$4 sm:$0xff] %v3033
      %v3200 = vld.sshfl [vmem:[#allocation1] sm:$0xff pattern:$0x73625140]
      %v3201 = vld.sshfl [vmem:[#allocation1 + $0x20] sm:$0xff pattern:$0x73625140]
      %3202 = vst [vmem:[#allocation1] ss:$4 sm:$0xff] %v3034
      %3203 = vst [vmem:[%s3086] ss:$4 sm:$0xff] %v2896
      %3204 = vst [vmem:[%s3088] ss:$4 sm:$0xff] %v2897
      %3205 = vst [vmem:[%s3090] ss:$4 sm:$0xff] %v3035
      %3206 = vst [vmem:[%s3092] ss:$4 sm:$0xff] %v3036
      %3207 = vst [vmem:[%s3094] ss:$4 sm:$0xff] %v3037
      %3208 = vst [vmem:[%s3096] ss:$4 sm:$0xff] %v2898
      %3209 = vst [vmem:[%s3098] ss:$4 sm:$0xff] %v3038
      %v3210 = vld.sshfl [vmem:[#allocation1] sm:$0xff pattern:$0x73625140]
      %v3211 = vld.sshfl [vmem:[#allocation1 + $0x20] sm:$0xff pattern:$0x73625140]
      %3212 = vst [vmem:[#allocation1] ss:$4 sm:$0xff] %v3039
      %3213 = vst [vmem:[%s3086] ss:$4 sm:$0xff] %v3040
      %3214 = vst [vmem:[%s3088] ss:$4 sm:$0xff] %v2899
      %3215 = vst [vmem:[%s3090] ss:$4 sm:$0xff] %v2900
      %3216 = vst [vmem:[%s3092] ss:$4 sm:$0xff] %v3041
      %3217 = vst [vmem:[%s3094] ss:$4 sm:$0xff] %v3042
      %3218 = vst [vmem:[%s3096] ss:$4 sm:$0xff] %v3043
      %3219 = vst [vmem:[%s3098] ss:$4 sm:$0xff] %v2901
      %v3220 = vld.sshfl [vmem:[#allocation1] sm:$0xff pattern:$0x73625140]
      %v3221 = vld.sshfl [vmem:[#allocation1 + $0x20] sm:$0xff pattern:$0x73625140]
      %3222 = vst [vmem:[#allocation1] ss:$4 sm:$0xff] %v3044
      %3223 = vst [vmem:[%s3086] ss:$4 sm:$0xff] %v3045
      %3224 = vst [vmem:[%s3088] ss:$4 sm:$0xff] %v3046
      %3225 = vst [vmem:[%s3090] ss:$4 sm:$0xff] %v2902
      %3226 = vst [vmem:[%s3092] ss:$4 sm:$0xff] %v2903
      %3227 = vst [vmem:[%s3094] ss:$4 sm:$0xff] %v3047
      %3228 = vst [vmem:[%s3096] ss:$4 sm:$0xff] %v3048
      %3229 = vst [vmem:[%s3098] ss:$4 sm:$0xff] %v3049
      %v3230 = vld.sshfl [vmem:[#allocation1] sm:$0xff pattern:$0x73625140]
      %v3231 = vld.sshfl [vmem:[#allocation1 + $0x20] sm:$0xff pattern:$0x73625140]
      %3232 = vst [vmem:[#allocation1] ss:$4 sm:$0xff] %v2904
      %3233 = vst [vmem:[%s3086] ss:$4 sm:$0xff] %v3050
      %3234 = vst [vmem:[%s3088] ss:$4 sm:$0xff] %v3051
      %3235 = vst [vmem:[%s3090] ss:$4 sm:$0xff] %v3052
      %3236 = vst [vmem:[%s3092] ss:$4 sm:$0xff] %v2905
      %3237 = vst [vmem:[%s3094] ss:$4 sm:$0xff] %v2906
      %3238 = vst [vmem:[%s3096] ss:$4 sm:$0xff] %v3053
      %3239 = vst [vmem:[%s3098] ss:$4 sm:$0xff] %v3054
      %v3240 = vld.sshfl [vmem:[#allocation1] sm:$0xff pattern:$0x73625140]
      %v3241 = vld.sshfl [vmem:[#allocation1 + $0x20] sm:$0xff pattern:$0x73625140]
      %3242 = vst [vmem:[#allocation1] ss:$4 sm:$0xff] %v3055
      %3243 = vst [vmem:[%s3086] ss:$4 sm:$0xff] %v2907
      %3244 = vst [vmem:[%s3088] ss:$4 sm:$0xff] %v3056
      %3245 = vst [vmem:[%s3090] ss:$4 sm:$0xff] %v3057
      %3246 = vst [vmem:[%s3092] ss:$4 sm:$0xff] %v3058
      %3247 = vst [vmem:[%s3094] ss:$4 sm:$0xff] %v2908
      %3248 = vst [vmem:[%s3096] ss:$4 sm:$0xff] %v2909
      %3249 = vst [vmem:[%s3098] ss:$4 sm:$0xff] %v3059
      %v3250 = vld.sshfl [vmem:[#allocation1] sm:$0xff pattern:$0x73625140]
      %v3251 = vld.sshfl [vmem:[#allocation1 + $0x20] sm:$0xff pattern:$0x73625140]
      %3252 = vst [vmem:[#allocation1] ss:$4 sm:$0xff] %v3060
      %3253 = vst [vmem:[%s3086] ss:$4 sm:$0xff] %v3061
      %3254 = vst [vmem:[%s3088] ss:$4 sm:$0xff] %v2910
      %3255 = vst [vmem:[%s3090] ss:$4 sm:$0xff] %v3062
      %3256 = vst [vmem:[%s3092] ss:$4 sm:$0xff] %v3063
      %3257 = vst [vmem:[%s3094] ss:$4 sm:$0xff] %v3064
      %3258 = vst [vmem:[%s3096] ss:$4 sm:$0xff] %v2911
      %3259 = vst [vmem:[%s3098] ss:$4 sm:$0xff] %v2912
      %v3260 = vld.sshfl [vmem:[#allocation1] sm:$0xff pattern:$0x73625140]
      %v3261 = vld.sshfl [vmem:[#allocation1 + $0x20] sm:$0xff pattern:$0x73625140]
      %3262 = vst [vmem:[#allocation1] ss:$4 sm:$0xff] %v3065
      %3263 = vst [vmem:[%s3086] ss:$4 sm:$0xff] %v3066
      %3264 = vst [vmem:[%s3088] ss:$4 sm:$0xff] %v3067
      %3265 = vst [vmem:[%s3090] ss:$4 sm:$0xff] %v2913
      %3266 = vst [vmem:[%s3092] ss:$4 sm:$0xff] %v3068
      %3267 = vst [vmem:[%s3094] ss:$4 sm:$0xff] %v3069
      %3268 = vst [vmem:[%s3096] ss:$4 sm:$0xff] %v3070
      %3269 = vst [vmem:[%s3098] ss:$4 sm:$0xff] %v2914
      %v3270 = vld.sshfl [vmem:[#allocation1] sm:$0xff pattern:$0x73625140]
      %v3271 = vld.sshfl [vmem:[#allocation1 + $0x20] sm:$0xff pattern:$0x73625140]
      %3272 = vst [vmem:[#allocation1] ss:$4 sm:$0xff] %v2915
      %3273 = vst [vmem:[%s3086] ss:$4 sm:$0xff] %v3071
      %3274 = vst [vmem:[%s3088] ss:$4 sm:$0xff] %v3072
      %3275 = vst [vmem:[%s3090] ss:$4 sm:$0xff] %v3073
      %3276 = vst [vmem:[%s3092] ss:$4 sm:$0xff] %v2916
      %3277 = vst [vmem:[%s3094] ss:$4 sm:$0xff] %v3074
      %3278 = vst [vmem:[%s3096] ss:$4 sm:$0xff] %v3075
      %3279 = vst [vmem:[%s3098] ss:$4 sm:$0xff] %v3076
      %v3280 = vld.sshfl [vmem:[#allocation1] sm:$0xff pattern:$0x73625140]
      %v3281 = vld.sshfl [vmem:[#allocation1 + $0x20] sm:$0xff pattern:$0x73625140]
      %3282 = vst [vmem:[#allocation1] ss:$4 sm:$0xff] %v2917
      %3283 = vst [vmem:[%s3086] ss:$4 sm:$0xff] %v2918
      %3284 = vst [vmem:[%s3088] ss:$4 sm:$0xff] %v3077
      %3285 = vst [vmem:[%s3090] ss:$4 sm:$0xff] %v3078
      %3286 = vst [vmem:[%s3092] ss:$4 sm:$0xff] %v3079
      %3287 = vst [vmem:[%s3094] ss:$4 sm:$0xff] %v2919
      %3288 = vst [vmem:[%s3096] ss:$4 sm:$0xff] %v3080
      %3289 = vst [vmem:[%s3098] ss:$4 sm:$0xff] %v3081
      %v3290 = vld.sshfl [vmem:[#allocation1] sm:$0xff pattern:$0x73625140]
      %v3291 = vld.sshfl [vmem:[#allocation1 + $0x20] sm:$0xff pattern:$0x73625140]
      %3292 = vst [vmem:[#allocation1] ss:$4 sm:$0xff] %v3082
      %3293 = vst [vmem:[%s3086] ss:$4 sm:$0xff] %v2920
      %v3294 = vld.sshfl [vmem:[#allocation1] sm:$0xff pattern:$0x73625140]
      %v3295 = vsel %vm816, %v3100, 0
      %v3297 = vsel %vm816, %v3101, 0
      %v3299 = vsel %vm816, %v3110, 0
      %v3301 = vsel %vm816, %v3111, 0
      %v3303 = vsel %vm816, %v3120, 0
      %v3305 = vsel %vm816, %v3121, 0
      %v3307 = vsel %vm816, %v3130, 0
      %v3309 = vsel %vm816, %v3131, 0
      %v3311 = vsel %vm816, %v3140, 0
      %v3313 = vsel %vm816, %v3141, 0
      %v3315 = vsel %vm816, %v3150, 0
      %v3317 = vsel %vm816, %v3151, 0
      %v3319 = vsel %vm816, %v3160, 0
      %v3321 = vsel %vm816, %v3161, 0
      %v3323 = vsel %vm816, %v3170, 0
      %v3325 = vsel %vm816, %v3171, 0
      %v3327 = vsel %vm816, %v3180, 0
      %v3329 = vsel %vm816, %v3181, 0
      %v3331 = vsel %vm816, %v3190, 0
      %v3333 = vsel %vm816, %v3191, 0
      %v3335 = vsel %vm816, %v3200, 0
      %v3337 = vsel %vm816, %v3201, 0
      %v3339 = vsel %vm816, %v3210, 0
      %v3341 = vsel %vm816, %v3211, 0
      %v3343 = vsel %vm816, %v3220, 0
      %v3345 = vsel %vm816, %v3221, 0
      %v3347 = vsel %vm816, %v3230, 0
      %v3349 = vsel %vm816, %v3231, 0
      %v3351 = vsel %vm816, %v3240, 0
      %v3353 = vsel %vm816, %v3241, 0
      %v3355 = vsel %vm816, %v3250, 0
      %v3357 = vsel %vm816, %v3251, 0
      %v3359 = vsel %vm816, %v3260, 0
      %v3361 = vsel %vm816, %v3261, 0
      %v3363 = vsel %vm816, %v3270, 0
      %v3365 = vsel %vm816, %v3271, 0
      %v3367 = vsel %vm816, %v3280, 0
      %v3369 = vsel %vm816, %v3281, 0
      %v3371 = vsel %vm816, %v3290, 0
      %v3373 = vsel %vm816, %v3291, 0
      %v3375 = vsel %vm816, %v3294, 0
      %v3378 = vsel %vm899, %v3084, 0
      %3380 = vmatpush.msra.mxu0 0.0
      %3381 = vmatpush.msra.mxu0 0.0
      %3382 = vmatpush.msra.mxu0 0.0
      %3383 = vmatpush.msra.mxu0 0.0
      %3384 = vmatpush.msra.mxu0 0.0
      %3385 = vmatpush.msra.mxu0 0.0
      %3386 = vmatpush.msra.mxu0 0.0
      %3387 = vmatpush.msra.mxu0 0.0
      %3388 = vmatpush.msra.mxu0 0.0
      %3389 = vmatpush.msra.mxu0 0.0
      %3390 = vmatpush.msra.mxu0 0.0
      %3391 = vmatpush.msra.mxu0 0.0
      %3392 = vmatpush.msra.mxu0 0.0
      %3393 = vmatpush.msra.mxu0 0.0
      %3394 = vmatpush.msra.mxu0 0.0
      %3395 = vmatpush.msra.mxu0 %v3378
      %3396 = vmatmul.f32.gmra.mxu0 %v3295
      %v3397 = vpop.f32.mrf.mxu0
      %v3398 = vadd.f32 0.0, %v3397
      %3399 = vmatmul.f32.gmra.mxu0 %v3297
      %v3400 = vpop.f32.mrf.mxu0
      %v3401 = vadd.f32 0.0, %v3400
      %3402 = vmatmul.f32.gmra.mxu0 %v3299
      %v3403 = vpop.f32.mrf.mxu0
      %v3404 = vadd.f32 0.0, %v3403
      %3405 = vmatmul.f32.gmra.mxu0 %v3301
      %v3406 = vpop.f32.mrf.mxu0
      %v3407 = vadd.f32 0.0, %v3406
      %3408 = vmatmul.f32.gmra.mxu0 %v3303
      %v3409 = vpop.f32.mrf.mxu0
      %v3410 = vadd.f32 0.0, %v3409
      %3411 = vmatmul.f32.gmra.mxu0 %v3305
      %v3412 = vpop.f32.mrf.mxu0
      %v3413 = vadd.f32 0.0, %v3412
      %3414 = vmatmul.f32.gmra.mxu0 %v3307
      %v3415 = vpop.f32.mrf.mxu0
      %v3416 = vadd.f32 0.0, %v3415
      %3417 = vmatmul.f32.gmra.mxu0 %v3309
      %v3418 = vpop.f32.mrf.mxu0
      %v3419 = vadd.f32 0.0, %v3418
      %3420 = vmatmul.f32.gmra.mxu0 %v3311
      %v3421 = vpop.f32.mrf.mxu0
      %v3422 = vadd.f32 0.0, %v3421
      %3423 = vmatmul.f32.gmra.mxu0 %v3313
      %v3424 = vpop.f32.mrf.mxu0
      %v3425 = vadd.f32 0.0, %v3424
      %3426 = vmatmul.f32.gmra.mxu0 %v3315
      %v3427 = vpop.f32.mrf.mxu0
      %v3428 = vadd.f32 0.0, %v3427
      %3429 = vmatmul.f32.gmra.mxu0 %v3317
      %v3430 = vpop.f32.mrf.mxu0
      %v3431 = vadd.f32 0.0, %v3430
      %3432 = vmatmul.f32.gmra.mxu0 %v3319
      %v3433 = vpop.f32.mrf.mxu0
      %v3434 = vadd.f32 0.0, %v3433
      %3435 = vmatmul.f32.gmra.mxu0 %v3321
      %v3436 = vpop.f32.mrf.mxu0
      %v3437 = vadd.f32 0.0, %v3436
      %3438 = vmatmul.f32.gmra.mxu0 %v3323
      %v3439 = vpop.f32.mrf.mxu0
      %v3440 = vadd.f32 0.0, %v3439
      %3441 = vmatmul.f32.gmra.mxu0 %v3325
      %v3442 = vpop.f32.mrf.mxu0
      %v3443 = vadd.f32 0.0, %v3442
      %3444 = vmatmul.f32.gmra.mxu0 %v3327
      %v3445 = vpop.f32.mrf.mxu0
      %v3446 = vadd.f32 0.0, %v3445
      %3447 = vmatmul.f32.gmra.mxu0 %v3329
      %v3448 = vpop.f32.mrf.mxu0
      %v3449 = vadd.f32 0.0, %v3448
      %3450 = vmatmul.f32.gmra.mxu0 %v3331
      %v3451 = vpop.f32.mrf.mxu0
      %v3452 = vadd.f32 0.0, %v3451
      %3453 = vmatmul.f32.gmra.mxu0 %v3333
      %v3454 = vpop.f32.mrf.mxu0
      %v3455 = vadd.f32 0.0, %v3454
      %3456 = vmatmul.f32.gmra.mxu0 %v3335
      %v3457 = vpop.f32.mrf.mxu0
      %v3458 = vadd.f32 0.0, %v3457
      %3459 = vmatmul.f32.gmra.mxu0 %v3337
      %v3460 = vpop.f32.mrf.mxu0
      %v3461 = vadd.f32 0.0, %v3460
      %3462 = vmatmul.f32.gmra.mxu0 %v3339
      %v3463 = vpop.f32.mrf.mxu0
      %v3464 = vadd.f32 0.0, %v3463
      %3465 = vmatmul.f32.gmra.mxu0 %v3341
      %v3466 = vpop.f32.mrf.mxu0
      %v3467 = vadd.f32 0.0, %v3466
      %3468 = vmatmul.f32.gmra.mxu0 %v3343
      %v3469 = vpop.f32.mrf.mxu0
      %v3470 = vadd.f32 0.0, %v3469
      %3471 = vmatmul.f32.gmra.mxu0 %v3345
      %v3472 = vpop.f32.mrf.mxu0
      %v3473 = vadd.f32 0.0, %v3472
      %3474 = vmatmul.f32.gmra.mxu0 %v3347
      %v3475 = vpop.f32.mrf.mxu0
      %v3476 = vadd.f32 0.0, %v3475
      %3477 = vmatmul.f32.gmra.mxu0 %v3349
      %v3478 = vpop.f32.mrf.mxu0
      %v3479 = vadd.f32 0.0, %v3478
      %3480 = vmatmul.f32.gmra.mxu0 %v3351
      %v3481 = vpop.f32.mrf.mxu0
      %v3482 = vadd.f32 0.0, %v3481
      %3483 = vmatmul.f32.gmra.mxu0 %v3353
      %v3484 = vpop.f32.mrf.mxu0
      %v3485 = vadd.f32 0.0, %v3484
      %3486 = vmatmul.f32.gmra.mxu0 %v3355
      %v3487 = vpop.f32.mrf.mxu0
      %v3488 = vadd.f32 0.0, %v3487
      %3489 = vmatmul.f32.gmra.mxu0 %v3357
      %v3490 = vpop.f32.mrf.mxu0
      %v3491 = vadd.f32 0.0, %v3490
      %3492 = vmatmul.f32.gmra.mxu0 %v3359
      %v3493 = vpop.f32.mrf.mxu0
      %v3494 = vadd.f32 0.0, %v3493
      %3495 = vmatmul.f32.gmra.mxu0 %v3361
      %v3496 = vpop.f32.mrf.mxu0
      %v3497 = vadd.f32 0.0, %v3496
      %3498 = vmatmul.f32.gmra.mxu0 %v3363
      %v3499 = vpop.f32.mrf.mxu0
      %v3500 = vadd.f32 0.0, %v3499
      %3501 = vmatmul.f32.gmra.mxu0 %v3365
      %v3502 = vpop.f32.mrf.mxu0
      %v3503 = vadd.f32 0.0, %v3502
      %3504 = vmatmul.f32.gmra.mxu0 %v3367
      %v3505 = vpop.f32.mrf.mxu0
      %v3506 = vadd.f32 0.0, %v3505
      %3507 = vmatmul.f32.gmra.mxu0 %v3369
      %v3508 = vpop.f32.mrf.mxu0
      %v3509 = vadd.f32 0.0, %v3508
      %3510 = vmatmul.f32.gmra.mxu0 %v3371
      %v3511 = vpop.f32.mrf.mxu0
      %v3512 = vadd.f32 0.0, %v3511
      %3513 = vmatmul.f32.gmra.mxu0 %v3373
      %v3514 = vpop.f32.mrf.mxu0
      %v3515 = vadd.f32 0.0, %v3514
      %3516 = vmatmul.f32.gmra.mxu0 %v3375
      %v3517 = vpop.f32.mrf.mxu0
      %v3518 = vadd.f32 0.0, %v3517
      %3519 = vdwg.mxu0
      %v3520 = vadd.f32 %v2826, %v3398
      %v3521 = vadd.f32 %v2827, %v3401
      %v3522 = vadd.f32 %v2828, %v3404
      %v3523 = vadd.f32 %v2829, %v3407
      %v3524 = vadd.f32 %v2830, %v3410
      %v3525 = vadd.f32 %v2831, %v3413
      %v3526 = vadd.f32 %v2832, %v3416
      %v3527 = vadd.f32 %v2833, %v3419
      %v3528 = vadd.f32 %v2834, %v3422
      %v3529 = vadd.f32 %v2835, %v3425
      %v3530 = vadd.f32 %v2836, %v3428
      %v3531 = vadd.f32 %v2837, %v3431
      %v3532 = vadd.f32 %v2838, %v3434
      %v3533 = vadd.f32 %v2839, %v3437
      %v3534 = vadd.f32 %v2840, %v3440
      %v3535 = vadd.f32 %v2841, %v3443
      %v3536 = vadd.f32 %v2842, %v3446
      %v3537 = vadd.f32 %v2843, %v3449
      %v3538 = vadd.f32 %v2844, %v3452
      %v3539 = vadd.f32 %v2845, %v3455
      %v3540 = vadd.f32 %v2846, %v3458
      %v3541 = vadd.f32 %v2847, %v3461
      %v3542 = vadd.f32 %v2848, %v3464
      %v3543 = vadd.f32 %v2849, %v3467
      %v3544 = vadd.f32 %v2850, %v3470
      %v3545 = vadd.f32 %v2851, %v3473
      %v3546 = vadd.f32 %v2852, %v3476
      %v3547 = vadd.f32 %v2853, %v3479
      %v3548 = vadd.f32 %v2854, %v3482
      %v3549 = vadd.f32 %v2855, %v3485
      %v3550 = vadd.f32 %v2856, %v3488
      %v3551 = vadd.f32 %v2857, %v3491
      %v3552 = vadd.f32 %v2858, %v3494
      %v3553 = vadd.f32 %v2859, %v3497
      %v3554 = vadd.f32 %v2860, %v3500
      %v3555 = vadd.f32 %v2861, %v3503
      %v3556 = vadd.f32 %v2862, %v3506
      %v3557 = vadd.f32 %v2863, %v3509
      %v3558 = vadd.f32 %v2864, %v3512
      %v3559 = vadd.f32 %v2865, %v3515
      %v3560 = vadd.f32 %v2866, %v3518
      %v3561 = vld [vmem:[%s2172 + $0x2] sm:$0xff]
      %v3562 = vld [vmem:[%s2172 + $0xa] sm:$0xff]
      %v3563 = vld [vmem:[%s2172 + $0x12] sm:$0x3]
      %v3564 = vld [vmem:[%s2172 + $0x1a] sm:$0xff]
      %v3565 = vld [vmem:[%s2172 + $0x22] sm:$0xff]
      %v3566 = vld [vmem:[%s2172 + $0x2a] sm:$0x3]
      %v3567 = vld [vmem:[%s2172 + $0x32] sm:$0xff]
      %v3568 = vld [vmem:[%s2172 + $0x3a] sm:$0xff]
      %v3569 = vld [vmem:[%s2172 + $0x42] sm:$0x3]
      %v3570 = vld [vmem:[%s2172 + $0x4a] sm:$0xff]
      %v3571 = vld [vmem:[%s2172 + $0x52] sm:$0xff]
      %v3572 = vld [vmem:[%s2172 + $0x5a] sm:$0x3]
      %v3573 = vld [vmem:[%s2172 + $0x62] sm:$0xff]
      %v3574 = vld [vmem:[%s2172 + $0x6a] sm:$0xff]
      %v3575 = vld [vmem:[%s2172 + $0x72] sm:$0x3]
      %v3576 = vld [vmem:[%s2172 + $0x7a] sm:$0xff]
      %v3577 = vld [vmem:[%s2172 + $0x82] sm:$0xff]
      %v3578 = vld [vmem:[%s2172 + $0x8a] sm:$0x3]
      %v3579 = vld [vmem:[%s2172 + $0x92] sm:$0xff]
      %v3580 = vld [vmem:[%s2172 + $0x9a] sm:$0xff]
      %v3581 = vld [vmem:[%s2172 + $0xa2] sm:$0x3]
      %v3582 = vld [vmem:[%s2172 + $0xaa] sm:$0xff]
      %v3583 = vld [vmem:[%s2172 + $0xb2] sm:$0xff]
      %v3584 = vld [vmem:[%s2172 + $0xba] sm:$0x3]
      %v3585 = vld [vmem:[%s2172 + $0xc2] sm:$0xff]
      %v3586 = vld [vmem:[%s2172 + $0xca] sm:$0xff]
      %v3587 = vld [vmem:[%s2172 + $0xd2] sm:$0x3]
      %v3588 = vld [vmem:[%s2172 + $0xda] sm:$0xff]
      %v3589 = vld [vmem:[%s2172 + $0xe2] sm:$0xff]
      %v3590 = vld [vmem:[%s2172 + $0xea] sm:$0x3]
      %v3591 = vld [vmem:[%s2172 + $0xf2] sm:$0xff]
      %v3592 = vld [vmem:[%s2172 + $0xfa] sm:$0xff]
      %v3593 = vld [vmem:[%s2172 + $0x102] sm:$0x3]
      %v3594 = vld [vmem:[%s2172 + $0x10a] sm:$0xff]
      %v3595 = vld [vmem:[%s2172 + $0x112] sm:$0xff]
      %v3596 = vld [vmem:[%s2172 + $0x11a] sm:$0x3]
      %v3597 = vld [vmem:[%s2172 + $0x122] sm:$0xff]
      %v3598 = vld [vmem:[%s2172 + $0x12a] sm:$0xff]
      %v3599 = vld [vmem:[%s2172 + $0x132] sm:$0x3]
      %v3600 = vld [vmem:[%s2172 + $0x13a] sm:$0xff]
      %v3601 = vld [vmem:[%s2172 + $0x142] sm:$0xff]
      %v3602 = vld [vmem:[%s2172 + $0x14a] sm:$0x3]
      %v3603 = vld [vmem:[%s2172 + $0x152] sm:$0xff]
      %v3604 = vld [vmem:[%s2172 + $0x15a] sm:$0xff]
      %v3605 = vld [vmem:[%s2172 + $0x162] sm:$0x3]
      %v3606 = vld [vmem:[%s2172 + $0x16a] sm:$0xff]
      %v3607 = vld [vmem:[%s2172 + $0x172] sm:$0xff]
      %v3608 = vld [vmem:[%s2172 + $0x17a] sm:$0x3]
      %v3609 = vld [vmem:[%s2172 + $0x182] sm:$0xff]
      %v3610 = vld [vmem:[%s2172 + $0x18a] sm:$0xff]
      %v3611 = vld [vmem:[%s2172 + $0x192] sm:$0x3]
      %v3612 = vld [vmem:[%s2172 + $0x19a] sm:$0xff]
      %v3613 = vld [vmem:[%s2172 + $0x1a2] sm:$0xff]
      %v3614 = vld [vmem:[%s2172 + $0x1aa] sm:$0x3]
      %v3669 = vrot.slane %v3561, 2
      %v3670 = vrot.slane %v3561, 4
      %v3671 = vrot.slane %v3561, 6
      %v3672 = vrot.slane %v3562, 2
      %v3673 = vrot.slane %v3562, 4
      %v3674 = vrot.slane %v3562, 6
      %v3675 = vrot.slane %v3564, 2
      %v3676 = vrot.slane %v3564, 4
      %v3677 = vrot.slane %v3564, 6
      %v3678 = vrot.slane %v3565, 2
      %v3679 = vrot.slane %v3565, 4
      %v3680 = vrot.slane %v3565, 6
      %v3681 = vrot.slane %v3567, 2
      %v3682 = vrot.slane %v3567, 4
      %v3683 = vrot.slane %v3567, 6
      %v3684 = vrot.slane %v3568, 2
      %v3685 = vrot.slane %v3568, 4
      %v3686 = vrot.slane %v3568, 6
      %v3687 = vrot.slane %v3570, 2
      %v3688 = vrot.slane %v3570, 4
      %v3689 = vrot.slane %v3570, 6
      %v3690 = vrot.slane %v3571, 2
      %v3691 = vrot.slane %v3571, 4
      %v3692 = vrot.slane %v3571, 6
      %v3693 = vrot.slane %v3573, 2
      %v3694 = vrot.slane %v3573, 4
      %v3695 = vrot.slane %v3573, 6
      %v3696 = vrot.slane %v3574, 2
      %v3697 = vrot.slane %v3574, 4
      %v3698 = vrot.slane %v3574, 6
      %v3699 = vrot.slane %v3576, 2
      %v3700 = vrot.slane %v3576, 4
      %v3701 = vrot.slane %v3576, 6
      %v3702 = vrot.slane %v3577, 2
      %v3703 = vrot.slane %v3577, 4
      %v3704 = vrot.slane %v3577, 6
      %v3705 = vrot.slane %v3579, 2
      %v3706 = vrot.slane %v3579, 4
      %v3707 = vrot.slane %v3579, 6
      %v3708 = vrot.slane %v3580, 2
      %v3709 = vrot.slane %v3580, 4
      %v3710 = vrot.slane %v3580, 6
      %v3711 = vrot.slane %v3582, 2
      %v3712 = vrot.slane %v3582, 4
      %v3713 = vrot.slane %v3582, 6
      %v3714 = vrot.slane %v3583, 2
      %v3715 = vrot.slane %v3583, 4
      %v3716 = vrot.slane %v3583, 6
      %v3717 = vrot.slane %v3585, 2
      %v3718 = vrot.slane %v3585, 4
      %v3719 = vrot.slane %v3585, 6
      %v3720 = vrot.slane %v3586, 2
      %v3721 = vrot.slane %v3586, 4
      %v3722 = vrot.slane %v3586, 6
      %v3723 = vrot.slane %v3588, 2
      %v3724 = vrot.slane %v3588, 4
      %v3725 = vrot.slane %v3588, 6
      %v3726 = vrot.slane %v3589, 2
      %v3727 = vrot.slane %v3589, 4
      %v3728 = vrot.slane %v3589, 6
      %v3729 = vrot.slane %v3591, 2
      %v3730 = vrot.slane %v3591, 4
      %v3731 = vrot.slane %v3591, 6
      %v3732 = vrot.slane %v3592, 2
      %v3733 = vrot.slane %v3592, 4
      %v3734 = vrot.slane %v3592, 6
      %v3735 = vrot.slane %v3594, 2
      %v3736 = vrot.slane %v3594, 4
      %v3737 = vrot.slane %v3594, 6
      %v3738 = vrot.slane %v3595, 2
      %v3739 = vrot.slane %v3595, 4
      %v3740 = vrot.slane %v3595, 6
      %v3741 = vrot.slane %v3597, 2
      %v3742 = vrot.slane %v3597, 4
      %v3743 = vrot.slane %v3597, 6
      %v3744 = vrot.slane %v3598, 2
      %v3745 = vrot.slane %v3598, 4
      %v3746 = vrot.slane %v3598, 6
      %v3747 = vrot.slane %v3600, 2
      %v3748 = vrot.slane %v3600, 4
      %v3749 = vrot.slane %v3600, 6
      %v3750 = vrot.slane %v3601, 2
      %v3751 = vrot.slane %v3601, 4
      %v3752 = vrot.slane %v3601, 6
      %v3753 = vrot.slane %v3603, 2
      %v3754 = vrot.slane %v3603, 4
      %v3755 = vrot.slane %v3603, 6
      %v3756 = vrot.slane %v3604, 2
      %v3757 = vrot.slane %v3604, 4
      %v3758 = vrot.slane %v3604, 6
      %v3759 = vrot.slane %v3606, 2
      %v3760 = vrot.slane %v3606, 4
      %v3761 = vrot.slane %v3606, 6
      %v3762 = vrot.slane %v3607, 2
      %v3763 = vrot.slane %v3607, 4
      %v3764 = vrot.slane %v3607, 6
      %v3765 = vrot.slane %v3609, 2
      %v3766 = vrot.slane %v3609, 4
      %v3767 = vrot.slane %v3609, 6
      %v3768 = vrot.slane %v3610, 2
      %v3769 = vrot.slane %v3610, 4
      %v3770 = vrot.slane %v3610, 6
      %v3771 = vrot.slane %v3612, 2
      %v3772 = vrot.slane %v3612, 4
      %v3773 = vrot.slane %v3612, 6
      %v3774 = vrot.slane %v3613, 2
      %v3775 = vrot.slane %v3613, 4
      %v3776 = vrot.slane %v3613, 6
      %s3777 = scalar_lea.vmem %s1, 20
      %v3778 = vld [vmem:[%s3777] sm:$0x7]
      %3779 = vst [vmem:[#allocation1] ss:$4 sm:$0xff] %v3561
      %s3780 = scalar_lea.vmem [#allocation1], 1
      %3781 = vst [vmem:[%s3780] ss:$4 sm:$0xff] %v3669
      %s3782 = scalar_lea.vmem [#allocation1], 2
      %3783 = vst [vmem:[%s3782] ss:$4 sm:$0xff] %v3670
      %s3784 = scalar_lea.vmem [#allocation1], 3
      %3785 = vst [vmem:[%s3784] ss:$4 sm:$0xff] %v3671
      %s3786 = scalar_lea.vmem [#allocation1], 32
      %3787 = vst [vmem:[%s3786] ss:$4 sm:$0xff] %v3562
      %s3788 = scalar_lea.vmem [#allocation1], 33
      %3789 = vst [vmem:[%s3788] ss:$4 sm:$0xff] %v3672
      %s3790 = scalar_lea.vmem [#allocation1], 34
      %3791 = vst [vmem:[%s3790] ss:$4 sm:$0xff] %v3673
      %s3792 = scalar_lea.vmem [#allocation1], 35
      %3793 = vst [vmem:[%s3792] ss:$4 sm:$0xff] %v3674
      %v3794 = vld.sshfl [vmem:[#allocation1] sm:$0xff pattern:$0x73625140]
      %v3795 = vld.sshfl [vmem:[#allocation1 + $0x20] sm:$0xff pattern:$0x73625140]
      %3796 = vst [vmem:[#allocation1] ss:$4 sm:$0xff] %v3563
      %3797 = vst [vmem:[%s3780] ss:$4 sm:$0xff] %v3564
      %3798 = vst [vmem:[%s3782] ss:$4 sm:$0xff] %v3675
      %3799 = vst [vmem:[%s3784] ss:$4 sm:$0xff] %v3676
      %3800 = vst [vmem:[%s3786] ss:$4 sm:$0xff] %v3677
      %3801 = vst [vmem:[%s3788] ss:$4 sm:$0xff] %v3565
      %3802 = vst [vmem:[%s3790] ss:$4 sm:$0xff] %v3678
      %3803 = vst [vmem:[%s3792] ss:$4 sm:$0xff] %v3679
      %v3804 = vld.sshfl [vmem:[#allocation1] sm:$0xff pattern:$0x73625140]
      %v3805 = vld.sshfl [vmem:[#allocation1 + $0x20] sm:$0xff pattern:$0x73625140]
      %3806 = vst [vmem:[#allocation1] ss:$4 sm:$0xff] %v3680
      %3807 = vst [vmem:[%s3780] ss:$4 sm:$0xff] %v3566
      %3808 = vst [vmem:[%s3782] ss:$4 sm:$0xff] %v3567
      %3809 = vst [vmem:[%s3784] ss:$4 sm:$0xff] %v3681
      %3810 = vst [vmem:[%s3786] ss:$4 sm:$0xff] %v3682
      %3811 = vst [vmem:[%s3788] ss:$4 sm:$0xff] %v3683
      %3812 = vst [vmem:[%s3790] ss:$4 sm:$0xff] %v3568
      %3813 = vst [vmem:[%s3792] ss:$4 sm:$0xff] %v3684
      %v3814 = vld.sshfl [vmem:[#allocation1] sm:$0xff pattern:$0x73625140]
      %v3815 = vld.sshfl [vmem:[#allocation1 + $0x20] sm:$0xff pattern:$0x73625140]
      %3816 = vst [vmem:[#allocation1] ss:$4 sm:$0xff] %v3685
      %3817 = vst [vmem:[%s3780] ss:$4 sm:$0xff] %v3686
      %3818 = vst [vmem:[%s3782] ss:$4 sm:$0xff] %v3569
      %3819 = vst [vmem:[%s3784] ss:$4 sm:$0xff] %v3570
      %3820 = vst [vmem:[%s3786] ss:$4 sm:$0xff] %v3687
      %3821 = vst [vmem:[%s3788] ss:$4 sm:$0xff] %v3688
      %3822 = vst [vmem:[%s3790] ss:$4 sm:$0xff] %v3689
      %3823 = vst [vmem:[%s3792] ss:$4 sm:$0xff] %v3571
      %v3824 = vld.sshfl [vmem:[#allocation1] sm:$0xff pattern:$0x73625140]
      %v3825 = vld.sshfl [vmem:[#allocation1 + $0x20] sm:$0xff pattern:$0x73625140]
      %3826 = vst [vmem:[#allocation1] ss:$4 sm:$0xff] %v3690
      %3827 = vst [vmem:[%s3780] ss:$4 sm:$0xff] %v3691
      %3828 = vst [vmem:[%s3782] ss:$4 sm:$0xff] %v3692
      %3829 = vst [vmem:[%s3784] ss:$4 sm:$0xff] %v3572
      %3830 = vst [vmem:[%s3786] ss:$4 sm:$0xff] %v3573
      %3831 = vst [vmem:[%s3788] ss:$4 sm:$0xff] %v3693
      %3832 = vst [vmem:[%s3790] ss:$4 sm:$0xff] %v3694
      %3833 = vst [vmem:[%s3792] ss:$4 sm:$0xff] %v3695
      %v3834 = vld.sshfl [vmem:[#allocation1] sm:$0xff pattern:$0x73625140]
      %v3835 = vld.sshfl [vmem:[#allocation1 + $0x20] sm:$0xff pattern:$0x73625140]
      %3836 = vst [vmem:[#allocation1] ss:$4 sm:$0xff] %v3574
      %3837 = vst [vmem:[%s3780] ss:$4 sm:$0xff] %v3696
      %3838 = vst [vmem:[%s3782] ss:$4 sm:$0xff] %v3697
      %3839 = vst [vmem:[%s3784] ss:$4 sm:$0xff] %v3698
      %3840 = vst [vmem:[%s3786] ss:$4 sm:$0xff] %v3575
      %3841 = vst [vmem:[%s3788] ss:$4 sm:$0xff] %v3576
      %3842 = vst [vmem:[%s3790] ss:$4 sm:$0xff] %v3699
      %3843 = vst [vmem:[%s3792] ss:$4 sm:$0xff] %v3700
      %v3844 = vld.sshfl [vmem:[#allocation1] sm:$0xff pattern:$0x73625140]
      %v3845 = vld.sshfl [vmem:[#allocation1 + $0x20] sm:$0xff pattern:$0x73625140]
      %3846 = vst [vmem:[#allocation1] ss:$4 sm:$0xff] %v3701
      %3847 = vst [vmem:[%s3780] ss:$4 sm:$0xff] %v3577
      %3848 = vst [vmem:[%s3782] ss:$4 sm:$0xff] %v3702
      %3849 = vst [vmem:[%s3784] ss:$4 sm:$0xff] %v3703
      %3850 = vst [vmem:[%s3786] ss:$4 sm:$0xff] %v3704
      %3851 = vst [vmem:[%s3788] ss:$4 sm:$0xff] %v3578
      %3852 = vst [vmem:[%s3790] ss:$4 sm:$0xff] %v3579
      %3853 = vst [vmem:[%s3792] ss:$4 sm:$0xff] %v3705
      %v3854 = vld.sshfl [vmem:[#allocation1] sm:$0xff pattern:$0x73625140]
      %v3855 = vld.sshfl [vmem:[#allocation1 + $0x20] sm:$0xff pattern:$0x73625140]
      %3856 = vst [vmem:[#allocation1] ss:$4 sm:$0xff] %v3706
      %3857 = vst [vmem:[%s3780] ss:$4 sm:$0xff] %v3707
      %3858 = vst [vmem:[%s3782] ss:$4 sm:$0xff] %v3580
      %3859 = vst [vmem:[%s3784] ss:$4 sm:$0xff] %v3708
      %3860 = vst [vmem:[%s3786] ss:$4 sm:$0xff] %v3709
      %3861 = vst [vmem:[%s3788] ss:$4 sm:$0xff] %v3710
      %3862 = vst [vmem:[%s3790] ss:$4 sm:$0xff] %v3581
      %3863 = vst [vmem:[%s3792] ss:$4 sm:$0xff] %v3582
      %v3864 = vld.sshfl [vmem:[#allocation1] sm:$0xff pattern:$0x73625140]
      %v3865 = vld.sshfl [vmem:[#allocation1 + $0x20] sm:$0xff pattern:$0x73625140]
      %3866 = vst [vmem:[#allocation1] ss:$4 sm:$0xff] %v3711
      %3867 = vst [vmem:[%s3780] ss:$4 sm:$0xff] %v3712
      %3868 = vst [vmem:[%s3782] ss:$4 sm:$0xff] %v3713
      %3869 = vst [vmem:[%s3784] ss:$4 sm:$0xff] %v3583
      %3870 = vst [vmem:[%s3786] ss:$4 sm:$0xff] %v3714
      %3871 = vst [vmem:[%s3788] ss:$4 sm:$0xff] %v3715
      %3872 = vst [vmem:[%s3790] ss:$4 sm:$0xff] %v3716
      %3873 = vst [vmem:[%s3792] ss:$4 sm:$0xff] %v3584
      %v3874 = vld.sshfl [vmem:[#allocation1] sm:$0xff pattern:$0x73625140]
      %v3875 = vld.sshfl [vmem:[#allocation1 + $0x20] sm:$0xff pattern:$0x73625140]
      %3876 = vst [vmem:[#allocation1] ss:$4 sm:$0xff] %v3585
      %3877 = vst [vmem:[%s3780] ss:$4 sm:$0xff] %v3717
      %3878 = vst [vmem:[%s3782] ss:$4 sm:$0xff] %v3718
      %3879 = vst [vmem:[%s3784] ss:$4 sm:$0xff] %v3719
      %3880 = vst [vmem:[%s3786] ss:$4 sm:$0xff] %v3586
      %3881 = vst [vmem:[%s3788] ss:$4 sm:$0xff] %v3720
      %3882 = vst [vmem:[%s3790] ss:$4 sm:$0xff] %v3721
      %3883 = vst [vmem:[%s3792] ss:$4 sm:$0xff] %v3722
      %v3884 = vld.sshfl [vmem:[#allocation1] sm:$0xff pattern:$0x73625140]
      %v3885 = vld.sshfl [vmem:[#allocation1 + $0x20] sm:$0xff pattern:$0x73625140]
      %3886 = vst [vmem:[#allocation1] ss:$4 sm:$0xff] %v3587
      %3887 = vst [vmem:[%s3780] ss:$4 sm:$0xff] %v3588
      %3888 = vst [vmem:[%s3782] ss:$4 sm:$0xff] %v3723
      %3889 = vst [vmem:[%s3784] ss:$4 sm:$0xff] %v3724
      %3890 = vst [vmem:[%s3786] ss:$4 sm:$0xff] %v3725
      %3891 = vst [vmem:[%s3788] ss:$4 sm:$0xff] %v3589
      %3892 = vst [vmem:[%s3790] ss:$4 sm:$0xff] %v3726
      %3893 = vst [vmem:[%s3792] ss:$4 sm:$0xff] %v3727
      %v3894 = vld.sshfl [vmem:[#allocation1] sm:$0xff pattern:$0x73625140]
      %v3895 = vld.sshfl [vmem:[#allocation1 + $0x20] sm:$0xff pattern:$0x73625140]
      %3896 = vst [vmem:[#allocation1] ss:$4 sm:$0xff] %v3728
      %3897 = vst [vmem:[%s3780] ss:$4 sm:$0xff] %v3590
      %3898 = vst [vmem:[%s3782] ss:$4 sm:$0xff] %v3591
      %3899 = vst [vmem:[%s3784] ss:$4 sm:$0xff] %v3729
      %3900 = vst [vmem:[%s3786] ss:$4 sm:$0xff] %v3730
      %3901 = vst [vmem:[%s3788] ss:$4 sm:$0xff] %v3731
      %3902 = vst [vmem:[%s3790] ss:$4 sm:$0xff] %v3592
      %3903 = vst [vmem:[%s3792] ss:$4 sm:$0xff] %v3732
      %v3904 = vld.sshfl [vmem:[#allocation1] sm:$0xff pattern:$0x73625140]
      %v3905 = vld.sshfl [vmem:[#allocation1 + $0x20] sm:$0xff pattern:$0x73625140]
      %3906 = vst [vmem:[#allocation1] ss:$4 sm:$0xff] %v3733
      %3907 = vst [vmem:[%s3780] ss:$4 sm:$0xff] %v3734
      %3908 = vst [vmem:[%s3782] ss:$4 sm:$0xff] %v3593
      %3909 = vst [vmem:[%s3784] ss:$4 sm:$0xff] %v3594
      %3910 = vst [vmem:[%s3786] ss:$4 sm:$0xff] %v3735
      %3911 = vst [vmem:[%s3788] ss:$4 sm:$0xff] %v3736
      %3912 = vst [vmem:[%s3790] ss:$4 sm:$0xff] %v3737
      %3913 = vst [vmem:[%s3792] ss:$4 sm:$0xff] %v3595
      %v3914 = vld.sshfl [vmem:[#allocation1] sm:$0xff pattern:$0x73625140]
      %v3915 = vld.sshfl [vmem:[#allocation1 + $0x20] sm:$0xff pattern:$0x73625140]
      %3916 = vst [vmem:[#allocation1] ss:$4 sm:$0xff] %v3738
      %3917 = vst [vmem:[%s3780] ss:$4 sm:$0xff] %v3739
      %3918 = vst [vmem:[%s3782] ss:$4 sm:$0xff] %v3740
      %3919 = vst [vmem:[%s3784] ss:$4 sm:$0xff] %v3596
      %3920 = vst [vmem:[%s3786] ss:$4 sm:$0xff] %v3597
      %3921 = vst [vmem:[%s3788] ss:$4 sm:$0xff] %v3741
      %3922 = vst [vmem:[%s3790] ss:$4 sm:$0xff] %v3742
      %3923 = vst [vmem:[%s3792] ss:$4 sm:$0xff] %v3743
      %v3924 = vld.sshfl [vmem:[#allocation1] sm:$0xff pattern:$0x73625140]
      %v3925 = vld.sshfl [vmem:[#allocation1 + $0x20] sm:$0xff pattern:$0x73625140]
      %3926 = vst [vmem:[#allocation1] ss:$4 sm:$0xff] %v3598
      %3927 = vst [vmem:[%s3780] ss:$4 sm:$0xff] %v3744
      %3928 = vst [vmem:[%s3782] ss:$4 sm:$0xff] %v3745
      %3929 = vst [vmem:[%s3784] ss:$4 sm:$0xff] %v3746
      %3930 = vst [vmem:[%s3786] ss:$4 sm:$0xff] %v3599
      %3931 = vst [vmem:[%s3788] ss:$4 sm:$0xff] %v3600
      %3932 = vst [vmem:[%s3790] ss:$4 sm:$0xff] %v3747
      %3933 = vst [vmem:[%s3792] ss:$4 sm:$0xff] %v3748
      %v3934 = vld.sshfl [vmem:[#allocation1] sm:$0xff pattern:$0x73625140]
      %v3935 = vld.sshfl [vmem:[#allocation1 + $0x20] sm:$0xff pattern:$0x73625140]
      %3936 = vst [vmem:[#allocation1] ss:$4 sm:$0xff] %v3749
      %3937 = vst [vmem:[%s3780] ss:$4 sm:$0xff] %v3601
      %3938 = vst [vmem:[%s3782] ss:$4 sm:$0xff] %v3750
      %3939 = vst [vmem:[%s3784] ss:$4 sm:$0xff] %v3751
      %3940 = vst [vmem:[%s3786] ss:$4 sm:$0xff] %v3752
      %3941 = vst [vmem:[%s3788] ss:$4 sm:$0xff] %v3602
      %3942 = vst [vmem:[%s3790] ss:$4 sm:$0xff] %v3603
      %3943 = vst [vmem:[%s3792] ss:$4 sm:$0xff] %v3753
      %v3944 = vld.sshfl [vmem:[#allocation1] sm:$0xff pattern:$0x73625140]
      %v3945 = vld.sshfl [vmem:[#allocation1 + $0x20] sm:$0xff pattern:$0x73625140]
      %3946 = vst [vmem:[#allocation1] ss:$4 sm:$0xff] %v3754
      %3947 = vst [vmem:[%s3780] ss:$4 sm:$0xff] %v3755
      %3948 = vst [vmem:[%s3782] ss:$4 sm:$0xff] %v3604
      %3949 = vst [vmem:[%s3784] ss:$4 sm:$0xff] %v3756
      %3950 = vst [vmem:[%s3786] ss:$4 sm:$0xff] %v3757
      %3951 = vst [vmem:[%s3788] ss:$4 sm:$0xff] %v3758
      %3952 = vst [vmem:[%s3790] ss:$4 sm:$0xff] %v3605
      %3953 = vst [vmem:[%s3792] ss:$4 sm:$0xff] %v3606
      %v3954 = vld.sshfl [vmem:[#allocation1] sm:$0xff pattern:$0x73625140]
      %v3955 = vld.sshfl [vmem:[#allocation1 + $0x20] sm:$0xff pattern:$0x73625140]
      %3956 = vst [vmem:[#allocation1] ss:$4 sm:$0xff] %v3759
      %3957 = vst [vmem:[%s3780] ss:$4 sm:$0xff] %v3760
      %3958 = vst [vmem:[%s3782] ss:$4 sm:$0xff] %v3761
      %3959 = vst [vmem:[%s3784] ss:$4 sm:$0xff] %v3607
      %3960 = vst [vmem:[%s3786] ss:$4 sm:$0xff] %v3762
      %3961 = vst [vmem:[%s3788] ss:$4 sm:$0xff] %v3763
      %3962 = vst [vmem:[%s3790] ss:$4 sm:$0xff] %v3764
      %3963 = vst [vmem:[%s3792] ss:$4 sm:$0xff] %v3608
      %v3964 = vld.sshfl [vmem:[#allocation1] sm:$0xff pattern:$0x73625140]
      %v3965 = vld.sshfl [vmem:[#allocation1 + $0x20] sm:$0xff pattern:$0x73625140]
      %3966 = vst [vmem:[#allocation1] ss:$4 sm:$0xff] %v3609
      %3967 = vst [vmem:[%s3780] ss:$4 sm:$0xff] %v3765
      %3968 = vst [vmem:[%s3782] ss:$4 sm:$0xff] %v3766
      %3969 = vst [vmem:[%s3784] ss:$4 sm:$0xff] %v3767
      %3970 = vst [vmem:[%s3786] ss:$4 sm:$0xff] %v3610
      %3971 = vst [vmem:[%s3788] ss:$4 sm:$0xff] %v3768
      %3972 = vst [vmem:[%s3790] ss:$4 sm:$0xff] %v3769
      %3973 = vst [vmem:[%s3792] ss:$4 sm:$0xff] %v3770
      %v3974 = vld.sshfl [vmem:[#allocation1] sm:$0xff pattern:$0x73625140]
      %v3975 = vld.sshfl [vmem:[#allocation1 + $0x20] sm:$0xff pattern:$0x73625140]
      %3976 = vst [vmem:[#allocation1] ss:$4 sm:$0xff] %v3611
      %3977 = vst [vmem:[%s3780] ss:$4 sm:$0xff] %v3612
      %3978 = vst [vmem:[%s3782] ss:$4 sm:$0xff] %v3771
      %3979 = vst [vmem:[%s3784] ss:$4 sm:$0xff] %v3772
      %3980 = vst [vmem:[%s3786] ss:$4 sm:$0xff] %v3773
      %3981 = vst [vmem:[%s3788] ss:$4 sm:$0xff] %v3613
      %3982 = vst [vmem:[%s3790] ss:$4 sm:$0xff] %v3774
      %3983 = vst [vmem:[%s3792] ss:$4 sm:$0xff] %v3775
      %v3984 = vld.sshfl [vmem:[#allocation1] sm:$0xff pattern:$0x73625140]
      %v3985 = vld.sshfl [vmem:[#allocation1 + $0x20] sm:$0xff pattern:$0x73625140]
      %3986 = vst [vmem:[#allocation1] ss:$4 sm:$0xff] %v3776
      %3987 = vst [vmem:[%s3780] ss:$4 sm:$0xff] %v3614
      %v3988 = vld.sshfl [vmem:[#allocation1] sm:$0xff pattern:$0x73625140]
      %v3989 = vsel %vm816, %v3794, 0
      %v3991 = vsel %vm816, %v3795, 0
      %v3993 = vsel %vm816, %v3804, 0
      %v3995 = vsel %vm816, %v3805, 0
      %v3997 = vsel %vm816, %v3814, 0
      %v3999 = vsel %vm816, %v3815, 0
      %v4001 = vsel %vm816, %v3824, 0
      %v4003 = vsel %vm816, %v3825, 0
      %v4005 = vsel %vm816, %v3834, 0
      %v4007 = vsel %vm816, %v3835, 0
      %v4009 = vsel %vm816, %v3844, 0
      %v4011 = vsel %vm816, %v3845, 0
      %v4013 = vsel %vm816, %v3854, 0
      %v4015 = vsel %vm816, %v3855, 0
      %v4017 = vsel %vm816, %v3864, 0
      %v4019 = vsel %vm816, %v3865, 0
      %v4021 = vsel %vm816, %v3874, 0
      %v4023 = vsel %vm816, %v3875, 0
      %v4025 = vsel %vm816, %v3884, 0
      %v4027 = vsel %vm816, %v3885, 0
      %v4029 = vsel %vm816, %v3894, 0
      %v4031 = vsel %vm816, %v3895, 0
      %v4033 = vsel %vm816, %v3904, 0
      %v4035 = vsel %vm816, %v3905, 0
      %v4037 = vsel %vm816, %v3914, 0
      %v4039 = vsel %vm816, %v3915, 0
      %v4041 = vsel %vm816, %v3924, 0
      %v4043 = vsel %vm816, %v3925, 0
      %v4045 = vsel %vm816, %v3934, 0
      %v4047 = vsel %vm816, %v3935, 0
      %v4049 = vsel %vm816, %v3944, 0
      %v4051 = vsel %vm816, %v3945, 0
      %v4053 = vsel %vm816, %v3954, 0
      %v4055 = vsel %vm816, %v3955, 0
      %v4057 = vsel %vm816, %v3964, 0
      %v4059 = vsel %vm816, %v3965, 0
      %v4061 = vsel %vm816, %v3974, 0
      %v4063 = vsel %vm816, %v3975, 0
      %v4065 = vsel %vm816, %v3984, 0
      %v4067 = vsel %vm816, %v3985, 0
      %v4069 = vsel %vm816, %v3988, 0
      %v4072 = vsel %vm899, %v3778, 0
      %4074 = vmatpush.msra.mxu0 0.0
      %4075 = vmatpush.msra.mxu0 0.0
      %4076 = vmatpush.msra.mxu0 0.0
      %4077 = vmatpush.msra.mxu0 0.0
      %4078 = vmatpush.msra.mxu0 0.0
      %4079 = vmatpush.msra.mxu0 0.0
      %4080 = vmatpush.msra.mxu0 0.0
      %4081 = vmatpush.msra.mxu0 0.0
      %4082 = vmatpush.msra.mxu0 0.0
      %4083 = vmatpush.msra.mxu0 0.0
      %4084 = vmatpush.msra.mxu0 0.0
      %4085 = vmatpush.msra.mxu0 0.0
      %4086 = vmatpush.msra.mxu0 0.0
      %4087 = vmatpush.msra.mxu0 0.0
      %4088 = vmatpush.msra.mxu0 0.0
      %4089 = vmatpush.msra.mxu0 %v4072
      %4090 = vmatmul.f32.gmra.mxu0 %v3989
      %v4091 = vpop.f32.mrf.mxu0
      %v4092 = vadd.f32 0.0, %v4091
      %4093 = vmatmul.f32.gmra.mxu0 %v3991
      %v4094 = vpop.f32.mrf.mxu0
      %v4095 = vadd.f32 0.0, %v4094
      %4096 = vmatmul.f32.gmra.mxu0 %v3993
      %v4097 = vpop.f32.mrf.mxu0
      %v4098 = vadd.f32 0.0, %v4097
      %4099 = vmatmul.f32.gmra.mxu0 %v3995
      %v4100 = vpop.f32.mrf.mxu0
      %v4101 = vadd.f32 0.0, %v4100
      %4102 = vmatmul.f32.gmra.mxu0 %v3997
      %v4103 = vpop.f32.mrf.mxu0
      %v4104 = vadd.f32 0.0, %v4103
      %4105 = vmatmul.f32.gmra.mxu0 %v3999
      %v4106 = vpop.f32.mrf.mxu0
      %v4107 = vadd.f32 0.0, %v4106
      %4108 = vmatmul.f32.gmra.mxu0 %v4001
      %v4109 = vpop.f32.mrf.mxu0
      %v4110 = vadd.f32 0.0, %v4109
      %4111 = vmatmul.f32.gmra.mxu0 %v4003
      %v4112 = vpop.f32.mrf.mxu0
      %v4113 = vadd.f32 0.0, %v4112
      %4114 = vmatmul.f32.gmra.mxu0 %v4005
      %v4115 = vpop.f32.mrf.mxu0
      %v4116 = vadd.f32 0.0, %v4115
      %4117 = vmatmul.f32.gmra.mxu0 %v4007
      %v4118 = vpop.f32.mrf.mxu0
      %v4119 = vadd.f32 0.0, %v4118
      %4120 = vmatmul.f32.gmra.mxu0 %v4009
      %v4121 = vpop.f32.mrf.mxu0
      %v4122 = vadd.f32 0.0, %v4121
      %4123 = vmatmul.f32.gmra.mxu0 %v4011
      %v4124 = vpop.f32.mrf.mxu0
      %v4125 = vadd.f32 0.0, %v4124
      %4126 = vmatmul.f32.gmra.mxu0 %v4013
      %v4127 = vpop.f32.mrf.mxu0
      %v4128 = vadd.f32 0.0, %v4127
      %4129 = vmatmul.f32.gmra.mxu0 %v4015
      %v4130 = vpop.f32.mrf.mxu0
      %v4131 = vadd.f32 0.0, %v4130
      %4132 = vmatmul.f32.gmra.mxu0 %v4017
      %v4133 = vpop.f32.mrf.mxu0
      %v4134 = vadd.f32 0.0, %v4133
      %4135 = vmatmul.f32.gmra.mxu0 %v4019
      %v4136 = vpop.f32.mrf.mxu0
      %v4137 = vadd.f32 0.0, %v4136
      %4138 = vmatmul.f32.gmra.mxu0 %v4021
      %v4139 = vpop.f32.mrf.mxu0
      %v4140 = vadd.f32 0.0, %v4139
      %4141 = vmatmul.f32.gmra.mxu0 %v4023
      %v4142 = vpop.f32.mrf.mxu0
      %v4143 = vadd.f32 0.0, %v4142
      %4144 = vmatmul.f32.gmra.mxu0 %v4025
      %v4145 = vpop.f32.mrf.mxu0
      %v4146 = vadd.f32 0.0, %v4145
      %4147 = vmatmul.f32.gmra.mxu0 %v4027
      %v4148 = vpop.f32.mrf.mxu0
      %v4149 = vadd.f32 0.0, %v4148
      %4150 = vmatmul.f32.gmra.mxu0 %v4029
      %v4151 = vpop.f32.mrf.mxu0
      %v4152 = vadd.f32 0.0, %v4151
      %4153 = vmatmul.f32.gmra.mxu0 %v4031
      %v4154 = vpop.f32.mrf.mxu0
      %v4155 = vadd.f32 0.0, %v4154
      %4156 = vmatmul.f32.gmra.mxu0 %v4033
      %v4157 = vpop.f32.mrf.mxu0
      %v4158 = vadd.f32 0.0, %v4157
      %4159 = vmatmul.f32.gmra.mxu0 %v4035
      %v4160 = vpop.f32.mrf.mxu0
      %v4161 = vadd.f32 0.0, %v4160
      %4162 = vmatmul.f32.gmra.mxu0 %v4037
      %v4163 = vpop.f32.mrf.mxu0
      %v4164 = vadd.f32 0.0, %v4163
      %4165 = vmatmul.f32.gmra.mxu0 %v4039
      %v4166 = vpop.f32.mrf.mxu0
      %v4167 = vadd.f32 0.0, %v4166
      %4168 = vmatmul.f32.gmra.mxu0 %v4041
      %v4169 = vpop.f32.mrf.mxu0
      %v4170 = vadd.f32 0.0, %v4169
      %4171 = vmatmul.f32.gmra.mxu0 %v4043
      %v4172 = vpop.f32.mrf.mxu0
      %v4173 = vadd.f32 0.0, %v4172
      %4174 = vmatmul.f32.gmra.mxu0 %v4045
      %v4175 = vpop.f32.mrf.mxu0
      %v4176 = vadd.f32 0.0, %v4175
      %4177 = vmatmul.f32.gmra.mxu0 %v4047
      %v4178 = vpop.f32.mrf.mxu0
      %v4179 = vadd.f32 0.0, %v4178
      %4180 = vmatmul.f32.gmra.mxu0 %v4049
      %v4181 = vpop.f32.mrf.mxu0
      %v4182 = vadd.f32 0.0, %v4181
      %4183 = vmatmul.f32.gmra.mxu0 %v4051
      %v4184 = vpop.f32.mrf.mxu0
      %v4185 = vadd.f32 0.0, %v4184
      %4186 = vmatmul.f32.gmra.mxu0 %v4053
      %v4187 = vpop.f32.mrf.mxu0
      %v4188 = vadd.f32 0.0, %v4187
      %4189 = vmatmul.f32.gmra.mxu0 %v4055
      %v4190 = vpop.f32.mrf.mxu0
      %v4191 = vadd.f32 0.0, %v4190
      %4192 = vmatmul.f32.gmra.mxu0 %v4057
      %v4193 = vpop.f32.mrf.mxu0
      %v4194 = vadd.f32 0.0, %v4193
      %4195 = vmatmul.f32.gmra.mxu0 %v4059
      %v4196 = vpop.f32.mrf.mxu0
      %v4197 = vadd.f32 0.0, %v4196
      %4198 = vmatmul.f32.gmra.mxu0 %v4061
      %v4199 = vpop.f32.mrf.mxu0
      %v4200 = vadd.f32 0.0, %v4199
      %4201 = vmatmul.f32.gmra.mxu0 %v4063
      %v4202 = vpop.f32.mrf.mxu0
      %v4203 = vadd.f32 0.0, %v4202
      %4204 = vmatmul.f32.gmra.mxu0 %v4065
      %v4205 = vpop.f32.mrf.mxu0
      %v4206 = vadd.f32 0.0, %v4205
      %4207 = vmatmul.f32.gmra.mxu0 %v4067
      %v4208 = vpop.f32.mrf.mxu0
      %v4209 = vadd.f32 0.0, %v4208
      %4210 = vmatmul.f32.gmra.mxu0 %v4069
      %v4211 = vpop.f32.mrf.mxu0
      %v4212 = vadd.f32 0.0, %v4211
      %4213 = vdwg.mxu0
      %v4214 = vadd.f32 %v3520, %v4092
      %v4215 = vadd.f32 %v3521, %v4095
      %v4216 = vadd.f32 %v3522, %v4098
      %v4217 = vadd.f32 %v3523, %v4101
      %v4218 = vadd.f32 %v3524, %v4104
      %v4219 = vadd.f32 %v3525, %v4107
      %v4220 = vadd.f32 %v3526, %v4110
      %v4221 = vadd.f32 %v3527, %v4113
      %v4222 = vadd.f32 %v3528, %v4116
      %v4223 = vadd.f32 %v3529, %v4119
      %v4224 = vadd.f32 %v3530, %v4122
      %v4225 = vadd.f32 %v3531, %v4125
      %v4226 = vadd.f32 %v3532, %v4128
      %v4227 = vadd.f32 %v3533, %v4131
      %v4228 = vadd.f32 %v3534, %v4134
      %v4229 = vadd.f32 %v3535, %v4137
      %v4230 = vadd.f32 %v3536, %v4140
      %v4231 = vadd.f32 %v3537, %v4143
      %v4232 = vadd.f32 %v3538, %v4146
      %v4233 = vadd.f32 %v3539, %v4149
      %v4234 = vadd.f32 %v3540, %v4152
      %v4235 = vadd.f32 %v3541, %v4155
      %v4236 = vadd.f32 %v3542, %v4158
      %v4237 = vadd.f32 %v3543, %v4161
      %v4238 = vadd.f32 %v3544, %v4164
      %v4239 = vadd.f32 %v3545, %v4167
      %v4240 = vadd.f32 %v3546, %v4170
      %v4241 = vadd.f32 %v3547, %v4173
      %v4242 = vadd.f32 %v3548, %v4176
      %v4243 = vadd.f32 %v3549, %v4179
      %v4244 = vadd.f32 %v3550, %v4182
      %v4245 = vadd.f32 %v3551, %v4185
      %v4246 = vadd.f32 %v3552, %v4188
      %v4247 = vadd.f32 %v3553, %v4191
      %v4248 = vadd.f32 %v3554, %v4194
      %v4249 = vadd.f32 %v3555, %v4197
      %v4250 = vadd.f32 %v3556, %v4200
      %v4251 = vadd.f32 %v3557, %v4203
      %v4252 = vadd.f32 %v3558, %v4206
      %v4253 = vadd.f32 %v3559, %v4209
      %v4254 = vadd.f32 %v3560, %v4212
      %s4255 = scalar_lea.vmem %s165, 48
      %v4256 = vld [vmem:[%s4255] sm:$0xff]
      %v4257 = vld [vmem:[%s4255 + $0x8] sm:$0xff]
      %v4258 = vld [vmem:[%s4255 + $0x10] sm:$0x3]
      %v4259 = vld [vmem:[%s4255 + $0x18] sm:$0xff]
      %v4260 = vld [vmem:[%s4255 + $0x20] sm:$0xff]
      %v4261 = vld [vmem:[%s4255 + $0x28] sm:$0x3]
      %v4262 = vld [vmem:[%s4255 + $0x30] sm:$0xff]
      %v4263 = vld [vmem:[%s4255 + $0x38] sm:$0xff]
      %v4264 = vld [vmem:[%s4255 + $0x40] sm:$0x3]
      %v4265 = vld [vmem:[%s4255 + $0x48] sm:$0xff]
      %v4266 = vld [vmem:[%s4255 + $0x50] sm:$0xff]
      %v4267 = vld [vmem:[%s4255 + $0x58] sm:$0x3]
      %v4268 = vld [vmem:[%s4255 + $0x60] sm:$0xff]
      %v4269 = vld [vmem:[%s4255 + $0x68] sm:$0xff]
      %v4270 = vld [vmem:[%s4255 + $0x70] sm:$0x3]
      %v4271 = vld [vmem:[%s4255 + $0x78] sm:$0xff]
      %v4272 = vld [vmem:[%s4255 + $0x80] sm:$0xff]
      %v4273 = vld [vmem:[%s4255 + $0x88] sm:$0x3]
      %v4274 = vld [vmem:[%s4255 + $0x90] sm:$0xff]
      %v4275 = vld [vmem:[%s4255 + $0x98] sm:$0xff]
      %v4276 = vld [vmem:[%s4255 + $0xa0] sm:$0x3]
      %v4277 = vld [vmem:[%s4255 + $0xa8] sm:$0xff]
      %v4278 = vld [vmem:[%s4255 + $0xb0] sm:$0xff]
      %v4279 = vld [vmem:[%s4255 + $0xb8] sm:$0x3]
      %v4280 = vld [vmem:[%s4255 + $0xc0] sm:$0xff]
      %v4281 = vld [vmem:[%s4255 + $0xc8] sm:$0xff]
      %v4282 = vld [vmem:[%s4255 + $0xd0] sm:$0x3]
      %v4283 = vld [vmem:[%s4255 + $0xd8] sm:$0xff]
      %v4284 = vld [vmem:[%s4255 + $0xe0] sm:$0xff]
      %v4285 = vld [vmem:[%s4255 + $0xe8] sm:$0x3]
      %v4286 = vld [vmem:[%s4255 + $0xf0] sm:$0xff]
      %v4287 = vld [vmem:[%s4255 + $0xf8] sm:$0xff]
      %v4288 = vld [vmem:[%s4255 + $0x100] sm:$0x3]
      %v4289 = vld [vmem:[%s4255 + $0x108] sm:$0xff]
      %v4290 = vld [vmem:[%s4255 + $0x110] sm:$0xff]
      %v4291 = vld [vmem:[%s4255 + $0x118] sm:$0x3]
      %v4292 = vld [vmem:[%s4255 + $0x120] sm:$0xff]
      %v4293 = vld [vmem:[%s4255 + $0x128] sm:$0xff]
      %v4294 = vld [vmem:[%s4255 + $0x130] sm:$0x3]
      %v4295 = vld [vmem:[%s4255 + $0x138] sm:$0xff]
      %v4296 = vld [vmem:[%s4255 + $0x140] sm:$0xff]
      %v4297 = vld [vmem:[%s4255 + $0x148] sm:$0x3]
      %v4298 = vld [vmem:[%s4255 + $0x150] sm:$0xff]
      %v4299 = vld [vmem:[%s4255 + $0x158] sm:$0xff]
      %v4300 = vld [vmem:[%s4255 + $0x160] sm:$0x3]
      %v4301 = vld [vmem:[%s4255 + $0x168] sm:$0xff]
      %v4302 = vld [vmem:[%s4255 + $0x170] sm:$0xff]
      %v4303 = vld [vmem:[%s4255 + $0x178] sm:$0x3]
      %v4304 = vld [vmem:[%s4255 + $0x180] sm:$0xff]
      %v4305 = vld [vmem:[%s4255 + $0x188] sm:$0xff]
      %v4306 = vld [vmem:[%s4255 + $0x190] sm:$0x3]
      %v4307 = vld [vmem:[%s4255 + $0x198] sm:$0xff]
      %v4308 = vld [vmem:[%s4255 + $0x1a0] sm:$0xff]
      %v4309 = vld [vmem:[%s4255 + $0x1a8] sm:$0x3]
      %v4364 = vrot.slane %v4256, 2
      %v4365 = vrot.slane %v4256, 4
      %v4366 = vrot.slane %v4256, 6
      %v4367 = vrot.slane %v4257, 2
      %v4368 = vrot.slane %v4257, 4
      %v4369 = vrot.slane %v4257, 6
      %v4370 = vrot.slane %v4259, 2
      %v4371 = vrot.slane %v4259, 4
      %v4372 = vrot.slane %v4259, 6
      %v4373 = vrot.slane %v4260, 2
      %v4374 = vrot.slane %v4260, 4
      %v4375 = vrot.slane %v4260, 6
      %v4376 = vrot.slane %v4262, 2
      %v4377 = vrot.slane %v4262, 4
      %v4378 = vrot.slane %v4262, 6
      %v4379 = vrot.slane %v4263, 2
      %v4380 = vrot.slane %v4263, 4
      %v4381 = vrot.slane %v4263, 6
      %v4382 = vrot.slane %v4265, 2
      %v4383 = vrot.slane %v4265, 4
      %v4384 = vrot.slane %v4265, 6
      %v4385 = vrot.slane %v4266, 2
      %v4386 = vrot.slane %v4266, 4
      %v4387 = vrot.slane %v4266, 6
      %v4388 = vrot.slane %v4268, 2
      %v4389 = vrot.slane %v4268, 4
      %v4390 = vrot.slane %v4268, 6
      %v4391 = vrot.slane %v4269, 2
      %v4392 = vrot.slane %v4269, 4
      %v4393 = vrot.slane %v4269, 6
      %v4394 = vrot.slane %v4271, 2
      %v4395 = vrot.slane %v4271, 4
      %v4396 = vrot.slane %v4271, 6
      %v4397 = vrot.slane %v4272, 2
      %v4398 = vrot.slane %v4272, 4
      %v4399 = vrot.slane %v4272, 6
      %v4400 = vrot.slane %v4274, 2
      %v4401 = vrot.slane %v4274, 4
      %v4402 = vrot.slane %v4274, 6
      %v4403 = vrot.slane %v4275, 2
      %v4404 = vrot.slane %v4275, 4
      %v4405 = vrot.slane %v4275, 6
      %v4406 = vrot.slane %v4277, 2
      %v4407 = vrot.slane %v4277, 4
      %v4408 = vrot.slane %v4277, 6
      %v4409 = vrot.slane %v4278, 2
      %v4410 = vrot.slane %v4278, 4
      %v4411 = vrot.slane %v4278, 6
      %v4412 = vrot.slane %v4280, 2
      %v4413 = vrot.slane %v4280, 4
      %v4414 = vrot.slane %v4280, 6
      %v4415 = vrot.slane %v4281, 2
      %v4416 = vrot.slane %v4281, 4
      %v4417 = vrot.slane %v4281, 6
      %v4418 = vrot.slane %v4283, 2
      %v4419 = vrot.slane %v4283, 4
      %v4420 = vrot.slane %v4283, 6
      %v4421 = vrot.slane %v4284, 2
      %v4422 = vrot.slane %v4284, 4
      %v4423 = vrot.slane %v4284, 6
      %v4424 = vrot.slane %v4286, 2
      %v4425 = vrot.slane %v4286, 4
      %v4426 = vrot.slane %v4286, 6
      %v4427 = vrot.slane %v4287, 2
      %v4428 = vrot.slane %v4287, 4
      %v4429 = vrot.slane %v4287, 6
      %v4430 = vrot.slane %v4289, 2
      %v4431 = vrot.slane %v4289, 4
      %v4432 = vrot.slane %v4289, 6
      %v4433 = vrot.slane %v4290, 2
      %v4434 = vrot.slane %v4290, 4
      %v4435 = vrot.slane %v4290, 6
      %v4436 = vrot.slane %v4292, 2
      %v4437 = vrot.slane %v4292, 4
      %v4438 = vrot.slane %v4292, 6
      %v4439 = vrot.slane %v4293, 2
      %v4440 = vrot.slane %v4293, 4
      %v4441 = vrot.slane %v4293, 6
      %v4442 = vrot.slane %v4295, 2
      %v4443 = vrot.slane %v4295, 4
      %v4444 = vrot.slane %v4295, 6
      %v4445 = vrot.slane %v4296, 2
      %v4446 = vrot.slane %v4296, 4
      %v4447 = vrot.slane %v4296, 6
      %v4448 = vrot.slane %v4298, 2
      %v4449 = vrot.slane %v4298, 4
      %v4450 = vrot.slane %v4298, 6
      %v4451 = vrot.slane %v4299, 2
      %v4452 = vrot.slane %v4299, 4
      %v4453 = vrot.slane %v4299, 6
      %v4454 = vrot.slane %v4301, 2
      %v4455 = vrot.slane %v4301, 4
      %v4456 = vrot.slane %v4301, 6
      %v4457 = vrot.slane %v4302, 2
      %v4458 = vrot.slane %v4302, 4
      %v4459 = vrot.slane %v4302, 6
      %v4460 = vrot.slane %v4304, 2
      %v4461 = vrot.slane %v4304, 4
      %v4462 = vrot.slane %v4304, 6
      %v4463 = vrot.slane %v4305, 2
      %v4464 = vrot.slane %v4305, 4
      %v4465 = vrot.slane %v4305, 6
      %v4466 = vrot.slane %v4307, 2
      %v4467 = vrot.slane %v4307, 4
      %v4468 = vrot.slane %v4307, 6
      %v4469 = vrot.slane %v4308, 2
      %v4470 = vrot.slane %v4308, 4
      %v4471 = vrot.slane %v4308, 6
      %s4472 = scalar_lea.vmem %s1, 24
      %v4473 = vld [vmem:[%s4472] sm:$0x7]
      %4474 = vst [vmem:[#allocation1] ss:$4 sm:$0xff] %v4256
      %s4475 = scalar_lea.vmem [#allocation1], 1
      %4476 = vst [vmem:[%s4475] ss:$4 sm:$0xff] %v4364
      %s4477 = scalar_lea.vmem [#allocation1], 2
      %4478 = vst [vmem:[%s4477] ss:$4 sm:$0xff] %v4365
      %s4479 = scalar_lea.vmem [#allocation1], 3
      %4480 = vst [vmem:[%s4479] ss:$4 sm:$0xff] %v4366
      %s4481 = scalar_lea.vmem [#allocation1], 32
      %4482 = vst [vmem:[%s4481] ss:$4 sm:$0xff] %v4257
      %s4483 = scalar_lea.vmem [#allocation1], 33
      %4484 = vst [vmem:[%s4483] ss:$4 sm:$0xff] %v4367
      %s4485 = scalar_lea.vmem [#allocation1], 34
      %4486 = vst [vmem:[%s4485] ss:$4 sm:$0xff] %v4368
      %s4487 = scalar_lea.vmem [#allocation1], 35
      %4488 = vst [vmem:[%s4487] ss:$4 sm:$0xff] %v4369
      %v4489 = vld.sshfl [vmem:[#allocation1] sm:$0xff pattern:$0x73625140]
      %v4490 = vld.sshfl [vmem:[#allocation1 + $0x20] sm:$0xff pattern:$0x73625140]
      %4491 = vst [vmem:[#allocation1] ss:$4 sm:$0xff] %v4258
      %4492 = vst [vmem:[%s4475] ss:$4 sm:$0xff] %v4259
      %4493 = vst [vmem:[%s4477] ss:$4 sm:$0xff] %v4370
      %4494 = vst [vmem:[%s4479] ss:$4 sm:$0xff] %v4371
      %4495 = vst [vmem:[%s4481] ss:$4 sm:$0xff] %v4372
      %4496 = vst [vmem:[%s4483] ss:$4 sm:$0xff] %v4260
      %4497 = vst [vmem:[%s4485] ss:$4 sm:$0xff] %v4373
      %4498 = vst [vmem:[%s4487] ss:$4 sm:$0xff] %v4374
      %v4499 = vld.sshfl [vmem:[#allocation1] sm:$0xff pattern:$0x73625140]
      %v4500 = vld.sshfl [vmem:[#allocation1 + $0x20] sm:$0xff pattern:$0x73625140]
      %4501 = vst [vmem:[#allocation1] ss:$4 sm:$0xff] %v4375
      %4502 = vst [vmem:[%s4475] ss:$4 sm:$0xff] %v4261
      %4503 = vst [vmem:[%s4477] ss:$4 sm:$0xff] %v4262
      %4504 = vst [vmem:[%s4479] ss:$4 sm:$0xff] %v4376
      %4505 = vst [vmem:[%s4481] ss:$4 sm:$0xff] %v4377
      %4506 = vst [vmem:[%s4483] ss:$4 sm:$0xff] %v4378
      %4507 = vst [vmem:[%s4485] ss:$4 sm:$0xff] %v4263
      %4508 = vst [vmem:[%s4487] ss:$4 sm:$0xff] %v4379
      %v4509 = vld.sshfl [vmem:[#allocation1] sm:$0xff pattern:$0x73625140]
      %v4510 = vld.sshfl [vmem:[#allocation1 + $0x20] sm:$0xff pattern:$0x73625140]
      %4511 = vst [vmem:[#allocation1] ss:$4 sm:$0xff] %v4380
      %4512 = vst [vmem:[%s4475] ss:$4 sm:$0xff] %v4381
      %4513 = vst [vmem:[%s4477] ss:$4 sm:$0xff] %v4264
      %4514 = vst [vmem:[%s4479] ss:$4 sm:$0xff] %v4265
      %4515 = vst [vmem:[%s4481] ss:$4 sm:$0xff] %v4382
      %4516 = vst [vmem:[%s4483] ss:$4 sm:$0xff] %v4383
      %4517 = vst [vmem:[%s4485] ss:$4 sm:$0xff] %v4384
      %4518 = vst [vmem:[%s4487] ss:$4 sm:$0xff] %v4266
      %v4519 = vld.sshfl [vmem:[#allocation1] sm:$0xff pattern:$0x73625140]
      %v4520 = vld.sshfl [vmem:[#allocation1 + $0x20] sm:$0xff pattern:$0x73625140]
      %4521 = vst [vmem:[#allocation1] ss:$4 sm:$0xff] %v4385
      %4522 = vst [vmem:[%s4475] ss:$4 sm:$0xff] %v4386
      %4523 = vst [vmem:[%s4477] ss:$4 sm:$0xff] %v4387
      %4524 = vst [vmem:[%s4479] ss:$4 sm:$0xff] %v4267
      %4525 = vst [vmem:[%s4481] ss:$4 sm:$0xff] %v4268
      %4526 = vst [vmem:[%s4483] ss:$4 sm:$0xff] %v4388
      %4527 = vst [vmem:[%s4485] ss:$4 sm:$0xff] %v4389
      %4528 = vst [vmem:[%s4487] ss:$4 sm:$0xff] %v4390
      %v4529 = vld.sshfl [vmem:[#allocation1] sm:$0xff pattern:$0x73625140]
      %v4530 = vld.sshfl [vmem:[#allocation1 + $0x20] sm:$0xff pattern:$0x73625140]
      %4531 = vst [vmem:[#allocation1] ss:$4 sm:$0xff] %v4269
      %4532 = vst [vmem:[%s4475] ss:$4 sm:$0xff] %v4391
      %4533 = vst [vmem:[%s4477] ss:$4 sm:$0xff] %v4392
      %4534 = vst [vmem:[%s4479] ss:$4 sm:$0xff] %v4393
      %4535 = vst [vmem:[%s4481] ss:$4 sm:$0xff] %v4270
      %4536 = vst [vmem:[%s4483] ss:$4 sm:$0xff] %v4271
      %4537 = vst [vmem:[%s4485] ss:$4 sm:$0xff] %v4394
      %4538 = vst [vmem:[%s4487] ss:$4 sm:$0xff] %v4395
      %v4539 = vld.sshfl [vmem:[#allocation1] sm:$0xff pattern:$0x73625140]
      %v4540 = vld.sshfl [vmem:[#allocation1 + $0x20] sm:$0xff pattern:$0x73625140]
      %4541 = vst [vmem:[#allocation1] ss:$4 sm:$0xff] %v4396
      %4542 = vst [vmem:[%s4475] ss:$4 sm:$0xff] %v4272
      %4543 = vst [vmem:[%s4477] ss:$4 sm:$0xff] %v4397
      %4544 = vst [vmem:[%s4479] ss:$4 sm:$0xff] %v4398
      %4545 = vst [vmem:[%s4481] ss:$4 sm:$0xff] %v4399
      %4546 = vst [vmem:[%s4483] ss:$4 sm:$0xff] %v4273
      %4547 = vst [vmem:[%s4485] ss:$4 sm:$0xff] %v4274
      %4548 = vst [vmem:[%s4487] ss:$4 sm:$0xff] %v4400
      %v4549 = vld.sshfl [vmem:[#allocation1] sm:$0xff pattern:$0x73625140]
      %v4550 = vld.sshfl [vmem:[#allocation1 + $0x20] sm:$0xff pattern:$0x73625140]
      %4551 = vst [vmem:[#allocation1] ss:$4 sm:$0xff] %v4401
      %4552 = vst [vmem:[%s4475] ss:$4 sm:$0xff] %v4402
      %4553 = vst [vmem:[%s4477] ss:$4 sm:$0xff] %v4275
      %4554 = vst [vmem:[%s4479] ss:$4 sm:$0xff] %v4403
      %4555 = vst [vmem:[%s4481] ss:$4 sm:$0xff] %v4404
      %4556 = vst [vmem:[%s4483] ss:$4 sm:$0xff] %v4405
      %4557 = vst [vmem:[%s4485] ss:$4 sm:$0xff] %v4276
      %4558 = vst [vmem:[%s4487] ss:$4 sm:$0xff] %v4277
      %v4559 = vld.sshfl [vmem:[#allocation1] sm:$0xff pattern:$0x73625140]
      %v4560 = vld.sshfl [vmem:[#allocation1 + $0x20] sm:$0xff pattern:$0x73625140]
      %4561 = vst [vmem:[#allocation1] ss:$4 sm:$0xff] %v4406
      %4562 = vst [vmem:[%s4475] ss:$4 sm:$0xff] %v4407
      %4563 = vst [vmem:[%s4477] ss:$4 sm:$0xff] %v4408
      %4564 = vst [vmem:[%s4479] ss:$4 sm:$0xff] %v4278
      %4565 = vst [vmem:[%s4481] ss:$4 sm:$0xff] %v4409
      %4566 = vst [vmem:[%s4483] ss:$4 sm:$0xff] %v4410
      %4567 = vst [vmem:[%s4485] ss:$4 sm:$0xff] %v4411
      %4568 = vst [vmem:[%s4487] ss:$4 sm:$0xff] %v4279
      %v4569 = vld.sshfl [vmem:[#allocation1] sm:$0xff pattern:$0x73625140]
      %v4570 = vld.sshfl [vmem:[#allocation1 + $0x20] sm:$0xff pattern:$0x73625140]
      %4571 = vst [vmem:[#allocation1] ss:$4 sm:$0xff] %v4280
      %4572 = vst [vmem:[%s4475] ss:$4 sm:$0xff] %v4412
      %4573 = vst [vmem:[%s4477] ss:$4 sm:$0xff] %v4413
      %4574 = vst [vmem:[%s4479] ss:$4 sm:$0xff] %v4414
      %4575 = vst [vmem:[%s4481] ss:$4 sm:$0xff] %v4281
      %4576 = vst [vmem:[%s4483] ss:$4 sm:$0xff] %v4415
      %4577 = vst [vmem:[%s4485] ss:$4 sm:$0xff] %v4416
      %4578 = vst [vmem:[%s4487] ss:$4 sm:$0xff] %v4417
      %v4579 = vld.sshfl [vmem:[#allocation1] sm:$0xff pattern:$0x73625140]
      %v4580 = vld.sshfl [vmem:[#allocation1 + $0x20] sm:$0xff pattern:$0x73625140]
      %4581 = vst [vmem:[#allocation1] ss:$4 sm:$0xff] %v4282
      %4582 = vst [vmem:[%s4475] ss:$4 sm:$0xff] %v4283
      %4583 = vst [vmem:[%s4477] ss:$4 sm:$0xff] %v4418
      %4584 = vst [vmem:[%s4479] ss:$4 sm:$0xff] %v4419
      %4585 = vst [vmem:[%s4481] ss:$4 sm:$0xff] %v4420
      %4586 = vst [vmem:[%s4483] ss:$4 sm:$0xff] %v4284
      %4587 = vst [vmem:[%s4485] ss:$4 sm:$0xff] %v4421
      %4588 = vst [vmem:[%s4487] ss:$4 sm:$0xff] %v4422
      %v4589 = vld.sshfl [vmem:[#allocation1] sm:$0xff pattern:$0x73625140]
      %v4590 = vld.sshfl [vmem:[#allocation1 + $0x20] sm:$0xff pattern:$0x73625140]
      %4591 = vst [vmem:[#allocation1] ss:$4 sm:$0xff] %v4423
      %4592 = vst [vmem:[%s4475] ss:$4 sm:$0xff] %v4285
      %4593 = vst [vmem:[%s4477] ss:$4 sm:$0xff] %v4286
      %4594 = vst [vmem:[%s4479] ss:$4 sm:$0xff] %v4424
      %4595 = vst [vmem:[%s4481] ss:$4 sm:$0xff] %v4425
      %4596 = vst [vmem:[%s4483] ss:$4 sm:$0xff] %v4426
      %4597 = vst [vmem:[%s4485] ss:$4 sm:$0xff] %v4287
      %4598 = vst [vmem:[%s4487] ss:$4 sm:$0xff] %v4427
      %v4599 = vld.sshfl [vmem:[#allocation1] sm:$0xff pattern:$0x73625140]
      %v4600 = vld.sshfl [vmem:[#allocation1 + $0x20] sm:$0xff pattern:$0x73625140]
      %4601 = vst [vmem:[#allocation1] ss:$4 sm:$0xff] %v4428
      %4602 = vst [vmem:[%s4475] ss:$4 sm:$0xff] %v4429
      %4603 = vst [vmem:[%s4477] ss:$4 sm:$0xff] %v4288
      %4604 = vst [vmem:[%s4479] ss:$4 sm:$0xff] %v4289
      %4605 = vst [vmem:[%s4481] ss:$4 sm:$0xff] %v4430
      %4606 = vst [vmem:[%s4483] ss:$4 sm:$0xff] %v4431
      %4607 = vst [vmem:[%s4485] ss:$4 sm:$0xff] %v4432
      %4608 = vst [vmem:[%s4487] ss:$4 sm:$0xff] %v4290
      %v4609 = vld.sshfl [vmem:[#allocation1] sm:$0xff pattern:$0x73625140]
      %v4610 = vld.sshfl [vmem:[#allocation1 + $0x20] sm:$0xff pattern:$0x73625140]
      %4611 = vst [vmem:[#allocation1] ss:$4 sm:$0xff] %v4433
      %4612 = vst [vmem:[%s4475] ss:$4 sm:$0xff] %v4434
      %4613 = vst [vmem:[%s4477] ss:$4 sm:$0xff] %v4435
      %4614 = vst [vmem:[%s4479] ss:$4 sm:$0xff] %v4291
      %4615 = vst [vmem:[%s4481] ss:$4 sm:$0xff] %v4292
      %4616 = vst [vmem:[%s4483] ss:$4 sm:$0xff] %v4436
      %4617 = vst [vmem:[%s4485] ss:$4 sm:$0xff] %v4437
      %4618 = vst [vmem:[%s4487] ss:$4 sm:$0xff] %v4438
      %v4619 = vld.sshfl [vmem:[#allocation1] sm:$0xff pattern:$0x73625140]
      %v4620 = vld.sshfl [vmem:[#allocation1 + $0x20] sm:$0xff pattern:$0x73625140]
      %4621 = vst [vmem:[#allocation1] ss:$4 sm:$0xff] %v4293
      %4622 = vst [vmem:[%s4475] ss:$4 sm:$0xff] %v4439
      %4623 = vst [vmem:[%s4477] ss:$4 sm:$0xff] %v4440
      %4624 = vst [vmem:[%s4479] ss:$4 sm:$0xff] %v4441
      %4625 = vst [vmem:[%s4481] ss:$4 sm:$0xff] %v4294
      %4626 = vst [vmem:[%s4483] ss:$4 sm:$0xff] %v4295
      %4627 = vst [vmem:[%s4485] ss:$4 sm:$0xff] %v4442
      %4628 = vst [vmem:[%s4487] ss:$4 sm:$0xff] %v4443
      %v4629 = vld.sshfl [vmem:[#allocation1] sm:$0xff pattern:$0x73625140]
      %v4630 = vld.sshfl [vmem:[#allocation1 + $0x20] sm:$0xff pattern:$0x73625140]
      %4631 = vst [vmem:[#allocation1] ss:$4 sm:$0xff] %v4444
      %4632 = vst [vmem:[%s4475] ss:$4 sm:$0xff] %v4296
      %4633 = vst [vmem:[%s4477] ss:$4 sm:$0xff] %v4445
      %4634 = vst [vmem:[%s4479] ss:$4 sm:$0xff] %v4446
      %4635 = vst [vmem:[%s4481] ss:$4 sm:$0xff] %v4447
      %4636 = vst [vmem:[%s4483] ss:$4 sm:$0xff] %v4297
      %4637 = vst [vmem:[%s4485] ss:$4 sm:$0xff] %v4298
      %4638 = vst [vmem:[%s4487] ss:$4 sm:$0xff] %v4448
      %v4639 = vld.sshfl [vmem:[#allocation1] sm:$0xff pattern:$0x73625140]
      %v4640 = vld.sshfl [vmem:[#allocation1 + $0x20] sm:$0xff pattern:$0x73625140]
      %4641 = vst [vmem:[#allocation1] ss:$4 sm:$0xff] %v4449
      %4642 = vst [vmem:[%s4475] ss:$4 sm:$0xff] %v4450
      %4643 = vst [vmem:[%s4477] ss:$4 sm:$0xff] %v4299
      %4644 = vst [vmem:[%s4479] ss:$4 sm:$0xff] %v4451
      %4645 = vst [vmem:[%s4481] ss:$4 sm:$0xff] %v4452
      %4646 = vst [vmem:[%s4483] ss:$4 sm:$0xff] %v4453
      %4647 = vst [vmem:[%s4485] ss:$4 sm:$0xff] %v4300
      %4648 = vst [vmem:[%s4487] ss:$4 sm:$0xff] %v4301
      %v4649 = vld.sshfl [vmem:[#allocation1] sm:$0xff pattern:$0x73625140]
      %v4650 = vld.sshfl [vmem:[#allocation1 + $0x20] sm:$0xff pattern:$0x73625140]
      %4651 = vst [vmem:[#allocation1] ss:$4 sm:$0xff] %v4454
      %4652 = vst [vmem:[%s4475] ss:$4 sm:$0xff] %v4455
      %4653 = vst [vmem:[%s4477] ss:$4 sm:$0xff] %v4456
      %4654 = vst [vmem:[%s4479] ss:$4 sm:$0xff] %v4302
      %4655 = vst [vmem:[%s4481] ss:$4 sm:$0xff] %v4457
      %4656 = vst [vmem:[%s4483] ss:$4 sm:$0xff] %v4458
      %4657 = vst [vmem:[%s4485] ss:$4 sm:$0xff] %v4459
      %4658 = vst [vmem:[%s4487] ss:$4 sm:$0xff] %v4303
      %v4659 = vld.sshfl [vmem:[#allocation1] sm:$0xff pattern:$0x73625140]
      %v4660 = vld.sshfl [vmem:[#allocation1 + $0x20] sm:$0xff pattern:$0x73625140]
      %4661 = vst [vmem:[#allocation1] ss:$4 sm:$0xff] %v4304
      %4662 = vst [vmem:[%s4475] ss:$4 sm:$0xff] %v4460
      %4663 = vst [vmem:[%s4477] ss:$4 sm:$0xff] %v4461
      %4664 = vst [vmem:[%s4479] ss:$4 sm:$0xff] %v4462
      %4665 = vst [vmem:[%s4481] ss:$4 sm:$0xff] %v4305
      %4666 = vst [vmem:[%s4483] ss:$4 sm:$0xff] %v4463
      %4667 = vst [vmem:[%s4485] ss:$4 sm:$0xff] %v4464
      %4668 = vst [vmem:[%s4487] ss:$4 sm:$0xff] %v4465
      %v4669 = vld.sshfl [vmem:[#allocation1] sm:$0xff pattern:$0x73625140]
      %v4670 = vld.sshfl [vmem:[#allocation1 + $0x20] sm:$0xff pattern:$0x73625140]
      %4671 = vst [vmem:[#allocation1] ss:$4 sm:$0xff] %v4306
      %4672 = vst [vmem:[%s4475] ss:$4 sm:$0xff] %v4307
      %4673 = vst [vmem:[%s4477] ss:$4 sm:$0xff] %v4466
      %4674 = vst [vmem:[%s4479] ss:$4 sm:$0xff] %v4467
      %4675 = vst [vmem:[%s4481] ss:$4 sm:$0xff] %v4468
      %4676 = vst [vmem:[%s4483] ss:$4 sm:$0xff] %v4308
      %4677 = vst [vmem:[%s4485] ss:$4 sm:$0xff] %v4469
      %4678 = vst [vmem:[%s4487] ss:$4 sm:$0xff] %v4470
      %v4679 = vld.sshfl [vmem:[#allocation1] sm:$0xff pattern:$0x73625140]
      %v4680 = vld.sshfl [vmem:[#allocation1 + $0x20] sm:$0xff pattern:$0x73625140]
      %4681 = vst [vmem:[#allocation1] ss:$4 sm:$0xff] %v4471
      %4682 = vst [vmem:[%s4475] ss:$4 sm:$0xff] %v4309
      %v4683 = vld.sshfl [vmem:[#allocation1] sm:$0xff pattern:$0x73625140]
      %v4684 = vsel %vm816, %v4489, 0
      %v4686 = vsel %vm816, %v4490, 0
      %v4688 = vsel %vm816, %v4499, 0
      %v4690 = vsel %vm816, %v4500, 0
      %v4692 = vsel %vm816, %v4509, 0
      %v4694 = vsel %vm816, %v4510, 0
      %v4696 = vsel %vm816, %v4519, 0
      %v4698 = vsel %vm816, %v4520, 0
      %v4700 = vsel %vm816, %v4529, 0
      %v4702 = vsel %vm816, %v4530, 0
      %v4704 = vsel %vm816, %v4539, 0
      %v4706 = vsel %vm816, %v4540, 0
      %v4708 = vsel %vm816, %v4549, 0
      %v4710 = vsel %vm816, %v4550, 0
      %v4712 = vsel %vm816, %v4559, 0
      %v4714 = vsel %vm816, %v4560, 0
      %v4716 = vsel %vm816, %v4569, 0
      %v4718 = vsel %vm816, %v4570, 0
      %v4720 = vsel %vm816, %v4579, 0
      %v4722 = vsel %vm816, %v4580, 0
      %v4724 = vsel %vm816, %v4589, 0
      %v4726 = vsel %vm816, %v4590, 0
      %v4728 = vsel %vm816, %v4599, 0
      %v4730 = vsel %vm816, %v4600, 0
      %v4732 = vsel %vm816, %v4609, 0
      %v4734 = vsel %vm816, %v4610, 0
      %v4736 = vsel %vm816, %v4619, 0
      %v4738 = vsel %vm816, %v4620, 0
      %v4740 = vsel %vm816, %v4629, 0
      %v4742 = vsel %vm816, %v4630, 0
      %v4744 = vsel %vm816, %v4639, 0
      %v4746 = vsel %vm816, %v4640, 0
      %v4748 = vsel %vm816, %v4649, 0
      %v4750 = vsel %vm816, %v4650, 0
      %v4752 = vsel %vm816, %v4659, 0
      %v4754 = vsel %vm816, %v4660, 0
      %v4756 = vsel %vm816, %v4669, 0
      %v4758 = vsel %vm816, %v4670, 0
      %v4760 = vsel %vm816, %v4679, 0
      %v4762 = vsel %vm816, %v4680, 0
      %v4764 = vsel %vm816, %v4683, 0
      %v4767 = vsel %vm899, %v4473, 0
      %4769 = vmatpush.msra.mxu0 0.0
      %4770 = vmatpush.msra.mxu0 0.0
      %4771 = vmatpush.msra.mxu0 0.0
      %4772 = vmatpush.msra.mxu0 0.0
      %4773 = vmatpush.msra.mxu0 0.0
      %4774 = vmatpush.msra.mxu0 0.0
      %4775 = vmatpush.msra.mxu0 0.0
      %4776 = vmatpush.msra.mxu0 0.0
      %4777 = vmatpush.msra.mxu0 0.0
      %4778 = vmatpush.msra.mxu0 0.0
      %4779 = vmatpush.msra.mxu0 0.0
      %4780 = vmatpush.msra.mxu0 0.0
      %4781 = vmatpush.msra.mxu0 0.0
      %4782 = vmatpush.msra.mxu0 0.0
      %4783 = vmatpush.msra.mxu0 0.0
      %4784 = vmatpush.msra.mxu0 %v4767
      %4785 = vmatmul.f32.gmra.mxu0 %v4684
      %v4786 = vpop.f32.mrf.mxu0
      %v4787 = vadd.f32 0.0, %v4786
      %4788 = vmatmul.f32.gmra.mxu0 %v4686
      %v4789 = vpop.f32.mrf.mxu0
      %v4790 = vadd.f32 0.0, %v4789
      %4791 = vmatmul.f32.gmra.mxu0 %v4688
      %v4792 = vpop.f32.mrf.mxu0
      %v4793 = vadd.f32 0.0, %v4792
      %4794 = vmatmul.f32.gmra.mxu0 %v4690
      %v4795 = vpop.f32.mrf.mxu0
      %v4796 = vadd.f32 0.0, %v4795
      %4797 = vmatmul.f32.gmra.mxu0 %v4692
      %v4798 = vpop.f32.mrf.mxu0
      %v4799 = vadd.f32 0.0, %v4798
      %4800 = vmatmul.f32.gmra.mxu0 %v4694
      %v4801 = vpop.f32.mrf.mxu0
      %v4802 = vadd.f32 0.0, %v4801
      %4803 = vmatmul.f32.gmra.mxu0 %v4696
      %v4804 = vpop.f32.mrf.mxu0
      %v4805 = vadd.f32 0.0, %v4804
      %4806 = vmatmul.f32.gmra.mxu0 %v4698
      %v4807 = vpop.f32.mrf.mxu0
      %v4808 = vadd.f32 0.0, %v4807
      %4809 = vmatmul.f32.gmra.mxu0 %v4700
      %v4810 = vpop.f32.mrf.mxu0
      %v4811 = vadd.f32 0.0, %v4810
      %4812 = vmatmul.f32.gmra.mxu0 %v4702
      %v4813 = vpop.f32.mrf.mxu0
      %v4814 = vadd.f32 0.0, %v4813
      %4815 = vmatmul.f32.gmra.mxu0 %v4704
      %v4816 = vpop.f32.mrf.mxu0
      %v4817 = vadd.f32 0.0, %v4816
      %4818 = vmatmul.f32.gmra.mxu0 %v4706
      %v4819 = vpop.f32.mrf.mxu0
      %v4820 = vadd.f32 0.0, %v4819
      %4821 = vmatmul.f32.gmra.mxu0 %v4708
      %v4822 = vpop.f32.mrf.mxu0
      %v4823 = vadd.f32 0.0, %v4822
      %4824 = vmatmul.f32.gmra.mxu0 %v4710
      %v4825 = vpop.f32.mrf.mxu0
      %v4826 = vadd.f32 0.0, %v4825
      %4827 = vmatmul.f32.gmra.mxu0 %v4712
      %v4828 = vpop.f32.mrf.mxu0
      %v4829 = vadd.f32 0.0, %v4828
      %4830 = vmatmul.f32.gmra.mxu0 %v4714
      %v4831 = vpop.f32.mrf.mxu0
      %v4832 = vadd.f32 0.0, %v4831
      %4833 = vmatmul.f32.gmra.mxu0 %v4716
      %v4834 = vpop.f32.mrf.mxu0
      %v4835 = vadd.f32 0.0, %v4834
      %4836 = vmatmul.f32.gmra.mxu0 %v4718
      %v4837 = vpop.f32.mrf.mxu0
      %v4838 = vadd.f32 0.0, %v4837
      %4839 = vmatmul.f32.gmra.mxu0 %v4720
      %v4840 = vpop.f32.mrf.mxu0
      %v4841 = vadd.f32 0.0, %v4840
      %4842 = vmatmul.f32.gmra.mxu0 %v4722
      %v4843 = vpop.f32.mrf.mxu0
      %v4844 = vadd.f32 0.0, %v4843
      %4845 = vmatmul.f32.gmra.mxu0 %v4724
      %v4846 = vpop.f32.mrf.mxu0
      %v4847 = vadd.f32 0.0, %v4846
      %4848 = vmatmul.f32.gmra.mxu0 %v4726
      %v4849 = vpop.f32.mrf.mxu0
      %v4850 = vadd.f32 0.0, %v4849
      %4851 = vmatmul.f32.gmra.mxu0 %v4728
      %v4852 = vpop.f32.mrf.mxu0
      %v4853 = vadd.f32 0.0, %v4852
      %4854 = vmatmul.f32.gmra.mxu0 %v4730
      %v4855 = vpop.f32.mrf.mxu0
      %v4856 = vadd.f32 0.0, %v4855
      %4857 = vmatmul.f32.gmra.mxu0 %v4732
      %v4858 = vpop.f32.mrf.mxu0
      %v4859 = vadd.f32 0.0, %v4858
      %4860 = vmatmul.f32.gmra.mxu0 %v4734
      %v4861 = vpop.f32.mrf.mxu0
      %v4862 = vadd.f32 0.0, %v4861
      %4863 = vmatmul.f32.gmra.mxu0 %v4736
      %v4864 = vpop.f32.mrf.mxu0
      %v4865 = vadd.f32 0.0, %v4864
      %4866 = vmatmul.f32.gmra.mxu0 %v4738
      %v4867 = vpop.f32.mrf.mxu0
      %v4868 = vadd.f32 0.0, %v4867
      %4869 = vmatmul.f32.gmra.mxu0 %v4740
      %v4870 = vpop.f32.mrf.mxu0
      %v4871 = vadd.f32 0.0, %v4870
      %4872 = vmatmul.f32.gmra.mxu0 %v4742
      %v4873 = vpop.f32.mrf.mxu0
      %v4874 = vadd.f32 0.0, %v4873
      %4875 = vmatmul.f32.gmra.mxu0 %v4744
      %v4876 = vpop.f32.mrf.mxu0
      %v4877 = vadd.f32 0.0, %v4876
      %4878 = vmatmul.f32.gmra.mxu0 %v4746
      %v4879 = vpop.f32.mrf.mxu0
      %v4880 = vadd.f32 0.0, %v4879
      %4881 = vmatmul.f32.gmra.mxu0 %v4748
      %v4882 = vpop.f32.mrf.mxu0
      %v4883 = vadd.f32 0.0, %v4882
      %4884 = vmatmul.f32.gmra.mxu0 %v4750
      %v4885 = vpop.f32.mrf.mxu0
      %v4886 = vadd.f32 0.0, %v4885
      %4887 = vmatmul.f32.gmra.mxu0 %v4752
      %v4888 = vpop.f32.mrf.mxu0
      %v4889 = vadd.f32 0.0, %v4888
      %4890 = vmatmul.f32.gmra.mxu0 %v4754
      %v4891 = vpop.f32.mrf.mxu0
      %v4892 = vadd.f32 0.0, %v4891
      %4893 = vmatmul.f32.gmra.mxu0 %v4756
      %v4894 = vpop.f32.mrf.mxu0
      %v4895 = vadd.f32 0.0, %v4894
      %4896 = vmatmul.f32.gmra.mxu0 %v4758
      %v4897 = vpop.f32.mrf.mxu0
      %v4898 = vadd.f32 0.0, %v4897
      %4899 = vmatmul.f32.gmra.mxu0 %v4760
      %v4900 = vpop.f32.mrf.mxu0
      %v4901 = vadd.f32 0.0, %v4900
      %4902 = vmatmul.f32.gmra.mxu0 %v4762
      %v4903 = vpop.f32.mrf.mxu0
      %v4904 = vadd.f32 0.0, %v4903
      %4905 = vmatmul.f32.gmra.mxu0 %v4764
      %v4906 = vpop.f32.mrf.mxu0
      %v4907 = vadd.f32 0.0, %v4906
      %4908 = vdwg.mxu0
      %v4909 = vadd.f32 %v4214, %v4787
      %v4910 = vadd.f32 %v4215, %v4790
      %v4911 = vadd.f32 %v4216, %v4793
      %v4912 = vadd.f32 %v4217, %v4796
      %v4913 = vadd.f32 %v4218, %v4799
      %v4914 = vadd.f32 %v4219, %v4802
      %v4915 = vadd.f32 %v4220, %v4805
      %v4916 = vadd.f32 %v4221, %v4808
      %v4917 = vadd.f32 %v4222, %v4811
      %v4918 = vadd.f32 %v4223, %v4814
      %v4919 = vadd.f32 %v4224, %v4817
      %v4920 = vadd.f32 %v4225, %v4820
      %v4921 = vadd.f32 %v4226, %v4823
      %v4922 = vadd.f32 %v4227, %v4826
      %v4923 = vadd.f32 %v4228, %v4829
      %v4924 = vadd.f32 %v4229, %v4832
      %v4925 = vadd.f32 %v4230, %v4835
      %v4926 = vadd.f32 %v4231, %v4838
      %v4927 = vadd.f32 %v4232, %v4841
      %v4928 = vadd.f32 %v4233, %v4844
      %v4929 = vadd.f32 %v4234, %v4847
      %v4930 = vadd.f32 %v4235, %v4850
      %v4931 = vadd.f32 %v4236, %v4853
      %v4932 = vadd.f32 %v4237, %v4856
      %v4933 = vadd.f32 %v4238, %v4859
      %v4934 = vadd.f32 %v4239, %v4862
      %v4935 = vadd.f32 %v4240, %v4865
      %v4936 = vadd.f32 %v4241, %v4868
      %v4937 = vadd.f32 %v4242, %v4871
      %v4938 = vadd.f32 %v4243, %v4874
      %v4939 = vadd.f32 %v4244, %v4877
      %v4940 = vadd.f32 %v4245, %v4880
      %v4941 = vadd.f32 %v4246, %v4883
      %v4942 = vadd.f32 %v4247, %v4886
      %v4943 = vadd.f32 %v4248, %v4889
      %v4944 = vadd.f32 %v4249, %v4892
      %v4945 = vadd.f32 %v4250, %v4895
      %v4946 = vadd.f32 %v4251, %v4898
      %v4947 = vadd.f32 %v4252, %v4901
      %v4948 = vadd.f32 %v4253, %v4904
      %v4949 = vadd.f32 %v4254, %v4907
      %v4950 = vld [vmem:[%s4255 + $0x1] sm:$0xff]
      %v4951 = vld [vmem:[%s4255 + $0x9] sm:$0xff]
      %v4952 = vld [vmem:[%s4255 + $0x11] sm:$0x3]
      %v4953 = vld [vmem:[%s4255 + $0x19] sm:$0xff]
      %v4954 = vld [vmem:[%s4255 + $0x21] sm:$0xff]
      %v4955 = vld [vmem:[%s4255 + $0x29] sm:$0x3]
      %v4956 = vld [vmem:[%s4255 + $0x31] sm:$0xff]
      %v4957 = vld [vmem:[%s4255 + $0x39] sm:$0xff]
      %v4958 = vld [vmem:[%s4255 + $0x41] sm:$0x3]
      %v4959 = vld [vmem:[%s4255 + $0x49] sm:$0xff]
      %v4960 = vld [vmem:[%s4255 + $0x51] sm:$0xff]
      %v4961 = vld [vmem:[%s4255 + $0x59] sm:$0x3]
      %v4962 = vld [vmem:[%s4255 + $0x61] sm:$0xff]
      %v4963 = vld [vmem:[%s4255 + $0x69] sm:$0xff]
      %v4964 = vld [vmem:[%s4255 + $0x71] sm:$0x3]
      %v4965 = vld [vmem:[%s4255 + $0x79] sm:$0xff]
      %v4966 = vld [vmem:[%s4255 + $0x81] sm:$0xff]
      %v4967 = vld [vmem:[%s4255 + $0x89] sm:$0x3]
      %v4968 = vld [vmem:[%s4255 + $0x91] sm:$0xff]
      %v4969 = vld [vmem:[%s4255 + $0x99] sm:$0xff]
      %v4970 = vld [vmem:[%s4255 + $0xa1] sm:$0x3]
      %v4971 = vld [vmem:[%s4255 + $0xa9] sm:$0xff]
      %v4972 = vld [vmem:[%s4255 + $0xb1] sm:$0xff]
      %v4973 = vld [vmem:[%s4255 + $0xb9] sm:$0x3]
      %v4974 = vld [vmem:[%s4255 + $0xc1] sm:$0xff]
      %v4975 = vld [vmem:[%s4255 + $0xc9] sm:$0xff]
      %v4976 = vld [vmem:[%s4255 + $0xd1] sm:$0x3]
      %v4977 = vld [vmem:[%s4255 + $0xd9] sm:$0xff]
      %v4978 = vld [vmem:[%s4255 + $0xe1] sm:$0xff]
      %v4979 = vld [vmem:[%s4255 + $0xe9] sm:$0x3]
      %v4980 = vld [vmem:[%s4255 + $0xf1] sm:$0xff]
      %v4981 = vld [vmem:[%s4255 + $0xf9] sm:$0xff]
      %v4982 = vld [vmem:[%s4255 + $0x101] sm:$0x3]
      %v4983 = vld [vmem:[%s4255 + $0x109] sm:$0xff]
      %v4984 = vld [vmem:[%s4255 + $0x111] sm:$0xff]
      %v4985 = vld [vmem:[%s4255 + $0x119] sm:$0x3]
      %v4986 = vld [vmem:[%s4255 + $0x121] sm:$0xff]
      %v4987 = vld [vmem:[%s4255 + $0x129] sm:$0xff]
      %v4988 = vld [vmem:[%s4255 + $0x131] sm:$0x3]
      %v4989 = vld [vmem:[%s4255 + $0x139] sm:$0xff]
      %v4990 = vld [vmem:[%s4255 + $0x141] sm:$0xff]
      %v4991 = vld [vmem:[%s4255 + $0x149] sm:$0x3]
      %v4992 = vld [vmem:[%s4255 + $0x151] sm:$0xff]
      %v4993 = vld [vmem:[%s4255 + $0x159] sm:$0xff]
      %v4994 = vld [vmem:[%s4255 + $0x161] sm:$0x3]
      %v4995 = vld [vmem:[%s4255 + $0x169] sm:$0xff]
      %v4996 = vld [vmem:[%s4255 + $0x171] sm:$0xff]
      %v4997 = vld [vmem:[%s4255 + $0x179] sm:$0x3]
      %v4998 = vld [vmem:[%s4255 + $0x181] sm:$0xff]
      %v4999 = vld [vmem:[%s4255 + $0x189] sm:$0xff]
      %v5000 = vld [vmem:[%s4255 + $0x191] sm:$0x3]
      %v5001 = vld [vmem:[%s4255 + $0x199] sm:$0xff]
      %v5002 = vld [vmem:[%s4255 + $0x1a1] sm:$0xff]
      %v5003 = vld [vmem:[%s4255 + $0x1a9] sm:$0x3]
      %v5058 = vrot.slane %v4950, 2
      %v5059 = vrot.slane %v4950, 4
      %v5060 = vrot.slane %v4950, 6
      %v5061 = vrot.slane %v4951, 2
      %v5062 = vrot.slane %v4951, 4
      %v5063 = vrot.slane %v4951, 6
      %v5064 = vrot.slane %v4953, 2
      %v5065 = vrot.slane %v4953, 4
      %v5066 = vrot.slane %v4953, 6
      %v5067 = vrot.slane %v4954, 2
      %v5068 = vrot.slane %v4954, 4
      %v5069 = vrot.slane %v4954, 6
      %v5070 = vrot.slane %v4956, 2
      %v5071 = vrot.slane %v4956, 4
      %v5072 = vrot.slane %v4956, 6
      %v5073 = vrot.slane %v4957, 2
      %v5074 = vrot.slane %v4957, 4
      %v5075 = vrot.slane %v4957, 6
      %v5076 = vrot.slane %v4959, 2
      %v5077 = vrot.slane %v4959, 4
      %v5078 = vrot.slane %v4959, 6
      %v5079 = vrot.slane %v4960, 2
      %v5080 = vrot.slane %v4960, 4
      %v5081 = vrot.slane %v4960, 6
      %v5082 = vrot.slane %v4962, 2
      %v5083 = vrot.slane %v4962, 4
      %v5084 = vrot.slane %v4962, 6
      %v5085 = vrot.slane %v4963, 2
      %v5086 = vrot.slane %v4963, 4
      %v5087 = vrot.slane %v4963, 6
      %v5088 = vrot.slane %v4965, 2
      %v5089 = vrot.slane %v4965, 4
      %v5090 = vrot.slane %v4965, 6
      %v5091 = vrot.slane %v4966, 2
      %v5092 = vrot.slane %v4966, 4
      %v5093 = vrot.slane %v4966, 6
      %v5094 = vrot.slane %v4968, 2
      %v5095 = vrot.slane %v4968, 4
      %v5096 = vrot.slane %v4968, 6
      %v5097 = vrot.slane %v4969, 2
      %v5098 = vrot.slane %v4969, 4
      %v5099 = vrot.slane %v4969, 6
      %v5100 = vrot.slane %v4971, 2
      %v5101 = vrot.slane %v4971, 4
      %v5102 = vrot.slane %v4971, 6
      %v5103 = vrot.slane %v4972, 2
      %v5104 = vrot.slane %v4972, 4
      %v5105 = vrot.slane %v4972, 6
      %v5106 = vrot.slane %v4974, 2
      %v5107 = vrot.slane %v4974, 4
      %v5108 = vrot.slane %v4974, 6
      %v5109 = vrot.slane %v4975, 2
      %v5110 = vrot.slane %v4975, 4
      %v5111 = vrot.slane %v4975, 6
      %v5112 = vrot.slane %v4977, 2
      %v5113 = vrot.slane %v4977, 4
      %v5114 = vrot.slane %v4977, 6
      %v5115 = vrot.slane %v4978, 2
      %v5116 = vrot.slane %v4978, 4
      %v5117 = vrot.slane %v4978, 6
      %v5118 = vrot.slane %v4980, 2
      %v5119 = vrot.slane %v4980, 4
      %v5120 = vrot.slane %v4980, 6
      %v5121 = vrot.slane %v4981, 2
      %v5122 = vrot.slane %v4981, 4
      %v5123 = vrot.slane %v4981, 6
      %v5124 = vrot.slane %v4983, 2
      %v5125 = vrot.slane %v4983, 4
      %v5126 = vrot.slane %v4983, 6
      %v5127 = vrot.slane %v4984, 2
      %v5128 = vrot.slane %v4984, 4
      %v5129 = vrot.slane %v4984, 6
      %v5130 = vrot.slane %v4986, 2
      %v5131 = vrot.slane %v4986, 4
      %v5132 = vrot.slane %v4986, 6
      %v5133 = vrot.slane %v4987, 2
      %v5134 = vrot.slane %v4987, 4
      %v5135 = vrot.slane %v4987, 6
      %v5136 = vrot.slane %v4989, 2
      %v5137 = vrot.slane %v4989, 4
      %v5138 = vrot.slane %v4989, 6
      %v5139 = vrot.slane %v4990, 2
      %v5140 = vrot.slane %v4990, 4
      %v5141 = vrot.slane %v4990, 6
      %v5142 = vrot.slane %v4992, 2
      %v5143 = vrot.slane %v4992, 4
      %v5144 = vrot.slane %v4992, 6
      %v5145 = vrot.slane %v4993, 2
      %v5146 = vrot.slane %v4993, 4
      %v5147 = vrot.slane %v4993, 6
      %v5148 = vrot.slane %v4995, 2
      %v5149 = vrot.slane %v4995, 4
      %v5150 = vrot.slane %v4995, 6
      %v5151 = vrot.slane %v4996, 2
      %v5152 = vrot.slane %v4996, 4
      %v5153 = vrot.slane %v4996, 6
      %v5154 = vrot.slane %v4998, 2
      %v5155 = vrot.slane %v4998, 4
      %v5156 = vrot.slane %v4998, 6
      %v5157 = vrot.slane %v4999, 2
      %v5158 = vrot.slane %v4999, 4
      %v5159 = vrot.slane %v4999, 6
      %v5160 = vrot.slane %v5001, 2
      %v5161 = vrot.slane %v5001, 4
      %v5162 = vrot.slane %v5001, 6
      %v5163 = vrot.slane %v5002, 2
      %v5164 = vrot.slane %v5002, 4
      %v5165 = vrot.slane %v5002, 6
      %s5166 = scalar_lea.vmem %s1, 28
      %v5167 = vld [vmem:[%s5166] sm:$0x7]
      %5168 = vst [vmem:[#allocation1] ss:$4 sm:$0xff] %v4950
      %s5169 = scalar_lea.vmem [#allocation1], 1
      %5170 = vst [vmem:[%s5169] ss:$4 sm:$0xff] %v5058
      %s5171 = scalar_lea.vmem [#allocation1], 2
      %5172 = vst [vmem:[%s5171] ss:$4 sm:$0xff] %v5059
      %s5173 = scalar_lea.vmem [#allocation1], 3
      %5174 = vst [vmem:[%s5173] ss:$4 sm:$0xff] %v5060
      %s5175 = scalar_lea.vmem [#allocation1], 32
      %5176 = vst [vmem:[%s5175] ss:$4 sm:$0xff] %v4951
      %s5177 = scalar_lea.vmem [#allocation1], 33
      %5178 = vst [vmem:[%s5177] ss:$4 sm:$0xff] %v5061
      %s5179 = scalar_lea.vmem [#allocation1], 34
      %5180 = vst [vmem:[%s5179] ss:$4 sm:$0xff] %v5062
      %s5181 = scalar_lea.vmem [#allocation1], 35
      %5182 = vst [vmem:[%s5181] ss:$4 sm:$0xff] %v5063
      %v5183 = vld.sshfl [vmem:[#allocation1] sm:$0xff pattern:$0x73625140]
      %v5184 = vld.sshfl [vmem:[#allocation1 + $0x20] sm:$0xff pattern:$0x73625140]
      %5185 = vst [vmem:[#allocation1] ss:$4 sm:$0xff] %v4952
      %5186 = vst [vmem:[%s5169] ss:$4 sm:$0xff] %v4953
      %5187 = vst [vmem:[%s5171] ss:$4 sm:$0xff] %v5064
      %5188 = vst [vmem:[%s5173] ss:$4 sm:$0xff] %v5065
      %5189 = vst [vmem:[%s5175] ss:$4 sm:$0xff] %v5066
      %5190 = vst [vmem:[%s5177] ss:$4 sm:$0xff] %v4954
      %5191 = vst [vmem:[%s5179] ss:$4 sm:$0xff] %v5067
      %5192 = vst [vmem:[%s5181] ss:$4 sm:$0xff] %v5068
      %v5193 = vld.sshfl [vmem:[#allocation1] sm:$0xff pattern:$0x73625140]
      %v5194 = vld.sshfl [vmem:[#allocation1 + $0x20] sm:$0xff pattern:$0x73625140]
      %5195 = vst [vmem:[#allocation1] ss:$4 sm:$0xff] %v5069
      %5196 = vst [vmem:[%s5169] ss:$4 sm:$0xff] %v4955
      %5197 = vst [vmem:[%s5171] ss:$4 sm:$0xff] %v4956
      %5198 = vst [vmem:[%s5173] ss:$4 sm:$0xff] %v5070
      %5199 = vst [vmem:[%s5175] ss:$4 sm:$0xff] %v5071
      %5200 = vst [vmem:[%s5177] ss:$4 sm:$0xff] %v5072
      %5201 = vst [vmem:[%s5179] ss:$4 sm:$0xff] %v4957
      %5202 = vst [vmem:[%s5181] ss:$4 sm:$0xff] %v5073
      %v5203 = vld.sshfl [vmem:[#allocation1] sm:$0xff pattern:$0x73625140]
      %v5204 = vld.sshfl [vmem:[#allocation1 + $0x20] sm:$0xff pattern:$0x73625140]
      %5205 = vst [vmem:[#allocation1] ss:$4 sm:$0xff] %v5074
      %5206 = vst [vmem:[%s5169] ss:$4 sm:$0xff] %v5075
      %5207 = vst [vmem:[%s5171] ss:$4 sm:$0xff] %v4958
      %5208 = vst [vmem:[%s5173] ss:$4 sm:$0xff] %v4959
      %5209 = vst [vmem:[%s5175] ss:$4 sm:$0xff] %v5076
      %5210 = vst [vmem:[%s5177] ss:$4 sm:$0xff] %v5077
      %5211 = vst [vmem:[%s5179] ss:$4 sm:$0xff] %v5078
      %5212 = vst [vmem:[%s5181] ss:$4 sm:$0xff] %v4960
      %v5213 = vld.sshfl [vmem:[#allocation1] sm:$0xff pattern:$0x73625140]
      %v5214 = vld.sshfl [vmem:[#allocation1 + $0x20] sm:$0xff pattern:$0x73625140]
      %5215 = vst [vmem:[#allocation1] ss:$4 sm:$0xff] %v5079
      %5216 = vst [vmem:[%s5169] ss:$4 sm:$0xff] %v5080
      %5217 = vst [vmem:[%s5171] ss:$4 sm:$0xff] %v5081
      %5218 = vst [vmem:[%s5173] ss:$4 sm:$0xff] %v4961
      %5219 = vst [vmem:[%s5175] ss:$4 sm:$0xff] %v4962
      %5220 = vst [vmem:[%s5177] ss:$4 sm:$0xff] %v5082
      %5221 = vst [vmem:[%s5179] ss:$4 sm:$0xff] %v5083
      %5222 = vst [vmem:[%s5181] ss:$4 sm:$0xff] %v5084
      %v5223 = vld.sshfl [vmem:[#allocation1] sm:$0xff pattern:$0x73625140]
      %v5224 = vld.sshfl [vmem:[#allocation1 + $0x20] sm:$0xff pattern:$0x73625140]
      %5225 = vst [vmem:[#allocation1] ss:$4 sm:$0xff] %v4963
      %5226 = vst [vmem:[%s5169] ss:$4 sm:$0xff] %v5085
      %5227 = vst [vmem:[%s5171] ss:$4 sm:$0xff] %v5086
      %5228 = vst [vmem:[%s5173] ss:$4 sm:$0xff] %v5087
      %5229 = vst [vmem:[%s5175] ss:$4 sm:$0xff] %v4964
      %5230 = vst [vmem:[%s5177] ss:$4 sm:$0xff] %v4965
      %5231 = vst [vmem:[%s5179] ss:$4 sm:$0xff] %v5088
      %5232 = vst [vmem:[%s5181] ss:$4 sm:$0xff] %v5089
      %v5233 = vld.sshfl [vmem:[#allocation1] sm:$0xff pattern:$0x73625140]
      %v5234 = vld.sshfl [vmem:[#allocation1 + $0x20] sm:$0xff pattern:$0x73625140]
      %5235 = vst [vmem:[#allocation1] ss:$4 sm:$0xff] %v5090
      %5236 = vst [vmem:[%s5169] ss:$4 sm:$0xff] %v4966
      %5237 = vst [vmem:[%s5171] ss:$4 sm:$0xff] %v5091
      %5238 = vst [vmem:[%s5173] ss:$4 sm:$0xff] %v5092
      %5239 = vst [vmem:[%s5175] ss:$4 sm:$0xff] %v5093
      %5240 = vst [vmem:[%s5177] ss:$4 sm:$0xff] %v4967
      %5241 = vst [vmem:[%s5179] ss:$4 sm:$0xff] %v4968
      %5242 = vst [vmem:[%s5181] ss:$4 sm:$0xff] %v5094
      %v5243 = vld.sshfl [vmem:[#allocation1] sm:$0xff pattern:$0x73625140]
      %v5244 = vld.sshfl [vmem:[#allocation1 + $0x20] sm:$0xff pattern:$0x73625140]
      %5245 = vst [vmem:[#allocation1] ss:$4 sm:$0xff] %v5095
      %5246 = vst [vmem:[%s5169] ss:$4 sm:$0xff] %v5096
      %5247 = vst [vmem:[%s5171] ss:$4 sm:$0xff] %v4969
      %5248 = vst [vmem:[%s5173] ss:$4 sm:$0xff] %v5097
      %5249 = vst [vmem:[%s5175] ss:$4 sm:$0xff] %v5098
      %5250 = vst [vmem:[%s5177] ss:$4 sm:$0xff] %v5099
      %5251 = vst [vmem:[%s5179] ss:$4 sm:$0xff] %v4970
      %5252 = vst [vmem:[%s5181] ss:$4 sm:$0xff] %v4971
      %v5253 = vld.sshfl [vmem:[#allocation1] sm:$0xff pattern:$0x73625140]
      %v5254 = vld.sshfl [vmem:[#allocation1 + $0x20] sm:$0xff pattern:$0x73625140]
      %5255 = vst [vmem:[#allocation1] ss:$4 sm:$0xff] %v5100
      %5256 = vst [vmem:[%s5169] ss:$4 sm:$0xff] %v5101
      %5257 = vst [vmem:[%s5171] ss:$4 sm:$0xff] %v5102
      %5258 = vst [vmem:[%s5173] ss:$4 sm:$0xff] %v4972
      %5259 = vst [vmem:[%s5175] ss:$4 sm:$0xff] %v5103
      %5260 = vst [vmem:[%s5177] ss:$4 sm:$0xff] %v5104
      %5261 = vst [vmem:[%s5179] ss:$4 sm:$0xff] %v5105
      %5262 = vst [vmem:[%s5181] ss:$4 sm:$0xff] %v4973
      %v5263 = vld.sshfl [vmem:[#allocation1] sm:$0xff pattern:$0x73625140]
      %v5264 = vld.sshfl [vmem:[#allocation1 + $0x20] sm:$0xff pattern:$0x73625140]
      %5265 = vst [vmem:[#allocation1] ss:$4 sm:$0xff] %v4974
      %5266 = vst [vmem:[%s5169] ss:$4 sm:$0xff] %v5106
      %5267 = vst [vmem:[%s5171] ss:$4 sm:$0xff] %v5107
      %5268 = vst [vmem:[%s5173] ss:$4 sm:$0xff] %v5108
      %5269 = vst [vmem:[%s5175] ss:$4 sm:$0xff] %v4975
      %5270 = vst [vmem:[%s5177] ss:$4 sm:$0xff] %v5109
      %5271 = vst [vmem:[%s5179] ss:$4 sm:$0xff] %v5110
      %5272 = vst [vmem:[%s5181] ss:$4 sm:$0xff] %v5111
      %v5273 = vld.sshfl [vmem:[#allocation1] sm:$0xff pattern:$0x73625140]
      %v5274 = vld.sshfl [vmem:[#allocation1 + $0x20] sm:$0xff pattern:$0x73625140]
      %5275 = vst [vmem:[#allocation1] ss:$4 sm:$0xff] %v4976
      %5276 = vst [vmem:[%s5169] ss:$4 sm:$0xff] %v4977
      %5277 = vst [vmem:[%s5171] ss:$4 sm:$0xff] %v5112
      %5278 = vst [vmem:[%s5173] ss:$4 sm:$0xff] %v5113
      %5279 = vst [vmem:[%s5175] ss:$4 sm:$0xff] %v5114
      %5280 = vst [vmem:[%s5177] ss:$4 sm:$0xff] %v4978
      %5281 = vst [vmem:[%s5179] ss:$4 sm:$0xff] %v5115
      %5282 = vst [vmem:[%s5181] ss:$4 sm:$0xff] %v5116
      %v5283 = vld.sshfl [vmem:[#allocation1] sm:$0xff pattern:$0x73625140]
      %v5284 = vld.sshfl [vmem:[#allocation1 + $0x20] sm:$0xff pattern:$0x73625140]
      %5285 = vst [vmem:[#allocation1] ss:$4 sm:$0xff] %v5117
      %5286 = vst [vmem:[%s5169] ss:$4 sm:$0xff] %v4979
      %5287 = vst [vmem:[%s5171] ss:$4 sm:$0xff] %v4980
      %5288 = vst [vmem:[%s5173] ss:$4 sm:$0xff] %v5118
      %5289 = vst [vmem:[%s5175] ss:$4 sm:$0xff] %v5119
      %5290 = vst [vmem:[%s5177] ss:$4 sm:$0xff] %v5120
      %5291 = vst [vmem:[%s5179] ss:$4 sm:$0xff] %v4981
      %5292 = vst [vmem:[%s5181] ss:$4 sm:$0xff] %v5121
      %v5293 = vld.sshfl [vmem:[#allocation1] sm:$0xff pattern:$0x73625140]
      %v5294 = vld.sshfl [vmem:[#allocation1 + $0x20] sm:$0xff pattern:$0x73625140]
      %5295 = vst [vmem:[#allocation1] ss:$4 sm:$0xff] %v5122
      %5296 = vst [vmem:[%s5169] ss:$4 sm:$0xff] %v5123
      %5297 = vst [vmem:[%s5171] ss:$4 sm:$0xff] %v4982
      %5298 = vst [vmem:[%s5173] ss:$4 sm:$0xff] %v4983
      %5299 = vst [vmem:[%s5175] ss:$4 sm:$0xff] %v5124
      %5300 = vst [vmem:[%s5177] ss:$4 sm:$0xff] %v5125
      %5301 = vst [vmem:[%s5179] ss:$4 sm:$0xff] %v5126
      %5302 = vst [vmem:[%s5181] ss:$4 sm:$0xff] %v4984
      %v5303 = vld.sshfl [vmem:[#allocation1] sm:$0xff pattern:$0x73625140]
      %v5304 = vld.sshfl [vmem:[#allocation1 + $0x20] sm:$0xff pattern:$0x73625140]
      %5305 = vst [vmem:[#allocation1] ss:$4 sm:$0xff] %v5127
      %5306 = vst [vmem:[%s5169] ss:$4 sm:$0xff] %v5128
      %5307 = vst [vmem:[%s5171] ss:$4 sm:$0xff] %v5129
      %5308 = vst [vmem:[%s5173] ss:$4 sm:$0xff] %v4985
      %5309 = vst [vmem:[%s5175] ss:$4 sm:$0xff] %v4986
      %5310 = vst [vmem:[%s5177] ss:$4 sm:$0xff] %v5130
      %5311 = vst [vmem:[%s5179] ss:$4 sm:$0xff] %v5131
      %5312 = vst [vmem:[%s5181] ss:$4 sm:$0xff] %v5132
      %v5313 = vld.sshfl [vmem:[#allocation1] sm:$0xff pattern:$0x73625140]
      %v5314 = vld.sshfl [vmem:[#allocation1 + $0x20] sm:$0xff pattern:$0x73625140]
      %5315 = vst [vmem:[#allocation1] ss:$4 sm:$0xff] %v4987
      %5316 = vst [vmem:[%s5169] ss:$4 sm:$0xff] %v5133
      %5317 = vst [vmem:[%s5171] ss:$4 sm:$0xff] %v5134
      %5318 = vst [vmem:[%s5173] ss:$4 sm:$0xff] %v5135
      %5319 = vst [vmem:[%s5175] ss:$4 sm:$0xff] %v4988
      %5320 = vst [vmem:[%s5177] ss:$4 sm:$0xff] %v4989
      %5321 = vst [vmem:[%s5179] ss:$4 sm:$0xff] %v5136
      %5322 = vst [vmem:[%s5181] ss:$4 sm:$0xff] %v5137
      %v5323 = vld.sshfl [vmem:[#allocation1] sm:$0xff pattern:$0x73625140]
      %v5324 = vld.sshfl [vmem:[#allocation1 + $0x20] sm:$0xff pattern:$0x73625140]
      %5325 = vst [vmem:[#allocation1] ss:$4 sm:$0xff] %v5138
      %5326 = vst [vmem:[%s5169] ss:$4 sm:$0xff] %v4990
      %5327 = vst [vmem:[%s5171] ss:$4 sm:$0xff] %v5139
      %5328 = vst [vmem:[%s5173] ss:$4 sm:$0xff] %v5140
      %5329 = vst [vmem:[%s5175] ss:$4 sm:$0xff] %v5141
      %5330 = vst [vmem:[%s5177] ss:$4 sm:$0xff] %v4991
      %5331 = vst [vmem:[%s5179] ss:$4 sm:$0xff] %v4992
      %5332 = vst [vmem:[%s5181] ss:$4 sm:$0xff] %v5142
      %v5333 = vld.sshfl [vmem:[#allocation1] sm:$0xff pattern:$0x73625140]
      %v5334 = vld.sshfl [vmem:[#allocation1 + $0x20] sm:$0xff pattern:$0x73625140]
      %5335 = vst [vmem:[#allocation1] ss:$4 sm:$0xff] %v5143
      %5336 = vst [vmem:[%s5169] ss:$4 sm:$0xff] %v5144
      %5337 = vst [vmem:[%s5171] ss:$4 sm:$0xff] %v4993
      %5338 = vst [vmem:[%s5173] ss:$4 sm:$0xff] %v5145
      %5339 = vst [vmem:[%s5175] ss:$4 sm:$0xff] %v5146
      %5340 = vst [vmem:[%s5177] ss:$4 sm:$0xff] %v5147
      %5341 = vst [vmem:[%s5179] ss:$4 sm:$0xff] %v4994
      %5342 = vst [vmem:[%s5181] ss:$4 sm:$0xff] %v4995
      %v5343 = vld.sshfl [vmem:[#allocation1] sm:$0xff pattern:$0x73625140]
      %v5344 = vld.sshfl [vmem:[#allocation1 + $0x20] sm:$0xff pattern:$0x73625140]
      %5345 = vst [vmem:[#allocation1] ss:$4 sm:$0xff] %v5148
      %5346 = vst [vmem:[%s5169] ss:$4 sm:$0xff] %v5149
      %5347 = vst [vmem:[%s5171] ss:$4 sm:$0xff] %v5150
      %5348 = vst [vmem:[%s5173] ss:$4 sm:$0xff] %v4996
      %5349 = vst [vmem:[%s5175] ss:$4 sm:$0xff] %v5151
      %5350 = vst [vmem:[%s5177] ss:$4 sm:$0xff] %v5152
      %5351 = vst [vmem:[%s5179] ss:$4 sm:$0xff] %v5153
      %5352 = vst [vmem:[%s5181] ss:$4 sm:$0xff] %v4997
      %v5353 = vld.sshfl [vmem:[#allocation1] sm:$0xff pattern:$0x73625140]
      %v5354 = vld.sshfl [vmem:[#allocation1 + $0x20] sm:$0xff pattern:$0x73625140]
      %5355 = vst [vmem:[#allocation1] ss:$4 sm:$0xff] %v4998
      %5356 = vst [vmem:[%s5169] ss:$4 sm:$0xff] %v5154
      %5357 = vst [vmem:[%s5171] ss:$4 sm:$0xff] %v5155
      %5358 = vst [vmem:[%s5173] ss:$4 sm:$0xff] %v5156
      %5359 = vst [vmem:[%s5175] ss:$4 sm:$0xff] %v4999
      %5360 = vst [vmem:[%s5177] ss:$4 sm:$0xff] %v5157
      %5361 = vst [vmem:[%s5179] ss:$4 sm:$0xff] %v5158
      %5362 = vst [vmem:[%s5181] ss:$4 sm:$0xff] %v5159
      %v5363 = vld.sshfl [vmem:[#allocation1] sm:$0xff pattern:$0x73625140]
      %v5364 = vld.sshfl [vmem:[#allocation1 + $0x20] sm:$0xff pattern:$0x73625140]
      %5365 = vst [vmem:[#allocation1] ss:$4 sm:$0xff] %v5000
      %5366 = vst [vmem:[%s5169] ss:$4 sm:$0xff] %v5001
      %5367 = vst [vmem:[%s5171] ss:$4 sm:$0xff] %v5160
      %5368 = vst [vmem:[%s5173] ss:$4 sm:$0xff] %v5161
      %5369 = vst [vmem:[%s5175] ss:$4 sm:$0xff] %v5162
      %5370 = vst [vmem:[%s5177] ss:$4 sm:$0xff] %v5002
      %5371 = vst [vmem:[%s5179] ss:$4 sm:$0xff] %v5163
      %5372 = vst [vmem:[%s5181] ss:$4 sm:$0xff] %v5164
      %v5373 = vld.sshfl [vmem:[#allocation1] sm:$0xff pattern:$0x73625140]
      %v5374 = vld.sshfl [vmem:[#allocation1 + $0x20] sm:$0xff pattern:$0x73625140]
      %5375 = vst [vmem:[#allocation1] ss:$4 sm:$0xff] %v5165
      %5376 = vst [vmem:[%s5169] ss:$4 sm:$0xff] %v5003
      %v5377 = vld.sshfl [vmem:[#allocation1] sm:$0xff pattern:$0x73625140]
      %v5378 = vsel %vm816, %v5183, 0
      %v5380 = vsel %vm816, %v5184, 0
      %v5382 = vsel %vm816, %v5193, 0
      %v5384 = vsel %vm816, %v5194, 0
      %v5386 = vsel %vm816, %v5203, 0
      %v5388 = vsel %vm816, %v5204, 0
      %v5390 = vsel %vm816, %v5213, 0
      %v5392 = vsel %vm816, %v5214, 0
      %v5394 = vsel %vm816, %v5223, 0
      %v5396 = vsel %vm816, %v5224, 0
      %v5398 = vsel %vm816, %v5233, 0
      %v5400 = vsel %vm816, %v5234, 0
      %v5402 = vsel %vm816, %v5243, 0
      %v5404 = vsel %vm816, %v5244, 0
      %v5406 = vsel %vm816, %v5253, 0
      %v5408 = vsel %vm816, %v5254, 0
      %v5410 = vsel %vm816, %v5263, 0
      %v5412 = vsel %vm816, %v5264, 0
      %v5414 = vsel %vm816, %v5273, 0
      %v5416 = vsel %vm816, %v5274, 0
      %v5418 = vsel %vm816, %v5283, 0
      %v5420 = vsel %vm816, %v5284, 0
      %v5422 = vsel %vm816, %v5293, 0
      %v5424 = vsel %vm816, %v5294, 0
      %v5426 = vsel %vm816, %v5303, 0
      %v5428 = vsel %vm816, %v5304, 0
      %v5430 = vsel %vm816, %v5313, 0
      %v5432 = vsel %vm816, %v5314, 0
      %v5434 = vsel %vm816, %v5323, 0
      %v5436 = vsel %vm816, %v5324, 0
      %v5438 = vsel %vm816, %v5333, 0
      %v5440 = vsel %vm816, %v5334, 0
      %v5442 = vsel %vm816, %v5343, 0
      %v5444 = vsel %vm816, %v5344, 0
      %v5446 = vsel %vm816, %v5353, 0
      %v5448 = vsel %vm816, %v5354, 0
      %v5450 = vsel %vm816, %v5363, 0
      %v5452 = vsel %vm816, %v5364, 0
      %v5454 = vsel %vm816, %v5373, 0
      %v5456 = vsel %vm816, %v5374, 0
      %v5458 = vsel %vm816, %v5377, 0
      %v5461 = vsel %vm899, %v5167, 0
      %5463 = vmatpush.msra.mxu0 0.0
      %5464 = vmatpush.msra.mxu0 0.0
      %5465 = vmatpush.msra.mxu0 0.0
      %5466 = vmatpush.msra.mxu0 0.0
      %5467 = vmatpush.msra.mxu0 0.0
      %5468 = vmatpush.msra.mxu0 0.0
      %5469 = vmatpush.msra.mxu0 0.0
      %5470 = vmatpush.msra.mxu0 0.0
      %5471 = vmatpush.msra.mxu0 0.0
      %5472 = vmatpush.msra.mxu0 0.0
      %5473 = vmatpush.msra.mxu0 0.0
      %5474 = vmatpush.msra.mxu0 0.0
      %5475 = vmatpush.msra.mxu0 0.0
      %5476 = vmatpush.msra.mxu0 0.0
      %5477 = vmatpush.msra.mxu0 0.0
      %5478 = vmatpush.msra.mxu0 %v5461
      %5479 = vmatmul.f32.gmra.mxu0 %v5378
      %v5480 = vpop.f32.mrf.mxu0
      %v5481 = vadd.f32 0.0, %v5480
      %5482 = vmatmul.f32.gmra.mxu0 %v5380
      %v5483 = vpop.f32.mrf.mxu0
      %v5484 = vadd.f32 0.0, %v5483
      %5485 = vmatmul.f32.gmra.mxu0 %v5382
      %v5486 = vpop.f32.mrf.mxu0
      %v5487 = vadd.f32 0.0, %v5486
      %5488 = vmatmul.f32.gmra.mxu0 %v5384
      %v5489 = vpop.f32.mrf.mxu0
      %v5490 = vadd.f32 0.0, %v5489
      %5491 = vmatmul.f32.gmra.mxu0 %v5386
      %v5492 = vpop.f32.mrf.mxu0
      %v5493 = vadd.f32 0.0, %v5492
      %5494 = vmatmul.f32.gmra.mxu0 %v5388
      %v5495 = vpop.f32.mrf.mxu0
      %v5496 = vadd.f32 0.0, %v5495
      %5497 = vmatmul.f32.gmra.mxu0 %v5390
      %v5498 = vpop.f32.mrf.mxu0
      %v5499 = vadd.f32 0.0, %v5498
      %5500 = vmatmul.f32.gmra.mxu0 %v5392
      %v5501 = vpop.f32.mrf.mxu0
      %v5502 = vadd.f32 0.0, %v5501
      %5503 = vmatmul.f32.gmra.mxu0 %v5394
      %v5504 = vpop.f32.mrf.mxu0
      %v5505 = vadd.f32 0.0, %v5504
      %5506 = vmatmul.f32.gmra.mxu0 %v5396
      %v5507 = vpop.f32.mrf.mxu0
      %v5508 = vadd.f32 0.0, %v5507
      %5509 = vmatmul.f32.gmra.mxu0 %v5398
      %v5510 = vpop.f32.mrf.mxu0
      %v5511 = vadd.f32 0.0, %v5510
      %5512 = vmatmul.f32.gmra.mxu0 %v5400
      %v5513 = vpop.f32.mrf.mxu0
      %v5514 = vadd.f32 0.0, %v5513
      %5515 = vmatmul.f32.gmra.mxu0 %v5402
      %v5516 = vpop.f32.mrf.mxu0
      %v5517 = vadd.f32 0.0, %v5516
      %5518 = vmatmul.f32.gmra.mxu0 %v5404
      %v5519 = vpop.f32.mrf.mxu0
      %v5520 = vadd.f32 0.0, %v5519
      %5521 = vmatmul.f32.gmra.mxu0 %v5406
      %v5522 = vpop.f32.mrf.mxu0
      %v5523 = vadd.f32 0.0, %v5522
      %5524 = vmatmul.f32.gmra.mxu0 %v5408
      %v5525 = vpop.f32.mrf.mxu0
      %v5526 = vadd.f32 0.0, %v5525
      %5527 = vmatmul.f32.gmra.mxu0 %v5410
      %v5528 = vpop.f32.mrf.mxu0
      %v5529 = vadd.f32 0.0, %v5528
      %5530 = vmatmul.f32.gmra.mxu0 %v5412
      %v5531 = vpop.f32.mrf.mxu0
      %v5532 = vadd.f32 0.0, %v5531
      %5533 = vmatmul.f32.gmra.mxu0 %v5414
      %v5534 = vpop.f32.mrf.mxu0
      %v5535 = vadd.f32 0.0, %v5534
      %5536 = vmatmul.f32.gmra.mxu0 %v5416
      %v5537 = vpop.f32.mrf.mxu0
      %v5538 = vadd.f32 0.0, %v5537
      %5539 = vmatmul.f32.gmra.mxu0 %v5418
      %v5540 = vpop.f32.mrf.mxu0
      %v5541 = vadd.f32 0.0, %v5540
      %5542 = vmatmul.f32.gmra.mxu0 %v5420
      %v5543 = vpop.f32.mrf.mxu0
      %v5544 = vadd.f32 0.0, %v5543
      %5545 = vmatmul.f32.gmra.mxu0 %v5422
      %v5546 = vpop.f32.mrf.mxu0
      %v5547 = vadd.f32 0.0, %v5546
      %5548 = vmatmul.f32.gmra.mxu0 %v5424
      %v5549 = vpop.f32.mrf.mxu0
      %v5550 = vadd.f32 0.0, %v5549
      %5551 = vmatmul.f32.gmra.mxu0 %v5426
      %v5552 = vpop.f32.mrf.mxu0
      %v5553 = vadd.f32 0.0, %v5552
      %5554 = vmatmul.f32.gmra.mxu0 %v5428
      %v5555 = vpop.f32.mrf.mxu0
      %v5556 = vadd.f32 0.0, %v5555
      %5557 = vmatmul.f32.gmra.mxu0 %v5430
      %v5558 = vpop.f32.mrf.mxu0
      %v5559 = vadd.f32 0.0, %v5558
      %5560 = vmatmul.f32.gmra.mxu0 %v5432
      %v5561 = vpop.f32.mrf.mxu0
      %v5562 = vadd.f32 0.0, %v5561
      %5563 = vmatmul.f32.gmra.mxu0 %v5434
      %v5564 = vpop.f32.mrf.mxu0
      %v5565 = vadd.f32 0.0, %v5564
      %5566 = vmatmul.f32.gmra.mxu0 %v5436
      %v5567 = vpop.f32.mrf.mxu0
      %v5568 = vadd.f32 0.0, %v5567
      %5569 = vmatmul.f32.gmra.mxu0 %v5438
      %v5570 = vpop.f32.mrf.mxu0
      %v5571 = vadd.f32 0.0, %v5570
      %5572 = vmatmul.f32.gmra.mxu0 %v5440
      %v5573 = vpop.f32.mrf.mxu0
      %v5574 = vadd.f32 0.0, %v5573
      %5575 = vmatmul.f32.gmra.mxu0 %v5442
      %v5576 = vpop.f32.mrf.mxu0
      %v5577 = vadd.f32 0.0, %v5576
      %5578 = vmatmul.f32.gmra.mxu0 %v5444
      %v5579 = vpop.f32.mrf.mxu0
      %v5580 = vadd.f32 0.0, %v5579
      %5581 = vmatmul.f32.gmra.mxu0 %v5446
      %v5582 = vpop.f32.mrf.mxu0
      %v5583 = vadd.f32 0.0, %v5582
      %5584 = vmatmul.f32.gmra.mxu0 %v5448
      %v5585 = vpop.f32.mrf.mxu0
      %v5586 = vadd.f32 0.0, %v5585
      %5587 = vmatmul.f32.gmra.mxu0 %v5450
      %v5588 = vpop.f32.mrf.mxu0
      %v5589 = vadd.f32 0.0, %v5588
      %5590 = vmatmul.f32.gmra.mxu0 %v5452
      %v5591 = vpop.f32.mrf.mxu0
      %v5592 = vadd.f32 0.0, %v5591
      %5593 = vmatmul.f32.gmra.mxu0 %v5454
      %v5594 = vpop.f32.mrf.mxu0
      %v5595 = vadd.f32 0.0, %v5594
      %5596 = vmatmul.f32.gmra.mxu0 %v5456
      %v5597 = vpop.f32.mrf.mxu0
      %v5598 = vadd.f32 0.0, %v5597
      %5599 = vmatmul.f32.gmra.mxu0 %v5458
      %v5600 = vpop.f32.mrf.mxu0
      %v5601 = vadd.f32 0.0, %v5600
      %5602 = vdwg.mxu0
      %v5603 = vadd.f32 %v4909, %v5481
      %v5604 = vadd.f32 %v4910, %v5484
      %v5605 = vadd.f32 %v4911, %v5487
      %v5606 = vadd.f32 %v4912, %v5490
      %v5607 = vadd.f32 %v4913, %v5493
      %v5608 = vadd.f32 %v4914, %v5496
      %v5609 = vadd.f32 %v4915, %v5499
      %v5610 = vadd.f32 %v4916, %v5502
      %v5611 = vadd.f32 %v4917, %v5505
      %v5612 = vadd.f32 %v4918, %v5508
      %v5613 = vadd.f32 %v4919, %v5511
      %v5614 = vadd.f32 %v4920, %v5514
      %v5615 = vadd.f32 %v4921, %v5517
      %v5616 = vadd.f32 %v4922, %v5520
      %v5617 = vadd.f32 %v4923, %v5523
      %v5618 = vadd.f32 %v4924, %v5526
      %v5619 = vadd.f32 %v4925, %v5529
      %v5620 = vadd.f32 %v4926, %v5532
      %v5621 = vadd.f32 %v4927, %v5535
      %v5622 = vadd.f32 %v4928, %v5538
      %v5623 = vadd.f32 %v4929, %v5541
      %v5624 = vadd.f32 %v4930, %v5544
      %v5625 = vadd.f32 %v4931, %v5547
      %v5626 = vadd.f32 %v4932, %v5550
      %v5627 = vadd.f32 %v4933, %v5553
      %v5628 = vadd.f32 %v4934, %v5556
      %v5629 = vadd.f32 %v4935, %v5559
      %v5630 = vadd.f32 %v4936, %v5562
      %v5631 = vadd.f32 %v4937, %v5565
      %v5632 = vadd.f32 %v4938, %v5568
      %v5633 = vadd.f32 %v4939, %v5571
      %v5634 = vadd.f32 %v4940, %v5574
      %v5635 = vadd.f32 %v4941, %v5577
      %v5636 = vadd.f32 %v4942, %v5580
      %v5637 = vadd.f32 %v4943, %v5583
      %v5638 = vadd.f32 %v4944, %v5586
      %v5639 = vadd.f32 %v4945, %v5589
      %v5640 = vadd.f32 %v4946, %v5592
      %v5641 = vadd.f32 %v4947, %v5595
      %v5642 = vadd.f32 %v4948, %v5598
      %v5643 = vadd.f32 %v4949, %v5601
      %v5644 = vld [vmem:[%s4255 + $0x2] sm:$0xff]
      %v5645 = vld [vmem:[%s4255 + $0xa] sm:$0xff]
      %v5646 = vld [vmem:[%s4255 + $0x12] sm:$0x3]
      %v5647 = vld [vmem:[%s4255 + $0x1a] sm:$0xff]
      %v5648 = vld [vmem:[%s4255 + $0x22] sm:$0xff]
      %v5649 = vld [vmem:[%s4255 + $0x2a] sm:$0x3]
      %v5650 = vld [vmem:[%s4255 + $0x32] sm:$0xff]
      %v5651 = vld [vmem:[%s4255 + $0x3a] sm:$0xff]
      %v5652 = vld [vmem:[%s4255 + $0x42] sm:$0x3]
      %v5653 = vld [vmem:[%s4255 + $0x4a] sm:$0xff]
      %v5654 = vld [vmem:[%s4255 + $0x52] sm:$0xff]
      %v5655 = vld [vmem:[%s4255 + $0x5a] sm:$0x3]
      %v5656 = vld [vmem:[%s4255 + $0x62] sm:$0xff]
      %v5657 = vld [vmem:[%s4255 + $0x6a] sm:$0xff]
      %v5658 = vld [vmem:[%s4255 + $0x72] sm:$0x3]
      %v5659 = vld [vmem:[%s4255 + $0x7a] sm:$0xff]
      %v5660 = vld [vmem:[%s4255 + $0x82] sm:$0xff]
      %v5661 = vld [vmem:[%s4255 + $0x8a] sm:$0x3]
      %v5662 = vld [vmem:[%s4255 + $0x92] sm:$0xff]
      %v5663 = vld [vmem:[%s4255 + $0x9a] sm:$0xff]
      %v5664 = vld [vmem:[%s4255 + $0xa2] sm:$0x3]
      %v5665 = vld [vmem:[%s4255 + $0xaa] sm:$0xff]
      %v5666 = vld [vmem:[%s4255 + $0xb2] sm:$0xff]
      %v5667 = vld [vmem:[%s4255 + $0xba] sm:$0x3]
      %v5668 = vld [vmem:[%s4255 + $0xc2] sm:$0xff]
      %v5669 = vld [vmem:[%s4255 + $0xca] sm:$0xff]
      %v5670 = vld [vmem:[%s4255 + $0xd2] sm:$0x3]
      %v5671 = vld [vmem:[%s4255 + $0xda] sm:$0xff]
      %v5672 = vld [vmem:[%s4255 + $0xe2] sm:$0xff]
      %v5673 = vld [vmem:[%s4255 + $0xea] sm:$0x3]
      %v5674 = vld [vmem:[%s4255 + $0xf2] sm:$0xff]
      %v5675 = vld [vmem:[%s4255 + $0xfa] sm:$0xff]
      %v5676 = vld [vmem:[%s4255 + $0x102] sm:$0x3]
      %v5677 = vld [vmem:[%s4255 + $0x10a] sm:$0xff]
      %v5678 = vld [vmem:[%s4255 + $0x112] sm:$0xff]
      %v5679 = vld [vmem:[%s4255 + $0x11a] sm:$0x3]
      %v5680 = vld [vmem:[%s4255 + $0x122] sm:$0xff]
      %v5681 = vld [vmem:[%s4255 + $0x12a] sm:$0xff]
      %v5682 = vld [vmem:[%s4255 + $0x132] sm:$0x3]
      %v5683 = vld [vmem:[%s4255 + $0x13a] sm:$0xff]
      %v5684 = vld [vmem:[%s4255 + $0x142] sm:$0xff]
      %v5685 = vld [vmem:[%s4255 + $0x14a] sm:$0x3]
      %v5686 = vld [vmem:[%s4255 + $0x152] sm:$0xff]
      %v5687 = vld [vmem:[%s4255 + $0x15a] sm:$0xff]
      %v5688 = vld [vmem:[%s4255 + $0x162] sm:$0x3]
      %v5689 = vld [vmem:[%s4255 + $0x16a] sm:$0xff]
      %v5690 = vld [vmem:[%s4255 + $0x172] sm:$0xff]
      %v5691 = vld [vmem:[%s4255 + $0x17a] sm:$0x3]
      %v5692 = vld [vmem:[%s4255 + $0x182] sm:$0xff]
      %v5693 = vld [vmem:[%s4255 + $0x18a] sm:$0xff]
      %v5694 = vld [vmem:[%s4255 + $0x192] sm:$0x3]
      %v5695 = vld [vmem:[%s4255 + $0x19a] sm:$0xff]
      %v5696 = vld [vmem:[%s4255 + $0x1a2] sm:$0xff]
      %v5697 = vld [vmem:[%s4255 + $0x1aa] sm:$0x3]
      %v5752 = vrot.slane %v5644, 2
      %v5753 = vrot.slane %v5644, 4
      %v5754 = vrot.slane %v5644, 6
      %v5755 = vrot.slane %v5645, 2
      %v5756 = vrot.slane %v5645, 4
      %v5757 = vrot.slane %v5645, 6
      %v5758 = vrot.slane %v5647, 2
      %v5759 = vrot.slane %v5647, 4
      %v5760 = vrot.slane %v5647, 6
      %v5761 = vrot.slane %v5648, 2
      %v5762 = vrot.slane %v5648, 4
      %v5763 = vrot.slane %v5648, 6
      %v5764 = vrot.slane %v5650, 2
      %v5765 = vrot.slane %v5650, 4
      %v5766 = vrot.slane %v5650, 6
      %v5767 = vrot.slane %v5651, 2
      %v5768 = vrot.slane %v5651, 4
      %v5769 = vrot.slane %v5651, 6
      %v5770 = vrot.slane %v5653, 2
      %v5771 = vrot.slane %v5653, 4
      %v5772 = vrot.slane %v5653, 6
      %v5773 = vrot.slane %v5654, 2
      %v5774 = vrot.slane %v5654, 4
      %v5775 = vrot.slane %v5654, 6
      %v5776 = vrot.slane %v5656, 2
      %v5777 = vrot.slane %v5656, 4
      %v5778 = vrot.slane %v5656, 6
      %v5779 = vrot.slane %v5657, 2
      %v5780 = vrot.slane %v5657, 4
      %v5781 = vrot.slane %v5657, 6
      %v5782 = vrot.slane %v5659, 2
      %v5783 = vrot.slane %v5659, 4
      %v5784 = vrot.slane %v5659, 6
      %v5785 = vrot.slane %v5660, 2
      %v5786 = vrot.slane %v5660, 4
      %v5787 = vrot.slane %v5660, 6
      %v5788 = vrot.slane %v5662, 2
      %v5789 = vrot.slane %v5662, 4
      %v5790 = vrot.slane %v5662, 6
      %v5791 = vrot.slane %v5663, 2
      %v5792 = vrot.slane %v5663, 4
      %v5793 = vrot.slane %v5663, 6
      %v5794 = vrot.slane %v5665, 2
      %v5795 = vrot.slane %v5665, 4
      %v5796 = vrot.slane %v5665, 6
      %v5797 = vrot.slane %v5666, 2
      %v5798 = vrot.slane %v5666, 4
      %v5799 = vrot.slane %v5666, 6
      %v5800 = vrot.slane %v5668, 2
      %v5801 = vrot.slane %v5668, 4
      %v5802 = vrot.slane %v5668, 6
      %v5803 = vrot.slane %v5669, 2
      %v5804 = vrot.slane %v5669, 4
      %v5805 = vrot.slane %v5669, 6
      %v5806 = vrot.slane %v5671, 2
      %v5807 = vrot.slane %v5671, 4
      %v5808 = vrot.slane %v5671, 6
      %v5809 = vrot.slane %v5672, 2
      %v5810 = vrot.slane %v5672, 4
      %v5811 = vrot.slane %v5672, 6
      %v5812 = vrot.slane %v5674, 2
      %v5813 = vrot.slane %v5674, 4
      %v5814 = vrot.slane %v5674, 6
      %v5815 = vrot.slane %v5675, 2
      %v5816 = vrot.slane %v5675, 4
      %v5817 = vrot.slane %v5675, 6
      %v5818 = vrot.slane %v5677, 2
      %v5819 = vrot.slane %v5677, 4
      %v5820 = vrot.slane %v5677, 6
      %v5821 = vrot.slane %v5678, 2
      %v5822 = vrot.slane %v5678, 4
      %v5823 = vrot.slane %v5678, 6
      %v5824 = vrot.slane %v5680, 2
      %v5825 = vrot.slane %v5680, 4
      %v5826 = vrot.slane %v5680, 6
      %v5827 = vrot.slane %v5681, 2
      %v5828 = vrot.slane %v5681, 4
      %v5829 = vrot.slane %v5681, 6
      %v5830 = vrot.slane %v5683, 2
      %v5831 = vrot.slane %v5683, 4
      %v5832 = vrot.slane %v5683, 6
      %v5833 = vrot.slane %v5684, 2
      %v5834 = vrot.slane %v5684, 4
      %v5835 = vrot.slane %v5684, 6
      %v5836 = vrot.slane %v5686, 2
      %v5837 = vrot.slane %v5686, 4
      %v5838 = vrot.slane %v5686, 6
      %v5839 = vrot.slane %v5687, 2
      %v5840 = vrot.slane %v5687, 4
      %v5841 = vrot.slane %v5687, 6
      %v5842 = vrot.slane %v5689, 2
      %v5843 = vrot.slane %v5689, 4
      %v5844 = vrot.slane %v5689, 6
      %v5845 = vrot.slane %v5690, 2
      %v5846 = vrot.slane %v5690, 4
      %v5847 = vrot.slane %v5690, 6
      %v5848 = vrot.slane %v5692, 2
      %v5849 = vrot.slane %v5692, 4
      %v5850 = vrot.slane %v5692, 6
      %v5851 = vrot.slane %v5693, 2
      %v5852 = vrot.slane %v5693, 4
      %v5853 = vrot.slane %v5693, 6
      %v5854 = vrot.slane %v5695, 2
      %v5855 = vrot.slane %v5695, 4
      %v5856 = vrot.slane %v5695, 6
      %v5857 = vrot.slane %v5696, 2
      %v5858 = vrot.slane %v5696, 4
      %v5859 = vrot.slane %v5696, 6
      %s5860 = scalar_lea.vmem %s1, 32
      %v5861 = vld [vmem:[%s5860] sm:$0x7]
      %5862 = vst [vmem:[#allocation1] ss:$4 sm:$0xff] %v5644
      %s5863 = scalar_lea.vmem [#allocation1], 1
      %5864 = vst [vmem:[%s5863] ss:$4 sm:$0xff] %v5752
      %s5865 = scalar_lea.vmem [#allocation1], 2
      %5866 = vst [vmem:[%s5865] ss:$4 sm:$0xff] %v5753
      %s5867 = scalar_lea.vmem [#allocation1], 3
      %5868 = vst [vmem:[%s5867] ss:$4 sm:$0xff] %v5754
      %s5869 = scalar_lea.vmem [#allocation1], 32
      %5870 = vst [vmem:[%s5869] ss:$4 sm:$0xff] %v5645
      %s5871 = scalar_lea.vmem [#allocation1], 33
      %5872 = vst [vmem:[%s5871] ss:$4 sm:$0xff] %v5755
      %s5873 = scalar_lea.vmem [#allocation1], 34
      %5874 = vst [vmem:[%s5873] ss:$4 sm:$0xff] %v5756
      %s5875 = scalar_lea.vmem [#allocation1], 35
      %5876 = vst [vmem:[%s5875] ss:$4 sm:$0xff] %v5757
      %v5877 = vld.sshfl [vmem:[#allocation1] sm:$0xff pattern:$0x73625140]
      %v5878 = vld.sshfl [vmem:[#allocation1 + $0x20] sm:$0xff pattern:$0x73625140]
      %5879 = vst [vmem:[#allocation1] ss:$4 sm:$0xff] %v5646
      %5880 = vst [vmem:[%s5863] ss:$4 sm:$0xff] %v5647
      %5881 = vst [vmem:[%s5865] ss:$4 sm:$0xff] %v5758
      %5882 = vst [vmem:[%s5867] ss:$4 sm:$0xff] %v5759
      %5883 = vst [vmem:[%s5869] ss:$4 sm:$0xff] %v5760
      %5884 = vst [vmem:[%s5871] ss:$4 sm:$0xff] %v5648
      %5885 = vst [vmem:[%s5873] ss:$4 sm:$0xff] %v5761
      %5886 = vst [vmem:[%s5875] ss:$4 sm:$0xff] %v5762
      %v5887 = vld.sshfl [vmem:[#allocation1] sm:$0xff pattern:$0x73625140]
      %v5888 = vld.sshfl [vmem:[#allocation1 + $0x20] sm:$0xff pattern:$0x73625140]
      %5889 = vst [vmem:[#allocation1] ss:$4 sm:$0xff] %v5763
      %5890 = vst [vmem:[%s5863] ss:$4 sm:$0xff] %v5649
      %5891 = vst [vmem:[%s5865] ss:$4 sm:$0xff] %v5650
      %5892 = vst [vmem:[%s5867] ss:$4 sm:$0xff] %v5764
      %5893 = vst [vmem:[%s5869] ss:$4 sm:$0xff] %v5765
      %5894 = vst [vmem:[%s5871] ss:$4 sm:$0xff] %v5766
      %5895 = vst [vmem:[%s5873] ss:$4 sm:$0xff] %v5651
      %5896 = vst [vmem:[%s5875] ss:$4 sm:$0xff] %v5767
      %v5897 = vld.sshfl [vmem:[#allocation1] sm:$0xff pattern:$0x73625140]
      %v5898 = vld.sshfl [vmem:[#allocation1 + $0x20] sm:$0xff pattern:$0x73625140]
      %5899 = vst [vmem:[#allocation1] ss:$4 sm:$0xff] %v5768
      %5900 = vst [vmem:[%s5863] ss:$4 sm:$0xff] %v5769
      %5901 = vst [vmem:[%s5865] ss:$4 sm:$0xff] %v5652
      %5902 = vst [vmem:[%s5867] ss:$4 sm:$0xff] %v5653
      %5903 = vst [vmem:[%s5869] ss:$4 sm:$0xff] %v5770
      %5904 = vst [vmem:[%s5871] ss:$4 sm:$0xff] %v5771
      %5905 = vst [vmem:[%s5873] ss:$4 sm:$0xff] %v5772
      %5906 = vst [vmem:[%s5875] ss:$4 sm:$0xff] %v5654
      %v5907 = vld.sshfl [vmem:[#allocation1] sm:$0xff pattern:$0x73625140]
      %v5908 = vld.sshfl [vmem:[#allocation1 + $0x20] sm:$0xff pattern:$0x73625140]
      %5909 = vst [vmem:[#allocation1] ss:$4 sm:$0xff] %v5773
      %5910 = vst [vmem:[%s5863] ss:$4 sm:$0xff] %v5774
      %5911 = vst [vmem:[%s5865] ss:$4 sm:$0xff] %v5775
      %5912 = vst [vmem:[%s5867] ss:$4 sm:$0xff] %v5655
      %5913 = vst [vmem:[%s5869] ss:$4 sm:$0xff] %v5656
      %5914 = vst [vmem:[%s5871] ss:$4 sm:$0xff] %v5776
      %5915 = vst [vmem:[%s5873] ss:$4 sm:$0xff] %v5777
      %5916 = vst [vmem:[%s5875] ss:$4 sm:$0xff] %v5778
      %v5917 = vld.sshfl [vmem:[#allocation1] sm:$0xff pattern:$0x73625140]
      %v5918 = vld.sshfl [vmem:[#allocation1 + $0x20] sm:$0xff pattern:$0x73625140]
      %5919 = vst [vmem:[#allocation1] ss:$4 sm:$0xff] %v5657
      %5920 = vst [vmem:[%s5863] ss:$4 sm:$0xff] %v5779
      %5921 = vst [vmem:[%s5865] ss:$4 sm:$0xff] %v5780
      %5922 = vst [vmem:[%s5867] ss:$4 sm:$0xff] %v5781
      %5923 = vst [vmem:[%s5869] ss:$4 sm:$0xff] %v5658
      %5924 = vst [vmem:[%s5871] ss:$4 sm:$0xff] %v5659
      %5925 = vst [vmem:[%s5873] ss:$4 sm:$0xff] %v5782
      %5926 = vst [vmem:[%s5875] ss:$4 sm:$0xff] %v5783
      %v5927 = vld.sshfl [vmem:[#allocation1] sm:$0xff pattern:$0x73625140]
      %v5928 = vld.sshfl [vmem:[#allocation1 + $0x20] sm:$0xff pattern:$0x73625140]
      %5929 = vst [vmem:[#allocation1] ss:$4 sm:$0xff] %v5784
      %5930 = vst [vmem:[%s5863] ss:$4 sm:$0xff] %v5660
      %5931 = vst [vmem:[%s5865] ss:$4 sm:$0xff] %v5785
      %5932 = vst [vmem:[%s5867] ss:$4 sm:$0xff] %v5786
      %5933 = vst [vmem:[%s5869] ss:$4 sm:$0xff] %v5787
      %5934 = vst [vmem:[%s5871] ss:$4 sm:$0xff] %v5661
      %5935 = vst [vmem:[%s5873] ss:$4 sm:$0xff] %v5662
      %5936 = vst [vmem:[%s5875] ss:$4 sm:$0xff] %v5788
      %v5937 = vld.sshfl [vmem:[#allocation1] sm:$0xff pattern:$0x73625140]
      %v5938 = vld.sshfl [vmem:[#allocation1 + $0x20] sm:$0xff pattern:$0x73625140]
      %5939 = vst [vmem:[#allocation1] ss:$4 sm:$0xff] %v5789
      %5940 = vst [vmem:[%s5863] ss:$4 sm:$0xff] %v5790
      %5941 = vst [vmem:[%s5865] ss:$4 sm:$0xff] %v5663
      %5942 = vst [vmem:[%s5867] ss:$4 sm:$0xff] %v5791
      %5943 = vst [vmem:[%s5869] ss:$4 sm:$0xff] %v5792
      %5944 = vst [vmem:[%s5871] ss:$4 sm:$0xff] %v5793
      %5945 = vst [vmem:[%s5873] ss:$4 sm:$0xff] %v5664
      %5946 = vst [vmem:[%s5875] ss:$4 sm:$0xff] %v5665
      %v5947 = vld.sshfl [vmem:[#allocation1] sm:$0xff pattern:$0x73625140]
      %v5948 = vld.sshfl [vmem:[#allocation1 + $0x20] sm:$0xff pattern:$0x73625140]
      %5949 = vst [vmem:[#allocation1] ss:$4 sm:$0xff] %v5794
      %5950 = vst [vmem:[%s5863] ss:$4 sm:$0xff] %v5795
      %5951 = vst [vmem:[%s5865] ss:$4 sm:$0xff] %v5796
      %5952 = vst [vmem:[%s5867] ss:$4 sm:$0xff] %v5666
      %5953 = vst [vmem:[%s5869] ss:$4 sm:$0xff] %v5797
      %5954 = vst [vmem:[%s5871] ss:$4 sm:$0xff] %v5798
      %5955 = vst [vmem:[%s5873] ss:$4 sm:$0xff] %v5799
      %5956 = vst [vmem:[%s5875] ss:$4 sm:$0xff] %v5667
      %v5957 = vld.sshfl [vmem:[#allocation1] sm:$0xff pattern:$0x73625140]
      %v5958 = vld.sshfl [vmem:[#allocation1 + $0x20] sm:$0xff pattern:$0x73625140]
      %5959 = vst [vmem:[#allocation1] ss:$4 sm:$0xff] %v5668
      %5960 = vst [vmem:[%s5863] ss:$4 sm:$0xff] %v5800
      %5961 = vst [vmem:[%s5865] ss:$4 sm:$0xff] %v5801
      %5962 = vst [vmem:[%s5867] ss:$4 sm:$0xff] %v5802
      %5963 = vst [vmem:[%s5869] ss:$4 sm:$0xff] %v5669
      %5964 = vst [vmem:[%s5871] ss:$4 sm:$0xff] %v5803
      %5965 = vst [vmem:[%s5873] ss:$4 sm:$0xff] %v5804
      %5966 = vst [vmem:[%s5875] ss:$4 sm:$0xff] %v5805
      %v5967 = vld.sshfl [vmem:[#allocation1] sm:$0xff pattern:$0x73625140]
      %v5968 = vld.sshfl [vmem:[#allocation1 + $0x20] sm:$0xff pattern:$0x73625140]
      %5969 = vst [vmem:[#allocation1] ss:$4 sm:$0xff] %v5670
      %5970 = vst [vmem:[%s5863] ss:$4 sm:$0xff] %v5671
      %5971 = vst [vmem:[%s5865] ss:$4 sm:$0xff] %v5806
      %5972 = vst [vmem:[%s5867] ss:$4 sm:$0xff] %v5807
      %5973 = vst [vmem:[%s5869] ss:$4 sm:$0xff] %v5808
      %5974 = vst [vmem:[%s5871] ss:$4 sm:$0xff] %v5672
      %5975 = vst [vmem:[%s5873] ss:$4 sm:$0xff] %v5809
      %5976 = vst [vmem:[%s5875] ss:$4 sm:$0xff] %v5810
      %v5977 = vld.sshfl [vmem:[#allocation1] sm:$0xff pattern:$0x73625140]
      %v5978 = vld.sshfl [vmem:[#allocation1 + $0x20] sm:$0xff pattern:$0x73625140]
      %5979 = vst [vmem:[#allocation1] ss:$4 sm:$0xff] %v5811
      %5980 = vst [vmem:[%s5863] ss:$4 sm:$0xff] %v5673
      %5981 = vst [vmem:[%s5865] ss:$4 sm:$0xff] %v5674
      %5982 = vst [vmem:[%s5867] ss:$4 sm:$0xff] %v5812
      %5983 = vst [vmem:[%s5869] ss:$4 sm:$0xff] %v5813
      %5984 = vst [vmem:[%s5871] ss:$4 sm:$0xff] %v5814
      %5985 = vst [vmem:[%s5873] ss:$4 sm:$0xff] %v5675
      %5986 = vst [vmem:[%s5875] ss:$4 sm:$0xff] %v5815
      %v5987 = vld.sshfl [vmem:[#allocation1] sm:$0xff pattern:$0x73625140]
      %v5988 = vld.sshfl [vmem:[#allocation1 + $0x20] sm:$0xff pattern:$0x73625140]
      %5989 = vst [vmem:[#allocation1] ss:$4 sm:$0xff] %v5816
      %5990 = vst [vmem:[%s5863] ss:$4 sm:$0xff] %v5817
      %5991 = vst [vmem:[%s5865] ss:$4 sm:$0xff] %v5676
      %5992 = vst [vmem:[%s5867] ss:$4 sm:$0xff] %v5677
      %5993 = vst [vmem:[%s5869] ss:$4 sm:$0xff] %v5818
      %5994 = vst [vmem:[%s5871] ss:$4 sm:$0xff] %v5819
      %5995 = vst [vmem:[%s5873] ss:$4 sm:$0xff] %v5820
      %5996 = vst [vmem:[%s5875] ss:$4 sm:$0xff] %v5678
      %v5997 = vld.sshfl [vmem:[#allocation1] sm:$0xff pattern:$0x73625140]
      %v5998 = vld.sshfl [vmem:[#allocation1 + $0x20] sm:$0xff pattern:$0x73625140]
      %5999 = vst [vmem:[#allocation1] ss:$4 sm:$0xff] %v5821
      %6000 = vst [vmem:[%s5863] ss:$4 sm:$0xff] %v5822
      %6001 = vst [vmem:[%s5865] ss:$4 sm:$0xff] %v5823
      %6002 = vst [vmem:[%s5867] ss:$4 sm:$0xff] %v5679
      %6003 = vst [vmem:[%s5869] ss:$4 sm:$0xff] %v5680
      %6004 = vst [vmem:[%s5871] ss:$4 sm:$0xff] %v5824
      %6005 = vst [vmem:[%s5873] ss:$4 sm:$0xff] %v5825
      %6006 = vst [vmem:[%s5875] ss:$4 sm:$0xff] %v5826
      %v6007 = vld.sshfl [vmem:[#allocation1] sm:$0xff pattern:$0x73625140]
      %v6008 = vld.sshfl [vmem:[#allocation1 + $0x20] sm:$0xff pattern:$0x73625140]
      %6009 = vst [vmem:[#allocation1] ss:$4 sm:$0xff] %v5681
      %6010 = vst [vmem:[%s5863] ss:$4 sm:$0xff] %v5827
      %6011 = vst [vmem:[%s5865] ss:$4 sm:$0xff] %v5828
      %6012 = vst [vmem:[%s5867] ss:$4 sm:$0xff] %v5829
      %6013 = vst [vmem:[%s5869] ss:$4 sm:$0xff] %v5682
      %6014 = vst [vmem:[%s5871] ss:$4 sm:$0xff] %v5683
      %6015 = vst [vmem:[%s5873] ss:$4 sm:$0xff] %v5830
      %6016 = vst [vmem:[%s5875] ss:$4 sm:$0xff] %v5831
      %v6017 = vld.sshfl [vmem:[#allocation1] sm:$0xff pattern:$0x73625140]
      %v6018 = vld.sshfl [vmem:[#allocation1 + $0x20] sm:$0xff pattern:$0x73625140]
      %6019 = vst [vmem:[#allocation1] ss:$4 sm:$0xff] %v5832
      %6020 = vst [vmem:[%s5863] ss:$4 sm:$0xff] %v5684
      %6021 = vst [vmem:[%s5865] ss:$4 sm:$0xff] %v5833
      %6022 = vst [vmem:[%s5867] ss:$4 sm:$0xff] %v5834
      %6023 = vst [vmem:[%s5869] ss:$4 sm:$0xff] %v5835
      %6024 = vst [vmem:[%s5871] ss:$4 sm:$0xff] %v5685
      %6025 = vst [vmem:[%s5873] ss:$4 sm:$0xff] %v5686
      %6026 = vst [vmem:[%s5875] ss:$4 sm:$0xff] %v5836
      %v6027 = vld.sshfl [vmem:[#allocation1] sm:$0xff pattern:$0x73625140]
      %v6028 = vld.sshfl [vmem:[#allocation1 + $0x20] sm:$0xff pattern:$0x73625140]
      %6029 = vst [vmem:[#allocation1] ss:$4 sm:$0xff] %v5837
      %6030 = vst [vmem:[%s5863] ss:$4 sm:$0xff] %v5838
      %6031 = vst [vmem:[%s5865] ss:$4 sm:$0xff] %v5687
      %6032 = vst [vmem:[%s5867] ss:$4 sm:$0xff] %v5839
      %6033 = vst [vmem:[%s5869] ss:$4 sm:$0xff] %v5840
      %6034 = vst [vmem:[%s5871] ss:$4 sm:$0xff] %v5841
      %6035 = vst [vmem:[%s5873] ss:$4 sm:$0xff] %v5688
      %6036 = vst [vmem:[%s5875] ss:$4 sm:$0xff] %v5689
      %v6037 = vld.sshfl [vmem:[#allocation1] sm:$0xff pattern:$0x73625140]
      %v6038 = vld.sshfl [vmem:[#allocation1 + $0x20] sm:$0xff pattern:$0x73625140]
      %6039 = vst [vmem:[#allocation1] ss:$4 sm:$0xff] %v5842
      %6040 = vst [vmem:[%s5863] ss:$4 sm:$0xff] %v5843
      %6041 = vst [vmem:[%s5865] ss:$4 sm:$0xff] %v5844
      %6042 = vst [vmem:[%s5867] ss:$4 sm:$0xff] %v5690
      %6043 = vst [vmem:[%s5869] ss:$4 sm:$0xff] %v5845
      %6044 = vst [vmem:[%s5871] ss:$4 sm:$0xff] %v5846
      %6045 = vst [vmem:[%s5873] ss:$4 sm:$0xff] %v5847
      %6046 = vst [vmem:[%s5875] ss:$4 sm:$0xff] %v5691
      %v6047 = vld.sshfl [vmem:[#allocation1] sm:$0xff pattern:$0x73625140]
      %v6048 = vld.sshfl [vmem:[#allocation1 + $0x20] sm:$0xff pattern:$0x73625140]
      %6049 = vst [vmem:[#allocation1] ss:$4 sm:$0xff] %v5692
      %6050 = vst [vmem:[%s5863] ss:$4 sm:$0xff] %v5848
      %6051 = vst [vmem:[%s5865] ss:$4 sm:$0xff] %v5849
      %6052 = vst [vmem:[%s5867] ss:$4 sm:$0xff] %v5850
      %6053 = vst [vmem:[%s5869] ss:$4 sm:$0xff] %v5693
      %6054 = vst [vmem:[%s5871] ss:$4 sm:$0xff] %v5851
      %6055 = vst [vmem:[%s5873] ss:$4 sm:$0xff] %v5852
      %6056 = vst [vmem:[%s5875] ss:$4 sm:$0xff] %v5853
      %v6057 = vld.sshfl [vmem:[#allocation1] sm:$0xff pattern:$0x73625140]
      %v6058 = vld.sshfl [vmem:[#allocation1 + $0x20] sm:$0xff pattern:$0x73625140]
      %6059 = vst [vmem:[#allocation1] ss:$4 sm:$0xff] %v5694
      %6060 = vst [vmem:[%s5863] ss:$4 sm:$0xff] %v5695
      %6061 = vst [vmem:[%s5865] ss:$4 sm:$0xff] %v5854
      %6062 = vst [vmem:[%s5867] ss:$4 sm:$0xff] %v5855
      %6063 = vst [vmem:[%s5869] ss:$4 sm:$0xff] %v5856
      %6064 = vst [vmem:[%s5871] ss:$4 sm:$0xff] %v5696
      %6065 = vst [vmem:[%s5873] ss:$4 sm:$0xff] %v5857
      %6066 = vst [vmem:[%s5875] ss:$4 sm:$0xff] %v5858
      %v6067 = vld.sshfl [vmem:[#allocation1] sm:$0xff pattern:$0x73625140]
      %v6068 = vld.sshfl [vmem:[#allocation1 + $0x20] sm:$0xff pattern:$0x73625140]
      %6069 = vst [vmem:[#allocation1] ss:$4 sm:$0xff] %v5859
      %6070 = vst [vmem:[%s5863] ss:$4 sm:$0xff] %v5697
      %v6071 = vld.sshfl [vmem:[#allocation1] sm:$0xff pattern:$0x73625140]
      %v6072 = vsel %vm816, %v5877, 0
      %v6074 = vsel %vm816, %v5878, 0
      %v6076 = vsel %vm816, %v5887, 0
      %v6078 = vsel %vm816, %v5888, 0
      %v6080 = vsel %vm816, %v5897, 0
      %v6082 = vsel %vm816, %v5898, 0
      %v6084 = vsel %vm816, %v5907, 0
      %v6086 = vsel %vm816, %v5908, 0
      %v6088 = vsel %vm816, %v5917, 0
      %v6090 = vsel %vm816, %v5918, 0
      %v6092 = vsel %vm816, %v5927, 0
      %v6094 = vsel %vm816, %v5928, 0
      %v6096 = vsel %vm816, %v5937, 0
      %v6098 = vsel %vm816, %v5938, 0
      %v6100 = vsel %vm816, %v5947, 0
      %v6102 = vsel %vm816, %v5948, 0
      %v6104 = vsel %vm816, %v5957, 0
      %v6106 = vsel %vm816, %v5958, 0
      %v6108 = vsel %vm816, %v5967, 0
      %v6110 = vsel %vm816, %v5968, 0
      %v6112 = vsel %vm816, %v5977, 0
      %v6114 = vsel %vm816, %v5978, 0
      %v6116 = vsel %vm816, %v5987, 0
      %v6118 = vsel %vm816, %v5988, 0
      %v6120 = vsel %vm816, %v5997, 0
      %v6122 = vsel %vm816, %v5998, 0
      %v6124 = vsel %vm816, %v6007, 0
      %v6126 = vsel %vm816, %v6008, 0
      %v6128 = vsel %vm816, %v6017, 0
      %v6130 = vsel %vm816, %v6018, 0
      %v6132 = vsel %vm816, %v6027, 0
      %v6134 = vsel %vm816, %v6028, 0
      %v6136 = vsel %vm816, %v6037, 0
      %v6138 = vsel %vm816, %v6038, 0
      %v6140 = vsel %vm816, %v6047, 0
      %v6142 = vsel %vm816, %v6048, 0
      %v6144 = vsel %vm816, %v6057, 0
      %v6146 = vsel %vm816, %v6058, 0
      %v6148 = vsel %vm816, %v6067, 0
      %v6150 = vsel %vm816, %v6068, 0
      %v6152 = vsel %vm816, %v6071, 0
      %v6155 = vsel %vm899, %v5861, 0
      %6157 = vmatpush.msra.mxu0 0.0
      %6158 = vmatpush.msra.mxu0 0.0
      %6159 = vmatpush.msra.mxu0 0.0
      %6160 = vmatpush.msra.mxu0 0.0
      %6161 = vmatpush.msra.mxu0 0.0
      %6162 = vmatpush.msra.mxu0 0.0
      %6163 = vmatpush.msra.mxu0 0.0
      %6164 = vmatpush.msra.mxu0 0.0
      %6165 = vmatpush.msra.mxu0 0.0
      %6166 = vmatpush.msra.mxu0 0.0
      %6167 = vmatpush.msra.mxu0 0.0
      %6168 = vmatpush.msra.mxu0 0.0
      %6169 = vmatpush.msra.mxu0 0.0
      %6170 = vmatpush.msra.mxu0 0.0
      %6171 = vmatpush.msra.mxu0 0.0
      %6172 = vmatpush.msra.mxu0 %v6155
      %6173 = vmatmul.f32.gmra.mxu0 %v6072
      %v6174 = vpop.f32.mrf.mxu0
      %v6175 = vadd.f32 0.0, %v6174
      %6176 = vmatmul.f32.gmra.mxu0 %v6074
      %v6177 = vpop.f32.mrf.mxu0
      %v6178 = vadd.f32 0.0, %v6177
      %6179 = vmatmul.f32.gmra.mxu0 %v6076
      %v6180 = vpop.f32.mrf.mxu0
      %v6181 = vadd.f32 0.0, %v6180
      %6182 = vmatmul.f32.gmra.mxu0 %v6078
      %v6183 = vpop.f32.mrf.mxu0
      %v6184 = vadd.f32 0.0, %v6183
      %6185 = vmatmul.f32.gmra.mxu0 %v6080
      %v6186 = vpop.f32.mrf.mxu0
      %v6187 = vadd.f32 0.0, %v6186
      %6188 = vmatmul.f32.gmra.mxu0 %v6082
      %v6189 = vpop.f32.mrf.mxu0
      %v6190 = vadd.f32 0.0, %v6189
      %6191 = vmatmul.f32.gmra.mxu0 %v6084
      %v6192 = vpop.f32.mrf.mxu0
      %v6193 = vadd.f32 0.0, %v6192
      %6194 = vmatmul.f32.gmra.mxu0 %v6086
      %v6195 = vpop.f32.mrf.mxu0
      %v6196 = vadd.f32 0.0, %v6195
      %6197 = vmatmul.f32.gmra.mxu0 %v6088
      %v6198 = vpop.f32.mrf.mxu0
      %v6199 = vadd.f32 0.0, %v6198
      %6200 = vmatmul.f32.gmra.mxu0 %v6090
      %v6201 = vpop.f32.mrf.mxu0
      %v6202 = vadd.f32 0.0, %v6201
      %6203 = vmatmul.f32.gmra.mxu0 %v6092
      %v6204 = vpop.f32.mrf.mxu0
      %v6205 = vadd.f32 0.0, %v6204
      %6206 = vmatmul.f32.gmra.mxu0 %v6094
      %v6207 = vpop.f32.mrf.mxu0
      %v6208 = vadd.f32 0.0, %v6207
      %6209 = vmatmul.f32.gmra.mxu0 %v6096
      %v6210 = vpop.f32.mrf.mxu0
      %v6211 = vadd.f32 0.0, %v6210
      %6212 = vmatmul.f32.gmra.mxu0 %v6098
      %v6213 = vpop.f32.mrf.mxu0
      %v6214 = vadd.f32 0.0, %v6213
      %6215 = vmatmul.f32.gmra.mxu0 %v6100
      %v6216 = vpop.f32.mrf.mxu0
      %v6217 = vadd.f32 0.0, %v6216
      %6218 = vmatmul.f32.gmra.mxu0 %v6102
      %v6219 = vpop.f32.mrf.mxu0
      %v6220 = vadd.f32 0.0, %v6219
      %6221 = vmatmul.f32.gmra.mxu0 %v6104
      %v6222 = vpop.f32.mrf.mxu0
      %v6223 = vadd.f32 0.0, %v6222
      %6224 = vmatmul.f32.gmra.mxu0 %v6106
      %v6225 = vpop.f32.mrf.mxu0
      %v6226 = vadd.f32 0.0, %v6225
      %6227 = vmatmul.f32.gmra.mxu0 %v6108
      %v6228 = vpop.f32.mrf.mxu0
      %v6229 = vadd.f32 0.0, %v6228
      %6230 = vmatmul.f32.gmra.mxu0 %v6110
      %v6231 = vpop.f32.mrf.mxu0
      %v6232 = vadd.f32 0.0, %v6231
      %6233 = vmatmul.f32.gmra.mxu0 %v6112
      %v6234 = vpop.f32.mrf.mxu0
      %v6235 = vadd.f32 0.0, %v6234
      %6236 = vmatmul.f32.gmra.mxu0 %v6114
      %v6237 = vpop.f32.mrf.mxu0
      %v6238 = vadd.f32 0.0, %v6237
      %6239 = vmatmul.f32.gmra.mxu0 %v6116
      %v6240 = vpop.f32.mrf.mxu0
      %v6241 = vadd.f32 0.0, %v6240
      %6242 = vmatmul.f32.gmra.mxu0 %v6118
      %v6243 = vpop.f32.mrf.mxu0
      %v6244 = vadd.f32 0.0, %v6243
      %6245 = vmatmul.f32.gmra.mxu0 %v6120
      %v6246 = vpop.f32.mrf.mxu0
      %v6247 = vadd.f32 0.0, %v6246
      %6248 = vmatmul.f32.gmra.mxu0 %v6122
      %v6249 = vpop.f32.mrf.mxu0
      %v6250 = vadd.f32 0.0, %v6249
      %6251 = vmatmul.f32.gmra.mxu0 %v6124
      %v6252 = vpop.f32.mrf.mxu0
      %v6253 = vadd.f32 0.0, %v6252
      %6254 = vmatmul.f32.gmra.mxu0 %v6126
      %v6255 = vpop.f32.mrf.mxu0
      %v6256 = vadd.f32 0.0, %v6255
      %6257 = vmatmul.f32.gmra.mxu0 %v6128
      %v6258 = vpop.f32.mrf.mxu0
      %v6259 = vadd.f32 0.0, %v6258
      %6260 = vmatmul.f32.gmra.mxu0 %v6130
      %v6261 = vpop.f32.mrf.mxu0
      %v6262 = vadd.f32 0.0, %v6261
      %6263 = vmatmul.f32.gmra.mxu0 %v6132
      %v6264 = vpop.f32.mrf.mxu0
      %v6265 = vadd.f32 0.0, %v6264
      %6266 = vmatmul.f32.gmra.mxu0 %v6134
      %v6267 = vpop.f32.mrf.mxu0
      %v6268 = vadd.f32 0.0, %v6267
      %6269 = vmatmul.f32.gmra.mxu0 %v6136
      %v6270 = vpop.f32.mrf.mxu0
      %v6271 = vadd.f32 0.0, %v6270
      %6272 = vmatmul.f32.gmra.mxu0 %v6138
      %v6273 = vpop.f32.mrf.mxu0
      %v6274 = vadd.f32 0.0, %v6273
      %6275 = vmatmul.f32.gmra.mxu0 %v6140
      %v6276 = vpop.f32.mrf.mxu0
      %v6277 = vadd.f32 0.0, %v6276
      %6278 = vmatmul.f32.gmra.mxu0 %v6142
      %v6279 = vpop.f32.mrf.mxu0
      %v6280 = vadd.f32 0.0, %v6279
      %6281 = vmatmul.f32.gmra.mxu0 %v6144
      %v6282 = vpop.f32.mrf.mxu0
      %v6283 = vadd.f32 0.0, %v6282
      %6284 = vmatmul.f32.gmra.mxu0 %v6146
      %v6285 = vpop.f32.mrf.mxu0
      %v6286 = vadd.f32 0.0, %v6285
      %6287 = vmatmul.f32.gmra.mxu0 %v6148
      %v6288 = vpop.f32.mrf.mxu0
      %v6289 = vadd.f32 0.0, %v6288
      %6290 = vmatmul.f32.gmra.mxu0 %v6150
      %v6291 = vpop.f32.mrf.mxu0
      %v6292 = vadd.f32 0.0, %v6291
      %6293 = vmatmul.f32.gmra.mxu0 %v6152
      %v6294 = vpop.f32.mrf.mxu0
      %v6295 = vadd.f32 0.0, %v6294
      %6296 = vdwg.mxu0
      %v6297 = vadd.f32 %v5603, %v6175
      %v6298 = vadd.f32 %v5604, %v6178
      %v6299 = vadd.f32 %v5605, %v6181
      %v6300 = vadd.f32 %v5606, %v6184
      %v6301 = vadd.f32 %v5607, %v6187
      %v6302 = vadd.f32 %v5608, %v6190
      %v6303 = vadd.f32 %v5609, %v6193
      %v6304 = vadd.f32 %v5610, %v6196
      %v6305 = vadd.f32 %v5611, %v6199
      %v6306 = vadd.f32 %v5612, %v6202
      %v6307 = vadd.f32 %v5613, %v6205
      %v6308 = vadd.f32 %v5614, %v6208
      %v6309 = vadd.f32 %v5615, %v6211
      %v6310 = vadd.f32 %v5616, %v6214
      %v6311 = vadd.f32 %v5617, %v6217
      %v6312 = vadd.f32 %v5618, %v6220
      %v6313 = vadd.f32 %v5619, %v6223
      %v6314 = vadd.f32 %v5620, %v6226
      %v6315 = vadd.f32 %v5621, %v6229
      %v6316 = vadd.f32 %v5622, %v6232
      %v6317 = vadd.f32 %v5623, %v6235
      %v6318 = vadd.f32 %v5624, %v6238
      %v6319 = vadd.f32 %v5625, %v6241
      %v6320 = vadd.f32 %v5626, %v6244
      %v6321 = vadd.f32 %v5627, %v6247
      %v6322 = vadd.f32 %v5628, %v6250
      %v6323 = vadd.f32 %v5629, %v6253
      %v6324 = vadd.f32 %v5630, %v6256
      %v6325 = vadd.f32 %v5631, %v6259
      %v6326 = vadd.f32 %v5632, %v6262
      %v6327 = vadd.f32 %v5633, %v6265
      %v6328 = vadd.f32 %v5634, %v6268
      %v6329 = vadd.f32 %v5635, %v6271
      %v6330 = vadd.f32 %v5636, %v6274
      %v6331 = vadd.f32 %v5637, %v6277
      %v6332 = vadd.f32 %v5638, %v6280
      %v6333 = vadd.f32 %v5639, %v6283
      %v6334 = vadd.f32 %v5640, %v6286
      %v6335 = vadd.f32 %v5641, %v6289
      %v6336 = vadd.f32 %v5642, %v6292
      %v6337 = vadd.f32 %v5643, %v6295
      %v6338 = vld [vmem:[%s2] sm:$0x1]
      %v6340 = vperm.slane %v6338, 0
      %v6342 = vadd.f32 %v6297, %v6340
      %v6343 = vadd.f32 %v6298, %v6340
      %v6344 = vadd.f32 %v6299, %v6340
      %v6345 = vadd.f32 %v6300, %v6340
      %v6346 = vadd.f32 %v6301, %v6340
      %v6347 = vadd.f32 %v6302, %v6340
      %v6348 = vadd.f32 %v6303, %v6340
      %v6349 = vadd.f32 %v6304, %v6340
      %v6350 = vadd.f32 %v6305, %v6340
      %v6351 = vadd.f32 %v6306, %v6340
      %v6352 = vadd.f32 %v6307, %v6340
      %v6353 = vadd.f32 %v6308, %v6340
      %v6354 = vadd.f32 %v6309, %v6340
      %v6355 = vadd.f32 %v6310, %v6340
      %v6356 = vadd.f32 %v6311, %v6340
      %v6357 = vadd.f32 %v6312, %v6340
      %v6358 = vadd.f32 %v6313, %v6340
      %v6359 = vadd.f32 %v6314, %v6340
      %v6360 = vadd.f32 %v6315, %v6340
      %v6361 = vadd.f32 %v6316, %v6340
      %v6362 = vadd.f32 %v6317, %v6340
      %v6363 = vadd.f32 %v6318, %v6340
      %v6364 = vadd.f32 %v6319, %v6340
      %v6365 = vadd.f32 %v6320, %v6340
      %v6366 = vadd.f32 %v6321, %v6340
      %v6367 = vadd.f32 %v6322, %v6340
      %v6368 = vadd.f32 %v6323, %v6340
      %v6369 = vadd.f32 %v6324, %v6340
      %v6370 = vadd.f32 %v6325, %v6340
      %v6371 = vadd.f32 %v6326, %v6340
      %v6372 = vadd.f32 %v6327, %v6340
      %v6373 = vadd.f32 %v6328, %v6340
      %v6374 = vadd.f32 %v6329, %v6340
      %v6375 = vadd.f32 %v6330, %v6340
      %v6376 = vadd.f32 %v6331, %v6340
      %v6377 = vadd.f32 %v6332, %v6340
      %v6378 = vadd.f32 %v6333, %v6340
      %v6379 = vadd.f32 %v6334, %v6340
      %v6380 = vadd.f32 %v6335, %v6340
      %v6381 = vadd.f32 %v6336, %v6340
      %v6382 = vadd.f32 %v6337, %v6340
      %v6383 = vmax.f32 %v6342, 0.0
      %v6384 = vmax.f32 %v6343, 0.0
      %v6385 = vmax.f32 %v6344, 0.0
      %v6386 = vmax.f32 %v6345, 0.0
      %v6387 = vmax.f32 %v6346, 0.0
      %v6388 = vmax.f32 %v6347, 0.0
      %v6389 = vmax.f32 %v6348, 0.0
      %v6390 = vmax.f32 %v6349, 0.0
      %v6391 = vmax.f32 %v6350, 0.0
      %v6392 = vmax.f32 %v6351, 0.0
      %v6393 = vmax.f32 %v6352, 0.0
      %v6394 = vmax.f32 %v6353, 0.0
      %v6395 = vmax.f32 %v6354, 0.0
      %v6396 = vmax.f32 %v6355, 0.0
      %v6397 = vmax.f32 %v6356, 0.0
      %v6398 = vmax.f32 %v6357, 0.0
      %v6399 = vmax.f32 %v6358, 0.0
      %v6400 = vmax.f32 %v6359, 0.0
      %v6401 = vmax.f32 %v6360, 0.0
      %v6402 = vmax.f32 %v6361, 0.0
      %v6403 = vmax.f32 %v6362, 0.0
      %v6404 = vmax.f32 %v6363, 0.0
      %v6405 = vmax.f32 %v6364, 0.0
      %v6406 = vmax.f32 %v6365, 0.0
      %v6407 = vmax.f32 %v6366, 0.0
      %v6408 = vmax.f32 %v6367, 0.0
      %v6409 = vmax.f32 %v6368, 0.0
      %v6410 = vmax.f32 %v6369, 0.0
      %v6411 = vmax.f32 %v6370, 0.0
      %v6412 = vmax.f32 %v6371, 0.0
      %v6413 = vmax.f32 %v6372, 0.0
      %v6414 = vmax.f32 %v6373, 0.0
      %v6415 = vmax.f32 %v6374, 0.0
      %v6416 = vmax.f32 %v6375, 0.0
      %v6417 = vmax.f32 %v6376, 0.0
      %v6418 = vmax.f32 %v6377, 0.0
      %v6419 = vmax.f32 %v6378, 0.0
      %v6420 = vmax.f32 %v6379, 0.0
      %v6421 = vmax.f32 %v6380, 0.0
      %v6422 = vmax.f32 %v6381, 0.0
      %v6423 = vmax.f32 %v6382, 0.0
      %v6465 = vrot.slane %v6383, 2
      %v6466 = vrot.slane %v6383, 4
      %v6467 = vrot.slane %v6383, 6
      %v6468 = vrot.slane %v6384, 2
      %v6469 = vrot.slane %v6384, 4
      %v6470 = vrot.slane %v6384, 6
      %v6471 = vrot.slane %v6385, 2
      %v6472 = vrot.slane %v6385, 4
      %v6473 = vrot.slane %v6385, 6
      %v6474 = vrot.slane %v6386, 2
      %v6475 = vrot.slane %v6386, 4
      %v6476 = vrot.slane %v6386, 6
      %v6477 = vrot.slane %v6387, 2
      %v6478 = vrot.slane %v6387, 4
      %v6479 = vrot.slane %v6387, 6
      %v6480 = vrot.slane %v6388, 2
      %v6481 = vrot.slane %v6388, 4
      %v6482 = vrot.slane %v6388, 6
      %v6483 = vrot.slane %v6389, 2
      %v6484 = vrot.slane %v6389, 4
      %v6485 = vrot.slane %v6389, 6
      %v6486 = vrot.slane %v6390, 2
      %v6487 = vrot.slane %v6390, 4
      %v6488 = vrot.slane %v6390, 6
      %v6489 = vrot.slane %v6391, 2
      %v6490 = vrot.slane %v6391, 4
      %v6491 = vrot.slane %v6391, 6
      %v6492 = vrot.slane %v6392, 2
      %v6493 = vrot.slane %v6392, 4
      %v6494 = vrot.slane %v6392, 6
      %v6495 = vrot.slane %v6393, 2
      %v6496 = vrot.slane %v6393, 4
      %v6497 = vrot.slane %v6393, 6
      %v6498 = vrot.slane %v6394, 2
      %v6499 = vrot.slane %v6394, 4
      %v6500 = vrot.slane %v6394, 6
      %v6501 = vrot.slane %v6395, 2
      %v6502 = vrot.slane %v6395, 4
      %v6503 = vrot.slane %v6395, 6
      %v6504 = vrot.slane %v6396, 2
      %v6505 = vrot.slane %v6396, 4
      %v6506 = vrot.slane %v6396, 6
      %v6507 = vrot.slane %v6397, 2
      %v6508 = vrot.slane %v6397, 4
      %v6509 = vrot.slane %v6397, 6
      %v6510 = vrot.slane %v6398, 2
      %v6511 = vrot.slane %v6398, 4
      %v6512 = vrot.slane %v6398, 6
      %v6513 = vrot.slane %v6399, 2
      %v6514 = vrot.slane %v6399, 4
      %v6515 = vrot.slane %v6399, 6
      %v6516 = vrot.slane %v6400, 2
      %v6517 = vrot.slane %v6400, 4
      %v6518 = vrot.slane %v6400, 6
      %v6519 = vrot.slane %v6401, 2
      %v6520 = vrot.slane %v6401, 4
      %v6521 = vrot.slane %v6401, 6
      %v6522 = vrot.slane %v6402, 2
      %v6523 = vrot.slane %v6402, 4
      %v6524 = vrot.slane %v6402, 6
      %v6525 = vrot.slane %v6403, 2
      %v6526 = vrot.slane %v6403, 4
      %v6527 = vrot.slane %v6403, 6
      %v6528 = vrot.slane %v6404, 2
      %v6529 = vrot.slane %v6404, 4
      %v6530 = vrot.slane %v6404, 6
      %v6531 = vrot.slane %v6405, 2
      %v6532 = vrot.slane %v6405, 4
      %v6533 = vrot.slane %v6405, 6
      %v6534 = vrot.slane %v6406, 2
      %v6535 = vrot.slane %v6406, 4
      %v6536 = vrot.slane %v6406, 6
      %v6537 = vrot.slane %v6407, 2
      %v6538 = vrot.slane %v6407, 4
      %v6539 = vrot.slane %v6407, 6
      %v6540 = vrot.slane %v6408, 2
      %v6541 = vrot.slane %v6408, 4
      %v6542 = vrot.slane %v6408, 6
      %v6543 = vrot.slane %v6409, 2
      %v6544 = vrot.slane %v6409, 4
      %v6545 = vrot.slane %v6409, 6
      %v6546 = vrot.slane %v6410, 2
      %v6547 = vrot.slane %v6410, 4
      %v6548 = vrot.slane %v6410, 6
      %v6549 = vrot.slane %v6411, 2
      %v6550 = vrot.slane %v6411, 4
      %v6551 = vrot.slane %v6411, 6
      %v6552 = vrot.slane %v6412, 2
      %v6553 = vrot.slane %v6412, 4
      %v6554 = vrot.slane %v6412, 6
      %v6555 = vrot.slane %v6413, 2
      %v6556 = vrot.slane %v6413, 4
      %v6557 = vrot.slane %v6413, 6
      %v6558 = vrot.slane %v6414, 2
      %v6559 = vrot.slane %v6414, 4
      %v6560 = vrot.slane %v6414, 6
      %v6561 = vrot.slane %v6415, 2
      %v6562 = vrot.slane %v6415, 4
      %v6563 = vrot.slane %v6415, 6
      %v6564 = vrot.slane %v6416, 2
      %v6565 = vrot.slane %v6416, 4
      %v6566 = vrot.slane %v6416, 6
      %v6567 = vrot.slane %v6417, 2
      %v6568 = vrot.slane %v6417, 4
      %v6569 = vrot.slane %v6417, 6
      %v6570 = vrot.slane %v6418, 2
      %v6571 = vrot.slane %v6418, 4
      %v6572 = vrot.slane %v6418, 6
      %v6573 = vrot.slane %v6419, 2
      %v6574 = vrot.slane %v6419, 4
      %v6575 = vrot.slane %v6419, 6
      %v6576 = vrot.slane %v6420, 2
      %v6577 = vrot.slane %v6420, 4
      %v6578 = vrot.slane %v6420, 6
      %v6579 = vrot.slane %v6421, 2
      %v6580 = vrot.slane %v6421, 4
      %v6581 = vrot.slane %v6421, 6
      %v6582 = vrot.slane %v6422, 2
      %v6583 = vrot.slane %v6422, 4
      %v6584 = vrot.slane %v6422, 6
      %v6585 = vrot.slane %v6423, 2
      %vm6707 = vcmask 254976
      %v6708 = vsel %vm6707, %v6383, -inf
      %v6709 = vsel %vm6707, %v6471, -inf
      %v6710 = vmax.f32 %v6708, %v6709
      %v6711 = vsel %vm6707, %v6465, -inf
      %v6712 = vsel %vm6707, %v6472, -inf
      %v6713 = vmax.f32 %v6711, %v6712
      %v6714 = vsel %vm6707, %v6466, -inf
      %v6715 = vsel %vm6707, %v6473, -inf
      %v6716 = vmax.f32 %v6714, %v6715
      %v6717 = vsel %vm6707, %v6467, -inf
      %v6718 = vsel %vm6707, %v6386, -inf
      %v6719 = vmax.f32 %v6717, %v6718
      %v6720 = vsel %vm6707, %v6384, -inf
      %v6721 = vsel %vm6707, %v6474, -inf
      %v6722 = vmax.f32 %v6720, %v6721
      %v6723 = vsel %vm6707, %v6468, -inf
      %v6724 = vsel %vm6707, %v6475, -inf
      %v6725 = vmax.f32 %v6723, %v6724
      %v6726 = vsel %vm6707, %v6469, -inf
      %v6727 = vsel %vm6707, %v6476, -inf
      %v6728 = vmax.f32 %v6726, %v6727
      %v6729 = vsel %vm6707, %v6470, -inf
      %v6730 = vsel %vm6707, %v6387, -inf
      %v6731 = vmax.f32 %v6729, %v6730
      %v6732 = vsel %vm6707, %v6385, -inf
      %v6733 = vsel %vm6707, %v6477, -inf
      %v6734 = vmax.f32 %v6732, %v6733
      %v6735 = vsel %vm6707, %v6478, -inf
      %v6736 = vsel %vm6707, %v6485, -inf
      %v6737 = vmax.f32 %v6735, %v6736
      %v6738 = vsel %vm6707, %v6479, -inf
      %v6739 = vsel %vm6707, %v6390, -inf
      %v6740 = vmax.f32 %v6738, %v6739
      %v6741 = vsel %vm6707, %v6388, -inf
      %v6742 = vsel %vm6707, %v6486, -inf
      %v6743 = vmax.f32 %v6741, %v6742
      %v6744 = vsel %vm6707, %v6480, -inf
      %v6745 = vsel %vm6707, %v6487, -inf
      %v6746 = vmax.f32 %v6744, %v6745
      %v6747 = vsel %vm6707, %v6481, -inf
      %v6748 = vsel %vm6707, %v6488, -inf
      %v6749 = vmax.f32 %v6747, %v6748
      %v6750 = vsel %vm6707, %v6482, -inf
      %v6751 = vsel %vm6707, %v6391, -inf
      %v6752 = vmax.f32 %v6750, %v6751
      %v6753 = vsel %vm6707, %v6389, -inf
      %v6754 = vsel %vm6707, %v6489, -inf
      %v6755 = vmax.f32 %v6753, %v6754
      %v6756 = vsel %vm6707, %v6483, -inf
      %v6757 = vsel %vm6707, %v6490, -inf
      %v6758 = vmax.f32 %v6756, %v6757
      %v6759 = vsel %vm6707, %v6484, -inf
      %v6760 = vsel %vm6707, %v6491, -inf
      %v6761 = vmax.f32 %v6759, %v6760
      %v6762 = vsel %vm6707, %v6392, -inf
      %v6763 = vsel %vm6707, %v6498, -inf
      %v6764 = vmax.f32 %v6762, %v6763
      %v6765 = vsel %vm6707, %v6492, -inf
      %v6766 = vsel %vm6707, %v6499, -inf
      %v6767 = vmax.f32 %v6765, %v6766
      %v6768 = vsel %vm6707, %v6493, -inf
      %v6769 = vsel %vm6707, %v6500, -inf
      %v6770 = vmax.f32 %v6768, %v6769
      %v6771 = vsel %vm6707, %v6494, -inf
      %v6772 = vsel %vm6707, %v6395, -inf
      %v6773 = vmax.f32 %v6771, %v6772
      %v6774 = vsel %vm6707, %v6393, -inf
      %v6775 = vsel %vm6707, %v6501, -inf
      %v6776 = vmax.f32 %v6774, %v6775
      %v6777 = vsel %vm6707, %v6495, -inf
      %v6778 = vsel %vm6707, %v6502, -inf
      %v6779 = vmax.f32 %v6777, %v6778
      %v6780 = vsel %vm6707, %v6496, -inf
      %v6781 = vsel %vm6707, %v6503, -inf
      %v6782 = vmax.f32 %v6780, %v6781
      %v6783 = vsel %vm6707, %v6497, -inf
      %v6784 = vsel %vm6707, %v6396, -inf
      %v6785 = vmax.f32 %v6783, %v6784
      %v6786 = vsel %vm6707, %v6394, -inf
      %v6787 = vsel %vm6707, %v6504, -inf
      %v6788 = vmax.f32 %v6786, %v6787
      %v6789 = vsel %vm6707, %v6505, -inf
      %v6790 = vsel %vm6707, %v6512, -inf
      %v6791 = vmax.f32 %v6789, %v6790
      %v6792 = vsel %vm6707, %v6506, -inf
      %v6793 = vsel %vm6707, %v6399, -inf
      %v6794 = vmax.f32 %v6792, %v6793
      %v6795 = vsel %vm6707, %v6397, -inf
      %v6796 = vsel %vm6707, %v6513, -inf
      %v6797 = vmax.f32 %v6795, %v6796
      %v6798 = vsel %vm6707, %v6507, -inf
      %v6799 = vsel %vm6707, %v6514, -inf
      %v6800 = vmax.f32 %v6798, %v6799
      %v6801 = vsel %vm6707, %v6508, -inf
      %v6802 = vsel %vm6707, %v6515, -inf
      %v6803 = vmax.f32 %v6801, %v6802
      %v6804 = vsel %vm6707, %v6509, -inf
      %v6805 = vsel %vm6707, %v6400, -inf
      %v6806 = vmax.f32 %v6804, %v6805
      %v6807 = vsel %vm6707, %v6398, -inf
      %v6808 = vsel %vm6707, %v6516, -inf
      %v6809 = vmax.f32 %v6807, %v6808
      %v6810 = vsel %vm6707, %v6510, -inf
      %v6811 = vsel %vm6707, %v6517, -inf
      %v6812 = vmax.f32 %v6810, %v6811
      %v6813 = vsel %vm6707, %v6511, -inf
      %v6814 = vsel %vm6707, %v6518, -inf
      %v6815 = vmax.f32 %v6813, %v6814
      %v6816 = vsel %vm6707, %v6401, -inf
      %v6817 = vsel %vm6707, %v6525, -inf
      %v6818 = vmax.f32 %v6816, %v6817
      %v6819 = vsel %vm6707, %v6519, -inf
      %v6820 = vsel %vm6707, %v6526, -inf
      %v6821 = vmax.f32 %v6819, %v6820
      %v6822 = vsel %vm6707, %v6520, -inf
      %v6823 = vsel %vm6707, %v6527, -inf
      %v6824 = vmax.f32 %v6822, %v6823
      %v6825 = vsel %vm6707, %v6521, -inf
      %v6826 = vsel %vm6707, %v6404, -inf
      %v6827 = vmax.f32 %v6825, %v6826
      %v6828 = vsel %vm6707, %v6402, -inf
      %v6829 = vsel %vm6707, %v6528, -inf
      %v6830 = vmax.f32 %v6828, %v6829
      %v6831 = vsel %vm6707, %v6522, -inf
      %v6832 = vsel %vm6707, %v6529, -inf
      %v6833 = vmax.f32 %v6831, %v6832
      %v6834 = vsel %vm6707, %v6523, -inf
      %v6835 = vsel %vm6707, %v6530, -inf
      %v6836 = vmax.f32 %v6834, %v6835
      %v6837 = vsel %vm6707, %v6524, -inf
      %v6838 = vsel %vm6707, %v6405, -inf
      %v6839 = vmax.f32 %v6837, %v6838
      %v6840 = vsel %vm6707, %v6403, -inf
      %v6841 = vsel %vm6707, %v6531, -inf
      %v6842 = vmax.f32 %v6840, %v6841
      %v6843 = vsel %vm6707, %v6532, -inf
      %v6844 = vsel %vm6707, %v6539, -inf
      %v6845 = vmax.f32 %v6843, %v6844
      %v6846 = vsel %vm6707, %v6533, -inf
      %v6847 = vsel %vm6707, %v6408, -inf
      %v6848 = vmax.f32 %v6846, %v6847
      %v6849 = vsel %vm6707, %v6406, -inf
      %v6850 = vsel %vm6707, %v6540, -inf
      %v6851 = vmax.f32 %v6849, %v6850
      %v6852 = vsel %vm6707, %v6534, -inf
      %v6853 = vsel %vm6707, %v6541, -inf
      %v6854 = vmax.f32 %v6852, %v6853
      %v6855 = vsel %vm6707, %v6535, -inf
      %v6856 = vsel %vm6707, %v6542, -inf
      %v6857 = vmax.f32 %v6855, %v6856
      %v6858 = vsel %vm6707, %v6536, -inf
      %v6859 = vsel %vm6707, %v6409, -inf
      %v6860 = vmax.f32 %v6858, %v6859
      %v6861 = vsel %vm6707, %v6407, -inf
      %v6862 = vsel %vm6707, %v6543, -inf
      %v6863 = vmax.f32 %v6861, %v6862
      %v6864 = vsel %vm6707, %v6537, -inf
      %v6865 = vsel %vm6707, %v6544, -inf
      %v6866 = vmax.f32 %v6864, %v6865
      %v6867 = vsel %vm6707, %v6538, -inf
      %v6868 = vsel %vm6707, %v6545, -inf
      %v6869 = vmax.f32 %v6867, %v6868
      %v6870 = vsel %vm6707, %v6410, -inf
      %v6871 = vsel %vm6707, %v6552, -inf
      %v6872 = vmax.f32 %v6870, %v6871
      %v6873 = vsel %vm6707, %v6546, -inf
      %v6874 = vsel %vm6707, %v6553, -inf
      %v6875 = vmax.f32 %v6873, %v6874
      %v6876 = vsel %vm6707, %v6547, -inf
      %v6877 = vsel %vm6707, %v6554, -inf
      %v6878 = vmax.f32 %v6876, %v6877
      %v6879 = vsel %vm6707, %v6548, -inf
      %v6880 = vsel %vm6707, %v6413, -inf
      %v6881 = vmax.f32 %v6879, %v6880
      %v6882 = vsel %vm6707, %v6411, -inf
      %v6883 = vsel %vm6707, %v6555, -inf
      %v6884 = vmax.f32 %v6882, %v6883
      %v6885 = vsel %vm6707, %v6549, -inf
      %v6886 = vsel %vm6707, %v6556, -inf
      %v6887 = vmax.f32 %v6885, %v6886
      %v6888 = vsel %vm6707, %v6550, -inf
      %v6889 = vsel %vm6707, %v6557, -inf
      %v6890 = vmax.f32 %v6888, %v6889
      %v6891 = vsel %vm6707, %v6551, -inf
      %v6892 = vsel %vm6707, %v6414, -inf
      %v6893 = vmax.f32 %v6891, %v6892
      %v6894 = vsel %vm6707, %v6412, -inf
      %v6895 = vsel %vm6707, %v6558, -inf
      %v6896 = vmax.f32 %v6894, %v6895
      %v6897 = vsel %vm6707, %v6559, -inf
      %v6898 = vsel %vm6707, %v6566, -inf
      %v6899 = vmax.f32 %v6897, %v6898
      %v6900 = vsel %vm6707, %v6560, -inf
      %v6901 = vsel %vm6707, %v6417, -inf
      %v6902 = vmax.f32 %v6900, %v6901
      %v6903 = vsel %vm6707, %v6415, -inf
      %v6904 = vsel %vm6707, %v6567, -inf
      %v6905 = vmax.f32 %v6903, %v6904
      %v6906 = vsel %vm6707, %v6561, -inf
      %v6907 = vsel %vm6707, %v6568, -inf
      %v6908 = vmax.f32 %v6906, %v6907
      %v6909 = vsel %vm6707, %v6562, -inf
      %v6910 = vsel %vm6707, %v6569, -inf
      %v6911 = vmax.f32 %v6909, %v6910
      %v6912 = vsel %vm6707, %v6563, -inf
      %v6913 = vsel %vm6707, %v6418, -inf
      %v6914 = vmax.f32 %v6912, %v6913
      %v6915 = vsel %vm6707, %v6416, -inf
      %v6916 = vsel %vm6707, %v6570, -inf
      %v6917 = vmax.f32 %v6915, %v6916
      %v6918 = vsel %vm6707, %v6564, -inf
      %v6919 = vsel %vm6707, %v6571, -inf
      %v6920 = vmax.f32 %v6918, %v6919
      %v6921 = vsel %vm6707, %v6565, -inf
      %v6922 = vsel %vm6707, %v6572, -inf
      %v6923 = vmax.f32 %v6921, %v6922
      %v6924 = vsel %vm6707, %v6419, -inf
      %v6925 = vsel %vm6707, %v6579, -inf
      %v6926 = vmax.f32 %v6924, %v6925
      %v6927 = vsel %vm6707, %v6573, -inf
      %v6928 = vsel %vm6707, %v6580, -inf
      %v6929 = vmax.f32 %v6927, %v6928
      %v6930 = vsel %vm6707, %v6574, -inf
      %v6931 = vsel %vm6707, %v6581, -inf
      %v6932 = vmax.f32 %v6930, %v6931
      %v6933 = vsel %vm6707, %v6575, -inf
      %v6934 = vsel %vm6707, %v6422, -inf
      %v6935 = vmax.f32 %v6933, %v6934
      %v6936 = vsel %vm6707, %v6420, -inf
      %v6937 = vsel %vm6707, %v6582, -inf
      %v6938 = vmax.f32 %v6936, %v6937
      %v6939 = vsel %vm6707, %v6576, -inf
      %v6940 = vsel %vm6707, %v6583, -inf
      %v6941 = vmax.f32 %v6939, %v6940
      %v6942 = vsel %vm6707, %v6577, -inf
      %v6943 = vsel %vm6707, %v6584, -inf
      %v6944 = vmax.f32 %v6942, %v6943
      %v6945 = vsel %vm6707, %v6578, -inf
      %v6946 = vsel %vm6707, %v6423, -inf
      %v6947 = vmax.f32 %v6945, %v6946
      %v6948 = vsel %vm6707, %v6421, -inf
      %v6949 = vsel %vm6707, %v6585, -inf
      %v6950 = vmax.f32 %v6948, %v6949
      %v6951 = vsel %vm6707, %v6710, -inf
      %v6952 = vrot.slane %v6951, 4
      %v6953 = vmax.f32 %v6951, %v6952
      %v6954 = vrot.slane %v6953, 2
      %v6955 = vmax.f32 %v6953, %v6954
      %v6956 = vrot.slane %v6955, 1
      %v6957 = vmax.f32 %v6955, %v6956
      %v6958 = vsel %vm6707, %v6713, -inf
      %v6959 = vrot.slane %v6958, 4
      %v6960 = vmax.f32 %v6958, %v6959
      %v6961 = vrot.slane %v6960, 2
      %v6962 = vmax.f32 %v6960, %v6961
      %v6963 = vrot.slane %v6962, 1
      %v6964 = vmax.f32 %v6962, %v6963
      %v6965 = vsel %vm6707, %v6716, -inf
      %v6966 = vrot.slane %v6965, 4
      %v6967 = vmax.f32 %v6965, %v6966
      %v6968 = vrot.slane %v6967, 2
      %v6969 = vmax.f32 %v6967, %v6968
      %v6970 = vrot.slane %v6969, 1
      %v6971 = vmax.f32 %v6969, %v6970
      %v6972 = vsel %vm6707, %v6719, -inf
      %v6973 = vrot.slane %v6972, 4
      %v6974 = vmax.f32 %v6972, %v6973
      %v6975 = vrot.slane %v6974, 2
      %v6976 = vmax.f32 %v6974, %v6975
      %v6977 = vrot.slane %v6976, 1
      %v6978 = vmax.f32 %v6976, %v6977
      %v6979 = vsel %vm6707, %v6722, -inf
      %v6980 = vrot.slane %v6979, 4
      %v6981 = vmax.f32 %v6979, %v6980
      %v6982 = vrot.slane %v6981, 2
      %v6983 = vmax.f32 %v6981, %v6982
      %v6984 = vrot.slane %v6983, 1
      %v6985 = vmax.f32 %v6983, %v6984
      %v6986 = vsel %vm6707, %v6725, -inf
      %v6987 = vrot.slane %v6986, 4
      %v6988 = vmax.f32 %v6986, %v6987
      %v6989 = vrot.slane %v6988, 2
      %v6990 = vmax.f32 %v6988, %v6989
      %v6991 = vrot.slane %v6990, 1
      %v6992 = vmax.f32 %v6990, %v6991
      %v6993 = vsel %vm6707, %v6728, -inf
      %v6994 = vrot.slane %v6993, 4
      %v6995 = vmax.f32 %v6993, %v6994
      %v6996 = vrot.slane %v6995, 2
      %v6997 = vmax.f32 %v6995, %v6996
      %v6998 = vrot.slane %v6997, 1
      %v6999 = vmax.f32 %v6997, %v6998
      %v7000 = vsel %vm6707, %v6731, -inf
      %v7001 = vrot.slane %v7000, 4
      %v7002 = vmax.f32 %v7000, %v7001
      %v7003 = vrot.slane %v7002, 2
      %v7004 = vmax.f32 %v7002, %v7003
      %v7005 = vrot.slane %v7004, 1
      %v7006 = vmax.f32 %v7004, %v7005
      %v7007 = vsel %vm6707, %v6734, -inf
      %v7008 = vrot.slane %v7007, 4
      %v7009 = vmax.f32 %v7007, %v7008
      %v7010 = vrot.slane %v7009, 2
      %v7011 = vmax.f32 %v7009, %v7010
      %v7012 = vrot.slane %v7011, 1
      %v7013 = vmax.f32 %v7011, %v7012
      %v7014 = vsel %vm6707, %v6737, -inf
      %v7015 = vrot.slane %v7014, 4
      %v7016 = vmax.f32 %v7014, %v7015
      %v7017 = vrot.slane %v7016, 2
      %v7018 = vmax.f32 %v7016, %v7017
      %v7019 = vrot.slane %v7018, 1
      %v7020 = vmax.f32 %v7018, %v7019
      %v7021 = vsel %vm6707, %v6740, -inf
      %v7022 = vrot.slane %v7021, 4
      %v7023 = vmax.f32 %v7021, %v7022
      %v7024 = vrot.slane %v7023, 2
      %v7025 = vmax.f32 %v7023, %v7024
      %v7026 = vrot.slane %v7025, 1
      %v7027 = vmax.f32 %v7025, %v7026
      %v7028 = vsel %vm6707, %v6743, -inf
      %v7029 = vrot.slane %v7028, 4
      %v7030 = vmax.f32 %v7028, %v7029
      %v7031 = vrot.slane %v7030, 2
      %v7032 = vmax.f32 %v7030, %v7031
      %v7033 = vrot.slane %v7032, 1
      %v7034 = vmax.f32 %v7032, %v7033
      %v7035 = vsel %vm6707, %v6746, -inf
      %v7036 = vrot.slane %v7035, 4
      %v7037 = vmax.f32 %v7035, %v7036
      %v7038 = vrot.slane %v7037, 2
      %v7039 = vmax.f32 %v7037, %v7038
      %v7040 = vrot.slane %v7039, 1
      %v7041 = vmax.f32 %v7039, %v7040
      %v7042 = vsel %vm6707, %v6749, -inf
      %v7043 = vrot.slane %v7042, 4
      %v7044 = vmax.f32 %v7042, %v7043
      %v7045 = vrot.slane %v7044, 2
      %v7046 = vmax.f32 %v7044, %v7045
      %v7047 = vrot.slane %v7046, 1
      %v7048 = vmax.f32 %v7046, %v7047
      %v7049 = vsel %vm6707, %v6752, -inf
      %v7050 = vrot.slane %v7049, 4
      %v7051 = vmax.f32 %v7049, %v7050
      %v7052 = vrot.slane %v7051, 2
      %v7053 = vmax.f32 %v7051, %v7052
      %v7054 = vrot.slane %v7053, 1
      %v7055 = vmax.f32 %v7053, %v7054
      %v7056 = vsel %vm6707, %v6755, -inf
      %v7057 = vrot.slane %v7056, 4
      %v7058 = vmax.f32 %v7056, %v7057
      %v7059 = vrot.slane %v7058, 2
      %v7060 = vmax.f32 %v7058, %v7059
      %v7061 = vrot.slane %v7060, 1
      %v7062 = vmax.f32 %v7060, %v7061
      %v7063 = vsel %vm6707, %v6758, -inf
      %v7064 = vrot.slane %v7063, 4
      %v7065 = vmax.f32 %v7063, %v7064
      %v7066 = vrot.slane %v7065, 2
      %v7067 = vmax.f32 %v7065, %v7066
      %v7068 = vrot.slane %v7067, 1
      %v7069 = vmax.f32 %v7067, %v7068
      %v7070 = vsel %vm6707, %v6761, -inf
      %v7071 = vrot.slane %v7070, 4
      %v7072 = vmax.f32 %v7070, %v7071
      %v7073 = vrot.slane %v7072, 2
      %v7074 = vmax.f32 %v7072, %v7073
      %v7075 = vrot.slane %v7074, 1
      %v7076 = vmax.f32 %v7074, %v7075
      %v7077 = vsel %vm6707, %v6764, -inf
      %v7078 = vrot.slane %v7077, 4
      %v7079 = vmax.f32 %v7077, %v7078
      %v7080 = vrot.slane %v7079, 2
      %v7081 = vmax.f32 %v7079, %v7080
      %v7082 = vrot.slane %v7081, 1
      %v7083 = vmax.f32 %v7081, %v7082
      %v7084 = vsel %vm6707, %v6767, -inf
      %v7085 = vrot.slane %v7084, 4
      %v7086 = vmax.f32 %v7084, %v7085
      %v7087 = vrot.slane %v7086, 2
      %v7088 = vmax.f32 %v7086, %v7087
      %v7089 = vrot.slane %v7088, 1
      %v7090 = vmax.f32 %v7088, %v7089
      %v7091 = vsel %vm6707, %v6770, -inf
      %v7092 = vrot.slane %v7091, 4
      %v7093 = vmax.f32 %v7091, %v7092
      %v7094 = vrot.slane %v7093, 2
      %v7095 = vmax.f32 %v7093, %v7094
      %v7096 = vrot.slane %v7095, 1
      %v7097 = vmax.f32 %v7095, %v7096
      %v7098 = vsel %vm6707, %v6773, -inf
      %v7099 = vrot.slane %v7098, 4
      %v7100 = vmax.f32 %v7098, %v7099
      %v7101 = vrot.slane %v7100, 2
      %v7102 = vmax.f32 %v7100, %v7101
      %v7103 = vrot.slane %v7102, 1
      %v7104 = vmax.f32 %v7102, %v7103
      %v7105 = vsel %vm6707, %v6776, -inf
      %v7106 = vrot.slane %v7105, 4
      %v7107 = vmax.f32 %v7105, %v7106
      %v7108 = vrot.slane %v7107, 2
      %v7109 = vmax.f32 %v7107, %v7108
      %v7110 = vrot.slane %v7109, 1
      %v7111 = vmax.f32 %v7109, %v7110
      %v7112 = vsel %vm6707, %v6779, -inf
      %v7113 = vrot.slane %v7112, 4
      %v7114 = vmax.f32 %v7112, %v7113
      %v7115 = vrot.slane %v7114, 2
      %v7116 = vmax.f32 %v7114, %v7115
      %v7117 = vrot.slane %v7116, 1
      %v7118 = vmax.f32 %v7116, %v7117
      %v7119 = vsel %vm6707, %v6782, -inf
      %v7120 = vrot.slane %v7119, 4
      %v7121 = vmax.f32 %v7119, %v7120
      %v7122 = vrot.slane %v7121, 2
      %v7123 = vmax.f32 %v7121, %v7122
      %v7124 = vrot.slane %v7123, 1
      %v7125 = vmax.f32 %v7123, %v7124
      %v7126 = vsel %vm6707, %v6785, -inf
      %v7127 = vrot.slane %v7126, 4
      %v7128 = vmax.f32 %v7126, %v7127
      %v7129 = vrot.slane %v7128, 2
      %v7130 = vmax.f32 %v7128, %v7129
      %v7131 = vrot.slane %v7130, 1
      %v7132 = vmax.f32 %v7130, %v7131
      %v7133 = vsel %vm6707, %v6788, -inf
      %v7134 = vrot.slane %v7133, 4
      %v7135 = vmax.f32 %v7133, %v7134
      %v7136 = vrot.slane %v7135, 2
      %v7137 = vmax.f32 %v7135, %v7136
      %v7138 = vrot.slane %v7137, 1
      %v7139 = vmax.f32 %v7137, %v7138
      %v7140 = vsel %vm6707, %v6791, -inf
      %v7141 = vrot.slane %v7140, 4
      %v7142 = vmax.f32 %v7140, %v7141
      %v7143 = vrot.slane %v7142, 2
      %v7144 = vmax.f32 %v7142, %v7143
      %v7145 = vrot.slane %v7144, 1
      %v7146 = vmax.f32 %v7144, %v7145
      %v7147 = vsel %vm6707, %v6794, -inf
      %v7148 = vrot.slane %v7147, 4
      %v7149 = vmax.f32 %v7147, %v7148
      %v7150 = vrot.slane %v7149, 2
      %v7151 = vmax.f32 %v7149, %v7150
      %v7152 = vrot.slane %v7151, 1
      %v7153 = vmax.f32 %v7151, %v7152
      %v7154 = vsel %vm6707, %v6797, -inf
      %v7155 = vrot.slane %v7154, 4
      %v7156 = vmax.f32 %v7154, %v7155
      %v7157 = vrot.slane %v7156, 2
      %v7158 = vmax.f32 %v7156, %v7157
      %v7159 = vrot.slane %v7158, 1
      %v7160 = vmax.f32 %v7158, %v7159
      %v7161 = vsel %vm6707, %v6800, -inf
      %v7162 = vrot.slane %v7161, 4
      %v7163 = vmax.f32 %v7161, %v7162
      %v7164 = vrot.slane %v7163, 2
      %v7165 = vmax.f32 %v7163, %v7164
      %v7166 = vrot.slane %v7165, 1
      %v7167 = vmax.f32 %v7165, %v7166
      %v7168 = vsel %vm6707, %v6803, -inf
      %v7169 = vrot.slane %v7168, 4
      %v7170 = vmax.f32 %v7168, %v7169
      %v7171 = vrot.slane %v7170, 2
      %v7172 = vmax.f32 %v7170, %v7171
      %v7173 = vrot.slane %v7172, 1
      %v7174 = vmax.f32 %v7172, %v7173
      %v7175 = vsel %vm6707, %v6806, -inf
      %v7176 = vrot.slane %v7175, 4
      %v7177 = vmax.f32 %v7175, %v7176
      %v7178 = vrot.slane %v7177, 2
      %v7179 = vmax.f32 %v7177, %v7178
      %v7180 = vrot.slane %v7179, 1
      %v7181 = vmax.f32 %v7179, %v7180
      %v7182 = vsel %vm6707, %v6809, -inf
      %v7183 = vrot.slane %v7182, 4
      %v7184 = vmax.f32 %v7182, %v7183
      %v7185 = vrot.slane %v7184, 2
      %v7186 = vmax.f32 %v7184, %v7185
      %v7187 = vrot.slane %v7186, 1
      %v7188 = vmax.f32 %v7186, %v7187
      %v7189 = vsel %vm6707, %v6812, -inf
      %v7190 = vrot.slane %v7189, 4
      %v7191 = vmax.f32 %v7189, %v7190
      %v7192 = vrot.slane %v7191, 2
      %v7193 = vmax.f32 %v7191, %v7192
      %v7194 = vrot.slane %v7193, 1
      %v7195 = vmax.f32 %v7193, %v7194
      %v7196 = vsel %vm6707, %v6815, -inf
      %v7197 = vrot.slane %v7196, 4
      %v7198 = vmax.f32 %v7196, %v7197
      %v7199 = vrot.slane %v7198, 2
      %v7200 = vmax.f32 %v7198, %v7199
      %v7201 = vrot.slane %v7200, 1
      %v7202 = vmax.f32 %v7200, %v7201
      %v7203 = vsel %vm6707, %v6818, -inf
      %v7204 = vrot.slane %v7203, 4
      %v7205 = vmax.f32 %v7203, %v7204
      %v7206 = vrot.slane %v7205, 2
      %v7207 = vmax.f32 %v7205, %v7206
      %v7208 = vrot.slane %v7207, 1
      %v7209 = vmax.f32 %v7207, %v7208
      %v7210 = vsel %vm6707, %v6821, -inf
      %v7211 = vrot.slane %v7210, 4
      %v7212 = vmax.f32 %v7210, %v7211
      %v7213 = vrot.slane %v7212, 2
      %v7214 = vmax.f32 %v7212, %v7213
      %v7215 = vrot.slane %v7214, 1
      %v7216 = vmax.f32 %v7214, %v7215
      %v7217 = vsel %vm6707, %v6824, -inf
      %v7218 = vrot.slane %v7217, 4
      %v7219 = vmax.f32 %v7217, %v7218
      %v7220 = vrot.slane %v7219, 2
      %v7221 = vmax.f32 %v7219, %v7220
      %v7222 = vrot.slane %v7221, 1
      %v7223 = vmax.f32 %v7221, %v7222
      %v7224 = vsel %vm6707, %v6827, -inf
      %v7225 = vrot.slane %v7224, 4
      %v7226 = vmax.f32 %v7224, %v7225
      %v7227 = vrot.slane %v7226, 2
      %v7228 = vmax.f32 %v7226, %v7227
      %v7229 = vrot.slane %v7228, 1
      %v7230 = vmax.f32 %v7228, %v7229
      %v7231 = vsel %vm6707, %v6830, -inf
      %v7232 = vrot.slane %v7231, 4
      %v7233 = vmax.f32 %v7231, %v7232
      %v7234 = vrot.slane %v7233, 2
      %v7235 = vmax.f32 %v7233, %v7234
      %v7236 = vrot.slane %v7235, 1
      %v7237 = vmax.f32 %v7235, %v7236
      %v7238 = vsel %vm6707, %v6833, -inf
      %v7239 = vrot.slane %v7238, 4
      %v7240 = vmax.f32 %v7238, %v7239
      %v7241 = vrot.slane %v7240, 2
      %v7242 = vmax.f32 %v7240, %v7241
      %v7243 = vrot.slane %v7242, 1
      %v7244 = vmax.f32 %v7242, %v7243
      %v7245 = vsel %vm6707, %v6836, -inf
      %v7246 = vrot.slane %v7245, 4
      %v7247 = vmax.f32 %v7245, %v7246
      %v7248 = vrot.slane %v7247, 2
      %v7249 = vmax.f32 %v7247, %v7248
      %v7250 = vrot.slane %v7249, 1
      %v7251 = vmax.f32 %v7249, %v7250
      %v7252 = vsel %vm6707, %v6839, -inf
      %v7253 = vrot.slane %v7252, 4
      %v7254 = vmax.f32 %v7252, %v7253
      %v7255 = vrot.slane %v7254, 2
      %v7256 = vmax.f32 %v7254, %v7255
      %v7257 = vrot.slane %v7256, 1
      %v7258 = vmax.f32 %v7256, %v7257
      %v7259 = vsel %vm6707, %v6842, -inf
      %v7260 = vrot.slane %v7259, 4
      %v7261 = vmax.f32 %v7259, %v7260
      %v7262 = vrot.slane %v7261, 2
      %v7263 = vmax.f32 %v7261, %v7262
      %v7264 = vrot.slane %v7263, 1
      %v7265 = vmax.f32 %v7263, %v7264
      %v7266 = vsel %vm6707, %v6845, -inf
      %v7267 = vrot.slane %v7266, 4
      %v7268 = vmax.f32 %v7266, %v7267
      %v7269 = vrot.slane %v7268, 2
      %v7270 = vmax.f32 %v7268, %v7269
      %v7271 = vrot.slane %v7270, 1
      %v7272 = vmax.f32 %v7270, %v7271
      %v7273 = vsel %vm6707, %v6848, -inf
      %v7274 = vrot.slane %v7273, 4
      %v7275 = vmax.f32 %v7273, %v7274
      %v7276 = vrot.slane %v7275, 2
      %v7277 = vmax.f32 %v7275, %v7276
      %v7278 = vrot.slane %v7277, 1
      %v7279 = vmax.f32 %v7277, %v7278
      %v7280 = vsel %vm6707, %v6851, -inf
      %v7281 = vrot.slane %v7280, 4
      %v7282 = vmax.f32 %v7280, %v7281
      %v7283 = vrot.slane %v7282, 2
      %v7284 = vmax.f32 %v7282, %v7283
      %v7285 = vrot.slane %v7284, 1
      %v7286 = vmax.f32 %v7284, %v7285
      %v7287 = vsel %vm6707, %v6854, -inf
      %v7288 = vrot.slane %v7287, 4
      %v7289 = vmax.f32 %v7287, %v7288
      %v7290 = vrot.slane %v7289, 2
      %v7291 = vmax.f32 %v7289, %v7290
      %v7292 = vrot.slane %v7291, 1
      %v7293 = vmax.f32 %v7291, %v7292
      %v7294 = vsel %vm6707, %v6857, -inf
      %v7295 = vrot.slane %v7294, 4
      %v7296 = vmax.f32 %v7294, %v7295
      %v7297 = vrot.slane %v7296, 2
      %v7298 = vmax.f32 %v7296, %v7297
      %v7299 = vrot.slane %v7298, 1
      %v7300 = vmax.f32 %v7298, %v7299
      %v7301 = vsel %vm6707, %v6860, -inf
      %v7302 = vrot.slane %v7301, 4
      %v7303 = vmax.f32 %v7301, %v7302
      %v7304 = vrot.slane %v7303, 2
      %v7305 = vmax.f32 %v7303, %v7304
      %v7306 = vrot.slane %v7305, 1
      %v7307 = vmax.f32 %v7305, %v7306
      %v7308 = vsel %vm6707, %v6863, -inf
      %v7309 = vrot.slane %v7308, 4
      %v7310 = vmax.f32 %v7308, %v7309
      %v7311 = vrot.slane %v7310, 2
      %v7312 = vmax.f32 %v7310, %v7311
      %v7313 = vrot.slane %v7312, 1
      %v7314 = vmax.f32 %v7312, %v7313
      %v7315 = vsel %vm6707, %v6866, -inf
      %v7316 = vrot.slane %v7315, 4
      %v7317 = vmax.f32 %v7315, %v7316
      %v7318 = vrot.slane %v7317, 2
      %v7319 = vmax.f32 %v7317, %v7318
      %v7320 = vrot.slane %v7319, 1
      %v7321 = vmax.f32 %v7319, %v7320
      %v7322 = vsel %vm6707, %v6869, -inf
      %v7323 = vrot.slane %v7322, 4
      %v7324 = vmax.f32 %v7322, %v7323
      %v7325 = vrot.slane %v7324, 2
      %v7326 = vmax.f32 %v7324, %v7325
      %v7327 = vrot.slane %v7326, 1
      %v7328 = vmax.f32 %v7326, %v7327
      %v7329 = vsel %vm6707, %v6872, -inf
      %v7330 = vrot.slane %v7329, 4
      %v7331 = vmax.f32 %v7329, %v7330
      %v7332 = vrot.slane %v7331, 2
      %v7333 = vmax.f32 %v7331, %v7332
      %v7334 = vrot.slane %v7333, 1
      %v7335 = vmax.f32 %v7333, %v7334
      %v7336 = vsel %vm6707, %v6875, -inf
      %v7337 = vrot.slane %v7336, 4
      %v7338 = vmax.f32 %v7336, %v7337
      %v7339 = vrot.slane %v7338, 2
      %v7340 = vmax.f32 %v7338, %v7339
      %v7341 = vrot.slane %v7340, 1
      %v7342 = vmax.f32 %v7340, %v7341
      %v7343 = vsel %vm6707, %v6878, -inf
      %v7344 = vrot.slane %v7343, 4
      %v7345 = vmax.f32 %v7343, %v7344
      %v7346 = vrot.slane %v7345, 2
      %v7347 = vmax.f32 %v7345, %v7346
      %v7348 = vrot.slane %v7347, 1
      %v7349 = vmax.f32 %v7347, %v7348
      %v7350 = vsel %vm6707, %v6881, -inf
      %v7351 = vrot.slane %v7350, 4
      %v7352 = vmax.f32 %v7350, %v7351
      %v7353 = vrot.slane %v7352, 2
      %v7354 = vmax.f32 %v7352, %v7353
      %v7355 = vrot.slane %v7354, 1
      %v7356 = vmax.f32 %v7354, %v7355
      %v7357 = vsel %vm6707, %v6884, -inf
      %v7358 = vrot.slane %v7357, 4
      %v7359 = vmax.f32 %v7357, %v7358
      %v7360 = vrot.slane %v7359, 2
      %v7361 = vmax.f32 %v7359, %v7360
      %v7362 = vrot.slane %v7361, 1
      %v7363 = vmax.f32 %v7361, %v7362
      %v7364 = vsel %vm6707, %v6887, -inf
      %v7365 = vrot.slane %v7364, 4
      %v7366 = vmax.f32 %v7364, %v7365
      %v7367 = vrot.slane %v7366, 2
      %v7368 = vmax.f32 %v7366, %v7367
      %v7369 = vrot.slane %v7368, 1
      %v7370 = vmax.f32 %v7368, %v7369
      %v7371 = vsel %vm6707, %v6890, -inf
      %v7372 = vrot.slane %v7371, 4
      %v7373 = vmax.f32 %v7371, %v7372
      %v7374 = vrot.slane %v7373, 2
      %v7375 = vmax.f32 %v7373, %v7374
      %v7376 = vrot.slane %v7375, 1
      %v7377 = vmax.f32 %v7375, %v7376
      %v7378 = vsel %vm6707, %v6893, -inf
      %v7379 = vrot.slane %v7378, 4
      %v7380 = vmax.f32 %v7378, %v7379
      %v7381 = vrot.slane %v7380, 2
      %v7382 = vmax.f32 %v7380, %v7381
      %v7383 = vrot.slane %v7382, 1
      %v7384 = vmax.f32 %v7382, %v7383
      %v7385 = vsel %vm6707, %v6896, -inf
      %v7386 = vrot.slane %v7385, 4
      %v7387 = vmax.f32 %v7385, %v7386
      %v7388 = vrot.slane %v7387, 2
      %v7389 = vmax.f32 %v7387, %v7388
      %v7390 = vrot.slane %v7389, 1
      %v7391 = vmax.f32 %v7389, %v7390
      %v7392 = vsel %vm6707, %v6899, -inf
      %v7393 = vrot.slane %v7392, 4
      %v7394 = vmax.f32 %v7392, %v7393
      %v7395 = vrot.slane %v7394, 2
      %v7396 = vmax.f32 %v7394, %v7395
      %v7397 = vrot.slane %v7396, 1
      %v7398 = vmax.f32 %v7396, %v7397
      %v7399 = vsel %vm6707, %v6902, -inf
      %v7400 = vrot.slane %v7399, 4
      %v7401 = vmax.f32 %v7399, %v7400
      %v7402 = vrot.slane %v7401, 2
      %v7403 = vmax.f32 %v7401, %v7402
      %v7404 = vrot.slane %v7403, 1
      %v7405 = vmax.f32 %v7403, %v7404
      %v7406 = vsel %vm6707, %v6905, -inf
      %v7407 = vrot.slane %v7406, 4
      %v7408 = vmax.f32 %v7406, %v7407
      %v7409 = vrot.slane %v7408, 2
      %v7410 = vmax.f32 %v7408, %v7409
      %v7411 = vrot.slane %v7410, 1
      %v7412 = vmax.f32 %v7410, %v7411
      %v7413 = vsel %vm6707, %v6908, -inf
      %v7414 = vrot.slane %v7413, 4
      %v7415 = vmax.f32 %v7413, %v7414
      %v7416 = vrot.slane %v7415, 2
      %v7417 = vmax.f32 %v7415, %v7416
      %v7418 = vrot.slane %v7417, 1
      %v7419 = vmax.f32 %v7417, %v7418
      %v7420 = vsel %vm6707, %v6911, -inf
      %v7421 = vrot.slane %v7420, 4
      %v7422 = vmax.f32 %v7420, %v7421
      %v7423 = vrot.slane %v7422, 2
      %v7424 = vmax.f32 %v7422, %v7423
      %v7425 = vrot.slane %v7424, 1
      %v7426 = vmax.f32 %v7424, %v7425
      %v7427 = vsel %vm6707, %v6914, -inf
      %v7428 = vrot.slane %v7427, 4
      %v7429 = vmax.f32 %v7427, %v7428
      %v7430 = vrot.slane %v7429, 2
      %v7431 = vmax.f32 %v7429, %v7430
      %v7432 = vrot.slane %v7431, 1
      %v7433 = vmax.f32 %v7431, %v7432
      %v7434 = vsel %vm6707, %v6917, -inf
      %v7435 = vrot.slane %v7434, 4
      %v7436 = vmax.f32 %v7434, %v7435
      %v7437 = vrot.slane %v7436, 2
      %v7438 = vmax.f32 %v7436, %v7437
      %v7439 = vrot.slane %v7438, 1
      %v7440 = vmax.f32 %v7438, %v7439
      %v7441 = vsel %vm6707, %v6920, -inf
      %v7442 = vrot.slane %v7441, 4
      %v7443 = vmax.f32 %v7441, %v7442
      %v7444 = vrot.slane %v7443, 2
      %v7445 = vmax.f32 %v7443, %v7444
      %v7446 = vrot.slane %v7445, 1
      %v7447 = vmax.f32 %v7445, %v7446
      %v7448 = vsel %vm6707, %v6923, -inf
      %v7449 = vrot.slane %v7448, 4
      %v7450 = vmax.f32 %v7448, %v7449
      %v7451 = vrot.slane %v7450, 2
      %v7452 = vmax.f32 %v7450, %v7451
      %v7453 = vrot.slane %v7452, 1
      %v7454 = vmax.f32 %v7452, %v7453
      %v7455 = vsel %vm6707, %v6926, -inf
      %v7456 = vrot.slane %v7455, 4
      %v7457 = vmax.f32 %v7455, %v7456
      %v7458 = vrot.slane %v7457, 2
      %v7459 = vmax.f32 %v7457, %v7458
      %v7460 = vrot.slane %v7459, 1
      %v7461 = vmax.f32 %v7459, %v7460
      %v7462 = vsel %vm6707, %v6929, -inf
      %v7463 = vrot.slane %v7462, 4
      %v7464 = vmax.f32 %v7462, %v7463
      %v7465 = vrot.slane %v7464, 2
      %v7466 = vmax.f32 %v7464, %v7465
      %v7467 = vrot.slane %v7466, 1
      %v7468 = vmax.f32 %v7466, %v7467
      %v7469 = vsel %vm6707, %v6932, -inf
      %v7470 = vrot.slane %v7469, 4
      %v7471 = vmax.f32 %v7469, %v7470
      %v7472 = vrot.slane %v7471, 2
      %v7473 = vmax.f32 %v7471, %v7472
      %v7474 = vrot.slane %v7473, 1
      %v7475 = vmax.f32 %v7473, %v7474
      %v7476 = vsel %vm6707, %v6935, -inf
      %v7477 = vrot.slane %v7476, 4
      %v7478 = vmax.f32 %v7476, %v7477
      %v7479 = vrot.slane %v7478, 2
      %v7480 = vmax.f32 %v7478, %v7479
      %v7481 = vrot.slane %v7480, 1
      %v7482 = vmax.f32 %v7480, %v7481
      %v7483 = vsel %vm6707, %v6938, -inf
      %v7484 = vrot.slane %v7483, 4
      %v7485 = vmax.f32 %v7483, %v7484
      %v7486 = vrot.slane %v7485, 2
      %v7487 = vmax.f32 %v7485, %v7486
      %v7488 = vrot.slane %v7487, 1
      %v7489 = vmax.f32 %v7487, %v7488
      %v7490 = vsel %vm6707, %v6941, -inf
      %v7491 = vrot.slane %v7490, 4
      %v7492 = vmax.f32 %v7490, %v7491
      %v7493 = vrot.slane %v7492, 2
      %v7494 = vmax.f32 %v7492, %v7493
      %v7495 = vrot.slane %v7494, 1
      %v7496 = vmax.f32 %v7494, %v7495
      %v7497 = vsel %vm6707, %v6944, -inf
      %v7498 = vrot.slane %v7497, 4
      %v7499 = vmax.f32 %v7497, %v7498
      %v7500 = vrot.slane %v7499, 2
      %v7501 = vmax.f32 %v7499, %v7500
      %v7502 = vrot.slane %v7501, 1
      %v7503 = vmax.f32 %v7501, %v7502
      %v7504 = vsel %vm6707, %v6947, -inf
      %v7505 = vrot.slane %v7504, 4
      %v7506 = vmax.f32 %v7504, %v7505
      %v7507 = vrot.slane %v7506, 2
      %v7508 = vmax.f32 %v7506, %v7507
      %v7509 = vrot.slane %v7508, 1
      %v7510 = vmax.f32 %v7508, %v7509
      %v7511 = vsel %vm6707, %v6950, -inf
      %v7512 = vrot.slane %v7511, 4
      %v7513 = vmax.f32 %v7511, %v7512
      %v7514 = vrot.slane %v7513, 2
      %v7515 = vmax.f32 %v7513, %v7514
      %v7516 = vrot.slane %v7515, 1
      %v7517 = vmax.f32 %v7515, %v7516
      %vm7599 = vcmask 1041409
      %v7600 = vsel %vm7599, %v6964, %v6957
      %vm7601 = vcmask 1042434
      %v7602 = vsel %vm7601, %v6971, %v7600
      %vm7603 = vcmask 1043459
      %v7604 = vsel %vm7603, %v6978, %v7602
      %vm7605 = vcmask 1044484
      %v7606 = vsel %vm7605, %v6985, %v7604
      %vm7607 = vcmask 1045509
      %v7608 = vsel %vm7607, %v6992, %v7606
      %vm7609 = vcmask 1046534
      %v7610 = vsel %vm7609, %v6999, %v7608
      %vm7611 = vcmask 1047559
      %v7612 = vsel %vm7611, %v7006, %v7610
      %v7613 = vsel %vm7599, %v7027, %v7020
      %v7614 = vsel %vm7601, %v7034, %v7613
      %v7615 = vsel %vm7603, %v7041, %v7614
      %v7616 = vsel %vm7605, %v7048, %v7615
      %v7617 = vsel %vm7607, %v7055, %v7616
      %v7618 = vsel %vm7609, %v7062, %v7617
      %v7619 = vsel %vm7611, %v7069, %v7618
      %v7620 = vsel %vm7599, %v7090, %v7083
      %v7621 = vsel %vm7601, %v7097, %v7620
      %v7622 = vsel %vm7603, %v7104, %v7621
      %v7623 = vsel %vm7605, %v7111, %v7622
      %v7624 = vsel %vm7607, %v7118, %v7623
      %v7625 = vsel %vm7609, %v7125, %v7624
      %v7626 = vsel %vm7611, %v7132, %v7625
      %v7627 = vsel %vm7599, %v7153, %v7146
      %v7628 = vsel %vm7601, %v7160, %v7627
      %v7629 = vsel %vm7603, %v7167, %v7628
      %v7630 = vsel %vm7605, %v7174, %v7629
      %v7631 = vsel %vm7607, %v7181, %v7630
      %v7632 = vsel %vm7609, %v7188, %v7631
      %v7633 = vsel %vm7611, %v7195, %v7632
      %v7634 = vsel %vm7599, %v7216, %v7209
      %v7635 = vsel %vm7601, %v7223, %v7634
      %v7636 = vsel %vm7603, %v7230, %v7635
      %v7637 = vsel %vm7605, %v7237, %v7636
      %v7638 = vsel %vm7607, %v7244, %v7637
      %v7639 = vsel %vm7609, %v7251, %v7638
      %v7640 = vsel %vm7611, %v7258, %v7639
      %v7641 = vsel %vm7599, %v7279, %v7272
      %v7642 = vsel %vm7601, %v7286, %v7641
      %v7643 = vsel %vm7603, %v7293, %v7642
      %v7644 = vsel %vm7605, %v7300, %v7643
      %v7645 = vsel %vm7607, %v7307, %v7644
      %v7646 = vsel %vm7609, %v7314, %v7645
      %v7647 = vsel %vm7611, %v7321, %v7646
      %v7648 = vsel %vm7599, %v7342, %v7335
      %v7649 = vsel %vm7601, %v7349, %v7648
      %v7650 = vsel %vm7603, %v7356, %v7649
      %v7651 = vsel %vm7605, %v7363, %v7650
      %v7652 = vsel %vm7607, %v7370, %v7651
      %v7653 = vsel %vm7609, %v7377, %v7652
      %v7654 = vsel %vm7611, %v7384, %v7653
      %v7655 = vsel %vm7599, %v7405, %v7398
      %v7656 = vsel %vm7601, %v7412, %v7655
      %v7657 = vsel %vm7603, %v7419, %v7656
      %v7658 = vsel %vm7605, %v7426, %v7657
      %v7659 = vsel %vm7607, %v7433, %v7658
      %v7660 = vsel %vm7609, %v7440, %v7659
      %v7661 = vsel %vm7611, %v7447, %v7660
      %v7662 = vsel %vm7599, %v7468, %v7461
      %v7663 = vsel %vm7601, %v7475, %v7662
      %v7664 = vsel %vm7603, %v7482, %v7663
      %v7665 = vsel %vm7605, %v7489, %v7664
      %v7666 = vsel %vm7607, %v7496, %v7665
      %v7667 = vsel %vm7609, %v7503, %v7666
      %v7668 = vsel %vm7611, %v7510, %v7667
      %vm7687 = vcmask 261120
      %7688 = vst.msk [vmem:[%s170] sm:$0xff] %vm7687, %v7612
      %vm7689 = vcmask 253952
      %7690 = vst.msk [vmem:[%s170 + $0x8] sm:$0x1] %vm7689, %v7013
      %7691 = vst.msk [vmem:[%s170 + $0x10] sm:$0xff] %vm7687, %v7619
      %7692 = vst.msk [vmem:[%s170 + $0x18] sm:$0x1] %vm7689, %v7076
      %7693 = vst.msk [vmem:[%s170 + $0x20] sm:$0xff] %vm7687, %v7626
      %7694 = vst.msk [vmem:[%s170 + $0x28] sm:$0x1] %vm7689, %v7139
      %7695 = vst.msk [vmem:[%s170 + $0x30] sm:$0xff] %vm7687, %v7633
      %7696 = vst.msk [vmem:[%s170 + $0x38] sm:$0x1] %vm7689, %v7202
      %7697 = vst.msk [vmem:[%s170 + $0x40] sm:$0xff] %vm7687, %v7640
      %7698 = vst.msk [vmem:[%s170 + $0x48] sm:$0x1] %vm7689, %v7265
      %7699 = vst.msk [vmem:[%s170 + $0x50] sm:$0xff] %vm7687, %v7647
      %7700 = vst.msk [vmem:[%s170 + $0x58] sm:$0x1] %vm7689, %v7328
      %7701 = vst.msk [vmem:[%s170 + $0x60] sm:$0xff] %vm7687, %v7654
      %7702 = vst.msk [vmem:[%s170 + $0x68] sm:$0x1] %vm7689, %v7391
      %7703 = vst.msk [vmem:[%s170 + $0x70] sm:$0xff] %vm7687, %v7661
      %7704 = vst.msk [vmem:[%s170 + $0x78] sm:$0x1] %vm7689, %v7454
      %7705 = vst.msk [vmem:[%s170 + $0x80] sm:$0xff] %vm7687, %v7668
      %7706 = vst.msk [vmem:[%s170 + $0x88] sm:$0x1] %vm7689, %v7517
      %p7707 = scmp.lt.s32.totalorder %s14, 1
      %s7708 = scalar_select %p7707, %s14, 1
      %s7709 = smul.addr %s7708, 18
      %s7710 = smul.addr %s7709, 8
      %s7711 = scalar_lea.vmem %s3, %s7710
      // Predicated region
      $region33: #{cnn_regression_forward.3} parent=31 // pred_check
        %p7712 = pneg %p100
      $region34: #{cnn_regression_forward.3} parent=31 // pred_check_branch
        %7714 = sbr.rel (%p7712) target = $region36
      $region35: #{cnn_regression_forward.3} parent=31 // pred_region
        _
      $region36: #{cnn_regression_forward.3} parent=31 // pred_fallthru
        _
    $region32: #{cnn_regression_forward.3} parent=5 // pred_fallthru
      _
    %p7715 = scmp.le.s32.totalorder 2, %s9
    // Predicated region
    $region37: #{cnn_regression_forward.3} parent=5 // pred_check
      %p7716 = pneg %p7715
    $region38: #{cnn_regression_forward.3} parent=5 // pred_check_branch
      %7718 = sbr.rel (%p7716) target = $region40
    $region39: #{cnn_regression_forward.3} parent=5 // pred_region
      %s7719 = ssub.s32 %s9, 2
      // Predicated region
      $region41: #{cnn_regression_forward.3} parent=39 // pred_check
        %p7720 = pneg %p106
      $region42: #{cnn_regression_forward.3} parent=39 // pred_check_branch
        %7722 = sbr.rel (%p7720) target = $region44
      $region43: #{cnn_regression_forward.3} parent=39 // pred_region
        %p7723 = scmp.lt.s32.totalorder %s15, 1
        %s7724 = scalar_select %p7723, %s15, 1
        %s7725 = smul.addr %s7724, 18
        %s7726 = smul.addr %s7725, 8
        %s7727 = scalar_lea.vmem %s3, %s7726
      $region44: #{cnn_regression_forward.3} parent=39 // pred_fallthru
        _
    $region40: #{cnn_regression_forward.3} parent=5 // pred_fallthru
      _
  $region6: #{cnn_regression_forward.3} parent=0 // loop_footer
    %s13 = sadd.s32 1, %s9
  $region7: #{cnn_regression_forward.3} parent=0 // loop_footer_branch
    %8 = sbr.rel target = $region3
  $region8: #{cnn_regression_forward.3} parent=0 // loop_exit
    _

</llo_original>
